<compile_context>
chip_gen: v7x
topology: tpu7x:2x2x1
jax: 0.10.0
libtpu: 0.0.40
codegen_flags: <defaults>
</compile_context>

<pallas_src>
import jax
import jax.numpy as jnp
from jax.experimental import pallas as pl
from jax.experimental.pallas import tpu as pltpu

_EPS = 1e-5  # nn.InstanceNorm2d default eps

# (kernel_t, kernel_f, stride_f) for the 5 encoder stages.
_LAYER_KS = [(2, 5, 2), (2, 3, 2), (2, 3, 2), (2, 3, 2), (2, 3, 2)]


def _gate_layer_kernel(w_ref, b_ref, gamma_ref, beta_ref, alpha_ref,
                       p_ref, o_ref):
    """Fused Gate_Conv + InstanceNorm2d(affine) + PReLU for one batch element.

    w_ref     : (2*Co, K)   stacked [value-conv ; gate-conv] weights, K=Ci*kt*kf
    b_ref     : (2*Co, 1)   stacked biases
    gamma_ref : (Co, 1)     InstanceNorm scale
    beta_ref  : (Co, 1)     InstanceNorm shift
    alpha_ref : (Co, 1)     PReLU slope
    p_ref     : (1, K, M)   im2col patches for this batch element, M = T*Fo
    o_ref     : (1, Co, M)  output
    """
    co = o_ref.shape[1]
    p = p_ref[0]                                                  # (K, M)

    # One MXU matmul computes both the value conv and the gate conv.
    y_all = jnp.dot(w_ref[...], p, preferred_element_type=jnp.float32)
    y_all = y_all + b_ref[...]                                    # (2*Co, M)
    y_val = y_all[:co]
    y_gate = y_all[co:]

    gate = 1.0 / (1.0 + jnp.exp(-y_gate))                         # sigmoid (EUP)
    y = y_val * gate                                              # gated conv out

    # InstanceNorm2d: per-channel stats over the full spatial extent (lanes).
    mean = jnp.mean(y, axis=1, keepdims=True)                     # (Co, 1)
    cent = y - mean
    var = jnp.mean(cent * cent, axis=1, keepdims=True)            # biased var
    z = cent * jax.lax.rsqrt(var + _EPS)
    z = z * gamma_ref[...] + beta_ref[...]

    # PReLU with a per-channel slope.
    out = jnp.where(z > 0, z, alpha_ref[...] * z)
    o_ref[0] = out.astype(o_ref.dtype)


def _im2col(x, kt, kf, sf):
    """x: (N, Ci, T, F) -> patches (N, Ci*kt*kf, T*Fo), Fo.

    Matches nn.ConstantPad2d((0, 0, 1, 0)) followed by
    Conv2d(kernel=(kt, kf), stride=(1, sf)).  Pure layout plumbing (XLA slices);
    strided lane gathers have no clean Pallas-TPU equivalent.
    """
    N, Ci, T, F = x.shape
    Fo = (F - kf) // sf + 1
    xp = jnp.pad(x, ((0, 0), (0, 0), (1, 0), (0, 0)))             # causal time pad
    taps = []
    for dt in range(kt):
        for df in range(kf):
            taps.append(xp[:, :, dt:dt + T, df:df + sf * (Fo - 1) + 1:sf])
    # (N, Ci, kt*kf, T, Fo) -> (N, Ci*kt*kf, T*Fo); tap order matches the
    # flattened PyTorch weight layout (Co, Ci, kt, kf) -> (Co, Ci*kt*kf).
    patches = jnp.stack(taps, axis=2)
    return patches.reshape(N, Ci * kt * kf, T * Fo), Fo


def gate_conv_in_prelu(x, layer_params, kt, kf, sf):
    """One encoder stage: Gate_Conv -> InstanceNorm2d(affine) -> PReLU."""
    wc, bc, wg, bg, gamma, beta, alpha = layer_params
    N, Ci, T, _ = x.shape
    Co = wc.shape[0]
    P, Fo = _im2col(x, kt, kf, sf)
    K = Ci * kt * kf
    M = T * Fo

    w_all = jnp.concatenate([wc.reshape(Co, K), wg.reshape(Co, K)], axis=0)
    b_all = jnp.concatenate([bc, bg], axis=0).reshape(2 * Co, 1)

    out_flat = pl.pallas_call(
        _gate_layer_kernel,
        out_shape=jax.ShapeDtypeStruct((N, Co, M), jnp.float32),
        grid=(N,),
        in_specs=[
            pl.BlockSpec((2 * Co, K), lambda n: (0, 0)),          # stacked weights
            pl.BlockSpec((2 * Co, 1), lambda n: (0, 0)),          # stacked biases
            pl.BlockSpec((Co, 1), lambda n: (0, 0)),              # gamma
            pl.BlockSpec((Co, 1), lambda n: (0, 0)),              # beta
            pl.BlockSpec((Co, 1), lambda n: (0, 0)),              # prelu slope
            pl.BlockSpec((1, K, M), lambda n: (n, 0, 0)),         # patches
        ],
        out_specs=pl.BlockSpec((1, Co, M), lambda n: (n, 0, 0)),
        compiler_params=pltpu.CompilerParams(
            dimension_semantics=("parallel",)),
    )(w_all, b_all, gamma.reshape(Co, 1), beta.reshape(Co, 1),
      alpha.reshape(Co, 1), P)

    return out_flat.reshape(N, Co, T, Fo)


def encoder_forward(x, params):
    """Pallas implementation of Encoder.forward: returns (x, x_list)."""
    x_list = []
    for (kt, kf, sf), lp in zip(_LAYER_KS, params):
        x = gate_conv_in_prelu(x, lp, kt, kf, sf)
        x_list.append(x)
    return x, x_list


def init_encoder_params(key):
    """Random parameters matching the PyTorch module's shapes/initialization."""
    params = []
    specs = [(1, 64, 2, 5)] + [(64, 64, 2, 3)] * 4
    for ci, co, kt, kf in specs:
        key, k1, k2, k3, k4 = jax.random.split(key, 5)
        bound = 1.0 / float(jnp.sqrt(ci * kt * kf))
        wc = jax.random.uniform(k1, (co, ci, kt, kf), jnp.float32, -bound, bound)
        bc = jax.random.uniform(k2, (co,), jnp.float32, -bound, bound)
        wg = jax.random.uniform(k3, (co, ci, kt, kf), jnp.float32, -bound, bound)
        bg = jax.random.uniform(k4, (co,), jnp.float32, -bound, bound)
        gamma = jnp.ones((co,), jnp.float32)       # InstanceNorm2d affine init
        beta = jnp.zeros((co,), jnp.float32)
        alpha = jnp.full((co,), 0.25, jnp.float32)  # PReLU default init
        params.append((wc, bc, wg, bg, gamma, beta, alpha))
    return params


def _encoder_reference(x, params):
    """Pure-JAX reference mirroring the PyTorch module (for validation)."""
    dn = ('NCHW', 'OIHW', 'NCHW')
    x_list = []
    for (kt, kf, sf), (wc, bc, wg, bg, gamma, beta, alpha) in zip(_LAYER_KS,
                                                                  params):
        xp = jnp.pad(x, ((0, 0), (0, 0), (1, 0), (0, 0)))
        c = jax.lax.conv_general_dilated(xp, wc, (1, sf), 'VALID',
                                         dimension_numbers=dn)
        c = c + bc[None, :, None, None]
        g = jax.lax.conv_general_dilated(xp, wg, (1, sf), 'VALID',
                                         dimension_numbers=dn)
        g = g + bg[None, :, None, None]
        y = c * jax.nn.sigmoid(g)
        mean = y.mean(axis=(2, 3), keepdims=True)
        var = y.var(axis=(2, 3), keepdims=True)
        z = (y - mean) * jax.lax.rsqrt(var + _EPS)
        z = z * gamma[None, :, None, None] + beta[None, :, None, None]
        x = jnp.where(z > 0, z, alpha[None, :, None, None] * z)
        x_list.append(x)
    return x, x_list


if __name__ == "__main__":
    key = jax.random.PRNGKey(0)
    key, kx = jax.random.split(key)

    # Small but shape-consistent input: the 5 stride-2 frequency stages need
    # enough frequency bins; 161 is the canonical CTSNet bin count.
    N, T, F = 2, 8, 161
    x = jax.random.normal(kx, (N, 1, T, F), dtype=jnp.float32)
    params = init_encoder_params(key)

    out, out_list = jax.block_until_ready(jax.jit(encoder_forward)(x, params))

    ref, ref_list = _encoder_reference(x, params)
    assert out.shape == ref.shape, (out.shape, ref.shape)
    for o, r in zip(out_list, ref_list):
        assert o.shape == r.shape, (o.shape, r.shape)
        assert jnp.allclose(o, r, atol=2e-3, rtol=2e-3), \
            float(jnp.max(jnp.abs(o - r)))
    assert jnp.allclose(out, ref, atol=2e-3, rtol=2e-3)

    print("KERNEL_OK")
</pallas_src>

<mosaic_0001>
module attributes {stable_mosaic.version = 11 : i64} {
  func.func @_gate_layer_kernel(%arg0: i32, %arg1: memref<128x10xf32, #tpu.memory_space<vmem>>, %arg2: memref<128x1xf32, #tpu.memory_space<vmem>>, %arg3: memref<64x1xf32, #tpu.memory_space<vmem>>, %arg4: memref<64x1xf32, #tpu.memory_space<vmem>>, %arg5: memref<64x1xf32, #tpu.memory_space<vmem>>, %arg6: memref<1x10x632xf32, #tpu.memory_space<vmem>>, %arg7: memref<1x64x632xf32, #tpu.memory_space<vmem>>) attributes {dimension_semantics = [#tpu.dimension_semantics<parallel>], iteration_bounds = array<i64: 2>, scalar_prefetch = 0 : i64, scratch_operands = 0 : i64, tpu.core_type = #tpu.core_type<tc>, window_params = [{pipeline_mode = #tpu.pipeline_mode<synchronous>, transform_indices = @transform_0, window_bounds = array<i64: 128, 10>}, {pipeline_mode = #tpu.pipeline_mode<synchronous>, transform_indices = @transform_1, window_bounds = array<i64: 128, 1>}, {pipeline_mode = #tpu.pipeline_mode<synchronous>, transform_indices = @transform_2, window_bounds = array<i64: 64, 1>}, {pipeline_mode = #tpu.pipeline_mode<synchronous>, transform_indices = @transform_3, window_bounds = array<i64: 64, 1>}, {pipeline_mode = #tpu.pipeline_mode<synchronous>, transform_indices = @transform_4, window_bounds = array<i64: 64, 1>}, {transform_indices = @transform_5, window_bounds = array<i64: 1, 10, 632>}, {transform_indices = @transform_6, window_bounds = array<i64: 1, 64, 632>}]} {
    %c0 = arith.constant 0 : index
    %c0_0 = arith.constant 0 : index
    %c0_1 = arith.constant 0 : index
    %0 = vector.load %arg6[%c0, %c0_0, %c0_1] : memref<1x10x632xf32, #tpu.memory_space<vmem>>, vector<1x10x632xf32>
    %1 = vector.shape_cast %0 : vector<1x10x632xf32> to vector<10x632xf32>
    %c0_2 = arith.constant 0 : index
    %c0_3 = arith.constant 0 : index
    %2 = vector.load %arg1[%c0_2, %c0_3] : memref<128x10xf32, #tpu.memory_space<vmem>>, vector<128x10xf32>
    %cst = arith.constant dense<0.000000e+00> : vector<128x632xf32>
    %3 = tpu.matmul %2, %1, %cst {dimension_numbers = #tpu.dot_dimension_numbers<[1], [0], [0], [1], [0, 0, 1, 1], [], []>} : vector<128x10xf32>, vector<10x632xf32>, vector<128x632xf32> -> vector<128x632xf32>
    %c0_4 = arith.constant 0 : index
    %c0_5 = arith.constant 0 : index
    %4 = vector.load %arg2[%c0_4, %c0_5] : memref<128x1xf32, #tpu.memory_space<vmem>>, vector<128x1xf32>
    %5 = vector.broadcast %4 : vector<128x1xf32> to vector<128x632xf32>
    %6 = arith.addf %3, %5 : vector<128x632xf32>
    %7 = vector.extract_strided_slice %6 {offsets = [0, 0], sizes = [64, 632], strides = [1, 1]} : vector<128x632xf32> to vector<64x632xf32>
    %8 = vector.extract_strided_slice %6 {offsets = [64, 0], sizes = [64, 632], strides = [1, 1]} : vector<128x632xf32> to vector<64x632xf32>
    %cst_6 = arith.constant 0.000000e+00 : f32
    %9 = vector.broadcast %cst_6 : f32 to vector<64x632xf32>
    %10 = arith.subf %9, %8 : vector<64x632xf32>
    %11 = math.exp %10 : vector<64x632xf32>
    %cst_7 = arith.constant 1.000000e+00 : f32
    %12 = vector.broadcast %cst_7 : f32 to vector<64x632xf32>
    %13 = arith.addf %12, %11 : vector<64x632xf32>
    %cst_8 = arith.constant 1.000000e+00 : f32
    %14 = vector.broadcast %cst_8 : f32 to vector<64x632xf32>
    %15 = arith.divf %14, %13 : vector<64x632xf32>
    %16 = arith.mulf %7, %15 : vector<64x632xf32>
    %cst_9 = arith.constant dense<0.000000e+00> : vector<64xf32>
    %17 = vector.multi_reduction <add>, %16, %cst_9 [1] : vector<64x632xf32> to vector<64xf32>
    %18 = vector.shape_cast %17 : vector<64xf32> to vector<64x1xf32>
    %cst_10 = arith.constant 6.320000e+02 : f32
    %19 = vector.broadcast %cst_10 : f32 to vector<64x1xf32>
    %20 = arith.divf %18, %19 : vector<64x1xf32>
    %21 = vector.broadcast %20 : vector<64x1xf32> to vector<64x632xf32>
    %22 = arith.subf %16, %21 : vector<64x632xf32>
    %23 = arith.mulf %22, %22 : vector<64x632xf32>
    %cst_11 = arith.constant dense<0.000000e+00> : vector<64xf32>
    %24 = vector.multi_reduction <add>, %23, %cst_11 [1] : vector<64x632xf32> to vector<64xf32>
    %25 = vector.shape_cast %24 : vector<64xf32> to vector<64x1xf32>
    %cst_12 = arith.constant 6.320000e+02 : f32
    %26 = vector.broadcast %cst_12 : f32 to vector<64x1xf32>
    %27 = arith.divf %25, %26 : vector<64x1xf32>
    %cst_13 = arith.constant 9.99999974E-6 : f32
    %28 = vector.broadcast %cst_13 : f32 to vector<64x1xf32>
    %29 = arith.addf %27, %28 : vector<64x1xf32>
    %30 = math.rsqrt %29 : vector<64x1xf32>
    %31 = vector.broadcast %30 : vector<64x1xf32> to vector<64x632xf32>
    %32 = arith.mulf %22, %31 : vector<64x632xf32>
    %c0_14 = arith.constant 0 : index
    %c0_15 = arith.constant 0 : index
    %33 = vector.load %arg3[%c0_14, %c0_15] : memref<64x1xf32, #tpu.memory_space<vmem>>, vector<64x1xf32>
    %34 = vector.broadcast %33 : vector<64x1xf32> to vector<64x632xf32>
    %35 = arith.mulf %32, %34 : vector<64x632xf32>
    %c0_16 = arith.constant 0 : index
    %c0_17 = arith.constant 0 : index
    %36 = vector.load %arg4[%c0_16, %c0_17] : memref<64x1xf32, #tpu.memory_space<vmem>>, vector<64x1xf32>
    %37 = vector.broadcast %36 : vector<64x1xf32> to vector<64x632xf32>
    %38 = arith.addf %35, %37 : vector<64x632xf32>
    %cst_18 = arith.constant 0.000000e+00 : f32
    %39 = vector.broadcast %cst_18 : f32 to vector<64x632xf32>
    %40 = arith.cmpf ogt, %38, %39 : vector<64x632xf32>
    %c0_19 = arith.constant 0 : index
    %c0_20 = arith.constant 0 : index
    %41 = vector.load %arg5[%c0_19, %c0_20] : memref<64x1xf32, #tpu.memory_space<vmem>>, vector<64x1xf32>
    %42 = vector.broadcast %41 : vector<64x1xf32> to vector<64x632xf32>
    %43 = arith.mulf %42, %38 : vector<64x632xf32>
    %44 = arith.select %40, %38, %43 : vector<64x632xi1>, vector<64x632xf32>
    %c0_21 = arith.constant 0 : index
    %c0_22 = arith.constant 0 : index
    %c0_23 = arith.constant 0 : index
    %45 = vector.load %arg7[%c0_21, %c0_22, %c0_23] : memref<1x64x632xf32, #tpu.memory_space<vmem>>, vector<1x64x632xf32>
    %46 = vector.shape_cast %45 : vector<1x64x632xf32> to vector<64x632xf32>
    %47 = vector.shape_cast %44 : vector<64x632xf32> to vector<1x64x632xf32>
    tpu.vector_store %arg7[%c0_21, %c0_22, %c0_23], %47 {strides = array<i32>} : memref<1x64x632xf32, #tpu.memory_space<vmem>>, vector<1x64x632xf32>,
    return
  }
  func.func @transform_0(%arg0: i32) -> (i32, i32) {
    %c0_i32 = arith.constant 0 : i32
    %c0_i32_0 = arith.constant 0 : i32
    %c0_i32_1 = arith.constant 0 : i32
    return %c0_i32, %c0_i32_0 : i32, i32
  }
  func.func @transform_1(%arg0: i32) -> (i32, i32) {
    %c0_i32 = arith.constant 0 : i32
    %c0_i32_0 = arith.constant 0 : i32
    %c0_i32_1 = arith.constant 0 : i32
    return %c0_i32, %c0_i32_0 : i32, i32
  }
  func.func @transform_2(%arg0: i32) -> (i32, i32) {
    %c0_i32 = arith.constant 0 : i32
    %c0_i32_0 = arith.constant 0 : i32
    %c0_i32_1 = arith.constant 0 : i32
    return %c0_i32, %c0_i32_0 : i32, i32
  }
  func.func @transform_3(%arg0: i32) -> (i32, i32) {
    %c0_i32 = arith.constant 0 : i32
    %c0_i32_0 = arith.constant 0 : i32
    %c0_i32_1 = arith.constant 0 : i32
    return %c0_i32, %c0_i32_0 : i32, i32
  }
  func.func @transform_4(%arg0: i32) -> (i32, i32) {
    %c0_i32 = arith.constant 0 : i32
    %c0_i32_0 = arith.constant 0 : i32
    %c0_i32_1 = arith.constant 0 : i32
    return %c0_i32, %c0_i32_0 : i32, i32
  }
  func.func @transform_5(%arg0: i32) -> (i32, i32, i32) {
    %c0_i32 = arith.constant 0 : i32
    %c0_i32_0 = arith.constant 0 : i32
    %c0_i32_1 = arith.constant 0 : i32
    return %arg0, %c0_i32, %c0_i32_0 : i32, i32, i32
  }
  func.func @transform_6(%arg0: i32) -> (i32, i32, i32) {
    %c0_i32 = arith.constant 0 : i32
    %c0_i32_0 = arith.constant 0 : i32
    %c0_i32_1 = arith.constant 0 : i32
    return %arg0, %c0_i32, %c0_i32_0 : i32, i32, i32
  }
}

module attributes {stable_mosaic.version = 11 : i64} {
  func.func @_gate_layer_kernel(%arg0: i32, %arg1: memref<128x384xf32, #tpu.memory_space<vmem>>, %arg2: memref<128x1xf32, #tpu.memory_space<vmem>>, %arg3: memref<64x1xf32, #tpu.memory_space<vmem>>, %arg4: memref<64x1xf32, #tpu.memory_space<vmem>>, %arg5: memref<64x1xf32, #tpu.memory_space<vmem>>, %arg6: memref<1x384x312xf32, #tpu.memory_space<vmem>>, %arg7: memref<1x64x312xf32, #tpu.memory_space<vmem>>) attributes {dimension_semantics = [#tpu.dimension_semantics<parallel>], iteration_bounds = array<i64: 2>, scalar_prefetch = 0 : i64, scratch_operands = 0 : i64, tpu.core_type = #tpu.core_type<tc>, window_params = [{pipeline_mode = #tpu.pipeline_mode<synchronous>, transform_indices = @transform_0, window_bounds = array<i64: 128, 384>}, {pipeline_mode = #tpu.pipeline_mode<synchronous>, transform_indices = @transform_1, window_bounds = array<i64: 128, 1>}, {pipeline_mode = #tpu.pipeline_mode<synchronous>, transform_indices = @transform_2, window_bounds = array<i64: 64, 1>}, {pipeline_mode = #tpu.pipeline_mode<synchronous>, transform_indices = @transform_3, window_bounds = array<i64: 64, 1>}, {pipeline_mode = #tpu.pipeline_mode<synchronous>, transform_indices = @transform_4, window_bounds = array<i64: 64, 1>}, {transform_indices = @transform_5, window_bounds = array<i64: 1, 384, 312>}, {transform_indices = @transform_6, window_bounds = array<i64: 1, 64, 312>}]} {
    %c0 = arith.constant 0 : index
    %c0_0 = arith.constant 0 : index
    %c0_1 = arith.constant 0 : index
    %0 = vector.load %arg6[%c0, %c0_0, %c0_1] : memref<1x384x312xf32, #tpu.memory_space<vmem>>, vector<1x384x312xf32>
    %1 = vector.shape_cast %0 : vector<1x384x312xf32> to vector<384x312xf32>
    %c0_2 = arith.constant 0 : index
    %c0_3 = arith.constant 0 : index
    %2 = vector.load %arg1[%c0_2, %c0_3] : memref<128x384xf32, #tpu.memory_space<vmem>>, vector<128x384xf32>
    %cst = arith.constant dense<0.000000e+00> : vector<128x312xf32>
    %3 = tpu.matmul %2, %1, %cst {dimension_numbers = #tpu.dot_dimension_numbers<[1], [0], [0], [1], [0, 0, 1, 1], [], []>} : vector<128x384xf32>, vector<384x312xf32>, vector<128x312xf32> -> vector<128x312xf32>
    %c0_4 = arith.constant 0 : index
    %c0_5 = arith.constant 0 : index
    %4 = vector.load %arg2[%c0_4, %c0_5] : memref<128x1xf32, #tpu.memory_space<vmem>>, vector<128x1xf32>
    %5 = vector.broadcast %4 : vector<128x1xf32> to vector<128x312xf32>
    %6 = arith.addf %3, %5 : vector<128x312xf32>
    %7 = vector.extract_strided_slice %6 {offsets = [0, 0], sizes = [64, 312], strides = [1, 1]} : vector<128x312xf32> to vector<64x312xf32>
    %8 = vector.extract_strided_slice %6 {offsets = [64, 0], sizes = [64, 312], strides = [1, 1]} : vector<128x312xf32> to vector<64x312xf32>
    %cst_6 = arith.constant 0.000000e+00 : f32
    %9 = vector.broadcast %cst_6 : f32 to vector<64x312xf32>
    %10 = arith.subf %9, %8 : vector<64x312xf32>
    %11 = math.exp %10 : vector<64x312xf32>
    %cst_7 = arith.constant 1.000000e+00 : f32
    %12 = vector.broadcast %cst_7 : f32 to vector<64x312xf32>
    %13 = arith.addf %12, %11 : vector<64x312xf32>
    %cst_8 = arith.constant 1.000000e+00 : f32
    %14 = vector.broadcast %cst_8 : f32 to vector<64x312xf32>
    %15 = arith.divf %14, %13 : vector<64x312xf32>
    %16 = arith.mulf %7, %15 : vector<64x312xf32>
    %cst_9 = arith.constant dense<0.000000e+00> : vector<64xf32>
    %17 = vector.multi_reduction <add>, %16, %cst_9 [1] : vector<64x312xf32> to vector<64xf32>
    %18 = vector.shape_cast %17 : vector<64xf32> to vector<64x1xf32>
    %cst_10 = arith.constant 3.120000e+02 : f32
    %19 = vector.broadcast %cst_10 : f32 to vector<64x1xf32>
    %20 = arith.divf %18, %19 : vector<64x1xf32>
    %21 = vector.broadcast %20 : vector<64x1xf32> to vector<64x312xf32>
    %22 = arith.subf %16, %21 : vector<64x312xf32>
    %23 = arith.mulf %22, %22 : vector<64x312xf32>
    %cst_11 = arith.constant dense<0.000000e+00> : vector<64xf32>
    %24 = vector.multi_reduction <add>, %23, %cst_11 [1] : vector<64x312xf32> to vector<64xf32>
    %25 = vector.shape_cast %24 : vector<64xf32> to vector<64x1xf32>
    %cst_12 = arith.constant 3.120000e+02 : f32
    %26 = vector.broadcast %cst_12 : f32 to vector<64x1xf32>
    %27 = arith.divf %25, %26 : vector<64x1xf32>
    %cst_13 = arith.constant 9.99999974E-6 : f32
    %28 = vector.broadcast %cst_13 : f32 to vector<64x1xf32>
    %29 = arith.addf %27, %28 : vector<64x1xf32>
    %30 = math.rsqrt %29 : vector<64x1xf32>
    %31 = vector.broadcast %30 : vector<64x1xf32> to vector<64x312xf32>
    %32 = arith.mulf %22, %31 : vector<64x312xf32>
    %c0_14 = arith.constant 0 : index
    %c0_15 = arith.constant 0 : index
    %33 = vector.load %arg3[%c0_14, %c0_15] : memref<64x1xf32, #tpu.memory_space<vmem>>, vector<64x1xf32>
    %34 = vector.broadcast %33 : vector<64x1xf32> to vector<64x312xf32>
    %35 = arith.mulf %32, %34 : vector<64x312xf32>
    %c0_16 = arith.constant 0 : index
    %c0_17 = arith.constant 0 : index
    %36 = vector.load %arg4[%c0_16, %c0_17] : memref<64x1xf32, #tpu.memory_space<vmem>>, vector<64x1xf32>
    %37 = vector.broadcast %36 : vector<64x1xf32> to vector<64x312xf32>
    %38 = arith.addf %35, %37 : vector<64x312xf32>
    %cst_18 = arith.constant 0.000000e+00 : f32
    %39 = vector.broadcast %cst_18 : f32 to vector<64x312xf32>
    %40 = arith.cmpf ogt, %38, %39 : vector<64x312xf32>
    %c0_19 = arith.constant 0 : index
    %c0_20 = arith.constant 0 : index
    %41 = vector.load %arg5[%c0_19, %c0_20] : memref<64x1xf32, #tpu.memory_space<vmem>>, vector<64x1xf32>
    %42 = vector.broadcast %41 : vector<64x1xf32> to vector<64x312xf32>
    %43 = arith.mulf %42, %38 : vector<64x312xf32>
    %44 = arith.select %40, %38, %43 : vector<64x312xi1>, vector<64x312xf32>
    %c0_21 = arith.constant 0 : index
    %c0_22 = arith.constant 0 : index
    %c0_23 = arith.constant 0 : index
    %45 = vector.load %arg7[%c0_21, %c0_22, %c0_23] : memref<1x64x312xf32, #tpu.memory_space<vmem>>, vector<1x64x312xf32>
    %46 = vector.shape_cast %45 : vector<1x64x312xf32> to vector<64x312xf32>
    %47 = vector.shape_cast %44 : vector<64x312xf32> to vector<1x64x312xf32>
    tpu.vector_store %arg7[%c0_21, %c0_22, %c0_23], %47 {strides = array<i32>} : memref<1x64x312xf32, #tpu.memory_space<vmem>>, vector<1x64x312xf32>,
    return
  }
  func.func @transform_0(%arg0: i32) -> (i32, i32) {
    %c0_i32 = arith.constant 0 : i32
    %c0_i32_0 = arith.constant 0 : i32
    %c0_i32_1 = arith.constant 0 : i32
    return %c0_i32, %c0_i32_0 : i32, i32
  }
  func.func @transform_1(%arg0: i32) -> (i32, i32) {
    %c0_i32 = arith.constant 0 : i32
    %c0_i32_0 = arith.constant 0 : i32
    %c0_i32_1 = arith.constant 0 : i32
    return %c0_i32, %c0_i32_0 : i32, i32
  }
  func.func @transform_2(%arg0: i32) -> (i32, i32) {
    %c0_i32 = arith.constant 0 : i32
    %c0_i32_0 = arith.constant 0 : i32
    %c0_i32_1 = arith.constant 0 : i32
    return %c0_i32, %c0_i32_0 : i32, i32
  }
  func.func @transform_3(%arg0: i32) -> (i32, i32) {
    %c0_i32 = arith.constant 0 : i32
    %c0_i32_0 = arith.constant 0 : i32
    %c0_i32_1 = arith.constant 0 : i32
    return %c0_i32, %c0_i32_0 : i32, i32
  }
  func.func @transform_4(%arg0: i32) -> (i32, i32) {
    %c0_i32 = arith.constant 0 : i32
    %c0_i32_0 = arith.constant 0 : i32
    %c0_i32_1 = arith.constant 0 : i32
    return %c0_i32, %c0_i32_0 : i32, i32
  }
  func.func @transform_5(%arg0: i32) -> (i32, i32, i32) {
    %c0_i32 = arith.constant 0 : i32
    %c0_i32_0 = arith.constant 0 : i32
    %c0_i32_1 = arith.constant 0 : i32
    return %arg0, %c0_i32, %c0_i32_0 : i32, i32, i32
  }
  func.func @transform_6(%arg0: i32) -> (i32, i32, i32) {
    %c0_i32 = arith.constant 0 : i32
    %c0_i32_0 = arith.constant 0 : i32
    %c0_i32_1 = arith.constant 0 : i32
    return %arg0, %c0_i32, %c0_i32_0 : i32, i32, i32
  }
}

module attributes {stable_mosaic.version = 11 : i64} {
  func.func @_gate_layer_kernel(%arg0: i32, %arg1: memref<128x384xf32, #tpu.memory_space<vmem>>, %arg2: memref<128x1xf32, #tpu.memory_space<vmem>>, %arg3: memref<64x1xf32, #tpu.memory_space<vmem>>, %arg4: memref<64x1xf32, #tpu.memory_space<vmem>>, %arg5: memref<64x1xf32, #tpu.memory_space<vmem>>, %arg6: memref<1x384x152xf32, #tpu.memory_space<vmem>>, %arg7: memref<1x64x152xf32, #tpu.memory_space<vmem>>) attributes {dimension_semantics = [#tpu.dimension_semantics<parallel>], iteration_bounds = array<i64: 2>, scalar_prefetch = 0 : i64, scratch_operands = 0 : i64, tpu.core_type = #tpu.core_type<tc>, window_params = [{pipeline_mode = #tpu.pipeline_mode<synchronous>, transform_indices = @transform_0, window_bounds = array<i64: 128, 384>}, {pipeline_mode = #tpu.pipeline_mode<synchronous>, transform_indices = @transform_1, window_bounds = array<i64: 128, 1>}, {pipeline_mode = #tpu.pipeline_mode<synchronous>, transform_indices = @transform_2, window_bounds = array<i64: 64, 1>}, {pipeline_mode = #tpu.pipeline_mode<synchronous>, transform_indices = @transform_3, window_bounds = array<i64: 64, 1>}, {pipeline_mode = #tpu.pipeline_mode<synchronous>, transform_indices = @transform_4, window_bounds = array<i64: 64, 1>}, {transform_indices = @transform_5, window_bounds = array<i64: 1, 384, 152>}, {transform_indices = @transform_6, window_bounds = array<i64: 1, 64, 152>}]} {
    %c0 = arith.constant 0 : index
    %c0_0 = arith.constant 0 : index
    %c0_1 = arith.constant 0 : index
    %0 = vector.load %arg6[%c0, %c0_0, %c0_1] : memref<1x384x152xf32, #tpu.memory_space<vmem>>, vector<1x384x152xf32>
    %1 = vector.shape_cast %0 : vector<1x384x152xf32> to vector<384x152xf32>
    %c0_2 = arith.constant 0 : index
    %c0_3 = arith.constant 0 : index
    %2 = vector.load %arg1[%c0_2, %c0_3] : memref<128x384xf32, #tpu.memory_space<vmem>>, vector<128x384xf32>
    %cst = arith.constant dense<0.000000e+00> : vector<128x152xf32>
    %3 = tpu.matmul %2, %1, %cst {dimension_numbers = #tpu.dot_dimension_numbers<[1], [0], [0], [1], [0, 0, 1, 1], [], []>} : vector<128x384xf32>, vector<384x152xf32>, vector<128x152xf32> -> vector<128x152xf32>
    %c0_4 = arith.constant 0 : index
    %c0_5 = arith.constant 0 : index
    %4 = vector.load %arg2[%c0_4, %c0_5] : memref<128x1xf32, #tpu.memory_space<vmem>>, vector<128x1xf32>
    %5 = vector.broadcast %4 : vector<128x1xf32> to vector<128x152xf32>
    %6 = arith.addf %3, %5 : vector<128x152xf32>
    %7 = vector.extract_strided_slice %6 {offsets = [0, 0], sizes = [64, 152], strides = [1, 1]} : vector<128x152xf32> to vector<64x152xf32>
    %8 = vector.extract_strided_slice %6 {offsets = [64, 0], sizes = [64, 152], strides = [1, 1]} : vector<128x152xf32> to vector<64x152xf32>
    %cst_6 = arith.constant 0.000000e+00 : f32
    %9 = vector.broadcast %cst_6 : f32 to vector<64x152xf32>
    %10 = arith.subf %9, %8 : vector<64x152xf32>
    %11 = math.exp %10 : vector<64x152xf32>
    %cst_7 = arith.constant 1.000000e+00 : f32
    %12 = vector.broadcast %cst_7 : f32 to vector<64x152xf32>
    %13 = arith.addf %12, %11 : vector<64x152xf32>
    %cst_8 = arith.constant 1.000000e+00 : f32
    %14 = vector.broadcast %cst_8 : f32 to vector<64x152xf32>
    %15 = arith.divf %14, %13 : vector<64x152xf32>
    %16 = arith.mulf %7, %15 : vector<64x152xf32>
    %cst_9 = arith.constant dense<0.000000e+00> : vector<64xf32>
    %17 = vector.multi_reduction <add>, %16, %cst_9 [1] : vector<64x152xf32> to vector<64xf32>
    %18 = vector.shape_cast %17 : vector<64xf32> to vector<64x1xf32>
    %cst_10 = arith.constant 1.520000e+02 : f32
    %19 = vector.broadcast %cst_10 : f32 to vector<64x1xf32>
    %20 = arith.divf %18, %19 : vector<64x1xf32>
    %21 = vector.broadcast %20 : vector<64x1xf32> to vector<64x152xf32>
    %22 = arith.subf %16, %21 : vector<64x152xf32>
    %23 = arith.mulf %22, %22 : vector<64x152xf32>
    %cst_11 = arith.constant dense<0.000000e+00> : vector<64xf32>
    %24 = vector.multi_reduction <add>, %23, %cst_11 [1] : vector<64x152xf32> to vector<64xf32>
    %25 = vector.shape_cast %24 : vector<64xf32> to vector<64x1xf32>
    %cst_12 = arith.constant 1.520000e+02 : f32
    %26 = vector.broadcast %cst_12 : f32 to vector<64x1xf32>
    %27 = arith.divf %25, %26 : vector<64x1xf32>
    %cst_13 = arith.constant 9.99999974E-6 : f32
    %28 = vector.broadcast %cst_13 : f32 to vector<64x1xf32>
    %29 = arith.addf %27, %28 : vector<64x1xf32>
    %30 = math.rsqrt %29 : vector<64x1xf32>
    %31 = vector.broadcast %30 : vector<64x1xf32> to vector<64x152xf32>
    %32 = arith.mulf %22, %31 : vector<64x152xf32>
    %c0_14 = arith.constant 0 : index
    %c0_15 = arith.constant 0 : index
    %33 = vector.load %arg3[%c0_14, %c0_15] : memref<64x1xf32, #tpu.memory_space<vmem>>, vector<64x1xf32>
    %34 = vector.broadcast %33 : vector<64x1xf32> to vector<64x152xf32>
    %35 = arith.mulf %32, %34 : vector<64x152xf32>
    %c0_16 = arith.constant 0 : index
    %c0_17 = arith.constant 0 : index
    %36 = vector.load %arg4[%c0_16, %c0_17] : memref<64x1xf32, #tpu.memory_space<vmem>>, vector<64x1xf32>
    %37 = vector.broadcast %36 : vector<64x1xf32> to vector<64x152xf32>
    %38 = arith.addf %35, %37 : vector<64x152xf32>
    %cst_18 = arith.constant 0.000000e+00 : f32
    %39 = vector.broadcast %cst_18 : f32 to vector<64x152xf32>
    %40 = arith.cmpf ogt, %38, %39 : vector<64x152xf32>
    %c0_19 = arith.constant 0 : index
    %c0_20 = arith.constant 0 : index
    %41 = vector.load %arg5[%c0_19, %c0_20] : memref<64x1xf32, #tpu.memory_space<vmem>>, vector<64x1xf32>
    %42 = vector.broadcast %41 : vector<64x1xf32> to vector<64x152xf32>
    %43 = arith.mulf %42, %38 : vector<64x152xf32>
    %44 = arith.select %40, %38, %43 : vector<64x152xi1>, vector<64x152xf32>
    %c0_21 = arith.constant 0 : index
    %c0_22 = arith.constant 0 : index
    %c0_23 = arith.constant 0 : index
    %45 = vector.load %arg7[%c0_21, %c0_22, %c0_23] : memref<1x64x152xf32, #tpu.memory_space<vmem>>, vector<1x64x152xf32>
    %46 = vector.shape_cast %45 : vector<1x64x152xf32> to vector<64x152xf32>
    %47 = vector.shape_cast %44 : vector<64x152xf32> to vector<1x64x152xf32>
    tpu.vector_store %arg7[%c0_21, %c0_22, %c0_23], %47 {strides = array<i32>} : memref<1x64x152xf32, #tpu.memory_space<vmem>>, vector<1x64x152xf32>,
    return
  }
  func.func @transform_0(%arg0: i32) -> (i32, i32) {
    %c0_i32 = arith.constant 0 : i32
    %c0_i32_0 = arith.constant 0 : i32
    %c0_i32_1 = arith.constant 0 : i32
    return %c0_i32, %c0_i32_0 : i32, i32
  }
  func.func @transform_1(%arg0: i32) -> (i32, i32) {
    %c0_i32 = arith.constant 0 : i32
    %c0_i32_0 = arith.constant 0 : i32
    %c0_i32_1 = arith.constant 0 : i32
    return %c0_i32, %c0_i32_0 : i32, i32
  }
  func.func @transform_2(%arg0: i32) -> (i32, i32) {
    %c0_i32 = arith.constant 0 : i32
    %c0_i32_0 = arith.constant 0 : i32
    %c0_i32_1 = arith.constant 0 : i32
    return %c0_i32, %c0_i32_0 : i32, i32
  }
  func.func @transform_3(%arg0: i32) -> (i32, i32) {
    %c0_i32 = arith.constant 0 : i32
    %c0_i32_0 = arith.constant 0 : i32
    %c0_i32_1 = arith.constant 0 : i32
    return %c0_i32, %c0_i32_0 : i32, i32
  }
  func.func @transform_4(%arg0: i32) -> (i32, i32) {
    %c0_i32 = arith.constant 0 : i32
    %c0_i32_0 = arith.constant 0 : i32
    %c0_i32_1 = arith.constant 0 : i32
    return %c0_i32, %c0_i32_0 : i32, i32
  }
  func.func @transform_5(%arg0: i32) -> (i32, i32, i32) {
    %c0_i32 = arith.constant 0 : i32
    %c0_i32_0 = arith.constant 0 : i32
    %c0_i32_1 = arith.constant 0 : i32
    return %arg0, %c0_i32, %c0_i32_0 : i32, i32, i32
  }
  func.func @transform_6(%arg0: i32) -> (i32, i32, i32) {
    %c0_i32 = arith.constant 0 : i32
    %c0_i32_0 = arith.constant 0 : i32
    %c0_i32_1 = arith.constant 0 : i32
    return %arg0, %c0_i32, %c0_i32_0 : i32, i32, i32
  }
}

module attributes {stable_mosaic.version = 11 : i64} {
  func.func @_gate_layer_kernel(%arg0: i32, %arg1: memref<128x384xf32, #tpu.memory_space<vmem>>, %arg2: memref<128x1xf32, #tpu.memory_space<vmem>>, %arg3: memref<64x1xf32, #tpu.memory_space<vmem>>, %arg4: memref<64x1xf32, #tpu.memory_space<vmem>>, %arg5: memref<64x1xf32, #tpu.memory_space<vmem>>, %arg6: memref<1x384x72xf32, #tpu.memory_space<vmem>>, %arg7: memref<1x64x72xf32, #tpu.memory_space<vmem>>) attributes {dimension_semantics = [#tpu.dimension_semantics<parallel>], iteration_bounds = array<i64: 2>, scalar_prefetch = 0 : i64, scratch_operands = 0 : i64, tpu.core_type = #tpu.core_type<tc>, window_params = [{pipeline_mode = #tpu.pipeline_mode<synchronous>, transform_indices = @transform_0, window_bounds = array<i64: 128, 384>}, {pipeline_mode = #tpu.pipeline_mode<synchronous>, transform_indices = @transform_1, window_bounds = array<i64: 128, 1>}, {pipeline_mode = #tpu.pipeline_mode<synchronous>, transform_indices = @transform_2, window_bounds = array<i64: 64, 1>}, {pipeline_mode = #tpu.pipeline_mode<synchronous>, transform_indices = @transform_3, window_bounds = array<i64: 64, 1>}, {pipeline_mode = #tpu.pipeline_mode<synchronous>, transform_indices = @transform_4, window_bounds = array<i64: 64, 1>}, {transform_indices = @transform_5, window_bounds = array<i64: 1, 384, 72>}, {transform_indices = @transform_6, window_bounds = array<i64: 1, 64, 72>}]} {
    %c0 = arith.constant 0 : index
    %c0_0 = arith.constant 0 : index
    %c0_1 = arith.constant 0 : index
    %0 = vector.load %arg6[%c0, %c0_0, %c0_1] : memref<1x384x72xf32, #tpu.memory_space<vmem>>, vector<1x384x72xf32>
    %1 = vector.shape_cast %0 : vector<1x384x72xf32> to vector<384x72xf32>
    %c0_2 = arith.constant 0 : index
    %c0_3 = arith.constant 0 : index
    %2 = vector.load %arg1[%c0_2, %c0_3] : memref<128x384xf32, #tpu.memory_space<vmem>>, vector<128x384xf32>
    %cst = arith.constant dense<0.000000e+00> : vector<128x72xf32>
    %3 = tpu.matmul %2, %1, %cst {dimension_numbers = #tpu.dot_dimension_numbers<[1], [0], [0], [1], [0, 0, 1, 1], [], []>} : vector<128x384xf32>, vector<384x72xf32>, vector<128x72xf32> -> vector<128x72xf32>
    %c0_4 = arith.constant 0 : index
    %c0_5 = arith.constant 0 : index
    %4 = vector.load %arg2[%c0_4, %c0_5] : memref<128x1xf32, #tpu.memory_space<vmem>>, vector<128x1xf32>
    %5 = vector.broadcast %4 : vector<128x1xf32> to vector<128x72xf32>
    %6 = arith.addf %3, %5 : vector<128x72xf32>
    %7 = vector.extract_strided_slice %6 {offsets = [0, 0], sizes = [64, 72], strides = [1, 1]} : vector<128x72xf32> to vector<64x72xf32>
    %8 = vector.extract_strided_slice %6 {offsets = [64, 0], sizes = [64, 72], strides = [1, 1]} : vector<128x72xf32> to vector<64x72xf32>
    %cst_6 = arith.constant 0.000000e+00 : f32
    %9 = vector.broadcast %cst_6 : f32 to vector<64x72xf32>
    %10 = arith.subf %9, %8 : vector<64x72xf32>
    %11 = math.exp %10 : vector<64x72xf32>
    %cst_7 = arith.constant 1.000000e+00 : f32
    %12 = vector.broadcast %cst_7 : f32 to vector<64x72xf32>
    %13 = arith.addf %12, %11 : vector<64x72xf32>
    %cst_8 = arith.constant 1.000000e+00 : f32
    %14 = vector.broadcast %cst_8 : f32 to vector<64x72xf32>
    %15 = arith.divf %14, %13 : vector<64x72xf32>
    %16 = arith.mulf %7, %15 : vector<64x72xf32>
    %cst_9 = arith.constant dense<0.000000e+00> : vector<64xf32>
    %17 = vector.multi_reduction <add>, %16, %cst_9 [1] : vector<64x72xf32> to vector<64xf32>
    %18 = vector.shape_cast %17 : vector<64xf32> to vector<64x1xf32>
    %cst_10 = arith.constant 7.200000e+01 : f32
    %19 = vector.broadcast %cst_10 : f32 to vector<64x1xf32>
    %20 = arith.divf %18, %19 : vector<64x1xf32>
    %21 = vector.broadcast %20 : vector<64x1xf32> to vector<64x72xf32>
    %22 = arith.subf %16, %21 : vector<64x72xf32>
    %23 = arith.mulf %22, %22 : vector<64x72xf32>
    %cst_11 = arith.constant dense<0.000000e+00> : vector<64xf32>
    %24 = vector.multi_reduction <add>, %23, %cst_11 [1] : vector<64x72xf32> to vector<64xf32>
    %25 = vector.shape_cast %24 : vector<64xf32> to vector<64x1xf32>
    %cst_12 = arith.constant 7.200000e+01 : f32
    %26 = vector.broadcast %cst_12 : f32 to vector<64x1xf32>
    %27 = arith.divf %25, %26 : vector<64x1xf32>
    %cst_13 = arith.constant 9.99999974E-6 : f32
    %28 = vector.broadcast %cst_13 : f32 to vector<64x1xf32>
    %29 = arith.addf %27, %28 : vector<64x1xf32>
    %30 = math.rsqrt %29 : vector<64x1xf32>
    %31 = vector.broadcast %30 : vector<64x1xf32> to vector<64x72xf32>
    %32 = arith.mulf %22, %31 : vector<64x72xf32>
    %c0_14 = arith.constant 0 : index
    %c0_15 = arith.constant 0 : index
    %33 = vector.load %arg3[%c0_14, %c0_15] : memref<64x1xf32, #tpu.memory_space<vmem>>, vector<64x1xf32>
    %34 = vector.broadcast %33 : vector<64x1xf32> to vector<64x72xf32>
    %35 = arith.mulf %32, %34 : vector<64x72xf32>
    %c0_16 = arith.constant 0 : index
    %c0_17 = arith.constant 0 : index
    %36 = vector.load %arg4[%c0_16, %c0_17] : memref<64x1xf32, #tpu.memory_space<vmem>>, vector<64x1xf32>
    %37 = vector.broadcast %36 : vector<64x1xf32> to vector<64x72xf32>
    %38 = arith.addf %35, %37 : vector<64x72xf32>
    %cst_18 = arith.constant 0.000000e+00 : f32
    %39 = vector.broadcast %cst_18 : f32 to vector<64x72xf32>
    %40 = arith.cmpf ogt, %38, %39 : vector<64x72xf32>
    %c0_19 = arith.constant 0 : index
    %c0_20 = arith.constant 0 : index
    %41 = vector.load %arg5[%c0_19, %c0_20] : memref<64x1xf32, #tpu.memory_space<vmem>>, vector<64x1xf32>
    %42 = vector.broadcast %41 : vector<64x1xf32> to vector<64x72xf32>
    %43 = arith.mulf %42, %38 : vector<64x72xf32>
    %44 = arith.select %40, %38, %43 : vector<64x72xi1>, vector<64x72xf32>
    %c0_21 = arith.constant 0 : index
    %c0_22 = arith.constant 0 : index
    %c0_23 = arith.constant 0 : index
    %45 = vector.load %arg7[%c0_21, %c0_22, %c0_23] : memref<1x64x72xf32, #tpu.memory_space<vmem>>, vector<1x64x72xf32>
    %46 = vector.shape_cast %45 : vector<1x64x72xf32> to vector<64x72xf32>
    %47 = vector.shape_cast %44 : vector<64x72xf32> to vector<1x64x72xf32>
    tpu.vector_store %arg7[%c0_21, %c0_22, %c0_23], %47 {strides = array<i32>} : memref<1x64x72xf32, #tpu.memory_space<vmem>>, vector<1x64x72xf32>,
    return
  }
  func.func @transform_0(%arg0: i32) -> (i32, i32) {
    %c0_i32 = arith.constant 0 : i32
    %c0_i32_0 = arith.constant 0 : i32
    %c0_i32_1 = arith.constant 0 : i32
    return %c0_i32, %c0_i32_0 : i32, i32
  }
  func.func @transform_1(%arg0: i32) -> (i32, i32) {
    %c0_i32 = arith.constant 0 : i32
    %c0_i32_0 = arith.constant 0 : i32
    %c0_i32_1 = arith.constant 0 : i32
    return %c0_i32, %c0_i32_0 : i32, i32
  }
  func.func @transform_2(%arg0: i32) -> (i32, i32) {
    %c0_i32 = arith.constant 0 : i32
    %c0_i32_0 = arith.constant 0 : i32
    %c0_i32_1 = arith.constant 0 : i32
    return %c0_i32, %c0_i32_0 : i32, i32
  }
  func.func @transform_3(%arg0: i32) -> (i32, i32) {
    %c0_i32 = arith.constant 0 : i32
    %c0_i32_0 = arith.constant 0 : i32
    %c0_i32_1 = arith.constant 0 : i32
    return %c0_i32, %c0_i32_0 : i32, i32
  }
  func.func @transform_4(%arg0: i32) -> (i32, i32) {
    %c0_i32 = arith.constant 0 : i32
    %c0_i32_0 = arith.constant 0 : i32
    %c0_i32_1 = arith.constant 0 : i32
    return %c0_i32, %c0_i32_0 : i32, i32
  }
  func.func @transform_5(%arg0: i32) -> (i32, i32, i32) {
    %c0_i32 = arith.constant 0 : i32
    %c0_i32_0 = arith.constant 0 : i32
    %c0_i32_1 = arith.constant 0 : i32
    return %arg0, %c0_i32, %c0_i32_0 : i32, i32, i32
  }
  func.func @transform_6(%arg0: i32) -> (i32, i32, i32) {
    %c0_i32 = arith.constant 0 : i32
    %c0_i32_0 = arith.constant 0 : i32
    %c0_i32_1 = arith.constant 0 : i32
    return %arg0, %c0_i32, %c0_i32_0 : i32, i32, i32
  }
}

module attributes {stable_mosaic.version = 11 : i64} {
  func.func @_gate_layer_kernel(%arg0: i32, %arg1: memref<128x384xf32, #tpu.memory_space<vmem>>, %arg2: memref<128x1xf32, #tpu.memory_space<vmem>>, %arg3: memref<64x1xf32, #tpu.memory_space<vmem>>, %arg4: memref<64x1xf32, #tpu.memory_space<vmem>>, %arg5: memref<64x1xf32, #tpu.memory_space<vmem>>, %arg6: memref<1x384x32xf32, #tpu.memory_space<vmem>>, %arg7: memref<1x64x32xf32, #tpu.memory_space<vmem>>) attributes {dimension_semantics = [#tpu.dimension_semantics<parallel>], iteration_bounds = array<i64: 2>, scalar_prefetch = 0 : i64, scratch_operands = 0 : i64, tpu.core_type = #tpu.core_type<tc>, window_params = [{pipeline_mode = #tpu.pipeline_mode<synchronous>, transform_indices = @transform_0, window_bounds = array<i64: 128, 384>}, {pipeline_mode = #tpu.pipeline_mode<synchronous>, transform_indices = @transform_1, window_bounds = array<i64: 128, 1>}, {pipeline_mode = #tpu.pipeline_mode<synchronous>, transform_indices = @transform_2, window_bounds = array<i64: 64, 1>}, {pipeline_mode = #tpu.pipeline_mode<synchronous>, transform_indices = @transform_3, window_bounds = array<i64: 64, 1>}, {pipeline_mode = #tpu.pipeline_mode<synchronous>, transform_indices = @transform_4, window_bounds = array<i64: 64, 1>}, {transform_indices = @transform_5, window_bounds = array<i64: 1, 384, 32>}, {transform_indices = @transform_6, window_bounds = array<i64: 1, 64, 32>}]} {
    %c0 = arith.constant 0 : index
    %c0_0 = arith.constant 0 : index
    %c0_1 = arith.constant 0 : index
    %0 = vector.load %arg6[%c0, %c0_0, %c0_1] : memref<1x384x32xf32, #tpu.memory_space<vmem>>, vector<1x384x32xf32>
    %1 = vector.shape_cast %0 : vector<1x384x32xf32> to vector<384x32xf32>
    %c0_2 = arith.constant 0 : index
    %c0_3 = arith.constant 0 : index
    %2 = vector.load %arg1[%c0_2, %c0_3] : memref<128x384xf32, #tpu.memory_space<vmem>>, vector<128x384xf32>
    %cst = arith.constant dense<0.000000e+00> : vector<128x32xf32>
    %3 = tpu.matmul %2, %1, %cst {dimension_numbers = #tpu.dot_dimension_numbers<[1], [0], [0], [1], [0, 0, 1, 1], [], []>} : vector<128x384xf32>, vector<384x32xf32>, vector<128x32xf32> -> vector<128x32xf32>
    %c0_4 = arith.constant 0 : index
    %c0_5 = arith.constant 0 : index
    %4 = vector.load %arg2[%c0_4, %c0_5] : memref<128x1xf32, #tpu.memory_space<vmem>>, vector<128x1xf32>
    %5 = vector.broadcast %4 : vector<128x1xf32> to vector<128x32xf32>
    %6 = arith.addf %3, %5 : vector<128x32xf32>
    %7 = vector.extract_strided_slice %6 {offsets = [0, 0], sizes = [64, 32], strides = [1, 1]} : vector<128x32xf32> to vector<64x32xf32>
    %8 = vector.extract_strided_slice %6 {offsets = [64, 0], sizes = [64, 32], strides = [1, 1]} : vector<128x32xf32> to vector<64x32xf32>
    %cst_6 = arith.constant 0.000000e+00 : f32
    %9 = vector.broadcast %cst_6 : f32 to vector<64x32xf32>
    %10 = arith.subf %9, %8 : vector<64x32xf32>
    %11 = math.exp %10 : vector<64x32xf32>
    %cst_7 = arith.constant 1.000000e+00 : f32
    %12 = vector.broadcast %cst_7 : f32 to vector<64x32xf32>
    %13 = arith.addf %12, %11 : vector<64x32xf32>
    %cst_8 = arith.constant 1.000000e+00 : f32
    %14 = vector.broadcast %cst_8 : f32 to vector<64x32xf32>
    %15 = arith.divf %14, %13 : vector<64x32xf32>
    %16 = arith.mulf %7, %15 : vector<64x32xf32>
    %cst_9 = arith.constant dense<0.000000e+00> : vector<64xf32>
    %17 = vector.multi_reduction <add>, %16, %cst_9 [1] : vector<64x32xf32> to vector<64xf32>
    %18 = vector.shape_cast %17 : vector<64xf32> to vector<64x1xf32>
    %cst_10 = arith.constant 3.200000e+01 : f32
    %19 = vector.broadcast %cst_10 : f32 to vector<64x1xf32>
    %20 = arith.divf %18, %19 : vector<64x1xf32>
    %21 = vector.broadcast %20 : vector<64x1xf32> to vector<64x32xf32>
    %22 = arith.subf %16, %21 : vector<64x32xf32>
    %23 = arith.mulf %22, %22 : vector<64x32xf32>
    %cst_11 = arith.constant dense<0.000000e+00> : vector<64xf32>
    %24 = vector.multi_reduction <add>, %23, %cst_11 [1] : vector<64x32xf32> to vector<64xf32>
    %25 = vector.shape_cast %24 : vector<64xf32> to vector<64x1xf32>
    %cst_12 = arith.constant 3.200000e+01 : f32
    %26 = vector.broadcast %cst_12 : f32 to vector<64x1xf32>
    %27 = arith.divf %25, %26 : vector<64x1xf32>
    %cst_13 = arith.constant 9.99999974E-6 : f32
    %28 = vector.broadcast %cst_13 : f32 to vector<64x1xf32>
    %29 = arith.addf %27, %28 : vector<64x1xf32>
    %30 = math.rsqrt %29 : vector<64x1xf32>
    %31 = vector.broadcast %30 : vector<64x1xf32> to vector<64x32xf32>
    %32 = arith.mulf %22, %31 : vector<64x32xf32>
    %c0_14 = arith.constant 0 : index
    %c0_15 = arith.constant 0 : index
    %33 = vector.load %arg3[%c0_14, %c0_15] : memref<64x1xf32, #tpu.memory_space<vmem>>, vector<64x1xf32>
    %34 = vector.broadcast %33 : vector<64x1xf32> to vector<64x32xf32>
    %35 = arith.mulf %32, %34 : vector<64x32xf32>
    %c0_16 = arith.constant 0 : index
    %c0_17 = arith.constant 0 : index
    %36 = vector.load %arg4[%c0_16, %c0_17] : memref<64x1xf32, #tpu.memory_space<vmem>>, vector<64x1xf32>
    %37 = vector.broadcast %36 : vector<64x1xf32> to vector<64x32xf32>
    %38 = arith.addf %35, %37 : vector<64x32xf32>
    %cst_18 = arith.constant 0.000000e+00 : f32
    %39 = vector.broadcast %cst_18 : f32 to vector<64x32xf32>
    %40 = arith.cmpf ogt, %38, %39 : vector<64x32xf32>
    %c0_19 = arith.constant 0 : index
    %c0_20 = arith.constant 0 : index
    %41 = vector.load %arg5[%c0_19, %c0_20] : memref<64x1xf32, #tpu.memory_space<vmem>>, vector<64x1xf32>
    %42 = vector.broadcast %41 : vector<64x1xf32> to vector<64x32xf32>
    %43 = arith.mulf %42, %38 : vector<64x32xf32>
    %44 = arith.select %40, %38, %43 : vector<64x32xi1>, vector<64x32xf32>
    %c0_21 = arith.constant 0 : index
    %c0_22 = arith.constant 0 : index
    %c0_23 = arith.constant 0 : index
    %45 = vector.load %arg7[%c0_21, %c0_22, %c0_23] : memref<1x64x32xf32, #tpu.memory_space<vmem>>, vector<1x64x32xf32>
    %46 = vector.shape_cast %45 : vector<1x64x32xf32> to vector<64x32xf32>
    %47 = vector.shape_cast %44 : vector<64x32xf32> to vector<1x64x32xf32>
    tpu.vector_store %arg7[%c0_21, %c0_22, %c0_23], %47 {strides = array<i32>} : memref<1x64x32xf32, #tpu.memory_space<vmem>>, vector<1x64x32xf32>,
    return
  }
  func.func @transform_0(%arg0: i32) -> (i32, i32) {
    %c0_i32 = arith.constant 0 : i32
    %c0_i32_0 = arith.constant 0 : i32
    %c0_i32_1 = arith.constant 0 : i32
    return %c0_i32, %c0_i32_0 : i32, i32
  }
  func.func @transform_1(%arg0: i32) -> (i32, i32) {
    %c0_i32 = arith.constant 0 : i32
    %c0_i32_0 = arith.constant 0 : i32
    %c0_i32_1 = arith.constant 0 : i32
    return %c0_i32, %c0_i32_0 : i32, i32
  }
  func.func @transform_2(%arg0: i32) -> (i32, i32) {
    %c0_i32 = arith.constant 0 : i32
    %c0_i32_0 = arith.constant 0 : i32
    %c0_i32_1 = arith.constant 0 : i32
    return %c0_i32, %c0_i32_0 : i32, i32
  }
  func.func @transform_3(%arg0: i32) -> (i32, i32) {
    %c0_i32 = arith.constant 0 : i32
    %c0_i32_0 = arith.constant 0 : i32
    %c0_i32_1 = arith.constant 0 : i32
    return %c0_i32, %c0_i32_0 : i32, i32
  }
  func.func @transform_4(%arg0: i32) -> (i32, i32) {
    %c0_i32 = arith.constant 0 : i32
    %c0_i32_0 = arith.constant 0 : i32
    %c0_i32_1 = arith.constant 0 : i32
    return %c0_i32, %c0_i32_0 : i32, i32
  }
  func.func @transform_5(%arg0: i32) -> (i32, i32, i32) {
    %c0_i32 = arith.constant 0 : i32
    %c0_i32_0 = arith.constant 0 : i32
    %c0_i32_1 = arith.constant 0 : i32
    return %arg0, %c0_i32, %c0_i32_0 : i32, i32, i32
  }
  func.func @transform_6(%arg0: i32) -> (i32, i32, i32) {
    %c0_i32 = arith.constant 0 : i32
    %c0_i32_0 = arith.constant 0 : i32
    %c0_i32_1 = arith.constant 0 : i32
    return %arg0, %c0_i32, %c0_i32_0 : i32, i32, i32
  }
}

</mosaic_0001>

<llo_original>
// kernel: encoder_forward.5
$region0: #{encoder_forward.5}
  #allocation0 [shape = 'u32[]', space=smem, size = 0x4, offset = 0x4, fixed_abs, tag = 'smem constant byte address 0x4 - core index']
  #allocation1 [shape = 'u32[144,128]{1,0:T(1,128)}', space=vmem, size = 0x12000, scoped, tag = 'internal scratch']
  %s0 = inlined_call_operand.vmem [shape: f32[128,10], index: 0, kind: input, shape index: {}]
  %s1 = inlined_call_operand.vmem [shape: f32[128,1], index: 1, kind: input, shape index: {}]
  %s2 = inlined_call_operand.vmem [shape: f32[64,1], index: 2, kind: input, shape index: {}]
  %s3 = inlined_call_operand.vmem [shape: f32[64,1], index: 3, kind: input, shape index: {}]
  %s4 = inlined_call_operand.vmem [shape: f32[64,1], index: 4, kind: input, shape index: {}]
  %s5 = inlined_call_operand.vmem [shape: f32[2,10,632], index: 5, kind: input, shape index: {}]
  %s6 = inlined_call_operand.vmem [shape: f32[2,64,632], index: 6, kind: output, shape index: {}]
  %s7 = sld [smem:[#allocation0]]
  $region57: #{encoder_forward.5} parent=0
    _
  %s9 = ssub.s32 1, %s7
  %s10 = scalar_select 0, %s9, %s7
  loop: start=0, step=1, limit=4
  $region2: #{encoder_forward.5} parent=0 // loop_pre_header
    _
  $region3: #{encoder_forward.5} parent=0 // loop_header
    %s12 = sphi 0, %s16
    %p13 = scmp.ge.s32.totalorder %s12, 4
    %s20 = sphi 0, %s20
    %s22 = sphi 0, %s20
    %s23 = sphi 0, %s22
    %s37 = sphi 0, %s23
    %s41 = sphi 0, %s41
    %s43 = sphi 0, %s41
    %s44 = sphi 0, %s43
    %s58 = sphi 0, %s44
    %s62 = sphi 0, %s62
    %s64 = sphi 0, %s62
    %s65 = sphi 0, %s64
    %s79 = sphi 0, %s65
    %s83 = sphi 0, %s83
    %s85 = sphi 0, %s83
    %s86 = sphi 0, %s85
    %s100 = sphi 0, %s86
    %s104 = sphi 0, %s104
    %s106 = sphi 0, %s104
    %s107 = sphi 0, %s106
    %s121 = sphi 0, %s107
    %s127 = sphi 0, %s129
    %s130 = sphi 0, %s127
    %s131 = sphi 0, %s130
    %s147 = sphi 0, %s131
    %s153 = sphi 0, %s155
    %s156 = sphi 0, %s153
    %s157 = sphi 0, %s156
    %s173 = sphi 0, %s157
  $region4: #{encoder_forward.5} parent=0 // loop_header_branch
    %15 = sbr.rel (%p13) target = $region8
  $region5: #{encoder_forward.5} parent=0 // loop_body
    %s17 = ssub.s32 %s12, 1
    %s18 = ssub.s32 %s12, 2
    %s19 = sadd.s32 %s12, 1
    %s21 = sadd.s32 %s20, 1
    %p24 = scmp.eq.s32.totalorder %s12, 1
    %p25 = scmp.ne.s32.totalorder %s20, %s22
    %p26 = scmp.eq.s32.totalorder %s12, 0
    %p27 = por %p25, %p26
    %p28 = scmp.ne.s32.totalorder %s20, %s22
    %p29 = scmp.eq.s32.totalorder %s17, 1
    %p30 = por %p28, %p29
    %p31 = scmp.ne.s32.totalorder %s22, %s23
    %p32 = scmp.eq.s32.totalorder %s17, 0
    %p33 = por %p31, %p32
    %p34 = scmp.ne.s32.totalorder %s22, %s23
    %p35 = scmp.eq.s32.totalorder %s18, 1
    %p36 = por %p34, %p35
    %p38 = scmp.ne.s32.totalorder %s23, %s37
    %p39 = scmp.eq.s32.totalorder %s18, 0
    %p40 = por %p38, %p39
    %s42 = sadd.s32 %s41, 1
    %p45 = scmp.eq.s32.totalorder %s12, 1
    %p46 = scmp.ne.s32.totalorder %s41, %s43
    %p47 = scmp.eq.s32.totalorder %s12, 0
    %p48 = por %p46, %p47
    %p49 = scmp.ne.s32.totalorder %s41, %s43
    %p50 = scmp.eq.s32.totalorder %s17, 1
    %p51 = por %p49, %p50
    %p52 = scmp.ne.s32.totalorder %s43, %s44
    %p53 = scmp.eq.s32.totalorder %s17, 0
    %p54 = por %p52, %p53
    %p55 = scmp.ne.s32.totalorder %s43, %s44
    %p56 = scmp.eq.s32.totalorder %s18, 1
    %p57 = por %p55, %p56
    %p59 = scmp.ne.s32.totalorder %s44, %s58
    %p60 = scmp.eq.s32.totalorder %s18, 0
    %p61 = por %p59, %p60
    %s63 = sadd.s32 %s62, 1
    %p66 = scmp.eq.s32.totalorder %s12, 1
    %p67 = scmp.ne.s32.totalorder %s62, %s64
    %p68 = scmp.eq.s32.totalorder %s12, 0
    %p69 = por %p67, %p68
    %p70 = scmp.ne.s32.totalorder %s62, %s64
    %p71 = scmp.eq.s32.totalorder %s17, 1
    %p72 = por %p70, %p71
    %p73 = scmp.ne.s32.totalorder %s64, %s65
    %p74 = scmp.eq.s32.totalorder %s17, 0
    %p75 = por %p73, %p74
    %p76 = scmp.ne.s32.totalorder %s64, %s65
    %p77 = scmp.eq.s32.totalorder %s18, 1
    %p78 = por %p76, %p77
    %p80 = scmp.ne.s32.totalorder %s65, %s79
    %p81 = scmp.eq.s32.totalorder %s18, 0
    %p82 = por %p80, %p81
    %s84 = sadd.s32 %s83, 1
    %p87 = scmp.eq.s32.totalorder %s12, 1
    %p88 = scmp.ne.s32.totalorder %s83, %s85
    %p89 = scmp.eq.s32.totalorder %s12, 0
    %p90 = por %p88, %p89
    %p91 = scmp.ne.s32.totalorder %s83, %s85
    %p92 = scmp.eq.s32.totalorder %s17, 1
    %p93 = por %p91, %p92
    %p94 = scmp.ne.s32.totalorder %s85, %s86
    %p95 = scmp.eq.s32.totalorder %s17, 0
    %p96 = por %p94, %p95
    %p97 = scmp.ne.s32.totalorder %s85, %s86
    %p98 = scmp.eq.s32.totalorder %s18, 1
    %p99 = por %p97, %p98
    %p101 = scmp.ne.s32.totalorder %s86, %s100
    %p102 = scmp.eq.s32.totalorder %s18, 0
    %p103 = por %p101, %p102
    %s105 = sadd.s32 %s104, 1
    %p108 = scmp.eq.s32.totalorder %s12, 1
    %p109 = scmp.ne.s32.totalorder %s104, %s106
    %p110 = scmp.eq.s32.totalorder %s12, 0
    %p111 = por %p109, %p110
    %p112 = scmp.ne.s32.totalorder %s104, %s106
    %p113 = scmp.eq.s32.totalorder %s17, 1
    %p114 = por %p112, %p113
    %p115 = scmp.ne.s32.totalorder %s106, %s107
    %p116 = scmp.eq.s32.totalorder %s17, 0
    %p117 = por %p115, %p116
    %p118 = scmp.ne.s32.totalorder %s106, %s107
    %p119 = scmp.eq.s32.totalorder %s18, 1
    %p120 = por %p118, %p119
    %p122 = scmp.ne.s32.totalorder %s107, %s121
    %p123 = scmp.eq.s32.totalorder %s18, 0
    %p124 = por %p122, %p123
    %s125 = ssub.s32 %s12, %s19
    %p126 = scmp.eq.s32.totalorder %s125, 0
    %s128 = sadd.s32 %s127, 1
    %s129 = scalar_select %p126, %s127, %s128
    %p132 = pneg %p126
    %p133 = scmp.eq.s32.totalorder %s12, 1
    %p134 = por %p132, %p133
    %p135 = scmp.ne.s32.totalorder %s127, %s130
    %p136 = scmp.eq.s32.totalorder %s12, 0
    %p137 = por %p135, %p136
    %p138 = scmp.ne.s32.totalorder %s127, %s130
    %p139 = scmp.eq.s32.totalorder %s17, 1
    %p140 = por %p138, %p139
    %p141 = scmp.ne.s32.totalorder %s130, %s131
    %p142 = scmp.eq.s32.totalorder %s17, 0
    %p143 = por %p141, %p142
    %p144 = scmp.ne.s32.totalorder %s130, %s131
    %p145 = scmp.eq.s32.totalorder %s18, 1
    %p146 = por %p144, %p145
    %p148 = scmp.ne.s32.totalorder %s131, %s147
    %p149 = scmp.eq.s32.totalorder %s18, 0
    %p150 = por %p148, %p149
    %s151 = ssub.s32 %s12, %s19
    %p152 = scmp.eq.s32.totalorder %s151, 0
    %s154 = sadd.s32 %s153, 1
    %s155 = scalar_select %p152, %s153, %s154
    %p158 = pneg %p152
    %p159 = scmp.eq.s32.totalorder %s12, 1
    %p160 = por %p158, %p159
    %p161 = scmp.ne.s32.totalorder %s153, %s156
    %p162 = scmp.eq.s32.totalorder %s12, 0
    %p163 = por %p161, %p162
    %p164 = scmp.ne.s32.totalorder %s153, %s156
    %p165 = scmp.eq.s32.totalorder %s17, 1
    %p166 = por %p164, %p165
    %p167 = scmp.ne.s32.totalorder %s156, %s157
    %p168 = scmp.eq.s32.totalorder %s17, 0
    %p169 = por %p167, %p168
    %p170 = scmp.ne.s32.totalorder %s156, %s157
    %p171 = scmp.eq.s32.totalorder %s18, 1
    %p172 = por %p170, %p171
    %p174 = scmp.ne.s32.totalorder %s157, %s173
    %p175 = scmp.eq.s32.totalorder %s18, 0
    %p176 = por %p174, %p175
    %p177 = scmp.le.s32.totalorder 1, %s12
    %p178 = scmp.lt.s32.totalorder %s12, 3
    %p179 = pnand %p177, %p178
    %p180 = pneg %p179
    // Predicated region
    $region9: #{encoder_forward.5} parent=5 // pred_check
      _
    $region10: #{encoder_forward.5} parent=5 // pred_check_branch
      %182 = sbr.rel (%p179) target = $region12
    $region11: #{encoder_forward.5} parent=5 // pred_region
      %s183 = ssub.s32 %s12, 1
      // Predicated region
      $region13: #{encoder_forward.5} parent=11 // pred_check
        %p184 = pneg %p33
      $region14: #{encoder_forward.5} parent=11 // pred_check_branch
        %186 = sbr.rel (%p184) target = $region16
      $region15: #{encoder_forward.5} parent=11 // pred_region
        _
      $region16: #{encoder_forward.5} parent=11 // pred_fallthru
        _
      // Predicated region
      $region17: #{encoder_forward.5} parent=11 // pred_check
        %p187 = pneg %p54
      $region18: #{encoder_forward.5} parent=11 // pred_check_branch
        %189 = sbr.rel (%p187) target = $region20
      $region19: #{encoder_forward.5} parent=11 // pred_region
        _
      $region20: #{encoder_forward.5} parent=11 // pred_fallthru
        _
      // Predicated region
      $region21: #{encoder_forward.5} parent=11 // pred_check
        %p190 = pneg %p75
      $region22: #{encoder_forward.5} parent=11 // pred_check_branch
        %192 = sbr.rel (%p190) target = $region24
      $region23: #{encoder_forward.5} parent=11 // pred_region
        _
      $region24: #{encoder_forward.5} parent=11 // pred_fallthru
        _
      // Predicated region
      $region25: #{encoder_forward.5} parent=11 // pred_check
        %p193 = pneg %p96
      $region26: #{encoder_forward.5} parent=11 // pred_check_branch
        %195 = sbr.rel (%p193) target = $region28
      $region27: #{encoder_forward.5} parent=11 // pred_region
        _
      $region28: #{encoder_forward.5} parent=11 // pred_fallthru
        _
      // Predicated region
      $region29: #{encoder_forward.5} parent=11 // pred_check
        %p196 = pneg %p117
      $region30: #{encoder_forward.5} parent=11 // pred_check_branch
        %198 = sbr.rel (%p196) target = $region32
      $region31: #{encoder_forward.5} parent=11 // pred_region
        _
      $region32: #{encoder_forward.5} parent=11 // pred_fallthru
        _
    $region12: #{encoder_forward.5} parent=5 // pred_fallthru
      _
    %p199 = scmp.lt.s32.totalorder %s12, 2
    // Predicated region
    $region33: #{encoder_forward.5} parent=5 // pred_check
      %p200 = pneg %p199
    $region34: #{encoder_forward.5} parent=5 // pred_check_branch
      %202 = sbr.rel (%p200) target = $region36
    $region35: #{encoder_forward.5} parent=5 // pred_region
      // Predicated region
      $region37: #{encoder_forward.5} parent=35 // pred_check
        %p203 = pneg %p137
      $region38: #{encoder_forward.5} parent=35 // pred_check_branch
        %205 = sbr.rel (%p203) target = $region40
      $region39: #{encoder_forward.5} parent=35 // pred_region
        %p206 = scmp.lt.s32.totalorder %s12, 1
        %s207 = scalar_select %p206, %s12, 1
        %s208 = smul.addr %s207, 10
        %s209 = smul.addr %s208, 8
        %s210 = scalar_lea.vmem %s5, %s209
      $region40: #{encoder_forward.5} parent=35 // pred_fallthru
        _
    $region36: #{encoder_forward.5} parent=5 // pred_fallthru
      _
    %p211 = scmp.le.s32.totalorder 1, %s12
    %p212 = scmp.lt.s32.totalorder %s12, 3
    %p213 = pnand %p211, %p212
    %p214 = pneg %p213
    // Predicated region
    $region41: #{encoder_forward.5} parent=5 // pred_check
      _
    $region42: #{encoder_forward.5} parent=5 // pred_check_branch
      %216 = sbr.rel (%p213) target = $region44
    $region43: #{encoder_forward.5} parent=5 // pred_region
      %s217 = ssub.s32 %s12, 1
      %p218 = pneg %p33
      %p219 = pneg %p30
      %p220 = pneg %p54
      %p221 = pneg %p51
      %p222 = pneg %p75
      %p223 = pneg %p72
      %p224 = pneg %p96
      %p225 = pneg %p93
      %p226 = pneg %p117
      %p227 = pneg %p114
      %p228 = scmp.lt.s32.totalorder %s17, 1
      %s229 = scalar_select %p228, %s17, 1
      %s230 = smul.addr %s229, 10
      %s231 = smul.addr %s230, 8
      %s232 = scalar_lea.vmem %s5, %s231
      %p233 = pneg %p143
      %p234 = pneg %p140
      %p235 = pneg %p169
      %p236 = pneg %p166
      %p237 = scmp.lt.s32.totalorder %s17, 1
      %s238 = scalar_select %p237, %s17, 1
      %s239 = smul.addr %s238, 40
      %s240 = smul.addr %s239, 8
      %s241 = scalar_lea.vmem %s6, %s240
      %p242 = scmp.lt.s32.totalorder %s17, 1
      %s243 = scalar_select %p242, %s17, 1
      %s244 = smul.addr %s243, 10
      %s245 = smul.addr %s244, 8
      %s246 = scalar_lea.vmem %s5, %s245
      %p247 = scmp.lt.s32.totalorder %s17, 1
      %s248 = scalar_select %p247, %s17, 1
      %s249 = smul.addr %s248, 40
      %s250 = smul.addr %s249, 8
      %s251 = scalar_lea.vmem %s6, %s250
      %v252 = vld [vmem:[%s246] sm:$0xff]
      %v253 = vld [vmem:[%s246 + $0x8] sm:$0xff]
      %v254 = vld [vmem:[%s246 + $0x10] sm:$0xff]
      %v255 = vld [vmem:[%s246 + $0x18] sm:$0xff]
      %v256 = vld [vmem:[%s246 + $0x20] sm:$0xff]
      %v257 = vld [vmem:[%s246 + $0x28] sm:$0x3]
      %v258 = vld [vmem:[%s246 + $0x30] sm:$0x3]
      %v259 = vld [vmem:[%s246 + $0x38] sm:$0x3]
      %v260 = vld [vmem:[%s246 + $0x40] sm:$0x3]
      %v261 = vld [vmem:[%s246 + $0x48] sm:$0x3]
      %v262 = vld [vmem:[%s0] sm:$0xff]
      %v263 = vld [vmem:[%s0 + $0x8] sm:$0xff]
      %v264 = vld [vmem:[%s0 + $0x10] sm:$0xff]
      %v265 = vld [vmem:[%s0 + $0x18] sm:$0xff]
      %v266 = vld [vmem:[%s0 + $0x20] sm:$0xff]
      %v267 = vld [vmem:[%s0 + $0x28] sm:$0xff]
      %v268 = vld [vmem:[%s0 + $0x30] sm:$0xff]
      %v269 = vld [vmem:[%s0 + $0x38] sm:$0xff]
      %v270 = vld [vmem:[%s0 + $0x40] sm:$0xff]
      %v271 = vld [vmem:[%s0 + $0x48] sm:$0xff]
      %v272 = vld [vmem:[%s0 + $0x50] sm:$0xff]
      %v273 = vld [vmem:[%s0 + $0x58] sm:$0xff]
      %v274 = vld [vmem:[%s0 + $0x60] sm:$0xff]
      %v275 = vld [vmem:[%s0 + $0x68] sm:$0xff]
      %v276 = vld [vmem:[%s0 + $0x70] sm:$0xff]
      %v277 = vld [vmem:[%s0 + $0x78] sm:$0xff]
      %v278 = vld [vmem:[%s1] sm:$0xff]
      %v279 = vld [vmem:[%s1 + $0x8] sm:$0xff]
      %v280 = vld [vmem:[%s1 + $0x10] sm:$0xff]
      %v281 = vld [vmem:[%s1 + $0x18] sm:$0xff]
      %v282 = vld [vmem:[%s1 + $0x20] sm:$0xff]
      %v283 = vld [vmem:[%s1 + $0x28] sm:$0xff]
      %v284 = vld [vmem:[%s1 + $0x30] sm:$0xff]
      %v285 = vld [vmem:[%s1 + $0x38] sm:$0xff]
      %v286 = vld [vmem:[%s1 + $0x40] sm:$0xff]
      %v287 = vld [vmem:[%s1 + $0x48] sm:$0xff]
      %v288 = vld [vmem:[%s1 + $0x50] sm:$0xff]
      %v289 = vld [vmem:[%s1 + $0x58] sm:$0xff]
      %v290 = vld [vmem:[%s1 + $0x60] sm:$0xff]
      %v291 = vld [vmem:[%s1 + $0x68] sm:$0xff]
      %v292 = vld [vmem:[%s1 + $0x70] sm:$0xff]
      %v293 = vld [vmem:[%s1 + $0x78] sm:$0xff]
      %295 = vset.pattern.permute.xlu0 0
      %296 = vperm.xlu0 %295, %v278
      %v297 = vpop.permute.xlu0 %296
      %300 = vset.pattern.permute.xlu0 0
      %301 = vperm.xlu0 %300, %v279
      %v302 = vpop.permute.xlu0 %301
      %305 = vset.pattern.permute.xlu0 0
      %306 = vperm.xlu0 %305, %v280
      %v307 = vpop.permute.xlu0 %306
      %310 = vset.pattern.permute.xlu0 0
      %311 = vperm.xlu0 %310, %v281
      %v312 = vpop.permute.xlu0 %311
      %315 = vset.pattern.permute.xlu0 0
      %316 = vperm.xlu0 %315, %v282
      %v317 = vpop.permute.xlu0 %316
      %320 = vset.pattern.permute.xlu0 0
      %321 = vperm.xlu0 %320, %v283
      %v322 = vpop.permute.xlu0 %321
      %325 = vset.pattern.permute.xlu0 0
      %326 = vperm.xlu0 %325, %v284
      %v327 = vpop.permute.xlu0 %326
      %330 = vset.pattern.permute.xlu0 0
      %331 = vperm.xlu0 %330, %v285
      %v332 = vpop.permute.xlu0 %331
      %335 = vset.pattern.permute.xlu0 0
      %336 = vperm.xlu0 %335, %v286
      %v337 = vpop.permute.xlu0 %336
      %340 = vset.pattern.permute.xlu0 0
      %341 = vperm.xlu0 %340, %v287
      %v342 = vpop.permute.xlu0 %341
      %345 = vset.pattern.permute.xlu0 0
      %346 = vperm.xlu0 %345, %v288
      %v347 = vpop.permute.xlu0 %346
      %350 = vset.pattern.permute.xlu0 0
      %351 = vperm.xlu0 %350, %v289
      %v352 = vpop.permute.xlu0 %351
      %355 = vset.pattern.permute.xlu0 0
      %356 = vperm.xlu0 %355, %v290
      %v357 = vpop.permute.xlu0 %356
      %360 = vset.pattern.permute.xlu0 0
      %361 = vperm.xlu0 %360, %v291
      %v362 = vpop.permute.xlu0 %361
      %365 = vset.pattern.permute.xlu0 0
      %366 = vperm.xlu0 %365, %v292
      %v367 = vpop.permute.xlu0 %366
      %370 = vset.pattern.permute.xlu0 0
      %371 = vperm.xlu0 %370, %v293
      %v372 = vpop.permute.xlu0 %371
      %vm374 = vcmask 80896
      %v376 = vsel %vm374, %v262, 0
      %v379 = vsel %vm374, %v263, 0
      %v382 = vsel %vm374, %v264, 0
      %v385 = vsel %vm374, %v265, 0
      %v388 = vsel %vm374, %v266, 0
      %v391 = vsel %vm374, %v267, 0
      %v394 = vsel %vm374, %v268, 0
      %v397 = vsel %vm374, %v269, 0
      %v400 = vsel %vm374, %v270, 0
      %v403 = vsel %vm374, %v271, 0
      %v406 = vsel %vm374, %v272, 0
      %v409 = vsel %vm374, %v273, 0
      %v412 = vsel %vm374, %v274, 0
      %v415 = vsel %vm374, %v275, 0
      %v418 = vsel %vm374, %v276, 0
      %v421 = vsel %vm374, %v277, 0
      %vm423 = vcmask 1041408
      %v425 = vsel %vm423, %v257, 0
      %v428 = vsel %vm423, %v258, 0
      %v431 = vsel %vm423, %v259, 0
      %v434 = vsel %vm423, %v260, 0
      %v437 = vsel %vm423, %v261, 0
      %439 = vmatprep.subr.mxu0 %v253
      %440 = vmatpush1.msra.mxu0 %v252
      %441 = vmatprep.subr.mxu0 %v428
      %442 = vmatpush1.msra.mxu0 %v425
      %443 = vmatprep.subr.mxu0 0.0
      %444 = vmatpush1.msra.mxu0 0.0
      %445 = vmatprep.subr.mxu0 0.0
      %446 = vmatpush1.msra.mxu0 0.0
      %447 = vmatprep.subr.mxu0 0.0
      %448 = vmatpush1.msra.mxu0 0.0
      %449 = vmatprep.subr.mxu0 0.0
      %450 = vmatpush1.msra.mxu0 0.0
      %451 = vmatprep.subr.mxu0 0.0
      %452 = vmatpush1.msra.mxu0 0.0
      %453 = vmatprep.subr.mxu0 0.0
      %454 = vmatpush1.msra.mxu0 0.0
      %455 = vmatprep.subr.mxu0 0.0
      %456 = vmatpush1.msra.mxu0 0.0
      %457 = vmatprep.subr.mxu0 0.0
      %458 = vmatpush1.msra.mxu0 0.0
      %459 = vmatprep.subr.mxu0 0.0
      %460 = vmatpush1.msra.mxu0 0.0
      %461 = vmatprep.subr.mxu0 0.0
      %462 = vmatpush1.msra.mxu0 0.0
      %463 = vmatprep.subr.mxu0 0.0
      %464 = vmatpush1.msra.mxu0 0.0
      %465 = vmatprep.subr.mxu0 0.0
      %466 = vmatpush1.msra.mxu0 0.0
      %467 = vmatprep.subr.mxu0 0.0
      %468 = vmatpush1.msra.mxu0 0.0
      %469 = vmatprep.subr.mxu0 0.0
      %470 = vmatpush1.msra.mxu0 0.0
      %471 = vmatprep.subr.mxu0 0.0
      %472 = vmatpush1.msra.mxu0 0.0
      %473 = vmatprep.subr.mxu0 0.0
      %474 = vmatpush1.msra.mxu0 0.0
      %475 = vmatprep.subr.mxu0 0.0
      %476 = vmatpush1.msra.mxu0 0.0
      %477 = vmatprep.subr.mxu0 0.0
      %478 = vmatpush1.msra.mxu0 0.0
      %479 = vmatprep.subr.mxu0 0.0
      %480 = vmatpush1.msra.mxu0 0.0
      %481 = vmatprep.subr.mxu0 0.0
      %482 = vmatpush1.msra.mxu0 0.0
      %483 = vmatprep.subr.mxu0 0.0
      %484 = vmatpush1.msra.mxu0 0.0
      %485 = vmatprep.subr.mxu0 0.0
      %486 = vmatpush1.msra.mxu0 0.0
      %487 = vmatprep.subr.mxu0 0.0
      %488 = vmatpush1.msra.mxu0 0.0
      %489 = vmatprep.subr.mxu0 0.0
      %490 = vmatpush1.msra.mxu0 0.0
      %491 = vmatprep.subr.mxu0 0.0
      %492 = vmatpush1.msra.mxu0 0.0
      %493 = vmatprep.subr.mxu0 0.0
      %494 = vmatpush1.msra.mxu0 0.0
      %495 = vmatprep.subr.mxu0 0.0
      %496 = vmatpush1.msra.mxu0 0.0
      %497 = vmatprep.subr.mxu0 0.0
      %498 = vmatpush1.msra.mxu0 0.0
      %499 = vmatprep.subr.mxu0 0.0
      %500 = vmatpush1.msra.mxu0 0.0
      %501 = vmatprep.subr.mxu0 0.0
      %502 = vmatpush1.msra.mxu0 0.0
      %503 = vmatprep.mubr.f32.mxu0 0.0
      %504 = vmatmul.mubr.f32.gmra.mrb[0].mxu0 %v376
      %v505 = vpop.f32.mrb[0].mxu0
      %v506 = vadd.f32 %v297, %v505
      %v507 = vpop.f32.mrb[0].mxu0
      %v508 = vadd.f32 %v297, %v507
      %509 = vmatprep.mubr.f32.mxu0 0.0
      %510 = vmatmul.mubr.f32.gmra.mrb[0].mxu0 %v379
      %v511 = vpop.f32.mrb[0].mxu0
      %v512 = vadd.f32 %v302, %v511
      %v513 = vpop.f32.mrb[0].mxu0
      %v514 = vadd.f32 %v302, %v513
      %515 = vmatprep.mubr.f32.mxu0 0.0
      %516 = vmatmul.mubr.f32.gmra.mrb[0].mxu0 %v382
      %v517 = vpop.f32.mrb[0].mxu0
      %v518 = vadd.f32 %v307, %v517
      %v519 = vpop.f32.mrb[0].mxu0
      %v520 = vadd.f32 %v307, %v519
      %521 = vmatprep.mubr.f32.mxu0 0.0
      %522 = vmatmul.mubr.f32.gmra.mrb[0].mxu0 %v385
      %v523 = vpop.f32.mrb[0].mxu0
      %v524 = vadd.f32 %v312, %v523
      %v525 = vpop.f32.mrb[0].mxu0
      %v526 = vadd.f32 %v312, %v525
      %527 = vmatprep.mubr.f32.mxu0 0.0
      %528 = vmatmul.mubr.f32.gmra.mrb[0].mxu0 %v388
      %v529 = vpop.f32.mrb[0].mxu0
      %v530 = vadd.f32 %v317, %v529
      %v531 = vpop.f32.mrb[0].mxu0
      %v532 = vadd.f32 %v317, %v531
      %533 = vmatprep.mubr.f32.mxu0 0.0
      %534 = vmatmul.mubr.f32.gmra.mrb[0].mxu0 %v391
      %v535 = vpop.f32.mrb[0].mxu0
      %v536 = vadd.f32 %v322, %v535
      %v537 = vpop.f32.mrb[0].mxu0
      %v538 = vadd.f32 %v322, %v537
      %539 = vmatprep.mubr.f32.mxu0 0.0
      %540 = vmatmul.mubr.f32.gmra.mrb[0].mxu0 %v394
      %v541 = vpop.f32.mrb[0].mxu0
      %v542 = vadd.f32 %v327, %v541
      %v543 = vpop.f32.mrb[0].mxu0
      %v544 = vadd.f32 %v327, %v543
      %545 = vmatprep.mubr.f32.mxu0 0.0
      %546 = vmatmul.mubr.f32.gmra.mrb[0].mxu0 %v397
      %v547 = vpop.f32.mrb[0].mxu0
      %v548 = vadd.f32 %v332, %v547
      %v549 = vpop.f32.mrb[0].mxu0
      %v550 = vadd.f32 %v332, %v549
      %551 = vmatprep.mubr.f32.mxu0 0.0
      %552 = vmatmul.mubr.f32.gmra.mrb[0].mxu0 %v400
      %v553 = vpop.f32.mrb[0].mxu0
      %v554 = vadd.f32 %v337, %v553
      %v555 = vpop.f32.mrb[0].mxu0
      %v556 = vadd.f32 %v337, %v555
      %557 = vmatprep.mubr.f32.mxu0 0.0
      %558 = vmatmul.mubr.f32.gmra.mrb[0].mxu0 %v403
      %v559 = vpop.f32.mrb[0].mxu0
      %v560 = vadd.f32 %v342, %v559
      %v561 = vpop.f32.mrb[0].mxu0
      %v562 = vadd.f32 %v342, %v561
      %563 = vmatprep.mubr.f32.mxu0 0.0
      %564 = vmatmul.mubr.f32.gmra.mrb[0].mxu0 %v406
      %v565 = vpop.f32.mrb[0].mxu0
      %v566 = vadd.f32 %v347, %v565
      %v567 = vpop.f32.mrb[0].mxu0
      %v568 = vadd.f32 %v347, %v567
      %569 = vmatprep.mubr.f32.mxu0 0.0
      %570 = vmatmul.mubr.f32.gmra.mrb[0].mxu0 %v409
      %v571 = vpop.f32.mrb[0].mxu0
      %v572 = vadd.f32 %v352, %v571
      %v573 = vpop.f32.mrb[0].mxu0
      %v574 = vadd.f32 %v352, %v573
      %575 = vmatprep.mubr.f32.mxu0 0.0
      %576 = vmatmul.mubr.f32.gmra.mrb[0].mxu0 %v412
      %v577 = vpop.f32.mrb[0].mxu0
      %v578 = vadd.f32 %v357, %v577
      %v579 = vpop.f32.mrb[0].mxu0
      %v580 = vadd.f32 %v357, %v579
      %581 = vmatprep.mubr.f32.mxu0 0.0
      %582 = vmatmul.mubr.f32.gmra.mrb[0].mxu0 %v415
      %v583 = vpop.f32.mrb[0].mxu0
      %v584 = vadd.f32 %v362, %v583
      %v585 = vpop.f32.mrb[0].mxu0
      %v586 = vadd.f32 %v362, %v585
      %587 = vmatprep.mubr.f32.mxu0 0.0
      %588 = vmatmul.mubr.f32.gmra.mrb[0].mxu0 %v418
      %v589 = vpop.f32.mrb[0].mxu0
      %v590 = vadd.f32 %v367, %v589
      %v591 = vpop.f32.mrb[0].mxu0
      %v592 = vadd.f32 %v367, %v591
      %593 = vmatprep.mubr.f32.mxu0 0.0
      %594 = vmatmul.mubr.f32.gmra.mrb[0].mxu0 %v421
      %v595 = vpop.f32.mrb[0].mxu0
      %v596 = vadd.f32 %v372, %v595
      %v597 = vpop.f32.mrb[0].mxu0
      %v598 = vadd.f32 %v372, %v597
      %599 = vdwg.mxu0
      %600 = vmatprep.subr.mxu0 %v255
      %601 = vmatpush1.msra.mxu0 %v254
      %602 = vmatprep.subr.mxu0 %v434
      %603 = vmatpush1.msra.mxu0 %v431
      %604 = vmatprep.subr.mxu0 0.0
      %605 = vmatpush1.msra.mxu0 0.0
      %606 = vmatprep.subr.mxu0 0.0
      %607 = vmatpush1.msra.mxu0 0.0
      %608 = vmatprep.subr.mxu0 0.0
      %609 = vmatpush1.msra.mxu0 0.0
      %610 = vmatprep.subr.mxu0 0.0
      %611 = vmatpush1.msra.mxu0 0.0
      %612 = vmatprep.subr.mxu0 0.0
      %613 = vmatpush1.msra.mxu0 0.0
      %614 = vmatprep.subr.mxu0 0.0
      %615 = vmatpush1.msra.mxu0 0.0
      %616 = vmatprep.subr.mxu0 0.0
      %617 = vmatpush1.msra.mxu0 0.0
      %618 = vmatprep.subr.mxu0 0.0
      %619 = vmatpush1.msra.mxu0 0.0
      %620 = vmatprep.subr.mxu0 0.0
      %621 = vmatpush1.msra.mxu0 0.0
      %622 = vmatprep.subr.mxu0 0.0
      %623 = vmatpush1.msra.mxu0 0.0
      %624 = vmatprep.subr.mxu0 0.0
      %625 = vmatpush1.msra.mxu0 0.0
      %626 = vmatprep.subr.mxu0 0.0
      %627 = vmatpush1.msra.mxu0 0.0
      %628 = vmatprep.subr.mxu0 0.0
      %629 = vmatpush1.msra.mxu0 0.0
      %630 = vmatprep.subr.mxu0 0.0
      %631 = vmatpush1.msra.mxu0 0.0
      %632 = vmatprep.subr.mxu0 0.0
      %633 = vmatpush1.msra.mxu0 0.0
      %634 = vmatprep.subr.mxu0 0.0
      %635 = vmatpush1.msra.mxu0 0.0
      %636 = vmatprep.subr.mxu0 0.0
      %637 = vmatpush1.msra.mxu0 0.0
      %638 = vmatprep.subr.mxu0 0.0
      %639 = vmatpush1.msra.mxu0 0.0
      %640 = vmatprep.subr.mxu0 0.0
      %641 = vmatpush1.msra.mxu0 0.0
      %642 = vmatprep.subr.mxu0 0.0
      %643 = vmatpush1.msra.mxu0 0.0
      %644 = vmatprep.subr.mxu0 0.0
      %645 = vmatpush1.msra.mxu0 0.0
      %646 = vmatprep.subr.mxu0 0.0
      %647 = vmatpush1.msra.mxu0 0.0
      %648 = vmatprep.subr.mxu0 0.0
      %649 = vmatpush1.msra.mxu0 0.0
      %650 = vmatprep.subr.mxu0 0.0
      %651 = vmatpush1.msra.mxu0 0.0
      %652 = vmatprep.subr.mxu0 0.0
      %653 = vmatpush1.msra.mxu0 0.0
      %654 = vmatprep.subr.mxu0 0.0
      %655 = vmatpush1.msra.mxu0 0.0
      %656 = vmatprep.subr.mxu0 0.0
      %657 = vmatpush1.msra.mxu0 0.0
      %658 = vmatprep.subr.mxu0 0.0
      %659 = vmatpush1.msra.mxu0 0.0
      %660 = vmatprep.subr.mxu0 0.0
      %661 = vmatpush1.msra.mxu0 0.0
      %662 = vmatprep.subr.mxu0 0.0
      %663 = vmatpush1.msra.mxu0 0.0
      %664 = vmatprep.mubr.f32.mxu0 0.0
      %665 = vmatmul.mubr.f32.gmra.mrb[0].mxu0 %v376
      %v666 = vpop.f32.mrb[0].mxu0
      %v667 = vadd.f32 %v297, %v666
      %v668 = vpop.f32.mrb[0].mxu0
      %v669 = vadd.f32 %v297, %v668
      %670 = vmatprep.mubr.f32.mxu0 0.0
      %671 = vmatmul.mubr.f32.gmra.mrb[0].mxu0 %v379
      %v672 = vpop.f32.mrb[0].mxu0
      %v673 = vadd.f32 %v302, %v672
      %v674 = vpop.f32.mrb[0].mxu0
      %v675 = vadd.f32 %v302, %v674
      %676 = vmatprep.mubr.f32.mxu0 0.0
      %677 = vmatmul.mubr.f32.gmra.mrb[0].mxu0 %v382
      %v678 = vpop.f32.mrb[0].mxu0
      %v679 = vadd.f32 %v307, %v678
      %v680 = vpop.f32.mrb[0].mxu0
      %v681 = vadd.f32 %v307, %v680
      %682 = vmatprep.mubr.f32.mxu0 0.0
      %683 = vmatmul.mubr.f32.gmra.mrb[0].mxu0 %v385
      %v684 = vpop.f32.mrb[0].mxu0
      %v685 = vadd.f32 %v312, %v684
      %v686 = vpop.f32.mrb[0].mxu0
      %v687 = vadd.f32 %v312, %v686
      %688 = vmatprep.mubr.f32.mxu0 0.0
      %689 = vmatmul.mubr.f32.gmra.mrb[0].mxu0 %v388
      %v690 = vpop.f32.mrb[0].mxu0
      %v691 = vadd.f32 %v317, %v690
      %v692 = vpop.f32.mrb[0].mxu0
      %v693 = vadd.f32 %v317, %v692
      %694 = vmatprep.mubr.f32.mxu0 0.0
      %695 = vmatmul.mubr.f32.gmra.mrb[0].mxu0 %v391
      %v696 = vpop.f32.mrb[0].mxu0
      %v697 = vadd.f32 %v322, %v696
      %v698 = vpop.f32.mrb[0].mxu0
      %v699 = vadd.f32 %v322, %v698
      %700 = vmatprep.mubr.f32.mxu0 0.0
      %701 = vmatmul.mubr.f32.gmra.mrb[0].mxu0 %v394
      %v702 = vpop.f32.mrb[0].mxu0
      %v703 = vadd.f32 %v327, %v702
      %v704 = vpop.f32.mrb[0].mxu0
      %v705 = vadd.f32 %v327, %v704
      %706 = vmatprep.mubr.f32.mxu0 0.0
      %707 = vmatmul.mubr.f32.gmra.mrb[0].mxu0 %v397
      %v708 = vpop.f32.mrb[0].mxu0
      %v709 = vadd.f32 %v332, %v708
      %v710 = vpop.f32.mrb[0].mxu0
      %v711 = vadd.f32 %v332, %v710
      %712 = vmatprep.mubr.f32.mxu0 0.0
      %713 = vmatmul.mubr.f32.gmra.mrb[0].mxu0 %v400
      %v714 = vpop.f32.mrb[0].mxu0
      %v715 = vadd.f32 %v337, %v714
      %v716 = vpop.f32.mrb[0].mxu0
      %v717 = vadd.f32 %v337, %v716
      %718 = vmatprep.mubr.f32.mxu0 0.0
      %719 = vmatmul.mubr.f32.gmra.mrb[0].mxu0 %v403
      %v720 = vpop.f32.mrb[0].mxu0
      %v721 = vadd.f32 %v342, %v720
      %v722 = vpop.f32.mrb[0].mxu0
      %v723 = vadd.f32 %v342, %v722
      %724 = vmatprep.mubr.f32.mxu0 0.0
      %725 = vmatmul.mubr.f32.gmra.mrb[0].mxu0 %v406
      %v726 = vpop.f32.mrb[0].mxu0
      %v727 = vadd.f32 %v347, %v726
      %v728 = vpop.f32.mrb[0].mxu0
      %v729 = vadd.f32 %v347, %v728
      %730 = vmatprep.mubr.f32.mxu0 0.0
      %731 = vmatmul.mubr.f32.gmra.mrb[0].mxu0 %v409
      %v732 = vpop.f32.mrb[0].mxu0
      %v733 = vadd.f32 %v352, %v732
      %v734 = vpop.f32.mrb[0].mxu0
      %v735 = vadd.f32 %v352, %v734
      %736 = vmatprep.mubr.f32.mxu0 0.0
      %737 = vmatmul.mubr.f32.gmra.mrb[0].mxu0 %v412
      %v738 = vpop.f32.mrb[0].mxu0
      %v739 = vadd.f32 %v357, %v738
      %v740 = vpop.f32.mrb[0].mxu0
      %v741 = vadd.f32 %v357, %v740
      %742 = vmatprep.mubr.f32.mxu0 0.0
      %743 = vmatmul.mubr.f32.gmra.mrb[0].mxu0 %v415
      %v744 = vpop.f32.mrb[0].mxu0
      %v745 = vadd.f32 %v362, %v744
      %v746 = vpop.f32.mrb[0].mxu0
      %v747 = vadd.f32 %v362, %v746
      %748 = vmatprep.mubr.f32.mxu0 0.0
      %749 = vmatmul.mubr.f32.gmra.mrb[0].mxu0 %v418
      %v750 = vpop.f32.mrb[0].mxu0
      %v751 = vadd.f32 %v367, %v750
      %v752 = vpop.f32.mrb[0].mxu0
      %v753 = vadd.f32 %v367, %v752
      %754 = vmatprep.mubr.f32.mxu0 0.0
      %755 = vmatmul.mubr.f32.gmra.mrb[0].mxu0 %v421
      %v756 = vpop.f32.mrb[0].mxu0
      %v757 = vadd.f32 %v372, %v756
      %v758 = vpop.f32.mrb[0].mxu0
      %v759 = vadd.f32 %v372, %v758
      %760 = vdwg.mxu0
      %761 = vmatprep.subr.mxu0 0.0
      %762 = vmatpush1.msra.mxu0 %v256
      %763 = vmatprep.subr.mxu0 0.0
      %764 = vmatpush1.msra.mxu0 %v437
      %765 = vmatprep.subr.mxu0 0.0
      %766 = vmatpush1.msra.mxu0 0.0
      %767 = vmatprep.subr.mxu0 0.0
      %768 = vmatpush1.msra.mxu0 0.0
      %769 = vmatprep.subr.mxu0 0.0
      %770 = vmatpush1.msra.mxu0 0.0
      %771 = vmatprep.subr.mxu0 0.0
      %772 = vmatpush1.msra.mxu0 0.0
      %773 = vmatprep.subr.mxu0 0.0
      %774 = vmatpush1.msra.mxu0 0.0
      %775 = vmatprep.subr.mxu0 0.0
      %776 = vmatpush1.msra.mxu0 0.0
      %777 = vmatprep.subr.mxu0 0.0
      %778 = vmatpush1.msra.mxu0 0.0
      %779 = vmatprep.subr.mxu0 0.0
      %780 = vmatpush1.msra.mxu0 0.0
      %781 = vmatprep.subr.mxu0 0.0
      %782 = vmatpush1.msra.mxu0 0.0
      %783 = vmatprep.subr.mxu0 0.0
      %784 = vmatpush1.msra.mxu0 0.0
      %785 = vmatprep.subr.mxu0 0.0
      %786 = vmatpush1.msra.mxu0 0.0
      %787 = vmatprep.subr.mxu0 0.0
      %788 = vmatpush1.msra.mxu0 0.0
      %789 = vmatprep.subr.mxu0 0.0
      %790 = vmatpush1.msra.mxu0 0.0
      %791 = vmatprep.subr.mxu0 0.0
      %792 = vmatpush1.msra.mxu0 0.0
      %793 = vmatprep.subr.mxu0 0.0
      %794 = vmatpush1.msra.mxu0 0.0
      %795 = vmatprep.subr.mxu0 0.0
      %796 = vmatpush1.msra.mxu0 0.0
      %797 = vmatprep.subr.mxu0 0.0
      %798 = vmatpush1.msra.mxu0 0.0
      %799 = vmatprep.subr.mxu0 0.0
      %800 = vmatpush1.msra.mxu0 0.0
      %801 = vmatprep.subr.mxu0 0.0
      %802 = vmatpush1.msra.mxu0 0.0
      %803 = vmatprep.subr.mxu0 0.0
      %804 = vmatpush1.msra.mxu0 0.0
      %805 = vmatprep.subr.mxu0 0.0
      %806 = vmatpush1.msra.mxu0 0.0
      %807 = vmatprep.subr.mxu0 0.0
      %808 = vmatpush1.msra.mxu0 0.0
      %809 = vmatprep.subr.mxu0 0.0
      %810 = vmatpush1.msra.mxu0 0.0
      %811 = vmatprep.subr.mxu0 0.0
      %812 = vmatpush1.msra.mxu0 0.0
      %813 = vmatprep.subr.mxu0 0.0
      %814 = vmatpush1.msra.mxu0 0.0
      %815 = vmatprep.subr.mxu0 0.0
      %816 = vmatpush1.msra.mxu0 0.0
      %817 = vmatprep.subr.mxu0 0.0
      %818 = vmatpush1.msra.mxu0 0.0
      %819 = vmatprep.subr.mxu0 0.0
      %820 = vmatpush1.msra.mxu0 0.0
      %821 = vmatprep.subr.mxu0 0.0
      %822 = vmatpush1.msra.mxu0 0.0
      %823 = vmatprep.subr.mxu0 0.0
      %824 = vmatpush1.msra.mxu0 0.0
      %825 = vmatprep.mubr.f32.mxu0 0.0
      %826 = vmatmul.mubr.f32.gmra.mrb[0].mxu0 %v376
      %v827 = vpop.f32.mrb[0].mxu0
      %v828 = vadd.f32 %v297, %v827
      %v829 = vpop.f32.mrb[0].mxu0
      %830 = vmatprep.mubr.f32.mxu0 0.0
      %831 = vmatmul.mubr.f32.gmra.mrb[0].mxu0 %v379
      %v832 = vpop.f32.mrb[0].mxu0
      %v833 = vadd.f32 %v302, %v832
      %v834 = vpop.f32.mrb[0].mxu0
      %835 = vmatprep.mubr.f32.mxu0 0.0
      %836 = vmatmul.mubr.f32.gmra.mrb[0].mxu0 %v382
      %v837 = vpop.f32.mrb[0].mxu0
      %v838 = vadd.f32 %v307, %v837
      %v839 = vpop.f32.mrb[0].mxu0
      %840 = vmatprep.mubr.f32.mxu0 0.0
      %841 = vmatmul.mubr.f32.gmra.mrb[0].mxu0 %v385
      %v842 = vpop.f32.mrb[0].mxu0
      %v843 = vadd.f32 %v312, %v842
      %v844 = vpop.f32.mrb[0].mxu0
      %845 = vmatprep.mubr.f32.mxu0 0.0
      %846 = vmatmul.mubr.f32.gmra.mrb[0].mxu0 %v388
      %v847 = vpop.f32.mrb[0].mxu0
      %v848 = vadd.f32 %v317, %v847
      %v849 = vpop.f32.mrb[0].mxu0
      %850 = vmatprep.mubr.f32.mxu0 0.0
      %851 = vmatmul.mubr.f32.gmra.mrb[0].mxu0 %v391
      %v852 = vpop.f32.mrb[0].mxu0
      %v853 = vadd.f32 %v322, %v852
      %v854 = vpop.f32.mrb[0].mxu0
      %855 = vmatprep.mubr.f32.mxu0 0.0
      %856 = vmatmul.mubr.f32.gmra.mrb[0].mxu0 %v394
      %v857 = vpop.f32.mrb[0].mxu0
      %v858 = vadd.f32 %v327, %v857
      %v859 = vpop.f32.mrb[0].mxu0
      %860 = vmatprep.mubr.f32.mxu0 0.0
      %861 = vmatmul.mubr.f32.gmra.mrb[0].mxu0 %v397
      %v862 = vpop.f32.mrb[0].mxu0
      %v863 = vadd.f32 %v332, %v862
      %v864 = vpop.f32.mrb[0].mxu0
      %865 = vmatprep.mubr.f32.mxu0 0.0
      %866 = vmatmul.mubr.f32.gmra.mrb[0].mxu0 %v400
      %v867 = vpop.f32.mrb[0].mxu0
      %v868 = vadd.f32 %v337, %v867
      %v869 = vpop.f32.mrb[0].mxu0
      %870 = vmatprep.mubr.f32.mxu0 0.0
      %871 = vmatmul.mubr.f32.gmra.mrb[0].mxu0 %v403
      %v872 = vpop.f32.mrb[0].mxu0
      %v873 = vadd.f32 %v342, %v872
      %v874 = vpop.f32.mrb[0].mxu0
      %875 = vmatprep.mubr.f32.mxu0 0.0
      %876 = vmatmul.mubr.f32.gmra.mrb[0].mxu0 %v406
      %v877 = vpop.f32.mrb[0].mxu0
      %v878 = vadd.f32 %v347, %v877
      %v879 = vpop.f32.mrb[0].mxu0
      %880 = vmatprep.mubr.f32.mxu0 0.0
      %881 = vmatmul.mubr.f32.gmra.mrb[0].mxu0 %v409
      %v882 = vpop.f32.mrb[0].mxu0
      %v883 = vadd.f32 %v352, %v882
      %v884 = vpop.f32.mrb[0].mxu0
      %885 = vmatprep.mubr.f32.mxu0 0.0
      %886 = vmatmul.mubr.f32.gmra.mrb[0].mxu0 %v412
      %v887 = vpop.f32.mrb[0].mxu0
      %v888 = vadd.f32 %v357, %v887
      %v889 = vpop.f32.mrb[0].mxu0
      %890 = vmatprep.mubr.f32.mxu0 0.0
      %891 = vmatmul.mubr.f32.gmra.mrb[0].mxu0 %v415
      %v892 = vpop.f32.mrb[0].mxu0
      %v893 = vadd.f32 %v362, %v892
      %v894 = vpop.f32.mrb[0].mxu0
      %895 = vmatprep.mubr.f32.mxu0 0.0
      %896 = vmatmul.mubr.f32.gmra.mrb[0].mxu0 %v418
      %v897 = vpop.f32.mrb[0].mxu0
      %v898 = vadd.f32 %v367, %v897
      %v899 = vpop.f32.mrb[0].mxu0
      %900 = vmatprep.mubr.f32.mxu0 0.0
      %901 = vmatmul.mubr.f32.gmra.mrb[0].mxu0 %v421
      %v902 = vpop.f32.mrb[0].mxu0
      %v903 = vadd.f32 %v372, %v902
      %v904 = vpop.f32.mrb[0].mxu0
      %905 = vdwg.mxu0
      %v906 = vsub.f32 0.0, %v554
      %v907 = vsub.f32 0.0, %v556
      %v908 = vsub.f32 0.0, %v715
      %v909 = vsub.f32 0.0, %v717
      %v910 = vsub.f32 0.0, %v868
      %v911 = vsub.f32 0.0, %v560
      %v912 = vsub.f32 0.0, %v562
      %v913 = vsub.f32 0.0, %v721
      %v914 = vsub.f32 0.0, %v723
      %v915 = vsub.f32 0.0, %v873
      %v916 = vsub.f32 0.0, %v566
      %v917 = vsub.f32 0.0, %v568
      %v918 = vsub.f32 0.0, %v727
      %v919 = vsub.f32 0.0, %v729
      %v920 = vsub.f32 0.0, %v878
      %v921 = vsub.f32 0.0, %v572
      %v922 = vsub.f32 0.0, %v574
      %v923 = vsub.f32 0.0, %v733
      %v924 = vsub.f32 0.0, %v735
      %v925 = vsub.f32 0.0, %v883
      %v926 = vsub.f32 0.0, %v578
      %v927 = vsub.f32 0.0, %v580
      %v928 = vsub.f32 0.0, %v739
      %v929 = vsub.f32 0.0, %v741
      %v930 = vsub.f32 0.0, %v888
      %v931 = vsub.f32 0.0, %v584
      %v932 = vsub.f32 0.0, %v586
      %v933 = vsub.f32 0.0, %v745
      %v934 = vsub.f32 0.0, %v747
      %v935 = vsub.f32 0.0, %v893
      %v936 = vsub.f32 0.0, %v590
      %v937 = vsub.f32 0.0, %v592
      %v938 = vsub.f32 0.0, %v751
      %v939 = vsub.f32 0.0, %v753
      %v940 = vsub.f32 0.0, %v898
      %v941 = vsub.f32 0.0, %v596
      %v942 = vsub.f32 0.0, %v598
      %v943 = vsub.f32 0.0, %v757
      %v944 = vsub.f32 0.0, %v759
      %v945 = vsub.f32 0.0, %v903
      %v946 = vmul.f32 %v906, 1.442695
      %v947 = vpow.pop %v946
      %v948 = vmul.f32 %v907, 1.442695
      %v949 = vpow.pop %v948
      %v950 = vmul.f32 %v908, 1.442695
      %v951 = vpow.pop %v950
      %v952 = vmul.f32 %v909, 1.442695
      %v953 = vpow.pop %v952
      %v954 = vmul.f32 %v910, 1.442695
      %v955 = vpow.pop %v954
      %v956 = vmul.f32 %v911, 1.442695
      %v957 = vpow.pop %v956
      %v958 = vmul.f32 %v912, 1.442695
      %v959 = vpow.pop %v958
      %v960 = vmul.f32 %v913, 1.442695
      %v961 = vpow.pop %v960
      %v962 = vmul.f32 %v914, 1.442695
      %v963 = vpow.pop %v962
      %v964 = vmul.f32 %v915, 1.442695
      %v965 = vpow.pop %v964
      %v966 = vmul.f32 %v916, 1.442695
      %v967 = vpow.pop %v966
      %v968 = vmul.f32 %v917, 1.442695
      %v969 = vpow.pop %v968
      %v970 = vmul.f32 %v918, 1.442695
      %v971 = vpow.pop %v970
      %v972 = vmul.f32 %v919, 1.442695
      %v973 = vpow.pop %v972
      %v974 = vmul.f32 %v920, 1.442695
      %v975 = vpow.pop %v974
      %v976 = vmul.f32 %v921, 1.442695
      %v977 = vpow.pop %v976
      %v978 = vmul.f32 %v922, 1.442695
      %v979 = vpow.pop %v978
      %v980 = vmul.f32 %v923, 1.442695
      %v981 = vpow.pop %v980
      %v982 = vmul.f32 %v924, 1.442695
      %v983 = vpow.pop %v982
      %v984 = vmul.f32 %v925, 1.442695
      %v985 = vpow.pop %v984
      %v986 = vmul.f32 %v926, 1.442695
      %v987 = vpow.pop %v986
      %v988 = vmul.f32 %v927, 1.442695
      %v989 = vpow.pop %v988
      %v990 = vmul.f32 %v928, 1.442695
      %v991 = vpow.pop %v990
      %v992 = vmul.f32 %v929, 1.442695
      %v993 = vpow.pop %v992
      %v994 = vmul.f32 %v930, 1.442695
      %v995 = vpow.pop %v994
      %v996 = vmul.f32 %v931, 1.442695
      %v997 = vpow.pop %v996
      %v998 = vmul.f32 %v932, 1.442695
      %v999 = vpow.pop %v998
      %v1000 = vmul.f32 %v933, 1.442695
      %v1001 = vpow.pop %v1000
      %v1002 = vmul.f32 %v934, 1.442695
      %v1003 = vpow.pop %v1002
      %v1004 = vmul.f32 %v935, 1.442695
      %v1005 = vpow.pop %v1004
      %v1006 = vmul.f32 %v936, 1.442695
      %v1007 = vpow.pop %v1006
      %v1008 = vmul.f32 %v937, 1.442695
      %v1009 = vpow.pop %v1008
      %v1010 = vmul.f32 %v938, 1.442695
      %v1011 = vpow.pop %v1010
      %v1012 = vmul.f32 %v939, 1.442695
      %v1013 = vpow.pop %v1012
      %v1014 = vmul.f32 %v940, 1.442695
      %v1015 = vpow.pop %v1014
      %v1016 = vmul.f32 %v941, 1.442695
      %v1017 = vpow.pop %v1016
      %v1018 = vmul.f32 %v942, 1.442695
      %v1019 = vpow.pop %v1018
      %v1020 = vmul.f32 %v943, 1.442695
      %v1021 = vpow.pop %v1020
      %v1022 = vmul.f32 %v944, 1.442695
      %v1023 = vpow.pop %v1022
      %v1024 = vmul.f32 %v945, 1.442695
      %v1025 = vpow.pop %v1024
      %v1026 = vadd.f32 %v947, 1.0
      %v1027 = vadd.f32 %v949, 1.0
      %v1028 = vadd.f32 %v951, 1.0
      %v1029 = vadd.f32 %v953, 1.0
      %v1030 = vadd.f32 %v955, 1.0
      %v1031 = vadd.f32 %v957, 1.0
      %v1032 = vadd.f32 %v959, 1.0
      %v1033 = vadd.f32 %v961, 1.0
      %v1034 = vadd.f32 %v963, 1.0
      %v1035 = vadd.f32 %v965, 1.0
      %v1036 = vadd.f32 %v967, 1.0
      %v1037 = vadd.f32 %v969, 1.0
      %v1038 = vadd.f32 %v971, 1.0
      %v1039 = vadd.f32 %v973, 1.0
      %v1040 = vadd.f32 %v975, 1.0
      %v1041 = vadd.f32 %v977, 1.0
      %v1042 = vadd.f32 %v979, 1.0
      %v1043 = vadd.f32 %v981, 1.0
      %v1044 = vadd.f32 %v983, 1.0
      %v1045 = vadd.f32 %v985, 1.0
      %v1046 = vadd.f32 %v987, 1.0
      %v1047 = vadd.f32 %v989, 1.0
      %v1048 = vadd.f32 %v991, 1.0
      %v1049 = vadd.f32 %v993, 1.0
      %v1050 = vadd.f32 %v995, 1.0
      %v1051 = vadd.f32 %v997, 1.0
      %v1052 = vadd.f32 %v999, 1.0
      %v1053 = vadd.f32 %v1001, 1.0
      %v1054 = vadd.f32 %v1003, 1.0
      %v1055 = vadd.f32 %v1005, 1.0
      %v1056 = vadd.f32 %v1007, 1.0
      %v1057 = vadd.f32 %v1009, 1.0
      %v1058 = vadd.f32 %v1011, 1.0
      %v1059 = vadd.f32 %v1013, 1.0
      %v1060 = vadd.f32 %v1015, 1.0
      %v1061 = vadd.f32 %v1017, 1.0
      %v1062 = vadd.f32 %v1019, 1.0
      %v1063 = vadd.f32 %v1021, 1.0
      %v1064 = vadd.f32 %v1023, 1.0
      %v1065 = vadd.f32 %v1025, 1.0
      %v1066 = vrcp.pop %v1026
      %v1067 = vmul.f32 1.0, %v1066
      %v1068 = vrcp.pop %v1027
      %v1069 = vmul.f32 1.0, %v1068
      %v1070 = vrcp.pop %v1028
      %v1071 = vmul.f32 1.0, %v1070
      %v1072 = vrcp.pop %v1029
      %v1073 = vmul.f32 1.0, %v1072
      %v1074 = vrcp.pop %v1030
      %v1075 = vmul.f32 1.0, %v1074
      %v1076 = vrcp.pop %v1031
      %v1077 = vmul.f32 1.0, %v1076
      %v1078 = vrcp.pop %v1032
      %v1079 = vmul.f32 1.0, %v1078
      %v1080 = vrcp.pop %v1033
      %v1081 = vmul.f32 1.0, %v1080
      %v1082 = vrcp.pop %v1034
      %v1083 = vmul.f32 1.0, %v1082
      %v1084 = vrcp.pop %v1035
      %v1085 = vmul.f32 1.0, %v1084
      %v1086 = vrcp.pop %v1036
      %v1087 = vmul.f32 1.0, %v1086
      %v1088 = vrcp.pop %v1037
      %v1089 = vmul.f32 1.0, %v1088
      %v1090 = vrcp.pop %v1038
      %v1091 = vmul.f32 1.0, %v1090
      %v1092 = vrcp.pop %v1039
      %v1093 = vmul.f32 1.0, %v1092
      %v1094 = vrcp.pop %v1040
      %v1095 = vmul.f32 1.0, %v1094
      %v1096 = vrcp.pop %v1041
      %v1097 = vmul.f32 1.0, %v1096
      %v1098 = vrcp.pop %v1042
      %v1099 = vmul.f32 1.0, %v1098
      %v1100 = vrcp.pop %v1043
      %v1101 = vmul.f32 1.0, %v1100
      %v1102 = vrcp.pop %v1044
      %v1103 = vmul.f32 1.0, %v1102
      %v1104 = vrcp.pop %v1045
      %v1105 = vmul.f32 1.0, %v1104
      %v1106 = vrcp.pop %v1046
      %v1107 = vmul.f32 1.0, %v1106
      %v1108 = vrcp.pop %v1047
      %v1109 = vmul.f32 1.0, %v1108
      %v1110 = vrcp.pop %v1048
      %v1111 = vmul.f32 1.0, %v1110
      %v1112 = vrcp.pop %v1049
      %v1113 = vmul.f32 1.0, %v1112
      %v1114 = vrcp.pop %v1050
      %v1115 = vmul.f32 1.0, %v1114
      %v1116 = vrcp.pop %v1051
      %v1117 = vmul.f32 1.0, %v1116
      %v1118 = vrcp.pop %v1052
      %v1119 = vmul.f32 1.0, %v1118
      %v1120 = vrcp.pop %v1053
      %v1121 = vmul.f32 1.0, %v1120
      %v1122 = vrcp.pop %v1054
      %v1123 = vmul.f32 1.0, %v1122
      %v1124 = vrcp.pop %v1055
      %v1125 = vmul.f32 1.0, %v1124
      %v1126 = vrcp.pop %v1056
      %v1127 = vmul.f32 1.0, %v1126
      %v1128 = vrcp.pop %v1057
      %v1129 = vmul.f32 1.0, %v1128
      %v1130 = vrcp.pop %v1058
      %v1131 = vmul.f32 1.0, %v1130
      %v1132 = vrcp.pop %v1059
      %v1133 = vmul.f32 1.0, %v1132
      %v1134 = vrcp.pop %v1060
      %v1135 = vmul.f32 1.0, %v1134
      %v1136 = vrcp.pop %v1061
      %v1137 = vmul.f32 1.0, %v1136
      %v1138 = vrcp.pop %v1062
      %v1139 = vmul.f32 1.0, %v1138
      %v1140 = vrcp.pop %v1063
      %v1141 = vmul.f32 1.0, %v1140
      %v1142 = vrcp.pop %v1064
      %v1143 = vmul.f32 1.0, %v1142
      %v1144 = vrcp.pop %v1065
      %v1145 = vmul.f32 1.0, %v1144
      %v1146 = vmul.f32 %v506, %v1067
      %v1147 = vmul.f32 %v508, %v1069
      %v1148 = vmul.f32 %v667, %v1071
      %v1149 = vmul.f32 %v669, %v1073
      %v1150 = vmul.f32 %v828, %v1075
      %v1151 = vmul.f32 %v512, %v1077
      %v1152 = vmul.f32 %v514, %v1079
      %v1153 = vmul.f32 %v673, %v1081
      %v1154 = vmul.f32 %v675, %v1083
      %v1155 = vmul.f32 %v833, %v1085
      %v1156 = vmul.f32 %v518, %v1087
      %v1157 = vmul.f32 %v520, %v1089
      %v1158 = vmul.f32 %v679, %v1091
      %v1159 = vmul.f32 %v681, %v1093
      %v1160 = vmul.f32 %v838, %v1095
      %v1161 = vmul.f32 %v524, %v1097
      %v1162 = vmul.f32 %v526, %v1099
      %v1163 = vmul.f32 %v685, %v1101
      %v1164 = vmul.f32 %v687, %v1103
      %v1165 = vmul.f32 %v843, %v1105
      %v1166 = vmul.f32 %v530, %v1107
      %v1167 = vmul.f32 %v532, %v1109
      %v1168 = vmul.f32 %v691, %v1111
      %v1169 = vmul.f32 %v693, %v1113
      %v1170 = vmul.f32 %v848, %v1115
      %v1171 = vmul.f32 %v536, %v1117
      %v1172 = vmul.f32 %v538, %v1119
      %v1173 = vmul.f32 %v697, %v1121
      %v1174 = vmul.f32 %v699, %v1123
      %v1175 = vmul.f32 %v853, %v1125
      %v1176 = vmul.f32 %v542, %v1127
      %v1177 = vmul.f32 %v544, %v1129
      %v1178 = vmul.f32 %v703, %v1131
      %v1179 = vmul.f32 %v705, %v1133
      %v1180 = vmul.f32 %v858, %v1135
      %v1181 = vmul.f32 %v548, %v1137
      %v1182 = vmul.f32 %v550, %v1139
      %v1183 = vmul.f32 %v709, %v1141
      %v1184 = vmul.f32 %v711, %v1143
      %v1185 = vmul.f32 %v863, %v1145
      %v1186 = vadd.f32 %v1146, %v1147
      %v1187 = vadd.f32 %v1186, %v1148
      %v1188 = vadd.f32 %v1187, %v1149
      %vm1189 = vcmask 982016
      %v1190 = vsel %vm1189, %v1150, 0.0
      %v1191 = vadd.f32 %v1188, %v1190
      %1192 = vadd.xlane.f32.xlu0 %v1191
      %v1193 = vpop.xlane.xlu0 %1192
      %v1194 = vadd.f32 %v1151, %v1152
      %v1195 = vadd.f32 %v1194, %v1153
      %v1196 = vadd.f32 %v1195, %v1154
      %v1197 = vsel %vm1189, %v1155, 0.0
      %v1198 = vadd.f32 %v1196, %v1197
      %1199 = vadd.xlane.f32.xlu0 %v1198
      %v1200 = vpop.xlane.xlu0 %1199
      %v1201 = vadd.f32 %v1156, %v1157
      %v1202 = vadd.f32 %v1201, %v1158
      %v1203 = vadd.f32 %v1202, %v1159
      %v1204 = vsel %vm1189, %v1160, 0.0
      %v1205 = vadd.f32 %v1203, %v1204
      %1206 = vadd.xlane.f32.xlu0 %v1205
      %v1207 = vpop.xlane.xlu0 %1206
      %v1208 = vadd.f32 %v1161, %v1162
      %v1209 = vadd.f32 %v1208, %v1163
      %v1210 = vadd.f32 %v1209, %v1164
      %v1211 = vsel %vm1189, %v1165, 0.0
      %v1212 = vadd.f32 %v1210, %v1211
      %1213 = vadd.xlane.f32.xlu0 %v1212
      %v1214 = vpop.xlane.xlu0 %1213
      %v1215 = vadd.f32 %v1166, %v1167
      %v1216 = vadd.f32 %v1215, %v1168
      %v1217 = vadd.f32 %v1216, %v1169
      %v1218 = vsel %vm1189, %v1170, 0.0
      %v1219 = vadd.f32 %v1217, %v1218
      %1220 = vadd.xlane.f32.xlu0 %v1219
      %v1221 = vpop.xlane.xlu0 %1220
      %v1222 = vadd.f32 %v1171, %v1172
      %v1223 = vadd.f32 %v1222, %v1173
      %v1224 = vadd.f32 %v1223, %v1174
      %v1225 = vsel %vm1189, %v1175, 0.0
      %v1226 = vadd.f32 %v1224, %v1225
      %1227 = vadd.xlane.f32.xlu0 %v1226
      %v1228 = vpop.xlane.xlu0 %1227
      %v1229 = vadd.f32 %v1176, %v1177
      %v1230 = vadd.f32 %v1229, %v1178
      %v1231 = vadd.f32 %v1230, %v1179
      %v1232 = vsel %vm1189, %v1180, 0.0
      %v1233 = vadd.f32 %v1231, %v1232
      %1234 = vadd.xlane.f32.xlu0 %v1233
      %v1235 = vpop.xlane.xlu0 %1234
      %v1236 = vadd.f32 %v1181, %v1182
      %v1237 = vadd.f32 %v1236, %v1183
      %v1238 = vadd.f32 %v1237, %v1184
      %v1239 = vsel %vm1189, %v1185, 0.0
      %v1240 = vadd.f32 %v1238, %v1239
      %1241 = vadd.xlane.f32.xlu0 %v1240
      %v1242 = vpop.xlane.xlu0 %1241
      %v1243 = vrcp.pop 632.0
      %v1244 = vmul.f32 %v1193, %v1243
      %v1245 = vmul.f32 %v1200, %v1243
      %v1246 = vmul.f32 %v1207, %v1243
      %v1247 = vmul.f32 %v1214, %v1243
      %v1248 = vmul.f32 %v1221, %v1243
      %v1249 = vmul.f32 %v1228, %v1243
      %v1250 = vmul.f32 %v1235, %v1243
      %v1251 = vmul.f32 %v1242, %v1243
      %v1252 = vsub.f32 %v1146, %v1244
      %v1253 = vsub.f32 %v1147, %v1244
      %v1254 = vsub.f32 %v1148, %v1244
      %v1255 = vsub.f32 %v1149, %v1244
      %v1256 = vsub.f32 %v1150, %v1244
      %v1257 = vsub.f32 %v1151, %v1245
      %v1258 = vsub.f32 %v1152, %v1245
      %v1259 = vsub.f32 %v1153, %v1245
      %v1260 = vsub.f32 %v1154, %v1245
      %v1261 = vsub.f32 %v1155, %v1245
      %v1262 = vsub.f32 %v1156, %v1246
      %v1263 = vsub.f32 %v1157, %v1246
      %v1264 = vsub.f32 %v1158, %v1246
      %v1265 = vsub.f32 %v1159, %v1246
      %v1266 = vsub.f32 %v1160, %v1246
      %v1267 = vsub.f32 %v1161, %v1247
      %v1268 = vsub.f32 %v1162, %v1247
      %v1269 = vsub.f32 %v1163, %v1247
      %v1270 = vsub.f32 %v1164, %v1247
      %v1271 = vsub.f32 %v1165, %v1247
      %v1272 = vsub.f32 %v1166, %v1248
      %v1273 = vsub.f32 %v1167, %v1248
      %v1274 = vsub.f32 %v1168, %v1248
      %v1275 = vsub.f32 %v1169, %v1248
      %v1276 = vsub.f32 %v1170, %v1248
      %v1277 = vsub.f32 %v1171, %v1249
      %v1278 = vsub.f32 %v1172, %v1249
      %v1279 = vsub.f32 %v1173, %v1249
      %v1280 = vsub.f32 %v1174, %v1249
      %v1281 = vsub.f32 %v1175, %v1249
      %v1282 = vsub.f32 %v1176, %v1250
      %v1283 = vsub.f32 %v1177, %v1250
      %v1284 = vsub.f32 %v1178, %v1250
      %v1285 = vsub.f32 %v1179, %v1250
      %v1286 = vsub.f32 %v1180, %v1250
      %v1287 = vsub.f32 %v1181, %v1251
      %v1288 = vsub.f32 %v1182, %v1251
      %v1289 = vsub.f32 %v1183, %v1251
      %v1290 = vsub.f32 %v1184, %v1251
      %v1291 = vsub.f32 %v1185, %v1251
      %v1292 = vmul.f32 %v1252, %v1252
      %v1293 = vmul.f32 %v1253, %v1253
      %v1294 = vmul.f32 %v1254, %v1254
      %v1295 = vmul.f32 %v1255, %v1255
      %v1296 = vmul.f32 %v1256, %v1256
      %v1297 = vmul.f32 %v1257, %v1257
      %v1298 = vmul.f32 %v1258, %v1258
      %v1299 = vmul.f32 %v1259, %v1259
      %v1300 = vmul.f32 %v1260, %v1260
      %v1301 = vmul.f32 %v1261, %v1261
      %v1302 = vmul.f32 %v1262, %v1262
      %v1303 = vmul.f32 %v1263, %v1263
      %v1304 = vmul.f32 %v1264, %v1264
      %v1305 = vmul.f32 %v1265, %v1265
      %v1306 = vmul.f32 %v1266, %v1266
      %v1307 = vmul.f32 %v1267, %v1267
      %v1308 = vmul.f32 %v1268, %v1268
      %v1309 = vmul.f32 %v1269, %v1269
      %v1310 = vmul.f32 %v1270, %v1270
      %v1311 = vmul.f32 %v1271, %v1271
      %v1312 = vmul.f32 %v1272, %v1272
      %v1313 = vmul.f32 %v1273, %v1273
      %v1314 = vmul.f32 %v1274, %v1274
      %v1315 = vmul.f32 %v1275, %v1275
      %v1316 = vmul.f32 %v1276, %v1276
      %v1317 = vmul.f32 %v1277, %v1277
      %v1318 = vmul.f32 %v1278, %v1278
      %v1319 = vmul.f32 %v1279, %v1279
      %v1320 = vmul.f32 %v1280, %v1280
      %v1321 = vmul.f32 %v1281, %v1281
      %v1322 = vmul.f32 %v1282, %v1282
      %v1323 = vmul.f32 %v1283, %v1283
      %v1324 = vmul.f32 %v1284, %v1284
      %v1325 = vmul.f32 %v1285, %v1285
      %v1326 = vmul.f32 %v1286, %v1286
      %v1327 = vmul.f32 %v1287, %v1287
      %v1328 = vmul.f32 %v1288, %v1288
      %v1329 = vmul.f32 %v1289, %v1289
      %v1330 = vmul.f32 %v1290, %v1290
      %v1331 = vmul.f32 %v1291, %v1291
      %v1332 = vadd.f32 %v1292, %v1293
      %v1333 = vadd.f32 %v1332, %v1294
      %v1334 = vadd.f32 %v1333, %v1295
      %v1335 = vsel %vm1189, %v1296, 0.0
      %v1336 = vadd.f32 %v1334, %v1335
      %1337 = vadd.xlane.f32.xlu0 %v1336
      %v1338 = vpop.xlane.xlu0 %1337
      %v1339 = vadd.f32 %v1297, %v1298
      %v1340 = vadd.f32 %v1339, %v1299
      %v1341 = vadd.f32 %v1340, %v1300
      %v1342 = vsel %vm1189, %v1301, 0.0
      %v1343 = vadd.f32 %v1341, %v1342
      %1344 = vadd.xlane.f32.xlu0 %v1343
      %v1345 = vpop.xlane.xlu0 %1344
      %v1346 = vadd.f32 %v1302, %v1303
      %v1347 = vadd.f32 %v1346, %v1304
      %v1348 = vadd.f32 %v1347, %v1305
      %v1349 = vsel %vm1189, %v1306, 0.0
      %v1350 = vadd.f32 %v1348, %v1349
      %1351 = vadd.xlane.f32.xlu0 %v1350
      %v1352 = vpop.xlane.xlu0 %1351
      %v1353 = vadd.f32 %v1307, %v1308
      %v1354 = vadd.f32 %v1353, %v1309
      %v1355 = vadd.f32 %v1354, %v1310
      %v1356 = vsel %vm1189, %v1311, 0.0
      %v1357 = vadd.f32 %v1355, %v1356
      %1358 = vadd.xlane.f32.xlu0 %v1357
      %v1359 = vpop.xlane.xlu0 %1358
      %v1360 = vadd.f32 %v1312, %v1313
      %v1361 = vadd.f32 %v1360, %v1314
      %v1362 = vadd.f32 %v1361, %v1315
      %v1363 = vsel %vm1189, %v1316, 0.0
      %v1364 = vadd.f32 %v1362, %v1363
      %1365 = vadd.xlane.f32.xlu0 %v1364
      %v1366 = vpop.xlane.xlu0 %1365
      %v1367 = vadd.f32 %v1317, %v1318
      %v1368 = vadd.f32 %v1367, %v1319
      %v1369 = vadd.f32 %v1368, %v1320
      %v1370 = vsel %vm1189, %v1321, 0.0
      %v1371 = vadd.f32 %v1369, %v1370
      %1372 = vadd.xlane.f32.xlu0 %v1371
      %v1373 = vpop.xlane.xlu0 %1372
      %v1374 = vadd.f32 %v1322, %v1323
      %v1375 = vadd.f32 %v1374, %v1324
      %v1376 = vadd.f32 %v1375, %v1325
      %v1377 = vsel %vm1189, %v1326, 0.0
      %v1378 = vadd.f32 %v1376, %v1377
      %1379 = vadd.xlane.f32.xlu0 %v1378
      %v1380 = vpop.xlane.xlu0 %1379
      %v1381 = vadd.f32 %v1327, %v1328
      %v1382 = vadd.f32 %v1381, %v1329
      %v1383 = vadd.f32 %v1382, %v1330
      %v1384 = vsel %vm1189, %v1331, 0.0
      %v1385 = vadd.f32 %v1383, %v1384
      %1386 = vadd.xlane.f32.xlu0 %v1385
      %v1387 = vpop.xlane.xlu0 %1386
      %v1388 = vmul.f32 %v1338, %v1243
      %v1389 = vmul.f32 %v1345, %v1243
      %v1390 = vmul.f32 %v1352, %v1243
      %v1391 = vmul.f32 %v1359, %v1243
      %v1392 = vmul.f32 %v1366, %v1243
      %v1393 = vmul.f32 %v1373, %v1243
      %v1394 = vmul.f32 %v1380, %v1243
      %v1395 = vmul.f32 %v1387, %v1243
      %v1396 = vadd.f32 %v1388, 1e-05
      %v1397 = vadd.f32 %v1389, 1e-05
      %v1398 = vadd.f32 %v1390, 1e-05
      %v1399 = vadd.f32 %v1391, 1e-05
      %v1400 = vadd.f32 %v1392, 1e-05
      %v1401 = vadd.f32 %v1393, 1e-05
      %v1402 = vadd.f32 %v1394, 1e-05
      %v1403 = vadd.f32 %v1395, 1e-05
      %v1404 = vrsqrt.pop %v1396
      %v1405 = vrsqrt.pop %v1397
      %v1406 = vrsqrt.pop %v1398
      %v1407 = vrsqrt.pop %v1399
      %v1408 = vrsqrt.pop %v1400
      %v1409 = vrsqrt.pop %v1401
      %v1410 = vrsqrt.pop %v1402
      %v1411 = vrsqrt.pop %v1403
      %v1412 = vmul.f32 %v1252, %v1404
      %v1413 = vmul.f32 %v1253, %v1404
      %v1414 = vmul.f32 %v1254, %v1404
      %v1415 = vmul.f32 %v1255, %v1404
      %v1416 = vmul.f32 %v1256, %v1404
      %v1417 = vmul.f32 %v1257, %v1405
      %v1418 = vmul.f32 %v1258, %v1405
      %v1419 = vmul.f32 %v1259, %v1405
      %v1420 = vmul.f32 %v1260, %v1405
      %v1421 = vmul.f32 %v1261, %v1405
      %v1422 = vmul.f32 %v1262, %v1406
      %v1423 = vmul.f32 %v1263, %v1406
      %v1424 = vmul.f32 %v1264, %v1406
      %v1425 = vmul.f32 %v1265, %v1406
      %v1426 = vmul.f32 %v1266, %v1406
      %v1427 = vmul.f32 %v1267, %v1407
      %v1428 = vmul.f32 %v1268, %v1407
      %v1429 = vmul.f32 %v1269, %v1407
      %v1430 = vmul.f32 %v1270, %v1407
      %v1431 = vmul.f32 %v1271, %v1407
      %v1432 = vmul.f32 %v1272, %v1408
      %v1433 = vmul.f32 %v1273, %v1408
      %v1434 = vmul.f32 %v1274, %v1408
      %v1435 = vmul.f32 %v1275, %v1408
      %v1436 = vmul.f32 %v1276, %v1408
      %v1437 = vmul.f32 %v1277, %v1409
      %v1438 = vmul.f32 %v1278, %v1409
      %v1439 = vmul.f32 %v1279, %v1409
      %v1440 = vmul.f32 %v1280, %v1409
      %v1441 = vmul.f32 %v1281, %v1409
      %v1442 = vmul.f32 %v1282, %v1410
      %v1443 = vmul.f32 %v1283, %v1410
      %v1444 = vmul.f32 %v1284, %v1410
      %v1445 = vmul.f32 %v1285, %v1410
      %v1446 = vmul.f32 %v1286, %v1410
      %v1447 = vmul.f32 %v1287, %v1411
      %v1448 = vmul.f32 %v1288, %v1411
      %v1449 = vmul.f32 %v1289, %v1411
      %v1450 = vmul.f32 %v1290, %v1411
      %v1451 = vmul.f32 %v1291, %v1411
      %v1452 = vld [vmem:[%s2] sm:$0xff]
      %v1453 = vld [vmem:[%s2 + $0x8] sm:$0xff]
      %v1454 = vld [vmem:[%s2 + $0x10] sm:$0xff]
      %v1455 = vld [vmem:[%s2 + $0x18] sm:$0xff]
      %v1456 = vld [vmem:[%s2 + $0x20] sm:$0xff]
      %v1457 = vld [vmem:[%s2 + $0x28] sm:$0xff]
      %v1458 = vld [vmem:[%s2 + $0x30] sm:$0xff]
      %v1459 = vld [vmem:[%s2 + $0x38] sm:$0xff]
      %1461 = vset.pattern.permute.xlu0 0
      %1462 = vperm.xlu0 %1461, %v1452
      %v1463 = vpop.permute.xlu0 %1462
      %1466 = vset.pattern.permute.xlu0 0
      %1467 = vperm.xlu0 %1466, %v1453
      %v1468 = vpop.permute.xlu0 %1467
      %1471 = vset.pattern.permute.xlu0 0
      %1472 = vperm.xlu0 %1471, %v1454
      %v1473 = vpop.permute.xlu0 %1472
      %1476 = vset.pattern.permute.xlu0 0
      %1477 = vperm.xlu0 %1476, %v1455
      %v1478 = vpop.permute.xlu0 %1477
      %1481 = vset.pattern.permute.xlu0 0
      %1482 = vperm.xlu0 %1481, %v1456
      %v1483 = vpop.permute.xlu0 %1482
      %1486 = vset.pattern.permute.xlu0 0
      %1487 = vperm.xlu0 %1486, %v1457
      %v1488 = vpop.permute.xlu0 %1487
      %1491 = vset.pattern.permute.xlu0 0
      %1492 = vperm.xlu0 %1491, %v1458
      %v1493 = vpop.permute.xlu0 %1492
      %1496 = vset.pattern.permute.xlu0 0
      %1497 = vperm.xlu0 %1496, %v1459
      %v1498 = vpop.permute.xlu0 %1497
      %v1500 = vmul.f32 %v1412, %v1463
      %v1501 = vmul.f32 %v1413, %v1463
      %v1502 = vmul.f32 %v1414, %v1463
      %v1503 = vmul.f32 %v1415, %v1463
      %v1504 = vmul.f32 %v1416, %v1463
      %v1505 = vmul.f32 %v1417, %v1468
      %v1506 = vmul.f32 %v1418, %v1468
      %v1507 = vmul.f32 %v1419, %v1468
      %v1508 = vmul.f32 %v1420, %v1468
      %v1509 = vmul.f32 %v1421, %v1468
      %v1510 = vmul.f32 %v1422, %v1473
      %v1511 = vmul.f32 %v1423, %v1473
      %v1512 = vmul.f32 %v1424, %v1473
      %v1513 = vmul.f32 %v1425, %v1473
      %v1514 = vmul.f32 %v1426, %v1473
      %v1515 = vmul.f32 %v1427, %v1478
      %v1516 = vmul.f32 %v1428, %v1478
      %v1517 = vmul.f32 %v1429, %v1478
      %v1518 = vmul.f32 %v1430, %v1478
      %v1519 = vmul.f32 %v1431, %v1478
      %v1520 = vmul.f32 %v1432, %v1483
      %v1521 = vmul.f32 %v1433, %v1483
      %v1522 = vmul.f32 %v1434, %v1483
      %v1523 = vmul.f32 %v1435, %v1483
      %v1524 = vmul.f32 %v1436, %v1483
      %v1525 = vmul.f32 %v1437, %v1488
      %v1526 = vmul.f32 %v1438, %v1488
      %v1527 = vmul.f32 %v1439, %v1488
      %v1528 = vmul.f32 %v1440, %v1488
      %v1529 = vmul.f32 %v1441, %v1488
      %v1530 = vmul.f32 %v1442, %v1493
      %v1531 = vmul.f32 %v1443, %v1493
      %v1532 = vmul.f32 %v1444, %v1493
      %v1533 = vmul.f32 %v1445, %v1493
      %v1534 = vmul.f32 %v1446, %v1493
      %v1535 = vmul.f32 %v1447, %v1498
      %v1536 = vmul.f32 %v1448, %v1498
      %v1537 = vmul.f32 %v1449, %v1498
      %v1538 = vmul.f32 %v1450, %v1498
      %v1539 = vmul.f32 %v1451, %v1498
      %v1540 = vld [vmem:[%s3] sm:$0xff]
      %v1541 = vld [vmem:[%s3 + $0x8] sm:$0xff]
      %v1542 = vld [vmem:[%s3 + $0x10] sm:$0xff]
      %v1543 = vld [vmem:[%s3 + $0x18] sm:$0xff]
      %v1544 = vld [vmem:[%s3 + $0x20] sm:$0xff]
      %v1545 = vld [vmem:[%s3 + $0x28] sm:$0xff]
      %v1546 = vld [vmem:[%s3 + $0x30] sm:$0xff]
      %v1547 = vld [vmem:[%s3 + $0x38] sm:$0xff]
      %1549 = vset.pattern.permute.xlu0 0
      %1550 = vperm.xlu0 %1549, %v1540
      %v1551 = vpop.permute.xlu0 %1550
      %1554 = vset.pattern.permute.xlu0 0
      %1555 = vperm.xlu0 %1554, %v1541
      %v1556 = vpop.permute.xlu0 %1555
      %1559 = vset.pattern.permute.xlu0 0
      %1560 = vperm.xlu0 %1559, %v1542
      %v1561 = vpop.permute.xlu0 %1560
      %1564 = vset.pattern.permute.xlu0 0
      %1565 = vperm.xlu0 %1564, %v1543
      %v1566 = vpop.permute.xlu0 %1565
      %1569 = vset.pattern.permute.xlu0 0
      %1570 = vperm.xlu0 %1569, %v1544
      %v1571 = vpop.permute.xlu0 %1570
      %1574 = vset.pattern.permute.xlu0 0
      %1575 = vperm.xlu0 %1574, %v1545
      %v1576 = vpop.permute.xlu0 %1575
      %1579 = vset.pattern.permute.xlu0 0
      %1580 = vperm.xlu0 %1579, %v1546
      %v1581 = vpop.permute.xlu0 %1580
      %1584 = vset.pattern.permute.xlu0 0
      %1585 = vperm.xlu0 %1584, %v1547
      %v1586 = vpop.permute.xlu0 %1585
      %v1588 = vadd.f32 %v1500, %v1551
      %v1589 = vadd.f32 %v1501, %v1551
      %v1590 = vadd.f32 %v1502, %v1551
      %v1591 = vadd.f32 %v1503, %v1551
      %v1592 = vadd.f32 %v1504, %v1551
      %v1593 = vadd.f32 %v1505, %v1556
      %v1594 = vadd.f32 %v1506, %v1556
      %v1595 = vadd.f32 %v1507, %v1556
      %v1596 = vadd.f32 %v1508, %v1556
      %v1597 = vadd.f32 %v1509, %v1556
      %v1598 = vadd.f32 %v1510, %v1561
      %v1599 = vadd.f32 %v1511, %v1561
      %v1600 = vadd.f32 %v1512, %v1561
      %v1601 = vadd.f32 %v1513, %v1561
      %v1602 = vadd.f32 %v1514, %v1561
      %v1603 = vadd.f32 %v1515, %v1566
      %v1604 = vadd.f32 %v1516, %v1566
      %v1605 = vadd.f32 %v1517, %v1566
      %v1606 = vadd.f32 %v1518, %v1566
      %v1607 = vadd.f32 %v1519, %v1566
      %v1608 = vadd.f32 %v1520, %v1571
      %v1609 = vadd.f32 %v1521, %v1571
      %v1610 = vadd.f32 %v1522, %v1571
      %v1611 = vadd.f32 %v1523, %v1571
      %v1612 = vadd.f32 %v1524, %v1571
      %v1613 = vadd.f32 %v1525, %v1576
      %v1614 = vadd.f32 %v1526, %v1576
      %v1615 = vadd.f32 %v1527, %v1576
      %v1616 = vadd.f32 %v1528, %v1576
      %v1617 = vadd.f32 %v1529, %v1576
      %v1618 = vadd.f32 %v1530, %v1581
      %v1619 = vadd.f32 %v1531, %v1581
      %v1620 = vadd.f32 %v1532, %v1581
      %v1621 = vadd.f32 %v1533, %v1581
      %v1622 = vadd.f32 %v1534, %v1581
      %v1623 = vadd.f32 %v1535, %v1586
      %v1624 = vadd.f32 %v1536, %v1586
      %v1625 = vadd.f32 %v1537, %v1586
      %v1626 = vadd.f32 %v1538, %v1586
      %v1627 = vadd.f32 %v1539, %v1586
      %vm1628 = vcmp.gt.f32.partialorder %v1588, 0.0
      %vm1629 = vcmp.gt.f32.partialorder %v1589, 0.0
      %vm1630 = vcmp.gt.f32.partialorder %v1590, 0.0
      %vm1631 = vcmp.gt.f32.partialorder %v1591, 0.0
      %vm1632 = vcmp.gt.f32.partialorder %v1592, 0.0
      %vm1633 = vcmp.gt.f32.partialorder %v1593, 0.0
      %vm1634 = vcmp.gt.f32.partialorder %v1594, 0.0
      %vm1635 = vcmp.gt.f32.partialorder %v1595, 0.0
      %vm1636 = vcmp.gt.f32.partialorder %v1596, 0.0
      %vm1637 = vcmp.gt.f32.partialorder %v1597, 0.0
      %vm1638 = vcmp.gt.f32.partialorder %v1598, 0.0
      %vm1639 = vcmp.gt.f32.partialorder %v1599, 0.0
      %vm1640 = vcmp.gt.f32.partialorder %v1600, 0.0
      %vm1641 = vcmp.gt.f32.partialorder %v1601, 0.0
      %vm1642 = vcmp.gt.f32.partialorder %v1602, 0.0
      %vm1643 = vcmp.gt.f32.partialorder %v1603, 0.0
      %vm1644 = vcmp.gt.f32.partialorder %v1604, 0.0
      %vm1645 = vcmp.gt.f32.partialorder %v1605, 0.0
      %vm1646 = vcmp.gt.f32.partialorder %v1606, 0.0
      %vm1647 = vcmp.gt.f32.partialorder %v1607, 0.0
      %vm1648 = vcmp.gt.f32.partialorder %v1608, 0.0
      %vm1649 = vcmp.gt.f32.partialorder %v1609, 0.0
      %vm1650 = vcmp.gt.f32.partialorder %v1610, 0.0
      %vm1651 = vcmp.gt.f32.partialorder %v1611, 0.0
      %vm1652 = vcmp.gt.f32.partialorder %v1612, 0.0
      %vm1653 = vcmp.gt.f32.partialorder %v1613, 0.0
      %vm1654 = vcmp.gt.f32.partialorder %v1614, 0.0
      %vm1655 = vcmp.gt.f32.partialorder %v1615, 0.0
      %vm1656 = vcmp.gt.f32.partialorder %v1616, 0.0
      %vm1657 = vcmp.gt.f32.partialorder %v1617, 0.0
      %vm1658 = vcmp.gt.f32.partialorder %v1618, 0.0
      %vm1659 = vcmp.gt.f32.partialorder %v1619, 0.0
      %vm1660 = vcmp.gt.f32.partialorder %v1620, 0.0
      %vm1661 = vcmp.gt.f32.partialorder %v1621, 0.0
      %vm1662 = vcmp.gt.f32.partialorder %v1622, 0.0
      %vm1663 = vcmp.gt.f32.partialorder %v1623, 0.0
      %vm1664 = vcmp.gt.f32.partialorder %v1624, 0.0
      %vm1665 = vcmp.gt.f32.partialorder %v1625, 0.0
      %vm1666 = vcmp.gt.f32.partialorder %v1626, 0.0
      %vm1667 = vcmp.gt.f32.partialorder %v1627, 0.0
      %v1668 = vld [vmem:[%s4] sm:$0xff]
      %v1669 = vld [vmem:[%s4 + $0x8] sm:$0xff]
      %v1670 = vld [vmem:[%s4 + $0x10] sm:$0xff]
      %v1671 = vld [vmem:[%s4 + $0x18] sm:$0xff]
      %v1672 = vld [vmem:[%s4 + $0x20] sm:$0xff]
      %v1673 = vld [vmem:[%s4 + $0x28] sm:$0xff]
      %v1674 = vld [vmem:[%s4 + $0x30] sm:$0xff]
      %v1675 = vld [vmem:[%s4 + $0x38] sm:$0xff]
      %1677 = vset.pattern.permute.xlu0 0
      %1678 = vperm.xlu0 %1677, %v1668
      %v1679 = vpop.permute.xlu0 %1678
      %1682 = vset.pattern.permute.xlu0 0
      %1683 = vperm.xlu0 %1682, %v1669
      %v1684 = vpop.permute.xlu0 %1683
      %1687 = vset.pattern.permute.xlu0 0
      %1688 = vperm.xlu0 %1687, %v1670
      %v1689 = vpop.permute.xlu0 %1688
      %1692 = vset.pattern.permute.xlu0 0
      %1693 = vperm.xlu0 %1692, %v1671
      %v1694 = vpop.permute.xlu0 %1693
      %1697 = vset.pattern.permute.xlu0 0
      %1698 = vperm.xlu0 %1697, %v1672
      %v1699 = vpop.permute.xlu0 %1698
      %1702 = vset.pattern.permute.xlu0 0
      %1703 = vperm.xlu0 %1702, %v1673
      %v1704 = vpop.permute.xlu0 %1703
      %1707 = vset.pattern.permute.xlu0 0
      %1708 = vperm.xlu0 %1707, %v1674
      %v1709 = vpop.permute.xlu0 %1708
      %1712 = vset.pattern.permute.xlu0 0
      %1713 = vperm.xlu0 %1712, %v1675
      %v1714 = vpop.permute.xlu0 %1713
      %v1716 = vmul.f32 %v1679, %v1588
      %v1717 = vmul.f32 %v1679, %v1589
      %v1718 = vmul.f32 %v1679, %v1590
      %v1719 = vmul.f32 %v1679, %v1591
      %v1720 = vmul.f32 %v1679, %v1592
      %v1721 = vmul.f32 %v1684, %v1593
      %v1722 = vmul.f32 %v1684, %v1594
      %v1723 = vmul.f32 %v1684, %v1595
      %v1724 = vmul.f32 %v1684, %v1596
      %v1725 = vmul.f32 %v1684, %v1597
      %v1726 = vmul.f32 %v1689, %v1598
      %v1727 = vmul.f32 %v1689, %v1599
      %v1728 = vmul.f32 %v1689, %v1600
      %v1729 = vmul.f32 %v1689, %v1601
      %v1730 = vmul.f32 %v1689, %v1602
      %v1731 = vmul.f32 %v1694, %v1603
      %v1732 = vmul.f32 %v1694, %v1604
      %v1733 = vmul.f32 %v1694, %v1605
      %v1734 = vmul.f32 %v1694, %v1606
      %v1735 = vmul.f32 %v1694, %v1607
      %v1736 = vmul.f32 %v1699, %v1608
      %v1737 = vmul.f32 %v1699, %v1609
      %v1738 = vmul.f32 %v1699, %v1610
      %v1739 = vmul.f32 %v1699, %v1611
      %v1740 = vmul.f32 %v1699, %v1612
      %v1741 = vmul.f32 %v1704, %v1613
      %v1742 = vmul.f32 %v1704, %v1614
      %v1743 = vmul.f32 %v1704, %v1615
      %v1744 = vmul.f32 %v1704, %v1616
      %v1745 = vmul.f32 %v1704, %v1617
      %v1746 = vmul.f32 %v1709, %v1618
      %v1747 = vmul.f32 %v1709, %v1619
      %v1748 = vmul.f32 %v1709, %v1620
      %v1749 = vmul.f32 %v1709, %v1621
      %v1750 = vmul.f32 %v1709, %v1622
      %v1751 = vmul.f32 %v1714, %v1623
      %v1752 = vmul.f32 %v1714, %v1624
      %v1753 = vmul.f32 %v1714, %v1625
      %v1754 = vmul.f32 %v1714, %v1626
      %v1755 = vmul.f32 %v1714, %v1627
      %v1756 = vsel %vm1628, %v1588, %v1716
      %v1757 = vsel %vm1629, %v1589, %v1717
      %v1758 = vsel %vm1630, %v1590, %v1718
      %v1759 = vsel %vm1631, %v1591, %v1719
      %v1760 = vsel %vm1632, %v1592, %v1720
      %v1761 = vsel %vm1633, %v1593, %v1721
      %v1762 = vsel %vm1634, %v1594, %v1722
      %v1763 = vsel %vm1635, %v1595, %v1723
      %v1764 = vsel %vm1636, %v1596, %v1724
      %v1765 = vsel %vm1637, %v1597, %v1725
      %v1766 = vsel %vm1638, %v1598, %v1726
      %v1767 = vsel %vm1639, %v1599, %v1727
      %v1768 = vsel %vm1640, %v1600, %v1728
      %v1769 = vsel %vm1641, %v1601, %v1729
      %v1770 = vsel %vm1642, %v1602, %v1730
      %v1771 = vsel %vm1643, %v1603, %v1731
      %v1772 = vsel %vm1644, %v1604, %v1732
      %v1773 = vsel %vm1645, %v1605, %v1733
      %v1774 = vsel %vm1646, %v1606, %v1734
      %v1775 = vsel %vm1647, %v1607, %v1735
      %v1776 = vsel %vm1648, %v1608, %v1736
      %v1777 = vsel %vm1649, %v1609, %v1737
      %v1778 = vsel %vm1650, %v1610, %v1738
      %v1779 = vsel %vm1651, %v1611, %v1739
      %v1780 = vsel %vm1652, %v1612, %v1740
      %v1781 = vsel %vm1653, %v1613, %v1741
      %v1782 = vsel %vm1654, %v1614, %v1742
      %v1783 = vsel %vm1655, %v1615, %v1743
      %v1784 = vsel %vm1656, %v1616, %v1744
      %v1785 = vsel %vm1657, %v1617, %v1745
      %v1786 = vsel %vm1658, %v1618, %v1746
      %v1787 = vsel %vm1659, %v1619, %v1747
      %v1788 = vsel %vm1660, %v1620, %v1748
      %v1789 = vsel %vm1661, %v1621, %v1749
      %v1790 = vsel %vm1662, %v1622, %v1750
      %v1791 = vsel %vm1663, %v1623, %v1751
      %v1792 = vsel %vm1664, %v1624, %v1752
      %v1793 = vsel %vm1665, %v1625, %v1753
      %v1794 = vsel %vm1666, %v1626, %v1754
      %v1795 = vsel %vm1667, %v1627, %v1755
      %1796 = vst [vmem:[%s251] sm:$0xff] %v1756
      %1797 = vst [vmem:[%s251 + $0x8] sm:$0xff] %v1757
      %1798 = vst [vmem:[%s251 + $0x10] sm:$0xff] %v1758
      %1799 = vst [vmem:[%s251 + $0x18] sm:$0xff] %v1759
      %1800 = vst.msk [vmem:[%s251 + $0x20] sm:$0xff] %vm1189, %v1760
      %1801 = vst [vmem:[%s251 + $0x28] sm:$0xff] %v1761
      %1802 = vst [vmem:[%s251 + $0x30] sm:$0xff] %v1762
      %1803 = vst [vmem:[%s251 + $0x38] sm:$0xff] %v1763
      %1804 = vst [vmem:[%s251 + $0x40] sm:$0xff] %v1764
      %1805 = vst.msk [vmem:[%s251 + $0x48] sm:$0xff] %vm1189, %v1765
      %1806 = vst [vmem:[%s251 + $0x50] sm:$0xff] %v1766
      %1807 = vst [vmem:[%s251 + $0x58] sm:$0xff] %v1767
      %1808 = vst [vmem:[%s251 + $0x60] sm:$0xff] %v1768
      %1809 = vst [vmem:[%s251 + $0x68] sm:$0xff] %v1769
      %1810 = vst.msk [vmem:[%s251 + $0x70] sm:$0xff] %vm1189, %v1770
      %1811 = vst [vmem:[%s251 + $0x78] sm:$0xff] %v1771
      %1812 = vst [vmem:[%s251 + $0x80] sm:$0xff] %v1772
      %1813 = vst [vmem:[%s251 + $0x88] sm:$0xff] %v1773
      %1814 = vst [vmem:[%s251 + $0x90] sm:$0xff] %v1774
      %1815 = vst.msk [vmem:[%s251 + $0x98] sm:$0xff] %vm1189, %v1775
      %1816 = vst [vmem:[%s251 + $0xa0] sm:$0xff] %v1776
      %1817 = vst [vmem:[%s251 + $0xa8] sm:$0xff] %v1777
      %1818 = vst [vmem:[%s251 + $0xb0] sm:$0xff] %v1778
      %1819 = vst [vmem:[%s251 + $0xb8] sm:$0xff] %v1779
      %1820 = vst.msk [vmem:[%s251 + $0xc0] sm:$0xff] %vm1189, %v1780
      %1821 = vst [vmem:[%s251 + $0xc8] sm:$0xff] %v1781
      %1822 = vst [vmem:[%s251 + $0xd0] sm:$0xff] %v1782
      %1823 = vst [vmem:[%s251 + $0xd8] sm:$0xff] %v1783
      %1824 = vst [vmem:[%s251 + $0xe0] sm:$0xff] %v1784
      %1825 = vst.msk [vmem:[%s251 + $0xe8] sm:$0xff] %vm1189, %v1785
      %1826 = vst [vmem:[%s251 + $0xf0] sm:$0xff] %v1786
      %1827 = vst [vmem:[%s251 + $0xf8] sm:$0xff] %v1787
      %1828 = vst [vmem:[%s251 + $0x100] sm:$0xff] %v1788
      %1829 = vst [vmem:[%s251 + $0x108] sm:$0xff] %v1789
      %1830 = vst.msk [vmem:[%s251 + $0x110] sm:$0xff] %vm1189, %v1790
      %1831 = vst [vmem:[%s251 + $0x118] sm:$0xff] %v1791
      %1832 = vst [vmem:[%s251 + $0x120] sm:$0xff] %v1792
      %1833 = vst [vmem:[%s251 + $0x128] sm:$0xff] %v1793
      %1834 = vst [vmem:[%s251 + $0x130] sm:$0xff] %v1794
      %1835 = vst.msk [vmem:[%s251 + $0x138] sm:$0xff] %vm1189, %v1795
      %p1836 = scmp.lt.s32.totalorder %s17, 1
      %s1837 = scalar_select %p1836, %s17, 1
      %s1838 = smul.addr %s1837, 40
      %s1839 = smul.addr %s1838, 8
      %s1840 = scalar_lea.vmem %s6, %s1839
      // Predicated region
      $region45: #{encoder_forward.5} parent=43 // pred_check
        %p1841 = pneg %p166
      $region46: #{encoder_forward.5} parent=43 // pred_check_branch
        %1843 = sbr.rel (%p1841) target = $region48
      $region47: #{encoder_forward.5} parent=43 // pred_region
        _
      $region48: #{encoder_forward.5} parent=43 // pred_fallthru
        _
    $region44: #{encoder_forward.5} parent=5 // pred_fallthru
      _
    %p1844 = scmp.le.s32.totalorder 2, %s12
    // Predicated region
    $region49: #{encoder_forward.5} parent=5 // pred_check
      %p1845 = pneg %p1844
    $region50: #{encoder_forward.5} parent=5 // pred_check_branch
      %1847 = sbr.rel (%p1845) target = $region52
    $region51: #{encoder_forward.5} parent=5 // pred_region
      %s1848 = ssub.s32 %s12, 2
      // Predicated region
      $region53: #{encoder_forward.5} parent=51 // pred_check
        %p1849 = pneg %p172
      $region54: #{encoder_forward.5} parent=51 // pred_check_branch
        %1851 = sbr.rel (%p1849) target = $region56
      $region55: #{encoder_forward.5} parent=51 // pred_region
        %p1852 = scmp.lt.s32.totalorder %s18, 1
        %s1853 = scalar_select %p1852, %s18, 1
        %s1854 = smul.addr %s1853, 40
        %s1855 = smul.addr %s1854, 8
        %s1856 = scalar_lea.vmem %s6, %s1855
      $region56: #{encoder_forward.5} parent=51 // pred_fallthru
        _
    $region52: #{encoder_forward.5} parent=5 // pred_fallthru
      _
  $region6: #{encoder_forward.5} parent=0 // loop_footer
    %s16 = sadd.s32 1, %s12
  $region7: #{encoder_forward.5} parent=0 // loop_footer_branch
    %11 = sbr.rel target = $region3
  $region8: #{encoder_forward.5} parent=0 // loop_exit
    _

// kernel: encoder_forward.6
$region0: #{encoder_forward.6}
  #allocation0 [shape = 'u32[]', space=smem, size = 0x4, offset = 0x4, fixed_abs, tag = 'smem constant byte address 0x4 - core index']
  #allocation1 [shape = 'u32[144,128]{1,0:T(1,128)}', space=vmem, size = 0x12000, scoped, tag = 'internal scratch']
  %s0 = inlined_call_operand.vmem [shape: f32[128,384], index: 0, kind: input, shape index: {}]
  %s1 = inlined_call_operand.vmem [shape: f32[128,1], index: 1, kind: input, shape index: {}]
  %s2 = inlined_call_operand.vmem [shape: f32[64,1], index: 2, kind: input, shape index: {}]
  %s3 = inlined_call_operand.vmem [shape: f32[64,1], index: 3, kind: input, shape index: {}]
  %s4 = inlined_call_operand.vmem [shape: f32[64,1], index: 4, kind: input, shape index: {}]
  %s5 = inlined_call_operand.vmem [shape: f32[2,384,312], index: 5, kind: input, shape index: {}]
  %s6 = inlined_call_operand.vmem [shape: f32[2,64,312], index: 6, kind: output, shape index: {}]
  %s7 = sld [smem:[#allocation0]]
  $region57: #{encoder_forward.6} parent=0
    _
  %s9 = ssub.s32 1, %s7
  %s10 = scalar_select 0, %s9, %s7
  loop: start=0, step=1, limit=4
  $region2: #{encoder_forward.6} parent=0 // loop_pre_header
    _
  $region3: #{encoder_forward.6} parent=0 // loop_header
    %s12 = sphi 0, %s16
    %p13 = scmp.ge.s32.totalorder %s12, 4
    %s20 = sphi 0, %s20
    %s22 = sphi 0, %s20
    %s23 = sphi 0, %s22
    %s37 = sphi 0, %s23
    %s41 = sphi 0, %s41
    %s43 = sphi 0, %s41
    %s44 = sphi 0, %s43
    %s58 = sphi 0, %s44
    %s62 = sphi 0, %s62
    %s64 = sphi 0, %s62
    %s65 = sphi 0, %s64
    %s79 = sphi 0, %s65
    %s83 = sphi 0, %s83
    %s85 = sphi 0, %s83
    %s86 = sphi 0, %s85
    %s100 = sphi 0, %s86
    %s104 = sphi 0, %s104
    %s106 = sphi 0, %s104
    %s107 = sphi 0, %s106
    %s121 = sphi 0, %s107
    %s127 = sphi 0, %s129
    %s130 = sphi 0, %s127
    %s131 = sphi 0, %s130
    %s147 = sphi 0, %s131
    %s153 = sphi 0, %s155
    %s156 = sphi 0, %s153
    %s157 = sphi 0, %s156
    %s173 = sphi 0, %s157
  $region4: #{encoder_forward.6} parent=0 // loop_header_branch
    %15 = sbr.rel (%p13) target = $region8
  $region5: #{encoder_forward.6} parent=0 // loop_body
    %s17 = ssub.s32 %s12, 1
    %s18 = ssub.s32 %s12, 2
    %s19 = sadd.s32 %s12, 1
    %s21 = sadd.s32 %s20, 1
    %p24 = scmp.eq.s32.totalorder %s12, 1
    %p25 = scmp.ne.s32.totalorder %s20, %s22
    %p26 = scmp.eq.s32.totalorder %s12, 0
    %p27 = por %p25, %p26
    %p28 = scmp.ne.s32.totalorder %s20, %s22
    %p29 = scmp.eq.s32.totalorder %s17, 1
    %p30 = por %p28, %p29
    %p31 = scmp.ne.s32.totalorder %s22, %s23
    %p32 = scmp.eq.s32.totalorder %s17, 0
    %p33 = por %p31, %p32
    %p34 = scmp.ne.s32.totalorder %s22, %s23
    %p35 = scmp.eq.s32.totalorder %s18, 1
    %p36 = por %p34, %p35
    %p38 = scmp.ne.s32.totalorder %s23, %s37
    %p39 = scmp.eq.s32.totalorder %s18, 0
    %p40 = por %p38, %p39
    %s42 = sadd.s32 %s41, 1
    %p45 = scmp.eq.s32.totalorder %s12, 1
    %p46 = scmp.ne.s32.totalorder %s41, %s43
    %p47 = scmp.eq.s32.totalorder %s12, 0
    %p48 = por %p46, %p47
    %p49 = scmp.ne.s32.totalorder %s41, %s43
    %p50 = scmp.eq.s32.totalorder %s17, 1
    %p51 = por %p49, %p50
    %p52 = scmp.ne.s32.totalorder %s43, %s44
    %p53 = scmp.eq.s32.totalorder %s17, 0
    %p54 = por %p52, %p53
    %p55 = scmp.ne.s32.totalorder %s43, %s44
    %p56 = scmp.eq.s32.totalorder %s18, 1
    %p57 = por %p55, %p56
    %p59 = scmp.ne.s32.totalorder %s44, %s58
    %p60 = scmp.eq.s32.totalorder %s18, 0
    %p61 = por %p59, %p60
    %s63 = sadd.s32 %s62, 1
    %p66 = scmp.eq.s32.totalorder %s12, 1
    %p67 = scmp.ne.s32.totalorder %s62, %s64
    %p68 = scmp.eq.s32.totalorder %s12, 0
    %p69 = por %p67, %p68
    %p70 = scmp.ne.s32.totalorder %s62, %s64
    %p71 = scmp.eq.s32.totalorder %s17, 1
    %p72 = por %p70, %p71
    %p73 = scmp.ne.s32.totalorder %s64, %s65
    %p74 = scmp.eq.s32.totalorder %s17, 0
    %p75 = por %p73, %p74
    %p76 = scmp.ne.s32.totalorder %s64, %s65
    %p77 = scmp.eq.s32.totalorder %s18, 1
    %p78 = por %p76, %p77
    %p80 = scmp.ne.s32.totalorder %s65, %s79
    %p81 = scmp.eq.s32.totalorder %s18, 0
    %p82 = por %p80, %p81
    %s84 = sadd.s32 %s83, 1
    %p87 = scmp.eq.s32.totalorder %s12, 1
    %p88 = scmp.ne.s32.totalorder %s83, %s85
    %p89 = scmp.eq.s32.totalorder %s12, 0
    %p90 = por %p88, %p89
    %p91 = scmp.ne.s32.totalorder %s83, %s85
    %p92 = scmp.eq.s32.totalorder %s17, 1
    %p93 = por %p91, %p92
    %p94 = scmp.ne.s32.totalorder %s85, %s86
    %p95 = scmp.eq.s32.totalorder %s17, 0
    %p96 = por %p94, %p95
    %p97 = scmp.ne.s32.totalorder %s85, %s86
    %p98 = scmp.eq.s32.totalorder %s18, 1
    %p99 = por %p97, %p98
    %p101 = scmp.ne.s32.totalorder %s86, %s100
    %p102 = scmp.eq.s32.totalorder %s18, 0
    %p103 = por %p101, %p102
    %s105 = sadd.s32 %s104, 1
    %p108 = scmp.eq.s32.totalorder %s12, 1
    %p109 = scmp.ne.s32.totalorder %s104, %s106
    %p110 = scmp.eq.s32.totalorder %s12, 0
    %p111 = por %p109, %p110
    %p112 = scmp.ne.s32.totalorder %s104, %s106
    %p113 = scmp.eq.s32.totalorder %s17, 1
    %p114 = por %p112, %p113
    %p115 = scmp.ne.s32.totalorder %s106, %s107
    %p116 = scmp.eq.s32.totalorder %s17, 0
    %p117 = por %p115, %p116
    %p118 = scmp.ne.s32.totalorder %s106, %s107
    %p119 = scmp.eq.s32.totalorder %s18, 1
    %p120 = por %p118, %p119
    %p122 = scmp.ne.s32.totalorder %s107, %s121
    %p123 = scmp.eq.s32.totalorder %s18, 0
    %p124 = por %p122, %p123
    %s125 = ssub.s32 %s12, %s19
    %p126 = scmp.eq.s32.totalorder %s125, 0
    %s128 = sadd.s32 %s127, 1
    %s129 = scalar_select %p126, %s127, %s128
    %p132 = pneg %p126
    %p133 = scmp.eq.s32.totalorder %s12, 1
    %p134 = por %p132, %p133
    %p135 = scmp.ne.s32.totalorder %s127, %s130
    %p136 = scmp.eq.s32.totalorder %s12, 0
    %p137 = por %p135, %p136
    %p138 = scmp.ne.s32.totalorder %s127, %s130
    %p139 = scmp.eq.s32.totalorder %s17, 1
    %p140 = por %p138, %p139
    %p141 = scmp.ne.s32.totalorder %s130, %s131
    %p142 = scmp.eq.s32.totalorder %s17, 0
    %p143 = por %p141, %p142
    %p144 = scmp.ne.s32.totalorder %s130, %s131
    %p145 = scmp.eq.s32.totalorder %s18, 1
    %p146 = por %p144, %p145
    %p148 = scmp.ne.s32.totalorder %s131, %s147
    %p149 = scmp.eq.s32.totalorder %s18, 0
    %p150 = por %p148, %p149
    %s151 = ssub.s32 %s12, %s19
    %p152 = scmp.eq.s32.totalorder %s151, 0
    %s154 = sadd.s32 %s153, 1
    %s155 = scalar_select %p152, %s153, %s154
    %p158 = pneg %p152
    %p159 = scmp.eq.s32.totalorder %s12, 1
    %p160 = por %p158, %p159
    %p161 = scmp.ne.s32.totalorder %s153, %s156
    %p162 = scmp.eq.s32.totalorder %s12, 0
    %p163 = por %p161, %p162
    %p164 = scmp.ne.s32.totalorder %s153, %s156
    %p165 = scmp.eq.s32.totalorder %s17, 1
    %p166 = por %p164, %p165
    %p167 = scmp.ne.s32.totalorder %s156, %s157
    %p168 = scmp.eq.s32.totalorder %s17, 0
    %p169 = por %p167, %p168
    %p170 = scmp.ne.s32.totalorder %s156, %s157
    %p171 = scmp.eq.s32.totalorder %s18, 1
    %p172 = por %p170, %p171
    %p174 = scmp.ne.s32.totalorder %s157, %s173
    %p175 = scmp.eq.s32.totalorder %s18, 0
    %p176 = por %p174, %p175
    %p177 = scmp.le.s32.totalorder 1, %s12
    %p178 = scmp.lt.s32.totalorder %s12, 3
    %p179 = pnand %p177, %p178
    %p180 = pneg %p179
    // Predicated region
    $region9: #{encoder_forward.6} parent=5 // pred_check
      _
    $region10: #{encoder_forward.6} parent=5 // pred_check_branch
      %182 = sbr.rel (%p179) target = $region12
    $region11: #{encoder_forward.6} parent=5 // pred_region
      %s183 = ssub.s32 %s12, 1
      // Predicated region
      $region13: #{encoder_forward.6} parent=11 // pred_check
        %p184 = pneg %p33
      $region14: #{encoder_forward.6} parent=11 // pred_check_branch
        %186 = sbr.rel (%p184) target = $region16
      $region15: #{encoder_forward.6} parent=11 // pred_region
        _
      $region16: #{encoder_forward.6} parent=11 // pred_fallthru
        _
      // Predicated region
      $region17: #{encoder_forward.6} parent=11 // pred_check
        %p187 = pneg %p54
      $region18: #{encoder_forward.6} parent=11 // pred_check_branch
        %189 = sbr.rel (%p187) target = $region20
      $region19: #{encoder_forward.6} parent=11 // pred_region
        _
      $region20: #{encoder_forward.6} parent=11 // pred_fallthru
        _
      // Predicated region
      $region21: #{encoder_forward.6} parent=11 // pred_check
        %p190 = pneg %p75
      $region22: #{encoder_forward.6} parent=11 // pred_check_branch
        %192 = sbr.rel (%p190) target = $region24
      $region23: #{encoder_forward.6} parent=11 // pred_region
        _
      $region24: #{encoder_forward.6} parent=11 // pred_fallthru
        _
      // Predicated region
      $region25: #{encoder_forward.6} parent=11 // pred_check
        %p193 = pneg %p96
      $region26: #{encoder_forward.6} parent=11 // pred_check_branch
        %195 = sbr.rel (%p193) target = $region28
      $region27: #{encoder_forward.6} parent=11 // pred_region
        _
      $region28: #{encoder_forward.6} parent=11 // pred_fallthru
        _
      // Predicated region
      $region29: #{encoder_forward.6} parent=11 // pred_check
        %p196 = pneg %p117
      $region30: #{encoder_forward.6} parent=11 // pred_check_branch
        %198 = sbr.rel (%p196) target = $region32
      $region31: #{encoder_forward.6} parent=11 // pred_region
        _
      $region32: #{encoder_forward.6} parent=11 // pred_fallthru
        _
    $region12: #{encoder_forward.6} parent=5 // pred_fallthru
      _
    %p199 = scmp.lt.s32.totalorder %s12, 2
    // Predicated region
    $region33: #{encoder_forward.6} parent=5 // pred_check
      %p200 = pneg %p199
    $region34: #{encoder_forward.6} parent=5 // pred_check_branch
      %202 = sbr.rel (%p200) target = $region36
    $region35: #{encoder_forward.6} parent=5 // pred_region
      // Predicated region
      $region37: #{encoder_forward.6} parent=35 // pred_check
        %p203 = pneg %p137
      $region38: #{encoder_forward.6} parent=35 // pred_check_branch
        %205 = sbr.rel (%p203) target = $region40
      $region39: #{encoder_forward.6} parent=35 // pred_region
        %p206 = scmp.lt.s32.totalorder %s12, 1
        %s207 = scalar_select %p206, %s12, 1
        %s208 = smul.addr %s207, 144
        %s209 = smul.addr %s208, 8
        %s210 = scalar_lea.vmem %s5, %s209
      $region40: #{encoder_forward.6} parent=35 // pred_fallthru
        _
    $region36: #{encoder_forward.6} parent=5 // pred_fallthru
      _
    %p211 = scmp.le.s32.totalorder 1, %s12
    %p212 = scmp.lt.s32.totalorder %s12, 3
    %p213 = pnand %p211, %p212
    %p214 = pneg %p213
    // Predicated region
    $region41: #{encoder_forward.6} parent=5 // pred_check
      _
    $region42: #{encoder_forward.6} parent=5 // pred_check_branch
      %216 = sbr.rel (%p213) target = $region44
    $region43: #{encoder_forward.6} parent=5 // pred_region
      %s217 = ssub.s32 %s12, 1
      %p218 = pneg %p33
      %p219 = pneg %p30
      %p220 = pneg %p54
      %p221 = pneg %p51
      %p222 = pneg %p75
      %p223 = pneg %p72
      %p224 = pneg %p96
      %p225 = pneg %p93
      %p226 = pneg %p117
      %p227 = pneg %p114
      %p228 = scmp.lt.s32.totalorder %s17, 1
      %s229 = scalar_select %p228, %s17, 1
      %s230 = smul.addr %s229, 144
      %s231 = smul.addr %s230, 8
      %s232 = scalar_lea.vmem %s5, %s231
      %p233 = pneg %p143
      %p234 = pneg %p140
      %p235 = pneg %p169
      %p236 = pneg %p166
      %p237 = scmp.lt.s32.totalorder %s17, 1
      %s238 = scalar_select %p237, %s17, 1
      %s239 = smul.addr %s238, 24
      %s240 = smul.addr %s239, 8
      %s241 = scalar_lea.vmem %s6, %s240
      %p242 = scmp.lt.s32.totalorder %s17, 1
      %s243 = scalar_select %p242, %s17, 1
      %s244 = smul.addr %s243, 144
      %s245 = smul.addr %s244, 8
      %s246 = scalar_lea.vmem %s5, %s245
      %p247 = scmp.lt.s32.totalorder %s17, 1
      %s248 = scalar_select %p247, %s17, 1
      %s249 = smul.addr %s248, 24
      %s250 = smul.addr %s249, 8
      %s251 = scalar_lea.vmem %s6, %s250
      %v252 = vld [vmem:[%s246] sm:$0xff]
      %v253 = vld [vmem:[%s246 + $0x8] sm:$0xff]
      %v254 = vld [vmem:[%s246 + $0x10] sm:$0xff]
      %v255 = vld [vmem:[%s246 + $0x18] sm:$0xff]
      %v256 = vld [vmem:[%s246 + $0x20] sm:$0xff]
      %v257 = vld [vmem:[%s246 + $0x28] sm:$0xff]
      %v258 = vld [vmem:[%s246 + $0x30] sm:$0xff]
      %v259 = vld [vmem:[%s246 + $0x38] sm:$0xff]
      %v260 = vld [vmem:[%s246 + $0x40] sm:$0xff]
      %v261 = vld [vmem:[%s246 + $0x48] sm:$0xff]
      %v262 = vld [vmem:[%s246 + $0x50] sm:$0xff]
      %v263 = vld [vmem:[%s246 + $0x58] sm:$0xff]
      %v264 = vld [vmem:[%s246 + $0x60] sm:$0xff]
      %v265 = vld [vmem:[%s246 + $0x68] sm:$0xff]
      %v266 = vld [vmem:[%s246 + $0x70] sm:$0xff]
      %v267 = vld [vmem:[%s246 + $0x78] sm:$0xff]
      %v268 = vld [vmem:[%s246 + $0x80] sm:$0xff]
      %v269 = vld [vmem:[%s246 + $0x88] sm:$0xff]
      %v270 = vld [vmem:[%s246 + $0x90] sm:$0xff]
      %v271 = vld [vmem:[%s246 + $0x98] sm:$0xff]
      %v272 = vld [vmem:[%s246 + $0xa0] sm:$0xff]
      %v273 = vld [vmem:[%s246 + $0xa8] sm:$0xff]
      %v274 = vld [vmem:[%s246 + $0xb0] sm:$0xff]
      %v275 = vld [vmem:[%s246 + $0xb8] sm:$0xff]
      %v276 = vld [vmem:[%s246 + $0xc0] sm:$0xff]
      %v277 = vld [vmem:[%s246 + $0xc8] sm:$0xff]
      %v278 = vld [vmem:[%s246 + $0xd0] sm:$0xff]
      %v279 = vld [vmem:[%s246 + $0xd8] sm:$0xff]
      %v280 = vld [vmem:[%s246 + $0xe0] sm:$0xff]
      %v281 = vld [vmem:[%s246 + $0xe8] sm:$0xff]
      %v282 = vld [vmem:[%s246 + $0xf0] sm:$0xff]
      %v283 = vld [vmem:[%s246 + $0xf8] sm:$0xff]
      %v284 = vld [vmem:[%s246 + $0x100] sm:$0xff]
      %v285 = vld [vmem:[%s246 + $0x108] sm:$0xff]
      %v286 = vld [vmem:[%s246 + $0x110] sm:$0xff]
      %v287 = vld [vmem:[%s246 + $0x118] sm:$0xff]
      %v288 = vld [vmem:[%s246 + $0x120] sm:$0xff]
      %v289 = vld [vmem:[%s246 + $0x128] sm:$0xff]
      %v290 = vld [vmem:[%s246 + $0x130] sm:$0xff]
      %v291 = vld [vmem:[%s246 + $0x138] sm:$0xff]
      %v292 = vld [vmem:[%s246 + $0x140] sm:$0xff]
      %v293 = vld [vmem:[%s246 + $0x148] sm:$0xff]
      %v294 = vld [vmem:[%s246 + $0x150] sm:$0xff]
      %v295 = vld [vmem:[%s246 + $0x158] sm:$0xff]
      %v296 = vld [vmem:[%s246 + $0x160] sm:$0xff]
      %v297 = vld [vmem:[%s246 + $0x168] sm:$0xff]
      %v298 = vld [vmem:[%s246 + $0x170] sm:$0xff]
      %v299 = vld [vmem:[%s246 + $0x178] sm:$0xff]
      %v300 = vld [vmem:[%s246 + $0x180] sm:$0xff]
      %v301 = vld [vmem:[%s246 + $0x188] sm:$0xff]
      %v302 = vld [vmem:[%s246 + $0x190] sm:$0xff]
      %v303 = vld [vmem:[%s246 + $0x198] sm:$0xff]
      %v304 = vld [vmem:[%s246 + $0x1a0] sm:$0xff]
      %v305 = vld [vmem:[%s246 + $0x1a8] sm:$0xff]
      %v306 = vld [vmem:[%s246 + $0x1b0] sm:$0xff]
      %v307 = vld [vmem:[%s246 + $0x1b8] sm:$0xff]
      %v308 = vld [vmem:[%s246 + $0x1c0] sm:$0xff]
      %v309 = vld [vmem:[%s246 + $0x1c8] sm:$0xff]
      %v310 = vld [vmem:[%s246 + $0x1d0] sm:$0xff]
      %v311 = vld [vmem:[%s246 + $0x1d8] sm:$0xff]
      %v312 = vld [vmem:[%s246 + $0x1e0] sm:$0xff]
      %v313 = vld [vmem:[%s246 + $0x1e8] sm:$0xff]
      %v314 = vld [vmem:[%s246 + $0x1f0] sm:$0xff]
      %v315 = vld [vmem:[%s246 + $0x1f8] sm:$0xff]
      %v316 = vld [vmem:[%s246 + $0x200] sm:$0xff]
      %v317 = vld [vmem:[%s246 + $0x208] sm:$0xff]
      %v318 = vld [vmem:[%s246 + $0x210] sm:$0xff]
      %v319 = vld [vmem:[%s246 + $0x218] sm:$0xff]
      %v320 = vld [vmem:[%s246 + $0x220] sm:$0xff]
      %v321 = vld [vmem:[%s246 + $0x228] sm:$0xff]
      %v322 = vld [vmem:[%s246 + $0x230] sm:$0xff]
      %v323 = vld [vmem:[%s246 + $0x238] sm:$0xff]
      %v324 = vld [vmem:[%s246 + $0x240] sm:$0xff]
      %v325 = vld [vmem:[%s246 + $0x248] sm:$0xff]
      %v326 = vld [vmem:[%s246 + $0x250] sm:$0xff]
      %v327 = vld [vmem:[%s246 + $0x258] sm:$0xff]
      %v328 = vld [vmem:[%s246 + $0x260] sm:$0xff]
      %v329 = vld [vmem:[%s246 + $0x268] sm:$0xff]
      %v330 = vld [vmem:[%s246 + $0x270] sm:$0xff]
      %v331 = vld [vmem:[%s246 + $0x278] sm:$0xff]
      %v332 = vld [vmem:[%s246 + $0x280] sm:$0xff]
      %v333 = vld [vmem:[%s246 + $0x288] sm:$0xff]
      %v334 = vld [vmem:[%s246 + $0x290] sm:$0xff]
      %v335 = vld [vmem:[%s246 + $0x298] sm:$0xff]
      %v336 = vld [vmem:[%s246 + $0x2a0] sm:$0xff]
      %v337 = vld [vmem:[%s246 + $0x2a8] sm:$0xff]
      %v338 = vld [vmem:[%s246 + $0x2b0] sm:$0xff]
      %v339 = vld [vmem:[%s246 + $0x2b8] sm:$0xff]
      %v340 = vld [vmem:[%s246 + $0x2c0] sm:$0xff]
      %v341 = vld [vmem:[%s246 + $0x2c8] sm:$0xff]
      %v342 = vld [vmem:[%s246 + $0x2d0] sm:$0xff]
      %v343 = vld [vmem:[%s246 + $0x2d8] sm:$0xff]
      %v344 = vld [vmem:[%s246 + $0x2e0] sm:$0xff]
      %v345 = vld [vmem:[%s246 + $0x2e8] sm:$0xff]
      %v346 = vld [vmem:[%s246 + $0x2f0] sm:$0xff]
      %v347 = vld [vmem:[%s246 + $0x2f8] sm:$0xff]
      %v348 = vld [vmem:[%s246 + $0x300] sm:$0xff]
      %v349 = vld [vmem:[%s246 + $0x308] sm:$0xff]
      %v350 = vld [vmem:[%s246 + $0x310] sm:$0xff]
      %v351 = vld [vmem:[%s246 + $0x318] sm:$0xff]
      %v352 = vld [vmem:[%s246 + $0x320] sm:$0xff]
      %v353 = vld [vmem:[%s246 + $0x328] sm:$0xff]
      %v354 = vld [vmem:[%s246 + $0x330] sm:$0xff]
      %v355 = vld [vmem:[%s246 + $0x338] sm:$0xff]
      %v356 = vld [vmem:[%s246 + $0x340] sm:$0xff]
      %v357 = vld [vmem:[%s246 + $0x348] sm:$0xff]
      %v358 = vld [vmem:[%s246 + $0x350] sm:$0xff]
      %v359 = vld [vmem:[%s246 + $0x358] sm:$0xff]
      %v360 = vld [vmem:[%s246 + $0x360] sm:$0xff]
      %v361 = vld [vmem:[%s246 + $0x368] sm:$0xff]
      %v362 = vld [vmem:[%s246 + $0x370] sm:$0xff]
      %v363 = vld [vmem:[%s246 + $0x378] sm:$0xff]
      %v364 = vld [vmem:[%s246 + $0x380] sm:$0xff]
      %v365 = vld [vmem:[%s246 + $0x388] sm:$0xff]
      %v366 = vld [vmem:[%s246 + $0x390] sm:$0xff]
      %v367 = vld [vmem:[%s246 + $0x398] sm:$0xff]
      %v368 = vld [vmem:[%s246 + $0x3a0] sm:$0xff]
      %v369 = vld [vmem:[%s246 + $0x3a8] sm:$0xff]
      %v370 = vld [vmem:[%s246 + $0x3b0] sm:$0xff]
      %v371 = vld [vmem:[%s246 + $0x3b8] sm:$0xff]
      %v372 = vld [vmem:[%s246 + $0x3c0] sm:$0xff]
      %v373 = vld [vmem:[%s246 + $0x3c8] sm:$0xff]
      %v374 = vld [vmem:[%s246 + $0x3d0] sm:$0xff]
      %v375 = vld [vmem:[%s246 + $0x3d8] sm:$0xff]
      %v376 = vld [vmem:[%s246 + $0x3e0] sm:$0xff]
      %v377 = vld [vmem:[%s246 + $0x3e8] sm:$0xff]
      %v378 = vld [vmem:[%s246 + $0x3f0] sm:$0xff]
      %v379 = vld [vmem:[%s246 + $0x3f8] sm:$0xff]
      %v380 = vld [vmem:[%s246 + $0x400] sm:$0xff]
      %v381 = vld [vmem:[%s246 + $0x408] sm:$0xff]
      %v382 = vld [vmem:[%s246 + $0x410] sm:$0xff]
      %v383 = vld [vmem:[%s246 + $0x418] sm:$0xff]
      %v384 = vld [vmem:[%s246 + $0x420] sm:$0xff]
      %v385 = vld [vmem:[%s246 + $0x428] sm:$0xff]
      %v386 = vld [vmem:[%s246 + $0x430] sm:$0xff]
      %v387 = vld [vmem:[%s246 + $0x438] sm:$0xff]
      %v388 = vld [vmem:[%s246 + $0x440] sm:$0xff]
      %v389 = vld [vmem:[%s246 + $0x448] sm:$0xff]
      %v390 = vld [vmem:[%s246 + $0x450] sm:$0xff]
      %v391 = vld [vmem:[%s246 + $0x458] sm:$0xff]
      %v392 = vld [vmem:[%s246 + $0x460] sm:$0xff]
      %v393 = vld [vmem:[%s246 + $0x468] sm:$0xff]
      %v394 = vld [vmem:[%s246 + $0x470] sm:$0xff]
      %v395 = vld [vmem:[%s246 + $0x478] sm:$0xff]
      %v396 = vld [vmem:[%s0] sm:$0xff]
      %v397 = vld [vmem:[%s0 + $0x8] sm:$0xff]
      %v398 = vld [vmem:[%s0 + $0x10] sm:$0xff]
      %v399 = vld [vmem:[%s0 + $0x18] sm:$0xff]
      %v400 = vld [vmem:[%s0 + $0x20] sm:$0xff]
      %v401 = vld [vmem:[%s0 + $0x28] sm:$0xff]
      %v402 = vld [vmem:[%s0 + $0x30] sm:$0xff]
      %v403 = vld [vmem:[%s0 + $0x38] sm:$0xff]
      %v404 = vld [vmem:[%s0 + $0x40] sm:$0xff]
      %v405 = vld [vmem:[%s0 + $0x48] sm:$0xff]
      %v406 = vld [vmem:[%s0 + $0x50] sm:$0xff]
      %v407 = vld [vmem:[%s0 + $0x58] sm:$0xff]
      %v408 = vld [vmem:[%s0 + $0x60] sm:$0xff]
      %v409 = vld [vmem:[%s0 + $0x68] sm:$0xff]
      %v410 = vld [vmem:[%s0 + $0x70] sm:$0xff]
      %v411 = vld [vmem:[%s0 + $0x78] sm:$0xff]
      %v412 = vld [vmem:[%s0 + $0x80] sm:$0xff]
      %v413 = vld [vmem:[%s0 + $0x88] sm:$0xff]
      %v414 = vld [vmem:[%s0 + $0x90] sm:$0xff]
      %v415 = vld [vmem:[%s0 + $0x98] sm:$0xff]
      %v416 = vld [vmem:[%s0 + $0xa0] sm:$0xff]
      %v417 = vld [vmem:[%s0 + $0xa8] sm:$0xff]
      %v418 = vld [vmem:[%s0 + $0xb0] sm:$0xff]
      %v419 = vld [vmem:[%s0 + $0xb8] sm:$0xff]
      %v420 = vld [vmem:[%s0 + $0xc0] sm:$0xff]
      %v421 = vld [vmem:[%s0 + $0xc8] sm:$0xff]
      %v422 = vld [vmem:[%s0 + $0xd0] sm:$0xff]
      %v423 = vld [vmem:[%s0 + $0xd8] sm:$0xff]
      %v424 = vld [vmem:[%s0 + $0xe0] sm:$0xff]
      %v425 = vld [vmem:[%s0 + $0xe8] sm:$0xff]
      %v426 = vld [vmem:[%s0 + $0xf0] sm:$0xff]
      %v427 = vld [vmem:[%s0 + $0xf8] sm:$0xff]
      %v428 = vld [vmem:[%s0 + $0x100] sm:$0xff]
      %v429 = vld [vmem:[%s0 + $0x108] sm:$0xff]
      %v430 = vld [vmem:[%s0 + $0x110] sm:$0xff]
      %v431 = vld [vmem:[%s0 + $0x118] sm:$0xff]
      %v432 = vld [vmem:[%s0 + $0x120] sm:$0xff]
      %v433 = vld [vmem:[%s0 + $0x128] sm:$0xff]
      %v434 = vld [vmem:[%s0 + $0x130] sm:$0xff]
      %v435 = vld [vmem:[%s0 + $0x138] sm:$0xff]
      %v436 = vld [vmem:[%s0 + $0x140] sm:$0xff]
      %v437 = vld [vmem:[%s0 + $0x148] sm:$0xff]
      %v438 = vld [vmem:[%s0 + $0x150] sm:$0xff]
      %v439 = vld [vmem:[%s0 + $0x158] sm:$0xff]
      %v440 = vld [vmem:[%s0 + $0x160] sm:$0xff]
      %v441 = vld [vmem:[%s0 + $0x168] sm:$0xff]
      %v442 = vld [vmem:[%s0 + $0x170] sm:$0xff]
      %v443 = vld [vmem:[%s0 + $0x178] sm:$0xff]
      %v444 = vld [vmem:[%s1] sm:$0xff]
      %v445 = vld [vmem:[%s1 + $0x8] sm:$0xff]
      %v446 = vld [vmem:[%s1 + $0x10] sm:$0xff]
      %v447 = vld [vmem:[%s1 + $0x18] sm:$0xff]
      %v448 = vld [vmem:[%s1 + $0x20] sm:$0xff]
      %v449 = vld [vmem:[%s1 + $0x28] sm:$0xff]
      %v450 = vld [vmem:[%s1 + $0x30] sm:$0xff]
      %v451 = vld [vmem:[%s1 + $0x38] sm:$0xff]
      %v452 = vld [vmem:[%s1 + $0x40] sm:$0xff]
      %v453 = vld [vmem:[%s1 + $0x48] sm:$0xff]
      %v454 = vld [vmem:[%s1 + $0x50] sm:$0xff]
      %v455 = vld [vmem:[%s1 + $0x58] sm:$0xff]
      %v456 = vld [vmem:[%s1 + $0x60] sm:$0xff]
      %v457 = vld [vmem:[%s1 + $0x68] sm:$0xff]
      %v458 = vld [vmem:[%s1 + $0x70] sm:$0xff]
      %v459 = vld [vmem:[%s1 + $0x78] sm:$0xff]
      %461 = vset.pattern.permute.xlu0 0
      %462 = vperm.xlu0 %461, %v444
      %v463 = vpop.permute.xlu0 %462
      %466 = vset.pattern.permute.xlu0 0
      %467 = vperm.xlu0 %466, %v445
      %v468 = vpop.permute.xlu0 %467
      %471 = vset.pattern.permute.xlu0 0
      %472 = vperm.xlu0 %471, %v446
      %v473 = vpop.permute.xlu0 %472
      %476 = vset.pattern.permute.xlu0 0
      %477 = vperm.xlu0 %476, %v447
      %v478 = vpop.permute.xlu0 %477
      %481 = vset.pattern.permute.xlu0 0
      %482 = vperm.xlu0 %481, %v448
      %v483 = vpop.permute.xlu0 %482
      %486 = vset.pattern.permute.xlu0 0
      %487 = vperm.xlu0 %486, %v449
      %v488 = vpop.permute.xlu0 %487
      %491 = vset.pattern.permute.xlu0 0
      %492 = vperm.xlu0 %491, %v450
      %v493 = vpop.permute.xlu0 %492
      %496 = vset.pattern.permute.xlu0 0
      %497 = vperm.xlu0 %496, %v451
      %v498 = vpop.permute.xlu0 %497
      %501 = vset.pattern.permute.xlu0 0
      %502 = vperm.xlu0 %501, %v452
      %v503 = vpop.permute.xlu0 %502
      %506 = vset.pattern.permute.xlu0 0
      %507 = vperm.xlu0 %506, %v453
      %v508 = vpop.permute.xlu0 %507
      %511 = vset.pattern.permute.xlu0 0
      %512 = vperm.xlu0 %511, %v454
      %v513 = vpop.permute.xlu0 %512
      %516 = vset.pattern.permute.xlu0 0
      %517 = vperm.xlu0 %516, %v455
      %v518 = vpop.permute.xlu0 %517
      %521 = vset.pattern.permute.xlu0 0
      %522 = vperm.xlu0 %521, %v456
      %v523 = vpop.permute.xlu0 %522
      %526 = vset.pattern.permute.xlu0 0
      %527 = vperm.xlu0 %526, %v457
      %v528 = vpop.permute.xlu0 %527
      %531 = vset.pattern.permute.xlu0 0
      %532 = vperm.xlu0 %531, %v458
      %v533 = vpop.permute.xlu0 %532
      %536 = vset.pattern.permute.xlu0 0
      %537 = vperm.xlu0 %536, %v459
      %v538 = vpop.permute.xlu0 %537
      %540 = vmatprep.subr.mxu0 %v253
      %541 = vmatpush1.msra.mxu0 %v252
      %542 = vmatprep.subr.mxu0 %v256
      %543 = vmatpush1.msra.mxu0 %v255
      %544 = vmatprep.subr.mxu0 %v259
      %545 = vmatpush1.msra.mxu0 %v258
      %546 = vmatprep.subr.mxu0 %v262
      %547 = vmatpush1.msra.mxu0 %v261
      %548 = vmatprep.subr.mxu0 %v265
      %549 = vmatpush1.msra.mxu0 %v264
      %550 = vmatprep.subr.mxu0 %v268
      %551 = vmatpush1.msra.mxu0 %v267
      %552 = vmatprep.subr.mxu0 %v271
      %553 = vmatpush1.msra.mxu0 %v270
      %554 = vmatprep.subr.mxu0 %v274
      %555 = vmatpush1.msra.mxu0 %v273
      %556 = vmatprep.subr.mxu0 %v277
      %557 = vmatpush1.msra.mxu0 %v276
      %558 = vmatprep.subr.mxu0 %v280
      %559 = vmatpush1.msra.mxu0 %v279
      %560 = vmatprep.subr.mxu0 %v283
      %561 = vmatpush1.msra.mxu0 %v282
      %562 = vmatprep.subr.mxu0 %v286
      %563 = vmatpush1.msra.mxu0 %v285
      %564 = vmatprep.subr.mxu0 %v289
      %565 = vmatpush1.msra.mxu0 %v288
      %566 = vmatprep.subr.mxu0 %v292
      %567 = vmatpush1.msra.mxu0 %v291
      %568 = vmatprep.subr.mxu0 %v295
      %569 = vmatpush1.msra.mxu0 %v294
      %570 = vmatprep.subr.mxu0 %v298
      %571 = vmatpush1.msra.mxu0 %v297
      %572 = vmatprep.subr.mxu0 %v301
      %573 = vmatpush1.msra.mxu0 %v300
      %574 = vmatprep.subr.mxu0 %v304
      %575 = vmatpush1.msra.mxu0 %v303
      %576 = vmatprep.subr.mxu0 %v307
      %577 = vmatpush1.msra.mxu0 %v306
      %578 = vmatprep.subr.mxu0 %v310
      %579 = vmatpush1.msra.mxu0 %v309
      %580 = vmatprep.subr.mxu0 %v313
      %581 = vmatpush1.msra.mxu0 %v312
      %582 = vmatprep.subr.mxu0 %v316
      %583 = vmatpush1.msra.mxu0 %v315
      %584 = vmatprep.subr.mxu0 %v319
      %585 = vmatpush1.msra.mxu0 %v318
      %586 = vmatprep.subr.mxu0 %v322
      %587 = vmatpush1.msra.mxu0 %v321
      %588 = vmatprep.subr.mxu0 %v325
      %589 = vmatpush1.msra.mxu0 %v324
      %590 = vmatprep.subr.mxu0 %v328
      %591 = vmatpush1.msra.mxu0 %v327
      %592 = vmatprep.subr.mxu0 %v331
      %593 = vmatpush1.msra.mxu0 %v330
      %594 = vmatprep.subr.mxu0 %v334
      %595 = vmatpush1.msra.mxu0 %v333
      %596 = vmatprep.subr.mxu0 %v337
      %597 = vmatpush1.msra.mxu0 %v336
      %598 = vmatprep.subr.mxu0 %v340
      %599 = vmatpush1.msra.mxu0 %v339
      %600 = vmatprep.subr.mxu0 %v343
      %601 = vmatpush1.msra.mxu0 %v342
      %602 = vmatprep.subr.mxu0 %v346
      %603 = vmatpush1.msra.mxu0 %v345
      %604 = vmatprep.mubr.f32.mxu0 %v397
      %605 = vmatmul.mubr.f32.gmra.mrb[0].mxu0 %v396
      %v606 = vpop.f32.mrb[0].mxu0
      %v607 = vadd.f32 %v463, %v606
      %v608 = vpop.f32.mrb[0].mxu0
      %v609 = vadd.f32 %v463, %v608
      %610 = vmatprep.mubr.f32.mxu0 %v400
      %611 = vmatmul.mubr.f32.gmra.mrb[0].mxu0 %v399
      %v612 = vpop.f32.mrb[0].mxu0
      %v613 = vadd.f32 %v468, %v612
      %v614 = vpop.f32.mrb[0].mxu0
      %v615 = vadd.f32 %v468, %v614
      %616 = vmatprep.mubr.f32.mxu0 %v403
      %617 = vmatmul.mubr.f32.gmra.mrb[0].mxu0 %v402
      %v618 = vpop.f32.mrb[0].mxu0
      %v619 = vadd.f32 %v473, %v618
      %v620 = vpop.f32.mrb[0].mxu0
      %v621 = vadd.f32 %v473, %v620
      %622 = vmatprep.mubr.f32.mxu0 %v406
      %623 = vmatmul.mubr.f32.gmra.mrb[0].mxu0 %v405
      %v624 = vpop.f32.mrb[0].mxu0
      %v625 = vadd.f32 %v478, %v624
      %v626 = vpop.f32.mrb[0].mxu0
      %v627 = vadd.f32 %v478, %v626
      %628 = vmatprep.mubr.f32.mxu0 %v409
      %629 = vmatmul.mubr.f32.gmra.mrb[0].mxu0 %v408
      %v630 = vpop.f32.mrb[0].mxu0
      %v631 = vadd.f32 %v483, %v630
      %v632 = vpop.f32.mrb[0].mxu0
      %v633 = vadd.f32 %v483, %v632
      %634 = vmatprep.mubr.f32.mxu0 %v412
      %635 = vmatmul.mubr.f32.gmra.mrb[0].mxu0 %v411
      %v636 = vpop.f32.mrb[0].mxu0
      %v637 = vadd.f32 %v488, %v636
      %v638 = vpop.f32.mrb[0].mxu0
      %v639 = vadd.f32 %v488, %v638
      %640 = vmatprep.mubr.f32.mxu0 %v415
      %641 = vmatmul.mubr.f32.gmra.mrb[0].mxu0 %v414
      %v642 = vpop.f32.mrb[0].mxu0
      %v643 = vadd.f32 %v493, %v642
      %v644 = vpop.f32.mrb[0].mxu0
      %v645 = vadd.f32 %v493, %v644
      %646 = vmatprep.mubr.f32.mxu0 %v418
      %647 = vmatmul.mubr.f32.gmra.mrb[0].mxu0 %v417
      %v648 = vpop.f32.mrb[0].mxu0
      %v649 = vadd.f32 %v498, %v648
      %v650 = vpop.f32.mrb[0].mxu0
      %v651 = vadd.f32 %v498, %v650
      %652 = vmatprep.mubr.f32.mxu0 %v421
      %653 = vmatmul.mubr.f32.gmra.mrb[0].mxu0 %v420
      %v654 = vpop.f32.mrb[0].mxu0
      %v655 = vadd.f32 %v503, %v654
      %v656 = vpop.f32.mrb[0].mxu0
      %v657 = vadd.f32 %v503, %v656
      %658 = vmatprep.mubr.f32.mxu0 %v424
      %659 = vmatmul.mubr.f32.gmra.mrb[0].mxu0 %v423
      %v660 = vpop.f32.mrb[0].mxu0
      %v661 = vadd.f32 %v508, %v660
      %v662 = vpop.f32.mrb[0].mxu0
      %v663 = vadd.f32 %v508, %v662
      %664 = vmatprep.mubr.f32.mxu0 %v427
      %665 = vmatmul.mubr.f32.gmra.mrb[0].mxu0 %v426
      %v666 = vpop.f32.mrb[0].mxu0
      %v667 = vadd.f32 %v513, %v666
      %v668 = vpop.f32.mrb[0].mxu0
      %v669 = vadd.f32 %v513, %v668
      %670 = vmatprep.mubr.f32.mxu0 %v430
      %671 = vmatmul.mubr.f32.gmra.mrb[0].mxu0 %v429
      %v672 = vpop.f32.mrb[0].mxu0
      %v673 = vadd.f32 %v518, %v672
      %v674 = vpop.f32.mrb[0].mxu0
      %v675 = vadd.f32 %v518, %v674
      %676 = vmatprep.mubr.f32.mxu0 %v433
      %677 = vmatmul.mubr.f32.gmra.mrb[0].mxu0 %v432
      %v678 = vpop.f32.mrb[0].mxu0
      %v679 = vadd.f32 %v523, %v678
      %v680 = vpop.f32.mrb[0].mxu0
      %v681 = vadd.f32 %v523, %v680
      %682 = vmatprep.mubr.f32.mxu0 %v436
      %683 = vmatmul.mubr.f32.gmra.mrb[0].mxu0 %v435
      %v684 = vpop.f32.mrb[0].mxu0
      %v685 = vadd.f32 %v528, %v684
      %v686 = vpop.f32.mrb[0].mxu0
      %v687 = vadd.f32 %v528, %v686
      %688 = vmatprep.mubr.f32.mxu0 %v439
      %689 = vmatmul.mubr.f32.gmra.mrb[0].mxu0 %v438
      %v690 = vpop.f32.mrb[0].mxu0
      %v691 = vadd.f32 %v533, %v690
      %v692 = vpop.f32.mrb[0].mxu0
      %v693 = vadd.f32 %v533, %v692
      %694 = vmatprep.mubr.f32.mxu0 %v442
      %695 = vmatmul.mubr.f32.gmra.mrb[0].mxu0 %v441
      %v696 = vpop.f32.mrb[0].mxu0
      %v697 = vadd.f32 %v538, %v696
      %v698 = vpop.f32.mrb[0].mxu0
      %v699 = vadd.f32 %v538, %v698
      %700 = vdwg.mxu0
      %701 = vmatprep.subr.mxu0 %v349
      %702 = vmatpush1.msra.mxu0 %v348
      %703 = vmatprep.subr.mxu0 %v352
      %704 = vmatpush1.msra.mxu0 %v351
      %705 = vmatprep.subr.mxu0 %v355
      %706 = vmatpush1.msra.mxu0 %v354
      %707 = vmatprep.subr.mxu0 %v358
      %708 = vmatpush1.msra.mxu0 %v357
      %709 = vmatprep.subr.mxu0 %v361
      %710 = vmatpush1.msra.mxu0 %v360
      %711 = vmatprep.subr.mxu0 %v364
      %712 = vmatpush1.msra.mxu0 %v363
      %713 = vmatprep.subr.mxu0 %v367
      %714 = vmatpush1.msra.mxu0 %v366
      %715 = vmatprep.subr.mxu0 %v370
      %716 = vmatpush1.msra.mxu0 %v369
      %717 = vmatprep.subr.mxu0 %v373
      %718 = vmatpush1.msra.mxu0 %v372
      %719 = vmatprep.subr.mxu0 %v376
      %720 = vmatpush1.msra.mxu0 %v375
      %721 = vmatprep.subr.mxu0 %v379
      %722 = vmatpush1.msra.mxu0 %v378
      %723 = vmatprep.subr.mxu0 %v382
      %724 = vmatpush1.msra.mxu0 %v381
      %725 = vmatprep.subr.mxu0 %v385
      %726 = vmatpush1.msra.mxu0 %v384
      %727 = vmatprep.subr.mxu0 %v388
      %728 = vmatpush1.msra.mxu0 %v387
      %729 = vmatprep.subr.mxu0 %v391
      %730 = vmatpush1.msra.mxu0 %v390
      %731 = vmatprep.subr.mxu0 %v394
      %732 = vmatpush1.msra.mxu0 %v393
      %733 = vmatprep.subr.mxu0 0.0
      %734 = vmatpush1.msra.mxu0 0.0
      %735 = vmatprep.subr.mxu0 0.0
      %736 = vmatpush1.msra.mxu0 0.0
      %737 = vmatprep.subr.mxu0 0.0
      %738 = vmatpush1.msra.mxu0 0.0
      %739 = vmatprep.subr.mxu0 0.0
      %740 = vmatpush1.msra.mxu0 0.0
      %741 = vmatprep.subr.mxu0 0.0
      %742 = vmatpush1.msra.mxu0 0.0
      %743 = vmatprep.subr.mxu0 0.0
      %744 = vmatpush1.msra.mxu0 0.0
      %745 = vmatprep.subr.mxu0 0.0
      %746 = vmatpush1.msra.mxu0 0.0
      %747 = vmatprep.subr.mxu0 0.0
      %748 = vmatpush1.msra.mxu0 0.0
      %749 = vmatprep.subr.mxu0 0.0
      %750 = vmatpush1.msra.mxu0 0.0
      %751 = vmatprep.subr.mxu0 0.0
      %752 = vmatpush1.msra.mxu0 0.0
      %753 = vmatprep.subr.mxu0 0.0
      %754 = vmatpush1.msra.mxu0 0.0
      %755 = vmatprep.subr.mxu0 0.0
      %756 = vmatpush1.msra.mxu0 0.0
      %757 = vmatprep.subr.mxu0 0.0
      %758 = vmatpush1.msra.mxu0 0.0
      %759 = vmatprep.subr.mxu0 0.0
      %760 = vmatpush1.msra.mxu0 0.0
      %761 = vmatprep.subr.mxu0 0.0
      %762 = vmatpush1.msra.mxu0 0.0
      %763 = vmatprep.subr.mxu0 0.0
      %764 = vmatpush1.msra.mxu0 0.0
      %765 = vmatprep.mubr.f32.mxu0 0.0
      %766 = vmatmul.mubr.f32.gmra.mrb[0].mxu0 %v398
      %v767 = vpop.f32.mrb[0].mxu0
      %v768 = vadd.f32 %v607, %v767
      %v769 = vpop.f32.mrb[0].mxu0
      %v770 = vadd.f32 %v609, %v769
      %771 = vmatprep.mubr.f32.mxu0 0.0
      %772 = vmatmul.mubr.f32.gmra.mrb[0].mxu0 %v401
      %v773 = vpop.f32.mrb[0].mxu0
      %v774 = vadd.f32 %v613, %v773
      %v775 = vpop.f32.mrb[0].mxu0
      %v776 = vadd.f32 %v615, %v775
      %777 = vmatprep.mubr.f32.mxu0 0.0
      %778 = vmatmul.mubr.f32.gmra.mrb[0].mxu0 %v404
      %v779 = vpop.f32.mrb[0].mxu0
      %v780 = vadd.f32 %v619, %v779
      %v781 = vpop.f32.mrb[0].mxu0
      %v782 = vadd.f32 %v621, %v781
      %783 = vmatprep.mubr.f32.mxu0 0.0
      %784 = vmatmul.mubr.f32.gmra.mrb[0].mxu0 %v407
      %v785 = vpop.f32.mrb[0].mxu0
      %v786 = vadd.f32 %v625, %v785
      %v787 = vpop.f32.mrb[0].mxu0
      %v788 = vadd.f32 %v627, %v787
      %789 = vmatprep.mubr.f32.mxu0 0.0
      %790 = vmatmul.mubr.f32.gmra.mrb[0].mxu0 %v410
      %v791 = vpop.f32.mrb[0].mxu0
      %v792 = vadd.f32 %v631, %v791
      %v793 = vpop.f32.mrb[0].mxu0
      %v794 = vadd.f32 %v633, %v793
      %795 = vmatprep.mubr.f32.mxu0 0.0
      %796 = vmatmul.mubr.f32.gmra.mrb[0].mxu0 %v413
      %v797 = vpop.f32.mrb[0].mxu0
      %v798 = vadd.f32 %v637, %v797
      %v799 = vpop.f32.mrb[0].mxu0
      %v800 = vadd.f32 %v639, %v799
      %801 = vmatprep.mubr.f32.mxu0 0.0
      %802 = vmatmul.mubr.f32.gmra.mrb[0].mxu0 %v416
      %v803 = vpop.f32.mrb[0].mxu0
      %v804 = vadd.f32 %v643, %v803
      %v805 = vpop.f32.mrb[0].mxu0
      %v806 = vadd.f32 %v645, %v805
      %807 = vmatprep.mubr.f32.mxu0 0.0
      %808 = vmatmul.mubr.f32.gmra.mrb[0].mxu0 %v419
      %v809 = vpop.f32.mrb[0].mxu0
      %v810 = vadd.f32 %v649, %v809
      %v811 = vpop.f32.mrb[0].mxu0
      %v812 = vadd.f32 %v651, %v811
      %813 = vmatprep.mubr.f32.mxu0 0.0
      %814 = vmatmul.mubr.f32.gmra.mrb[0].mxu0 %v422
      %v815 = vpop.f32.mrb[0].mxu0
      %v816 = vadd.f32 %v655, %v815
      %v817 = vpop.f32.mrb[0].mxu0
      %v818 = vadd.f32 %v657, %v817
      %819 = vmatprep.mubr.f32.mxu0 0.0
      %820 = vmatmul.mubr.f32.gmra.mrb[0].mxu0 %v425
      %v821 = vpop.f32.mrb[0].mxu0
      %v822 = vadd.f32 %v661, %v821
      %v823 = vpop.f32.mrb[0].mxu0
      %v824 = vadd.f32 %v663, %v823
      %825 = vmatprep.mubr.f32.mxu0 0.0
      %826 = vmatmul.mubr.f32.gmra.mrb[0].mxu0 %v428
      %v827 = vpop.f32.mrb[0].mxu0
      %v828 = vadd.f32 %v667, %v827
      %v829 = vpop.f32.mrb[0].mxu0
      %v830 = vadd.f32 %v669, %v829
      %831 = vmatprep.mubr.f32.mxu0 0.0
      %832 = vmatmul.mubr.f32.gmra.mrb[0].mxu0 %v431
      %v833 = vpop.f32.mrb[0].mxu0
      %v834 = vadd.f32 %v673, %v833
      %v835 = vpop.f32.mrb[0].mxu0
      %v836 = vadd.f32 %v675, %v835
      %837 = vmatprep.mubr.f32.mxu0 0.0
      %838 = vmatmul.mubr.f32.gmra.mrb[0].mxu0 %v434
      %v839 = vpop.f32.mrb[0].mxu0
      %v840 = vadd.f32 %v679, %v839
      %v841 = vpop.f32.mrb[0].mxu0
      %v842 = vadd.f32 %v681, %v841
      %843 = vmatprep.mubr.f32.mxu0 0.0
      %844 = vmatmul.mubr.f32.gmra.mrb[0].mxu0 %v437
      %v845 = vpop.f32.mrb[0].mxu0
      %v846 = vadd.f32 %v685, %v845
      %v847 = vpop.f32.mrb[0].mxu0
      %v848 = vadd.f32 %v687, %v847
      %849 = vmatprep.mubr.f32.mxu0 0.0
      %850 = vmatmul.mubr.f32.gmra.mrb[0].mxu0 %v440
      %v851 = vpop.f32.mrb[0].mxu0
      %v852 = vadd.f32 %v691, %v851
      %v853 = vpop.f32.mrb[0].mxu0
      %v854 = vadd.f32 %v693, %v853
      %855 = vmatprep.mubr.f32.mxu0 0.0
      %856 = vmatmul.mubr.f32.gmra.mrb[0].mxu0 %v443
      %v857 = vpop.f32.mrb[0].mxu0
      %v858 = vadd.f32 %v697, %v857
      %v859 = vpop.f32.mrb[0].mxu0
      %v860 = vadd.f32 %v699, %v859
      %861 = vdwg.mxu0
      %862 = vmatprep.subr.mxu0 0.0
      %863 = vmatpush1.msra.mxu0 %v254
      %864 = vmatprep.subr.mxu0 0.0
      %865 = vmatpush1.msra.mxu0 %v257
      %866 = vmatprep.subr.mxu0 0.0
      %867 = vmatpush1.msra.mxu0 %v260
      %868 = vmatprep.subr.mxu0 0.0
      %869 = vmatpush1.msra.mxu0 %v263
      %870 = vmatprep.subr.mxu0 0.0
      %871 = vmatpush1.msra.mxu0 %v266
      %872 = vmatprep.subr.mxu0 0.0
      %873 = vmatpush1.msra.mxu0 %v269
      %874 = vmatprep.subr.mxu0 0.0
      %875 = vmatpush1.msra.mxu0 %v272
      %876 = vmatprep.subr.mxu0 0.0
      %877 = vmatpush1.msra.mxu0 %v275
      %878 = vmatprep.subr.mxu0 0.0
      %879 = vmatpush1.msra.mxu0 %v278
      %880 = vmatprep.subr.mxu0 0.0
      %881 = vmatpush1.msra.mxu0 %v281
      %882 = vmatprep.subr.mxu0 0.0
      %883 = vmatpush1.msra.mxu0 %v284
      %884 = vmatprep.subr.mxu0 0.0
      %885 = vmatpush1.msra.mxu0 %v287
      %886 = vmatprep.subr.mxu0 0.0
      %887 = vmatpush1.msra.mxu0 %v290
      %888 = vmatprep.subr.mxu0 0.0
      %889 = vmatpush1.msra.mxu0 %v293
      %890 = vmatprep.subr.mxu0 0.0
      %891 = vmatpush1.msra.mxu0 %v296
      %892 = vmatprep.subr.mxu0 0.0
      %893 = vmatpush1.msra.mxu0 %v299
      %894 = vmatprep.subr.mxu0 0.0
      %895 = vmatpush1.msra.mxu0 %v302
      %896 = vmatprep.subr.mxu0 0.0
      %897 = vmatpush1.msra.mxu0 %v305
      %898 = vmatprep.subr.mxu0 0.0
      %899 = vmatpush1.msra.mxu0 %v308
      %900 = vmatprep.subr.mxu0 0.0
      %901 = vmatpush1.msra.mxu0 %v311
      %902 = vmatprep.subr.mxu0 0.0
      %903 = vmatpush1.msra.mxu0 %v314
      %904 = vmatprep.subr.mxu0 0.0
      %905 = vmatpush1.msra.mxu0 %v317
      %906 = vmatprep.subr.mxu0 0.0
      %907 = vmatpush1.msra.mxu0 %v320
      %908 = vmatprep.subr.mxu0 0.0
      %909 = vmatpush1.msra.mxu0 %v323
      %910 = vmatprep.subr.mxu0 0.0
      %911 = vmatpush1.msra.mxu0 %v326
      %912 = vmatprep.subr.mxu0 0.0
      %913 = vmatpush1.msra.mxu0 %v329
      %914 = vmatprep.subr.mxu0 0.0
      %915 = vmatpush1.msra.mxu0 %v332
      %916 = vmatprep.subr.mxu0 0.0
      %917 = vmatpush1.msra.mxu0 %v335
      %918 = vmatprep.subr.mxu0 0.0
      %919 = vmatpush1.msra.mxu0 %v338
      %920 = vmatprep.subr.mxu0 0.0
      %921 = vmatpush1.msra.mxu0 %v341
      %922 = vmatprep.subr.mxu0 0.0
      %923 = vmatpush1.msra.mxu0 %v344
      %924 = vmatprep.subr.mxu0 0.0
      %925 = vmatpush1.msra.mxu0 %v347
      %926 = vmatprep.mubr.f32.mxu0 %v397
      %927 = vmatmul.mubr.f32.gmra.mrb[0].mxu0 %v396
      %v928 = vpop.f32.mrb[0].mxu0
      %v929 = vadd.f32 %v463, %v928
      %v930 = vpop.f32.mrb[0].mxu0
      %931 = vmatprep.mubr.f32.mxu0 %v400
      %932 = vmatmul.mubr.f32.gmra.mrb[0].mxu0 %v399
      %v933 = vpop.f32.mrb[0].mxu0
      %v934 = vadd.f32 %v468, %v933
      %v935 = vpop.f32.mrb[0].mxu0
      %936 = vmatprep.mubr.f32.mxu0 %v403
      %937 = vmatmul.mubr.f32.gmra.mrb[0].mxu0 %v402
      %v938 = vpop.f32.mrb[0].mxu0
      %v939 = vadd.f32 %v473, %v938
      %v940 = vpop.f32.mrb[0].mxu0
      %941 = vmatprep.mubr.f32.mxu0 %v406
      %942 = vmatmul.mubr.f32.gmra.mrb[0].mxu0 %v405
      %v943 = vpop.f32.mrb[0].mxu0
      %v944 = vadd.f32 %v478, %v943
      %v945 = vpop.f32.mrb[0].mxu0
      %946 = vmatprep.mubr.f32.mxu0 %v409
      %947 = vmatmul.mubr.f32.gmra.mrb[0].mxu0 %v408
      %v948 = vpop.f32.mrb[0].mxu0
      %v949 = vadd.f32 %v483, %v948
      %v950 = vpop.f32.mrb[0].mxu0
      %951 = vmatprep.mubr.f32.mxu0 %v412
      %952 = vmatmul.mubr.f32.gmra.mrb[0].mxu0 %v411
      %v953 = vpop.f32.mrb[0].mxu0
      %v954 = vadd.f32 %v488, %v953
      %v955 = vpop.f32.mrb[0].mxu0
      %956 = vmatprep.mubr.f32.mxu0 %v415
      %957 = vmatmul.mubr.f32.gmra.mrb[0].mxu0 %v414
      %v958 = vpop.f32.mrb[0].mxu0
      %v959 = vadd.f32 %v493, %v958
      %v960 = vpop.f32.mrb[0].mxu0
      %961 = vmatprep.mubr.f32.mxu0 %v418
      %962 = vmatmul.mubr.f32.gmra.mrb[0].mxu0 %v417
      %v963 = vpop.f32.mrb[0].mxu0
      %v964 = vadd.f32 %v498, %v963
      %v965 = vpop.f32.mrb[0].mxu0
      %966 = vmatprep.mubr.f32.mxu0 %v421
      %967 = vmatmul.mubr.f32.gmra.mrb[0].mxu0 %v420
      %v968 = vpop.f32.mrb[0].mxu0
      %v969 = vadd.f32 %v503, %v968
      %v970 = vpop.f32.mrb[0].mxu0
      %971 = vmatprep.mubr.f32.mxu0 %v424
      %972 = vmatmul.mubr.f32.gmra.mrb[0].mxu0 %v423
      %v973 = vpop.f32.mrb[0].mxu0
      %v974 = vadd.f32 %v508, %v973
      %v975 = vpop.f32.mrb[0].mxu0
      %976 = vmatprep.mubr.f32.mxu0 %v427
      %977 = vmatmul.mubr.f32.gmra.mrb[0].mxu0 %v426
      %v978 = vpop.f32.mrb[0].mxu0
      %v979 = vadd.f32 %v513, %v978
      %v980 = vpop.f32.mrb[0].mxu0
      %981 = vmatprep.mubr.f32.mxu0 %v430
      %982 = vmatmul.mubr.f32.gmra.mrb[0].mxu0 %v429
      %v983 = vpop.f32.mrb[0].mxu0
      %v984 = vadd.f32 %v518, %v983
      %v985 = vpop.f32.mrb[0].mxu0
      %986 = vmatprep.mubr.f32.mxu0 %v433
      %987 = vmatmul.mubr.f32.gmra.mrb[0].mxu0 %v432
      %v988 = vpop.f32.mrb[0].mxu0
      %v989 = vadd.f32 %v523, %v988
      %v990 = vpop.f32.mrb[0].mxu0
      %991 = vmatprep.mubr.f32.mxu0 %v436
      %992 = vmatmul.mubr.f32.gmra.mrb[0].mxu0 %v435
      %v993 = vpop.f32.mrb[0].mxu0
      %v994 = vadd.f32 %v528, %v993
      %v995 = vpop.f32.mrb[0].mxu0
      %996 = vmatprep.mubr.f32.mxu0 %v439
      %997 = vmatmul.mubr.f32.gmra.mrb[0].mxu0 %v438
      %v998 = vpop.f32.mrb[0].mxu0
      %v999 = vadd.f32 %v533, %v998
      %v1000 = vpop.f32.mrb[0].mxu0
      %1001 = vmatprep.mubr.f32.mxu0 %v442
      %1002 = vmatmul.mubr.f32.gmra.mrb[0].mxu0 %v441
      %v1003 = vpop.f32.mrb[0].mxu0
      %v1004 = vadd.f32 %v538, %v1003
      %v1005 = vpop.f32.mrb[0].mxu0
      %1006 = vdwg.mxu0
      %1007 = vmatprep.subr.mxu0 0.0
      %1008 = vmatpush1.msra.mxu0 %v350
      %1009 = vmatprep.subr.mxu0 0.0
      %1010 = vmatpush1.msra.mxu0 %v353
      %1011 = vmatprep.subr.mxu0 0.0
      %1012 = vmatpush1.msra.mxu0 %v356
      %1013 = vmatprep.subr.mxu0 0.0
      %1014 = vmatpush1.msra.mxu0 %v359
      %1015 = vmatprep.subr.mxu0 0.0
      %1016 = vmatpush1.msra.mxu0 %v362
      %1017 = vmatprep.subr.mxu0 0.0
      %1018 = vmatpush1.msra.mxu0 %v365
      %1019 = vmatprep.subr.mxu0 0.0
      %1020 = vmatpush1.msra.mxu0 %v368
      %1021 = vmatprep.subr.mxu0 0.0
      %1022 = vmatpush1.msra.mxu0 %v371
      %1023 = vmatprep.subr.mxu0 0.0
      %1024 = vmatpush1.msra.mxu0 %v374
      %1025 = vmatprep.subr.mxu0 0.0
      %1026 = vmatpush1.msra.mxu0 %v377
      %1027 = vmatprep.subr.mxu0 0.0
      %1028 = vmatpush1.msra.mxu0 %v380
      %1029 = vmatprep.subr.mxu0 0.0
      %1030 = vmatpush1.msra.mxu0 %v383
      %1031 = vmatprep.subr.mxu0 0.0
      %1032 = vmatpush1.msra.mxu0 %v386
      %1033 = vmatprep.subr.mxu0 0.0
      %1034 = vmatpush1.msra.mxu0 %v389
      %1035 = vmatprep.subr.mxu0 0.0
      %1036 = vmatpush1.msra.mxu0 %v392
      %1037 = vmatprep.subr.mxu0 0.0
      %1038 = vmatpush1.msra.mxu0 %v395
      %1039 = vmatprep.subr.mxu0 0.0
      %1040 = vmatpush1.msra.mxu0 0.0
      %1041 = vmatprep.subr.mxu0 0.0
      %1042 = vmatpush1.msra.mxu0 0.0
      %1043 = vmatprep.subr.mxu0 0.0
      %1044 = vmatpush1.msra.mxu0 0.0
      %1045 = vmatprep.subr.mxu0 0.0
      %1046 = vmatpush1.msra.mxu0 0.0
      %1047 = vmatprep.subr.mxu0 0.0
      %1048 = vmatpush1.msra.mxu0 0.0
      %1049 = vmatprep.subr.mxu0 0.0
      %1050 = vmatpush1.msra.mxu0 0.0
      %1051 = vmatprep.subr.mxu0 0.0
      %1052 = vmatpush1.msra.mxu0 0.0
      %1053 = vmatprep.subr.mxu0 0.0
      %1054 = vmatpush1.msra.mxu0 0.0
      %1055 = vmatprep.subr.mxu0 0.0
      %1056 = vmatpush1.msra.mxu0 0.0
      %1057 = vmatprep.subr.mxu0 0.0
      %1058 = vmatpush1.msra.mxu0 0.0
      %1059 = vmatprep.subr.mxu0 0.0
      %1060 = vmatpush1.msra.mxu0 0.0
      %1061 = vmatprep.subr.mxu0 0.0
      %1062 = vmatpush1.msra.mxu0 0.0
      %1063 = vmatprep.subr.mxu0 0.0
      %1064 = vmatpush1.msra.mxu0 0.0
      %1065 = vmatprep.subr.mxu0 0.0
      %1066 = vmatpush1.msra.mxu0 0.0
      %1067 = vmatprep.subr.mxu0 0.0
      %1068 = vmatpush1.msra.mxu0 0.0
      %1069 = vmatprep.subr.mxu0 0.0
      %1070 = vmatpush1.msra.mxu0 0.0
      %1071 = vmatprep.mubr.f32.mxu0 0.0
      %1072 = vmatmul.mubr.f32.gmra.mrb[0].mxu0 %v398
      %v1073 = vpop.f32.mrb[0].mxu0
      %v1074 = vadd.f32 %v929, %v1073
      %v1075 = vpop.f32.mrb[0].mxu0
      %1076 = vmatprep.mubr.f32.mxu0 0.0
      %1077 = vmatmul.mubr.f32.gmra.mrb[0].mxu0 %v401
      %v1078 = vpop.f32.mrb[0].mxu0
      %v1079 = vadd.f32 %v934, %v1078
      %v1080 = vpop.f32.mrb[0].mxu0
      %1081 = vmatprep.mubr.f32.mxu0 0.0
      %1082 = vmatmul.mubr.f32.gmra.mrb[0].mxu0 %v404
      %v1083 = vpop.f32.mrb[0].mxu0
      %v1084 = vadd.f32 %v939, %v1083
      %v1085 = vpop.f32.mrb[0].mxu0
      %1086 = vmatprep.mubr.f32.mxu0 0.0
      %1087 = vmatmul.mubr.f32.gmra.mrb[0].mxu0 %v407
      %v1088 = vpop.f32.mrb[0].mxu0
      %v1089 = vadd.f32 %v944, %v1088
      %v1090 = vpop.f32.mrb[0].mxu0
      %1091 = vmatprep.mubr.f32.mxu0 0.0
      %1092 = vmatmul.mubr.f32.gmra.mrb[0].mxu0 %v410
      %v1093 = vpop.f32.mrb[0].mxu0
      %v1094 = vadd.f32 %v949, %v1093
      %v1095 = vpop.f32.mrb[0].mxu0
      %1096 = vmatprep.mubr.f32.mxu0 0.0
      %1097 = vmatmul.mubr.f32.gmra.mrb[0].mxu0 %v413
      %v1098 = vpop.f32.mrb[0].mxu0
      %v1099 = vadd.f32 %v954, %v1098
      %v1100 = vpop.f32.mrb[0].mxu0
      %1101 = vmatprep.mubr.f32.mxu0 0.0
      %1102 = vmatmul.mubr.f32.gmra.mrb[0].mxu0 %v416
      %v1103 = vpop.f32.mrb[0].mxu0
      %v1104 = vadd.f32 %v959, %v1103
      %v1105 = vpop.f32.mrb[0].mxu0
      %1106 = vmatprep.mubr.f32.mxu0 0.0
      %1107 = vmatmul.mubr.f32.gmra.mrb[0].mxu0 %v419
      %v1108 = vpop.f32.mrb[0].mxu0
      %v1109 = vadd.f32 %v964, %v1108
      %v1110 = vpop.f32.mrb[0].mxu0
      %1111 = vmatprep.mubr.f32.mxu0 0.0
      %1112 = vmatmul.mubr.f32.gmra.mrb[0].mxu0 %v422
      %v1113 = vpop.f32.mrb[0].mxu0
      %v1114 = vadd.f32 %v969, %v1113
      %v1115 = vpop.f32.mrb[0].mxu0
      %1116 = vmatprep.mubr.f32.mxu0 0.0
      %1117 = vmatmul.mubr.f32.gmra.mrb[0].mxu0 %v425
      %v1118 = vpop.f32.mrb[0].mxu0
      %v1119 = vadd.f32 %v974, %v1118
      %v1120 = vpop.f32.mrb[0].mxu0
      %1121 = vmatprep.mubr.f32.mxu0 0.0
      %1122 = vmatmul.mubr.f32.gmra.mrb[0].mxu0 %v428
      %v1123 = vpop.f32.mrb[0].mxu0
      %v1124 = vadd.f32 %v979, %v1123
      %v1125 = vpop.f32.mrb[0].mxu0
      %1126 = vmatprep.mubr.f32.mxu0 0.0
      %1127 = vmatmul.mubr.f32.gmra.mrb[0].mxu0 %v431
      %v1128 = vpop.f32.mrb[0].mxu0
      %v1129 = vadd.f32 %v984, %v1128
      %v1130 = vpop.f32.mrb[0].mxu0
      %1131 = vmatprep.mubr.f32.mxu0 0.0
      %1132 = vmatmul.mubr.f32.gmra.mrb[0].mxu0 %v434
      %v1133 = vpop.f32.mrb[0].mxu0
      %v1134 = vadd.f32 %v989, %v1133
      %v1135 = vpop.f32.mrb[0].mxu0
      %1136 = vmatprep.mubr.f32.mxu0 0.0
      %1137 = vmatmul.mubr.f32.gmra.mrb[0].mxu0 %v437
      %v1138 = vpop.f32.mrb[0].mxu0
      %v1139 = vadd.f32 %v994, %v1138
      %v1140 = vpop.f32.mrb[0].mxu0
      %1141 = vmatprep.mubr.f32.mxu0 0.0
      %1142 = vmatmul.mubr.f32.gmra.mrb[0].mxu0 %v440
      %v1143 = vpop.f32.mrb[0].mxu0
      %v1144 = vadd.f32 %v999, %v1143
      %v1145 = vpop.f32.mrb[0].mxu0
      %1146 = vmatprep.mubr.f32.mxu0 0.0
      %1147 = vmatmul.mubr.f32.gmra.mrb[0].mxu0 %v443
      %v1148 = vpop.f32.mrb[0].mxu0
      %v1149 = vadd.f32 %v1004, %v1148
      %v1150 = vpop.f32.mrb[0].mxu0
      %1151 = vdwg.mxu0
      %v1152 = vsub.f32 0.0, %v816
      %v1153 = vsub.f32 0.0, %v818
      %v1154 = vsub.f32 0.0, %v1114
      %v1155 = vsub.f32 0.0, %v822
      %v1156 = vsub.f32 0.0, %v824
      %v1157 = vsub.f32 0.0, %v1119
      %v1158 = vsub.f32 0.0, %v828
      %v1159 = vsub.f32 0.0, %v830
      %v1160 = vsub.f32 0.0, %v1124
      %v1161 = vsub.f32 0.0, %v834
      %v1162 = vsub.f32 0.0, %v836
      %v1163 = vsub.f32 0.0, %v1129
      %v1164 = vsub.f32 0.0, %v840
      %v1165 = vsub.f32 0.0, %v842
      %v1166 = vsub.f32 0.0, %v1134
      %v1167 = vsub.f32 0.0, %v846
      %v1168 = vsub.f32 0.0, %v848
      %v1169 = vsub.f32 0.0, %v1139
      %v1170 = vsub.f32 0.0, %v852
      %v1171 = vsub.f32 0.0, %v854
      %v1172 = vsub.f32 0.0, %v1144
      %v1173 = vsub.f32 0.0, %v858
      %v1174 = vsub.f32 0.0, %v860
      %v1175 = vsub.f32 0.0, %v1149
      %v1176 = vmul.f32 %v1152, 1.442695
      %v1177 = vpow.pop %v1176
      %v1178 = vmul.f32 %v1153, 1.442695
      %v1179 = vpow.pop %v1178
      %v1180 = vmul.f32 %v1154, 1.442695
      %v1181 = vpow.pop %v1180
      %v1182 = vmul.f32 %v1155, 1.442695
      %v1183 = vpow.pop %v1182
      %v1184 = vmul.f32 %v1156, 1.442695
      %v1185 = vpow.pop %v1184
      %v1186 = vmul.f32 %v1157, 1.442695
      %v1187 = vpow.pop %v1186
      %v1188 = vmul.f32 %v1158, 1.442695
      %v1189 = vpow.pop %v1188
      %v1190 = vmul.f32 %v1159, 1.442695
      %v1191 = vpow.pop %v1190
      %v1192 = vmul.f32 %v1160, 1.442695
      %v1193 = vpow.pop %v1192
      %v1194 = vmul.f32 %v1161, 1.442695
      %v1195 = vpow.pop %v1194
      %v1196 = vmul.f32 %v1162, 1.442695
      %v1197 = vpow.pop %v1196
      %v1198 = vmul.f32 %v1163, 1.442695
      %v1199 = vpow.pop %v1198
      %v1200 = vmul.f32 %v1164, 1.442695
      %v1201 = vpow.pop %v1200
      %v1202 = vmul.f32 %v1165, 1.442695
      %v1203 = vpow.pop %v1202
      %v1204 = vmul.f32 %v1166, 1.442695
      %v1205 = vpow.pop %v1204
      %v1206 = vmul.f32 %v1167, 1.442695
      %v1207 = vpow.pop %v1206
      %v1208 = vmul.f32 %v1168, 1.442695
      %v1209 = vpow.pop %v1208
      %v1210 = vmul.f32 %v1169, 1.442695
      %v1211 = vpow.pop %v1210
      %v1212 = vmul.f32 %v1170, 1.442695
      %v1213 = vpow.pop %v1212
      %v1214 = vmul.f32 %v1171, 1.442695
      %v1215 = vpow.pop %v1214
      %v1216 = vmul.f32 %v1172, 1.442695
      %v1217 = vpow.pop %v1216
      %v1218 = vmul.f32 %v1173, 1.442695
      %v1219 = vpow.pop %v1218
      %v1220 = vmul.f32 %v1174, 1.442695
      %v1221 = vpow.pop %v1220
      %v1222 = vmul.f32 %v1175, 1.442695
      %v1223 = vpow.pop %v1222
      %v1224 = vadd.f32 %v1177, 1.0
      %v1225 = vadd.f32 %v1179, 1.0
      %v1226 = vadd.f32 %v1181, 1.0
      %v1227 = vadd.f32 %v1183, 1.0
      %v1228 = vadd.f32 %v1185, 1.0
      %v1229 = vadd.f32 %v1187, 1.0
      %v1230 = vadd.f32 %v1189, 1.0
      %v1231 = vadd.f32 %v1191, 1.0
      %v1232 = vadd.f32 %v1193, 1.0
      %v1233 = vadd.f32 %v1195, 1.0
      %v1234 = vadd.f32 %v1197, 1.0
      %v1235 = vadd.f32 %v1199, 1.0
      %v1236 = vadd.f32 %v1201, 1.0
      %v1237 = vadd.f32 %v1203, 1.0
      %v1238 = vadd.f32 %v1205, 1.0
      %v1239 = vadd.f32 %v1207, 1.0
      %v1240 = vadd.f32 %v1209, 1.0
      %v1241 = vadd.f32 %v1211, 1.0
      %v1242 = vadd.f32 %v1213, 1.0
      %v1243 = vadd.f32 %v1215, 1.0
      %v1244 = vadd.f32 %v1217, 1.0
      %v1245 = vadd.f32 %v1219, 1.0
      %v1246 = vadd.f32 %v1221, 1.0
      %v1247 = vadd.f32 %v1223, 1.0
      %v1248 = vrcp.pop %v1224
      %v1249 = vmul.f32 1.0, %v1248
      %v1250 = vrcp.pop %v1225
      %v1251 = vmul.f32 1.0, %v1250
      %v1252 = vrcp.pop %v1226
      %v1253 = vmul.f32 1.0, %v1252
      %v1254 = vrcp.pop %v1227
      %v1255 = vmul.f32 1.0, %v1254
      %v1256 = vrcp.pop %v1228
      %v1257 = vmul.f32 1.0, %v1256
      %v1258 = vrcp.pop %v1229
      %v1259 = vmul.f32 1.0, %v1258
      %v1260 = vrcp.pop %v1230
      %v1261 = vmul.f32 1.0, %v1260
      %v1262 = vrcp.pop %v1231
      %v1263 = vmul.f32 1.0, %v1262
      %v1264 = vrcp.pop %v1232
      %v1265 = vmul.f32 1.0, %v1264
      %v1266 = vrcp.pop %v1233
      %v1267 = vmul.f32 1.0, %v1266
      %v1268 = vrcp.pop %v1234
      %v1269 = vmul.f32 1.0, %v1268
      %v1270 = vrcp.pop %v1235
      %v1271 = vmul.f32 1.0, %v1270
      %v1272 = vrcp.pop %v1236
      %v1273 = vmul.f32 1.0, %v1272
      %v1274 = vrcp.pop %v1237
      %v1275 = vmul.f32 1.0, %v1274
      %v1276 = vrcp.pop %v1238
      %v1277 = vmul.f32 1.0, %v1276
      %v1278 = vrcp.pop %v1239
      %v1279 = vmul.f32 1.0, %v1278
      %v1280 = vrcp.pop %v1240
      %v1281 = vmul.f32 1.0, %v1280
      %v1282 = vrcp.pop %v1241
      %v1283 = vmul.f32 1.0, %v1282
      %v1284 = vrcp.pop %v1242
      %v1285 = vmul.f32 1.0, %v1284
      %v1286 = vrcp.pop %v1243
      %v1287 = vmul.f32 1.0, %v1286
      %v1288 = vrcp.pop %v1244
      %v1289 = vmul.f32 1.0, %v1288
      %v1290 = vrcp.pop %v1245
      %v1291 = vmul.f32 1.0, %v1290
      %v1292 = vrcp.pop %v1246
      %v1293 = vmul.f32 1.0, %v1292
      %v1294 = vrcp.pop %v1247
      %v1295 = vmul.f32 1.0, %v1294
      %v1296 = vmul.f32 %v768, %v1249
      %v1297 = vmul.f32 %v770, %v1251
      %v1298 = vmul.f32 %v1074, %v1253
      %v1299 = vmul.f32 %v774, %v1255
      %v1300 = vmul.f32 %v776, %v1257
      %v1301 = vmul.f32 %v1079, %v1259
      %v1302 = vmul.f32 %v780, %v1261
      %v1303 = vmul.f32 %v782, %v1263
      %v1304 = vmul.f32 %v1084, %v1265
      %v1305 = vmul.f32 %v786, %v1267
      %v1306 = vmul.f32 %v788, %v1269
      %v1307 = vmul.f32 %v1089, %v1271
      %v1308 = vmul.f32 %v792, %v1273
      %v1309 = vmul.f32 %v794, %v1275
      %v1310 = vmul.f32 %v1094, %v1277
      %v1311 = vmul.f32 %v798, %v1279
      %v1312 = vmul.f32 %v800, %v1281
      %v1313 = vmul.f32 %v1099, %v1283
      %v1314 = vmul.f32 %v804, %v1285
      %v1315 = vmul.f32 %v806, %v1287
      %v1316 = vmul.f32 %v1104, %v1289
      %v1317 = vmul.f32 %v810, %v1291
      %v1318 = vmul.f32 %v812, %v1293
      %v1319 = vmul.f32 %v1109, %v1295
      %v1320 = vadd.f32 %v1296, %v1297
      %vm1321 = vcmask 457728
      %v1322 = vsel %vm1321, %v1298, 0.0
      %v1323 = vadd.f32 %v1320, %v1322
      %1324 = vadd.xlane.f32.xlu0 %v1323
      %v1325 = vpop.xlane.xlu0 %1324
      %v1326 = vadd.f32 %v1299, %v1300
      %v1327 = vsel %vm1321, %v1301, 0.0
      %v1328 = vadd.f32 %v1326, %v1327
      %1329 = vadd.xlane.f32.xlu0 %v1328
      %v1330 = vpop.xlane.xlu0 %1329
      %v1331 = vadd.f32 %v1302, %v1303
      %v1332 = vsel %vm1321, %v1304, 0.0
      %v1333 = vadd.f32 %v1331, %v1332
      %1334 = vadd.xlane.f32.xlu0 %v1333
      %v1335 = vpop.xlane.xlu0 %1334
      %v1336 = vadd.f32 %v1305, %v1306
      %v1337 = vsel %vm1321, %v1307, 0.0
      %v1338 = vadd.f32 %v1336, %v1337
      %1339 = vadd.xlane.f32.xlu0 %v1338
      %v1340 = vpop.xlane.xlu0 %1339
      %v1341 = vadd.f32 %v1308, %v1309
      %v1342 = vsel %vm1321, %v1310, 0.0
      %v1343 = vadd.f32 %v1341, %v1342
      %1344 = vadd.xlane.f32.xlu0 %v1343
      %v1345 = vpop.xlane.xlu0 %1344
      %v1346 = vadd.f32 %v1311, %v1312
      %v1347 = vsel %vm1321, %v1313, 0.0
      %v1348 = vadd.f32 %v1346, %v1347
      %1349 = vadd.xlane.f32.xlu0 %v1348
      %v1350 = vpop.xlane.xlu0 %1349
      %v1351 = vadd.f32 %v1314, %v1315
      %v1352 = vsel %vm1321, %v1316, 0.0
      %v1353 = vadd.f32 %v1351, %v1352
      %1354 = vadd.xlane.f32.xlu0 %v1353
      %v1355 = vpop.xlane.xlu0 %1354
      %v1356 = vadd.f32 %v1317, %v1318
      %v1357 = vsel %vm1321, %v1319, 0.0
      %v1358 = vadd.f32 %v1356, %v1357
      %1359 = vadd.xlane.f32.xlu0 %v1358
      %v1360 = vpop.xlane.xlu0 %1359
      %v1361 = vrcp.pop 312.0
      %v1362 = vmul.f32 %v1325, %v1361
      %v1363 = vmul.f32 %v1330, %v1361
      %v1364 = vmul.f32 %v1335, %v1361
      %v1365 = vmul.f32 %v1340, %v1361
      %v1366 = vmul.f32 %v1345, %v1361
      %v1367 = vmul.f32 %v1350, %v1361
      %v1368 = vmul.f32 %v1355, %v1361
      %v1369 = vmul.f32 %v1360, %v1361
      %v1370 = vsub.f32 %v1296, %v1362
      %v1371 = vsub.f32 %v1297, %v1362
      %v1372 = vsub.f32 %v1298, %v1362
      %v1373 = vsub.f32 %v1299, %v1363
      %v1374 = vsub.f32 %v1300, %v1363
      %v1375 = vsub.f32 %v1301, %v1363
      %v1376 = vsub.f32 %v1302, %v1364
      %v1377 = vsub.f32 %v1303, %v1364
      %v1378 = vsub.f32 %v1304, %v1364
      %v1379 = vsub.f32 %v1305, %v1365
      %v1380 = vsub.f32 %v1306, %v1365
      %v1381 = vsub.f32 %v1307, %v1365
      %v1382 = vsub.f32 %v1308, %v1366
      %v1383 = vsub.f32 %v1309, %v1366
      %v1384 = vsub.f32 %v1310, %v1366
      %v1385 = vsub.f32 %v1311, %v1367
      %v1386 = vsub.f32 %v1312, %v1367
      %v1387 = vsub.f32 %v1313, %v1367
      %v1388 = vsub.f32 %v1314, %v1368
      %v1389 = vsub.f32 %v1315, %v1368
      %v1390 = vsub.f32 %v1316, %v1368
      %v1391 = vsub.f32 %v1317, %v1369
      %v1392 = vsub.f32 %v1318, %v1369
      %v1393 = vsub.f32 %v1319, %v1369
      %v1394 = vmul.f32 %v1370, %v1370
      %v1395 = vmul.f32 %v1371, %v1371
      %v1396 = vmul.f32 %v1372, %v1372
      %v1397 = vmul.f32 %v1373, %v1373
      %v1398 = vmul.f32 %v1374, %v1374
      %v1399 = vmul.f32 %v1375, %v1375
      %v1400 = vmul.f32 %v1376, %v1376
      %v1401 = vmul.f32 %v1377, %v1377
      %v1402 = vmul.f32 %v1378, %v1378
      %v1403 = vmul.f32 %v1379, %v1379
      %v1404 = vmul.f32 %v1380, %v1380
      %v1405 = vmul.f32 %v1381, %v1381
      %v1406 = vmul.f32 %v1382, %v1382
      %v1407 = vmul.f32 %v1383, %v1383
      %v1408 = vmul.f32 %v1384, %v1384
      %v1409 = vmul.f32 %v1385, %v1385
      %v1410 = vmul.f32 %v1386, %v1386
      %v1411 = vmul.f32 %v1387, %v1387
      %v1412 = vmul.f32 %v1388, %v1388
      %v1413 = vmul.f32 %v1389, %v1389
      %v1414 = vmul.f32 %v1390, %v1390
      %v1415 = vmul.f32 %v1391, %v1391
      %v1416 = vmul.f32 %v1392, %v1392
      %v1417 = vmul.f32 %v1393, %v1393
      %v1418 = vadd.f32 %v1394, %v1395
      %v1419 = vsel %vm1321, %v1396, 0.0
      %v1420 = vadd.f32 %v1418, %v1419
      %1421 = vadd.xlane.f32.xlu0 %v1420
      %v1422 = vpop.xlane.xlu0 %1421
      %v1423 = vadd.f32 %v1397, %v1398
      %v1424 = vsel %vm1321, %v1399, 0.0
      %v1425 = vadd.f32 %v1423, %v1424
      %1426 = vadd.xlane.f32.xlu0 %v1425
      %v1427 = vpop.xlane.xlu0 %1426
      %v1428 = vadd.f32 %v1400, %v1401
      %v1429 = vsel %vm1321, %v1402, 0.0
      %v1430 = vadd.f32 %v1428, %v1429
      %1431 = vadd.xlane.f32.xlu0 %v1430
      %v1432 = vpop.xlane.xlu0 %1431
      %v1433 = vadd.f32 %v1403, %v1404
      %v1434 = vsel %vm1321, %v1405, 0.0
      %v1435 = vadd.f32 %v1433, %v1434
      %1436 = vadd.xlane.f32.xlu0 %v1435
      %v1437 = vpop.xlane.xlu0 %1436
      %v1438 = vadd.f32 %v1406, %v1407
      %v1439 = vsel %vm1321, %v1408, 0.0
      %v1440 = vadd.f32 %v1438, %v1439
      %1441 = vadd.xlane.f32.xlu0 %v1440
      %v1442 = vpop.xlane.xlu0 %1441
      %v1443 = vadd.f32 %v1409, %v1410
      %v1444 = vsel %vm1321, %v1411, 0.0
      %v1445 = vadd.f32 %v1443, %v1444
      %1446 = vadd.xlane.f32.xlu0 %v1445
      %v1447 = vpop.xlane.xlu0 %1446
      %v1448 = vadd.f32 %v1412, %v1413
      %v1449 = vsel %vm1321, %v1414, 0.0
      %v1450 = vadd.f32 %v1448, %v1449
      %1451 = vadd.xlane.f32.xlu0 %v1450
      %v1452 = vpop.xlane.xlu0 %1451
      %v1453 = vadd.f32 %v1415, %v1416
      %v1454 = vsel %vm1321, %v1417, 0.0
      %v1455 = vadd.f32 %v1453, %v1454
      %1456 = vadd.xlane.f32.xlu0 %v1455
      %v1457 = vpop.xlane.xlu0 %1456
      %v1458 = vmul.f32 %v1422, %v1361
      %v1459 = vmul.f32 %v1427, %v1361
      %v1460 = vmul.f32 %v1432, %v1361
      %v1461 = vmul.f32 %v1437, %v1361
      %v1462 = vmul.f32 %v1442, %v1361
      %v1463 = vmul.f32 %v1447, %v1361
      %v1464 = vmul.f32 %v1452, %v1361
      %v1465 = vmul.f32 %v1457, %v1361
      %v1466 = vadd.f32 %v1458, 1e-05
      %v1467 = vadd.f32 %v1459, 1e-05
      %v1468 = vadd.f32 %v1460, 1e-05
      %v1469 = vadd.f32 %v1461, 1e-05
      %v1470 = vadd.f32 %v1462, 1e-05
      %v1471 = vadd.f32 %v1463, 1e-05
      %v1472 = vadd.f32 %v1464, 1e-05
      %v1473 = vadd.f32 %v1465, 1e-05
      %v1474 = vrsqrt.pop %v1466
      %v1475 = vrsqrt.pop %v1467
      %v1476 = vrsqrt.pop %v1468
      %v1477 = vrsqrt.pop %v1469
      %v1478 = vrsqrt.pop %v1470
      %v1479 = vrsqrt.pop %v1471
      %v1480 = vrsqrt.pop %v1472
      %v1481 = vrsqrt.pop %v1473
      %v1482 = vmul.f32 %v1370, %v1474
      %v1483 = vmul.f32 %v1371, %v1474
      %v1484 = vmul.f32 %v1372, %v1474
      %v1485 = vmul.f32 %v1373, %v1475
      %v1486 = vmul.f32 %v1374, %v1475
      %v1487 = vmul.f32 %v1375, %v1475
      %v1488 = vmul.f32 %v1376, %v1476
      %v1489 = vmul.f32 %v1377, %v1476
      %v1490 = vmul.f32 %v1378, %v1476
      %v1491 = vmul.f32 %v1379, %v1477
      %v1492 = vmul.f32 %v1380, %v1477
      %v1493 = vmul.f32 %v1381, %v1477
      %v1494 = vmul.f32 %v1382, %v1478
      %v1495 = vmul.f32 %v1383, %v1478
      %v1496 = vmul.f32 %v1384, %v1478
      %v1497 = vmul.f32 %v1385, %v1479
      %v1498 = vmul.f32 %v1386, %v1479
      %v1499 = vmul.f32 %v1387, %v1479
      %v1500 = vmul.f32 %v1388, %v1480
      %v1501 = vmul.f32 %v1389, %v1480
      %v1502 = vmul.f32 %v1390, %v1480
      %v1503 = vmul.f32 %v1391, %v1481
      %v1504 = vmul.f32 %v1392, %v1481
      %v1505 = vmul.f32 %v1393, %v1481
      %v1506 = vld [vmem:[%s2] sm:$0xff]
      %v1507 = vld [vmem:[%s2 + $0x8] sm:$0xff]
      %v1508 = vld [vmem:[%s2 + $0x10] sm:$0xff]
      %v1509 = vld [vmem:[%s2 + $0x18] sm:$0xff]
      %v1510 = vld [vmem:[%s2 + $0x20] sm:$0xff]
      %v1511 = vld [vmem:[%s2 + $0x28] sm:$0xff]
      %v1512 = vld [vmem:[%s2 + $0x30] sm:$0xff]
      %v1513 = vld [vmem:[%s2 + $0x38] sm:$0xff]
      %1515 = vset.pattern.permute.xlu0 0
      %1516 = vperm.xlu0 %1515, %v1506
      %v1517 = vpop.permute.xlu0 %1516
      %1520 = vset.pattern.permute.xlu0 0
      %1521 = vperm.xlu0 %1520, %v1507
      %v1522 = vpop.permute.xlu0 %1521
      %1525 = vset.pattern.permute.xlu0 0
      %1526 = vperm.xlu0 %1525, %v1508
      %v1527 = vpop.permute.xlu0 %1526
      %1530 = vset.pattern.permute.xlu0 0
      %1531 = vperm.xlu0 %1530, %v1509
      %v1532 = vpop.permute.xlu0 %1531
      %1535 = vset.pattern.permute.xlu0 0
      %1536 = vperm.xlu0 %1535, %v1510
      %v1537 = vpop.permute.xlu0 %1536
      %1540 = vset.pattern.permute.xlu0 0
      %1541 = vperm.xlu0 %1540, %v1511
      %v1542 = vpop.permute.xlu0 %1541
      %1545 = vset.pattern.permute.xlu0 0
      %1546 = vperm.xlu0 %1545, %v1512
      %v1547 = vpop.permute.xlu0 %1546
      %1550 = vset.pattern.permute.xlu0 0
      %1551 = vperm.xlu0 %1550, %v1513
      %v1552 = vpop.permute.xlu0 %1551
      %v1554 = vmul.f32 %v1482, %v1517
      %v1555 = vmul.f32 %v1483, %v1517
      %v1556 = vmul.f32 %v1484, %v1517
      %v1557 = vmul.f32 %v1485, %v1522
      %v1558 = vmul.f32 %v1486, %v1522
      %v1559 = vmul.f32 %v1487, %v1522
      %v1560 = vmul.f32 %v1488, %v1527
      %v1561 = vmul.f32 %v1489, %v1527
      %v1562 = vmul.f32 %v1490, %v1527
      %v1563 = vmul.f32 %v1491, %v1532
      %v1564 = vmul.f32 %v1492, %v1532
      %v1565 = vmul.f32 %v1493, %v1532
      %v1566 = vmul.f32 %v1494, %v1537
      %v1567 = vmul.f32 %v1495, %v1537
      %v1568 = vmul.f32 %v1496, %v1537
      %v1569 = vmul.f32 %v1497, %v1542
      %v1570 = vmul.f32 %v1498, %v1542
      %v1571 = vmul.f32 %v1499, %v1542
      %v1572 = vmul.f32 %v1500, %v1547
      %v1573 = vmul.f32 %v1501, %v1547
      %v1574 = vmul.f32 %v1502, %v1547
      %v1575 = vmul.f32 %v1503, %v1552
      %v1576 = vmul.f32 %v1504, %v1552
      %v1577 = vmul.f32 %v1505, %v1552
      %v1578 = vld [vmem:[%s3] sm:$0xff]
      %v1579 = vld [vmem:[%s3 + $0x8] sm:$0xff]
      %v1580 = vld [vmem:[%s3 + $0x10] sm:$0xff]
      %v1581 = vld [vmem:[%s3 + $0x18] sm:$0xff]
      %v1582 = vld [vmem:[%s3 + $0x20] sm:$0xff]
      %v1583 = vld [vmem:[%s3 + $0x28] sm:$0xff]
      %v1584 = vld [vmem:[%s3 + $0x30] sm:$0xff]
      %v1585 = vld [vmem:[%s3 + $0x38] sm:$0xff]
      %1587 = vset.pattern.permute.xlu0 0
      %1588 = vperm.xlu0 %1587, %v1578
      %v1589 = vpop.permute.xlu0 %1588
      %1592 = vset.pattern.permute.xlu0 0
      %1593 = vperm.xlu0 %1592, %v1579
      %v1594 = vpop.permute.xlu0 %1593
      %1597 = vset.pattern.permute.xlu0 0
      %1598 = vperm.xlu0 %1597, %v1580
      %v1599 = vpop.permute.xlu0 %1598
      %1602 = vset.pattern.permute.xlu0 0
      %1603 = vperm.xlu0 %1602, %v1581
      %v1604 = vpop.permute.xlu0 %1603
      %1607 = vset.pattern.permute.xlu0 0
      %1608 = vperm.xlu0 %1607, %v1582
      %v1609 = vpop.permute.xlu0 %1608
      %1612 = vset.pattern.permute.xlu0 0
      %1613 = vperm.xlu0 %1612, %v1583
      %v1614 = vpop.permute.xlu0 %1613
      %1617 = vset.pattern.permute.xlu0 0
      %1618 = vperm.xlu0 %1617, %v1584
      %v1619 = vpop.permute.xlu0 %1618
      %1622 = vset.pattern.permute.xlu0 0
      %1623 = vperm.xlu0 %1622, %v1585
      %v1624 = vpop.permute.xlu0 %1623
      %v1626 = vadd.f32 %v1554, %v1589
      %v1627 = vadd.f32 %v1555, %v1589
      %v1628 = vadd.f32 %v1556, %v1589
      %v1629 = vadd.f32 %v1557, %v1594
      %v1630 = vadd.f32 %v1558, %v1594
      %v1631 = vadd.f32 %v1559, %v1594
      %v1632 = vadd.f32 %v1560, %v1599
      %v1633 = vadd.f32 %v1561, %v1599
      %v1634 = vadd.f32 %v1562, %v1599
      %v1635 = vadd.f32 %v1563, %v1604
      %v1636 = vadd.f32 %v1564, %v1604
      %v1637 = vadd.f32 %v1565, %v1604
      %v1638 = vadd.f32 %v1566, %v1609
      %v1639 = vadd.f32 %v1567, %v1609
      %v1640 = vadd.f32 %v1568, %v1609
      %v1641 = vadd.f32 %v1569, %v1614
      %v1642 = vadd.f32 %v1570, %v1614
      %v1643 = vadd.f32 %v1571, %v1614
      %v1644 = vadd.f32 %v1572, %v1619
      %v1645 = vadd.f32 %v1573, %v1619
      %v1646 = vadd.f32 %v1574, %v1619
      %v1647 = vadd.f32 %v1575, %v1624
      %v1648 = vadd.f32 %v1576, %v1624
      %v1649 = vadd.f32 %v1577, %v1624
      %vm1650 = vcmp.gt.f32.partialorder %v1626, 0.0
      %vm1651 = vcmp.gt.f32.partialorder %v1627, 0.0
      %vm1652 = vcmp.gt.f32.partialorder %v1628, 0.0
      %vm1653 = vcmp.gt.f32.partialorder %v1629, 0.0
      %vm1654 = vcmp.gt.f32.partialorder %v1630, 0.0
      %vm1655 = vcmp.gt.f32.partialorder %v1631, 0.0
      %vm1656 = vcmp.gt.f32.partialorder %v1632, 0.0
      %vm1657 = vcmp.gt.f32.partialorder %v1633, 0.0
      %vm1658 = vcmp.gt.f32.partialorder %v1634, 0.0
      %vm1659 = vcmp.gt.f32.partialorder %v1635, 0.0
      %vm1660 = vcmp.gt.f32.partialorder %v1636, 0.0
      %vm1661 = vcmp.gt.f32.partialorder %v1637, 0.0
      %vm1662 = vcmp.gt.f32.partialorder %v1638, 0.0
      %vm1663 = vcmp.gt.f32.partialorder %v1639, 0.0
      %vm1664 = vcmp.gt.f32.partialorder %v1640, 0.0
      %vm1665 = vcmp.gt.f32.partialorder %v1641, 0.0
      %vm1666 = vcmp.gt.f32.partialorder %v1642, 0.0
      %vm1667 = vcmp.gt.f32.partialorder %v1643, 0.0
      %vm1668 = vcmp.gt.f32.partialorder %v1644, 0.0
      %vm1669 = vcmp.gt.f32.partialorder %v1645, 0.0
      %vm1670 = vcmp.gt.f32.partialorder %v1646, 0.0
      %vm1671 = vcmp.gt.f32.partialorder %v1647, 0.0
      %vm1672 = vcmp.gt.f32.partialorder %v1648, 0.0
      %vm1673 = vcmp.gt.f32.partialorder %v1649, 0.0
      %v1674 = vld [vmem:[%s4] sm:$0xff]
      %v1675 = vld [vmem:[%s4 + $0x8] sm:$0xff]
      %v1676 = vld [vmem:[%s4 + $0x10] sm:$0xff]
      %v1677 = vld [vmem:[%s4 + $0x18] sm:$0xff]
      %v1678 = vld [vmem:[%s4 + $0x20] sm:$0xff]
      %v1679 = vld [vmem:[%s4 + $0x28] sm:$0xff]
      %v1680 = vld [vmem:[%s4 + $0x30] sm:$0xff]
      %v1681 = vld [vmem:[%s4 + $0x38] sm:$0xff]
      %1683 = vset.pattern.permute.xlu0 0
      %1684 = vperm.xlu0 %1683, %v1674
      %v1685 = vpop.permute.xlu0 %1684
      %1688 = vset.pattern.permute.xlu0 0
      %1689 = vperm.xlu0 %1688, %v1675
      %v1690 = vpop.permute.xlu0 %1689
      %1693 = vset.pattern.permute.xlu0 0
      %1694 = vperm.xlu0 %1693, %v1676
      %v1695 = vpop.permute.xlu0 %1694
      %1698 = vset.pattern.permute.xlu0 0
      %1699 = vperm.xlu0 %1698, %v1677
      %v1700 = vpop.permute.xlu0 %1699
      %1703 = vset.pattern.permute.xlu0 0
      %1704 = vperm.xlu0 %1703, %v1678
      %v1705 = vpop.permute.xlu0 %1704
      %1708 = vset.pattern.permute.xlu0 0
      %1709 = vperm.xlu0 %1708, %v1679
      %v1710 = vpop.permute.xlu0 %1709
      %1713 = vset.pattern.permute.xlu0 0
      %1714 = vperm.xlu0 %1713, %v1680
      %v1715 = vpop.permute.xlu0 %1714
      %1718 = vset.pattern.permute.xlu0 0
      %1719 = vperm.xlu0 %1718, %v1681
      %v1720 = vpop.permute.xlu0 %1719
      %v1722 = vmul.f32 %v1685, %v1626
      %v1723 = vmul.f32 %v1685, %v1627
      %v1724 = vmul.f32 %v1685, %v1628
      %v1725 = vmul.f32 %v1690, %v1629
      %v1726 = vmul.f32 %v1690, %v1630
      %v1727 = vmul.f32 %v1690, %v1631
      %v1728 = vmul.f32 %v1695, %v1632
      %v1729 = vmul.f32 %v1695, %v1633
      %v1730 = vmul.f32 %v1695, %v1634
      %v1731 = vmul.f32 %v1700, %v1635
      %v1732 = vmul.f32 %v1700, %v1636
      %v1733 = vmul.f32 %v1700, %v1637
      %v1734 = vmul.f32 %v1705, %v1638
      %v1735 = vmul.f32 %v1705, %v1639
      %v1736 = vmul.f32 %v1705, %v1640
      %v1737 = vmul.f32 %v1710, %v1641
      %v1738 = vmul.f32 %v1710, %v1642
      %v1739 = vmul.f32 %v1710, %v1643
      %v1740 = vmul.f32 %v1715, %v1644
      %v1741 = vmul.f32 %v1715, %v1645
      %v1742 = vmul.f32 %v1715, %v1646
      %v1743 = vmul.f32 %v1720, %v1647
      %v1744 = vmul.f32 %v1720, %v1648
      %v1745 = vmul.f32 %v1720, %v1649
      %v1746 = vsel %vm1650, %v1626, %v1722
      %v1747 = vsel %vm1651, %v1627, %v1723
      %v1748 = vsel %vm1652, %v1628, %v1724
      %v1749 = vsel %vm1653, %v1629, %v1725
      %v1750 = vsel %vm1654, %v1630, %v1726
      %v1751 = vsel %vm1655, %v1631, %v1727
      %v1752 = vsel %vm1656, %v1632, %v1728
      %v1753 = vsel %vm1657, %v1633, %v1729
      %v1754 = vsel %vm1658, %v1634, %v1730
      %v1755 = vsel %vm1659, %v1635, %v1731
      %v1756 = vsel %vm1660, %v1636, %v1732
      %v1757 = vsel %vm1661, %v1637, %v1733
      %v1758 = vsel %vm1662, %v1638, %v1734
      %v1759 = vsel %vm1663, %v1639, %v1735
      %v1760 = vsel %vm1664, %v1640, %v1736
      %v1761 = vsel %vm1665, %v1641, %v1737
      %v1762 = vsel %vm1666, %v1642, %v1738
      %v1763 = vsel %vm1667, %v1643, %v1739
      %v1764 = vsel %vm1668, %v1644, %v1740
      %v1765 = vsel %vm1669, %v1645, %v1741
      %v1766 = vsel %vm1670, %v1646, %v1742
      %v1767 = vsel %vm1671, %v1647, %v1743
      %v1768 = vsel %vm1672, %v1648, %v1744
      %v1769 = vsel %vm1673, %v1649, %v1745
      %1770 = vst [vmem:[%s251] sm:$0xff] %v1746
      %1771 = vst [vmem:[%s251 + $0x8] sm:$0xff] %v1747
      %1772 = vst.msk [vmem:[%s251 + $0x10] sm:$0xff] %vm1321, %v1748
      %1773 = vst [vmem:[%s251 + $0x18] sm:$0xff] %v1749
      %1774 = vst [vmem:[%s251 + $0x20] sm:$0xff] %v1750
      %1775 = vst.msk [vmem:[%s251 + $0x28] sm:$0xff] %vm1321, %v1751
      %1776 = vst [vmem:[%s251 + $0x30] sm:$0xff] %v1752
      %1777 = vst [vmem:[%s251 + $0x38] sm:$0xff] %v1753
      %1778 = vst.msk [vmem:[%s251 + $0x40] sm:$0xff] %vm1321, %v1754
      %1779 = vst [vmem:[%s251 + $0x48] sm:$0xff] %v1755
      %1780 = vst [vmem:[%s251 + $0x50] sm:$0xff] %v1756
      %1781 = vst.msk [vmem:[%s251 + $0x58] sm:$0xff] %vm1321, %v1757
      %1782 = vst [vmem:[%s251 + $0x60] sm:$0xff] %v1758
      %1783 = vst [vmem:[%s251 + $0x68] sm:$0xff] %v1759
      %1784 = vst.msk [vmem:[%s251 + $0x70] sm:$0xff] %vm1321, %v1760
      %1785 = vst [vmem:[%s251 + $0x78] sm:$0xff] %v1761
      %1786 = vst [vmem:[%s251 + $0x80] sm:$0xff] %v1762
      %1787 = vst.msk [vmem:[%s251 + $0x88] sm:$0xff] %vm1321, %v1763
      %1788 = vst [vmem:[%s251 + $0x90] sm:$0xff] %v1764
      %1789 = vst [vmem:[%s251 + $0x98] sm:$0xff] %v1765
      %1790 = vst.msk [vmem:[%s251 + $0xa0] sm:$0xff] %vm1321, %v1766
      %1791 = vst [vmem:[%s251 + $0xa8] sm:$0xff] %v1767
      %1792 = vst [vmem:[%s251 + $0xb0] sm:$0xff] %v1768
      %1793 = vst.msk [vmem:[%s251 + $0xb8] sm:$0xff] %vm1321, %v1769
      %p1794 = scmp.lt.s32.totalorder %s17, 1
      %s1795 = scalar_select %p1794, %s17, 1
      %s1796 = smul.addr %s1795, 24
      %s1797 = smul.addr %s1796, 8
      %s1798 = scalar_lea.vmem %s6, %s1797
      // Predicated region
      $region45: #{encoder_forward.6} parent=43 // pred_check
        %p1799 = pneg %p166
      $region46: #{encoder_forward.6} parent=43 // pred_check_branch
        %1801 = sbr.rel (%p1799) target = $region48
      $region47: #{encoder_forward.6} parent=43 // pred_region
        _
      $region48: #{encoder_forward.6} parent=43 // pred_fallthru
        _
    $region44: #{encoder_forward.6} parent=5 // pred_fallthru
      _
    %p1802 = scmp.le.s32.totalorder 2, %s12
    // Predicated region
    $region49: #{encoder_forward.6} parent=5 // pred_check
      %p1803 = pneg %p1802
    $region50: #{encoder_forward.6} parent=5 // pred_check_branch
      %1805 = sbr.rel (%p1803) target = $region52
    $region51: #{encoder_forward.6} parent=5 // pred_region
      %s1806 = ssub.s32 %s12, 2
      // Predicated region
      $region53: #{encoder_forward.6} parent=51 // pred_check
        %p1807 = pneg %p172
      $region54: #{encoder_forward.6} parent=51 // pred_check_branch
        %1809 = sbr.rel (%p1807) target = $region56
      $region55: #{encoder_forward.6} parent=51 // pred_region
        %p1810 = scmp.lt.s32.totalorder %s18, 1
        %s1811 = scalar_select %p1810, %s18, 1
        %s1812 = smul.addr %s1811, 24
        %s1813 = smul.addr %s1812, 8
        %s1814 = scalar_lea.vmem %s6, %s1813
      $region56: #{encoder_forward.6} parent=51 // pred_fallthru
        _
    $region52: #{encoder_forward.6} parent=5 // pred_fallthru
      _
  $region6: #{encoder_forward.6} parent=0 // loop_footer
    %s16 = sadd.s32 1, %s12
  $region7: #{encoder_forward.6} parent=0 // loop_footer_branch
    %11 = sbr.rel target = $region3
  $region8: #{encoder_forward.6} parent=0 // loop_exit
    _

// kernel: encoder_forward.7
$region0: #{encoder_forward.7}
  #allocation0 [shape = 'u32[]', space=smem, size = 0x4, offset = 0x4, fixed_abs, tag = 'smem constant byte address 0x4 - core index']
  #allocation1 [shape = 'u32[144,128]{1,0:T(1,128)}', space=vmem, size = 0x12000, scoped, tag = 'internal scratch']
  %s0 = inlined_call_operand.vmem [shape: f32[128,384], index: 0, kind: input, shape index: {}]
  %s1 = inlined_call_operand.vmem [shape: f32[128,1], index: 1, kind: input, shape index: {}]
  %s2 = inlined_call_operand.vmem [shape: f32[64,1], index: 2, kind: input, shape index: {}]
  %s3 = inlined_call_operand.vmem [shape: f32[64,1], index: 3, kind: input, shape index: {}]
  %s4 = inlined_call_operand.vmem [shape: f32[64,1], index: 4, kind: input, shape index: {}]
  %s5 = inlined_call_operand.vmem [shape: f32[2,384,152], index: 5, kind: input, shape index: {}]
  %s6 = inlined_call_operand.vmem [shape: f32[2,64,152], index: 6, kind: output, shape index: {}]
  %s7 = sld [smem:[#allocation0]]
  $region57: #{encoder_forward.7} parent=0
    _
  %s9 = ssub.s32 1, %s7
  %s10 = scalar_select 0, %s9, %s7
  loop: start=0, step=1, limit=4
  $region2: #{encoder_forward.7} parent=0 // loop_pre_header
    _
  $region3: #{encoder_forward.7} parent=0 // loop_header
    %s12 = sphi 0, %s16
    %p13 = scmp.ge.s32.totalorder %s12, 4
    %s20 = sphi 0, %s20
    %s22 = sphi 0, %s20
    %s23 = sphi 0, %s22
    %s37 = sphi 0, %s23
    %s41 = sphi 0, %s41
    %s43 = sphi 0, %s41
    %s44 = sphi 0, %s43
    %s58 = sphi 0, %s44
    %s62 = sphi 0, %s62
    %s64 = sphi 0, %s62
    %s65 = sphi 0, %s64
    %s79 = sphi 0, %s65
    %s83 = sphi 0, %s83
    %s85 = sphi 0, %s83
    %s86 = sphi 0, %s85
    %s100 = sphi 0, %s86
    %s104 = sphi 0, %s104
    %s106 = sphi 0, %s104
    %s107 = sphi 0, %s106
    %s121 = sphi 0, %s107
    %s127 = sphi 0, %s129
    %s130 = sphi 0, %s127
    %s131 = sphi 0, %s130
    %s147 = sphi 0, %s131
    %s153 = sphi 0, %s155
    %s156 = sphi 0, %s153
    %s157 = sphi 0, %s156
    %s173 = sphi 0, %s157
  $region4: #{encoder_forward.7} parent=0 // loop_header_branch
    %15 = sbr.rel (%p13) target = $region8
  $region5: #{encoder_forward.7} parent=0 // loop_body
    %s17 = ssub.s32 %s12, 1
    %s18 = ssub.s32 %s12, 2
    %s19 = sadd.s32 %s12, 1
    %s21 = sadd.s32 %s20, 1
    %p24 = scmp.eq.s32.totalorder %s12, 1
    %p25 = scmp.ne.s32.totalorder %s20, %s22
    %p26 = scmp.eq.s32.totalorder %s12, 0
    %p27 = por %p25, %p26
    %p28 = scmp.ne.s32.totalorder %s20, %s22
    %p29 = scmp.eq.s32.totalorder %s17, 1
    %p30 = por %p28, %p29
    %p31 = scmp.ne.s32.totalorder %s22, %s23
    %p32 = scmp.eq.s32.totalorder %s17, 0
    %p33 = por %p31, %p32
    %p34 = scmp.ne.s32.totalorder %s22, %s23
    %p35 = scmp.eq.s32.totalorder %s18, 1
    %p36 = por %p34, %p35
    %p38 = scmp.ne.s32.totalorder %s23, %s37
    %p39 = scmp.eq.s32.totalorder %s18, 0
    %p40 = por %p38, %p39
    %s42 = sadd.s32 %s41, 1
    %p45 = scmp.eq.s32.totalorder %s12, 1
    %p46 = scmp.ne.s32.totalorder %s41, %s43
    %p47 = scmp.eq.s32.totalorder %s12, 0
    %p48 = por %p46, %p47
    %p49 = scmp.ne.s32.totalorder %s41, %s43
    %p50 = scmp.eq.s32.totalorder %s17, 1
    %p51 = por %p49, %p50
    %p52 = scmp.ne.s32.totalorder %s43, %s44
    %p53 = scmp.eq.s32.totalorder %s17, 0
    %p54 = por %p52, %p53
    %p55 = scmp.ne.s32.totalorder %s43, %s44
    %p56 = scmp.eq.s32.totalorder %s18, 1
    %p57 = por %p55, %p56
    %p59 = scmp.ne.s32.totalorder %s44, %s58
    %p60 = scmp.eq.s32.totalorder %s18, 0
    %p61 = por %p59, %p60
    %s63 = sadd.s32 %s62, 1
    %p66 = scmp.eq.s32.totalorder %s12, 1
    %p67 = scmp.ne.s32.totalorder %s62, %s64
    %p68 = scmp.eq.s32.totalorder %s12, 0
    %p69 = por %p67, %p68
    %p70 = scmp.ne.s32.totalorder %s62, %s64
    %p71 = scmp.eq.s32.totalorder %s17, 1
    %p72 = por %p70, %p71
    %p73 = scmp.ne.s32.totalorder %s64, %s65
    %p74 = scmp.eq.s32.totalorder %s17, 0
    %p75 = por %p73, %p74
    %p76 = scmp.ne.s32.totalorder %s64, %s65
    %p77 = scmp.eq.s32.totalorder %s18, 1
    %p78 = por %p76, %p77
    %p80 = scmp.ne.s32.totalorder %s65, %s79
    %p81 = scmp.eq.s32.totalorder %s18, 0
    %p82 = por %p80, %p81
    %s84 = sadd.s32 %s83, 1
    %p87 = scmp.eq.s32.totalorder %s12, 1
    %p88 = scmp.ne.s32.totalorder %s83, %s85
    %p89 = scmp.eq.s32.totalorder %s12, 0
    %p90 = por %p88, %p89
    %p91 = scmp.ne.s32.totalorder %s83, %s85
    %p92 = scmp.eq.s32.totalorder %s17, 1
    %p93 = por %p91, %p92
    %p94 = scmp.ne.s32.totalorder %s85, %s86
    %p95 = scmp.eq.s32.totalorder %s17, 0
    %p96 = por %p94, %p95
    %p97 = scmp.ne.s32.totalorder %s85, %s86
    %p98 = scmp.eq.s32.totalorder %s18, 1
    %p99 = por %p97, %p98
    %p101 = scmp.ne.s32.totalorder %s86, %s100
    %p102 = scmp.eq.s32.totalorder %s18, 0
    %p103 = por %p101, %p102
    %s105 = sadd.s32 %s104, 1
    %p108 = scmp.eq.s32.totalorder %s12, 1
    %p109 = scmp.ne.s32.totalorder %s104, %s106
    %p110 = scmp.eq.s32.totalorder %s12, 0
    %p111 = por %p109, %p110
    %p112 = scmp.ne.s32.totalorder %s104, %s106
    %p113 = scmp.eq.s32.totalorder %s17, 1
    %p114 = por %p112, %p113
    %p115 = scmp.ne.s32.totalorder %s106, %s107
    %p116 = scmp.eq.s32.totalorder %s17, 0
    %p117 = por %p115, %p116
    %p118 = scmp.ne.s32.totalorder %s106, %s107
    %p119 = scmp.eq.s32.totalorder %s18, 1
    %p120 = por %p118, %p119
    %p122 = scmp.ne.s32.totalorder %s107, %s121
    %p123 = scmp.eq.s32.totalorder %s18, 0
    %p124 = por %p122, %p123
    %s125 = ssub.s32 %s12, %s19
    %p126 = scmp.eq.s32.totalorder %s125, 0
    %s128 = sadd.s32 %s127, 1
    %s129 = scalar_select %p126, %s127, %s128
    %p132 = pneg %p126
    %p133 = scmp.eq.s32.totalorder %s12, 1
    %p134 = por %p132, %p133
    %p135 = scmp.ne.s32.totalorder %s127, %s130
    %p136 = scmp.eq.s32.totalorder %s12, 0
    %p137 = por %p135, %p136
    %p138 = scmp.ne.s32.totalorder %s127, %s130
    %p139 = scmp.eq.s32.totalorder %s17, 1
    %p140 = por %p138, %p139
    %p141 = scmp.ne.s32.totalorder %s130, %s131
    %p142 = scmp.eq.s32.totalorder %s17, 0
    %p143 = por %p141, %p142
    %p144 = scmp.ne.s32.totalorder %s130, %s131
    %p145 = scmp.eq.s32.totalorder %s18, 1
    %p146 = por %p144, %p145
    %p148 = scmp.ne.s32.totalorder %s131, %s147
    %p149 = scmp.eq.s32.totalorder %s18, 0
    %p150 = por %p148, %p149
    %s151 = ssub.s32 %s12, %s19
    %p152 = scmp.eq.s32.totalorder %s151, 0
    %s154 = sadd.s32 %s153, 1
    %s155 = scalar_select %p152, %s153, %s154
    %p158 = pneg %p152
    %p159 = scmp.eq.s32.totalorder %s12, 1
    %p160 = por %p158, %p159
    %p161 = scmp.ne.s32.totalorder %s153, %s156
    %p162 = scmp.eq.s32.totalorder %s12, 0
    %p163 = por %p161, %p162
    %p164 = scmp.ne.s32.totalorder %s153, %s156
    %p165 = scmp.eq.s32.totalorder %s17, 1
    %p166 = por %p164, %p165
    %p167 = scmp.ne.s32.totalorder %s156, %s157
    %p168 = scmp.eq.s32.totalorder %s17, 0
    %p169 = por %p167, %p168
    %p170 = scmp.ne.s32.totalorder %s156, %s157
    %p171 = scmp.eq.s32.totalorder %s18, 1
    %p172 = por %p170, %p171
    %p174 = scmp.ne.s32.totalorder %s157, %s173
    %p175 = scmp.eq.s32.totalorder %s18, 0
    %p176 = por %p174, %p175
    %p177 = scmp.le.s32.totalorder 1, %s12
    %p178 = scmp.lt.s32.totalorder %s12, 3
    %p179 = pnand %p177, %p178
    %p180 = pneg %p179
    // Predicated region
    $region9: #{encoder_forward.7} parent=5 // pred_check
      _
    $region10: #{encoder_forward.7} parent=5 // pred_check_branch
      %182 = sbr.rel (%p179) target = $region12
    $region11: #{encoder_forward.7} parent=5 // pred_region
      %s183 = ssub.s32 %s12, 1
      // Predicated region
      $region13: #{encoder_forward.7} parent=11 // pred_check
        %p184 = pneg %p33
      $region14: #{encoder_forward.7} parent=11 // pred_check_branch
        %186 = sbr.rel (%p184) target = $region16
      $region15: #{encoder_forward.7} parent=11 // pred_region
        _
      $region16: #{encoder_forward.7} parent=11 // pred_fallthru
        _
      // Predicated region
      $region17: #{encoder_forward.7} parent=11 // pred_check
        %p187 = pneg %p54
      $region18: #{encoder_forward.7} parent=11 // pred_check_branch
        %189 = sbr.rel (%p187) target = $region20
      $region19: #{encoder_forward.7} parent=11 // pred_region
        _
      $region20: #{encoder_forward.7} parent=11 // pred_fallthru
        _
      // Predicated region
      $region21: #{encoder_forward.7} parent=11 // pred_check
        %p190 = pneg %p75
      $region22: #{encoder_forward.7} parent=11 // pred_check_branch
        %192 = sbr.rel (%p190) target = $region24
      $region23: #{encoder_forward.7} parent=11 // pred_region
        _
      $region24: #{encoder_forward.7} parent=11 // pred_fallthru
        _
      // Predicated region
      $region25: #{encoder_forward.7} parent=11 // pred_check
        %p193 = pneg %p96
      $region26: #{encoder_forward.7} parent=11 // pred_check_branch
        %195 = sbr.rel (%p193) target = $region28
      $region27: #{encoder_forward.7} parent=11 // pred_region
        _
      $region28: #{encoder_forward.7} parent=11 // pred_fallthru
        _
      // Predicated region
      $region29: #{encoder_forward.7} parent=11 // pred_check
        %p196 = pneg %p117
      $region30: #{encoder_forward.7} parent=11 // pred_check_branch
        %198 = sbr.rel (%p196) target = $region32
      $region31: #{encoder_forward.7} parent=11 // pred_region
        _
      $region32: #{encoder_forward.7} parent=11 // pred_fallthru
        _
    $region12: #{encoder_forward.7} parent=5 // pred_fallthru
      _
    %p199 = scmp.lt.s32.totalorder %s12, 2
    // Predicated region
    $region33: #{encoder_forward.7} parent=5 // pred_check
      %p200 = pneg %p199
    $region34: #{encoder_forward.7} parent=5 // pred_check_branch
      %202 = sbr.rel (%p200) target = $region36
    $region35: #{encoder_forward.7} parent=5 // pred_region
      // Predicated region
      $region37: #{encoder_forward.7} parent=35 // pred_check
        %p203 = pneg %p137
      $region38: #{encoder_forward.7} parent=35 // pred_check_branch
        %205 = sbr.rel (%p203) target = $region40
      $region39: #{encoder_forward.7} parent=35 // pred_region
        %p206 = scmp.lt.s32.totalorder %s12, 1
        %s207 = scalar_select %p206, %s12, 1
        %s208 = smul.addr %s207, 96
        %s209 = smul.addr %s208, 8
        %s210 = scalar_lea.vmem %s5, %s209
      $region40: #{encoder_forward.7} parent=35 // pred_fallthru
        _
    $region36: #{encoder_forward.7} parent=5 // pred_fallthru
      _
    %p211 = scmp.le.s32.totalorder 1, %s12
    %p212 = scmp.lt.s32.totalorder %s12, 3
    %p213 = pnand %p211, %p212
    %p214 = pneg %p213
    // Predicated region
    $region41: #{encoder_forward.7} parent=5 // pred_check
      _
    $region42: #{encoder_forward.7} parent=5 // pred_check_branch
      %216 = sbr.rel (%p213) target = $region44
    $region43: #{encoder_forward.7} parent=5 // pred_region
      %s217 = ssub.s32 %s12, 1
      %p218 = pneg %p33
      %p219 = pneg %p30
      %p220 = pneg %p54
      %p221 = pneg %p51
      %p222 = pneg %p75
      %p223 = pneg %p72
      %p224 = pneg %p96
      %p225 = pneg %p93
      %p226 = pneg %p117
      %p227 = pneg %p114
      %p228 = scmp.lt.s32.totalorder %s17, 1
      %s229 = scalar_select %p228, %s17, 1
      %s230 = smul.addr %s229, 96
      %s231 = smul.addr %s230, 8
      %s232 = scalar_lea.vmem %s5, %s231
      %p233 = pneg %p143
      %p234 = pneg %p140
      %p235 = pneg %p169
      %p236 = pneg %p166
      %p237 = scmp.lt.s32.totalorder %s17, 1
      %s238 = scalar_select %p237, %s17, 1
      %s239 = smul.addr %s238, 16
      %s240 = smul.addr %s239, 8
      %s241 = scalar_lea.vmem %s6, %s240
      %p242 = scmp.lt.s32.totalorder %s17, 1
      %s243 = scalar_select %p242, %s17, 1
      %s244 = smul.addr %s243, 96
      %s245 = smul.addr %s244, 8
      %s246 = scalar_lea.vmem %s5, %s245
      %p247 = scmp.lt.s32.totalorder %s17, 1
      %s248 = scalar_select %p247, %s17, 1
      %s249 = smul.addr %s248, 16
      %s250 = smul.addr %s249, 8
      %s251 = scalar_lea.vmem %s6, %s250
      %v252 = vld [vmem:[%s246] sm:$0xff]
      %v253 = vld [vmem:[%s246 + $0x8] sm:$0xff]
      %v254 = vld [vmem:[%s246 + $0x10] sm:$0xff]
      %v255 = vld [vmem:[%s246 + $0x18] sm:$0xff]
      %v256 = vld [vmem:[%s246 + $0x20] sm:$0xff]
      %v257 = vld [vmem:[%s246 + $0x28] sm:$0xff]
      %v258 = vld [vmem:[%s246 + $0x30] sm:$0xff]
      %v259 = vld [vmem:[%s246 + $0x38] sm:$0xff]
      %v260 = vld [vmem:[%s246 + $0x40] sm:$0xff]
      %v261 = vld [vmem:[%s246 + $0x48] sm:$0xff]
      %v262 = vld [vmem:[%s246 + $0x50] sm:$0xff]
      %v263 = vld [vmem:[%s246 + $0x58] sm:$0xff]
      %v264 = vld [vmem:[%s246 + $0x60] sm:$0xff]
      %v265 = vld [vmem:[%s246 + $0x68] sm:$0xff]
      %v266 = vld [vmem:[%s246 + $0x70] sm:$0xff]
      %v267 = vld [vmem:[%s246 + $0x78] sm:$0xff]
      %v268 = vld [vmem:[%s246 + $0x80] sm:$0xff]
      %v269 = vld [vmem:[%s246 + $0x88] sm:$0xff]
      %v270 = vld [vmem:[%s246 + $0x90] sm:$0xff]
      %v271 = vld [vmem:[%s246 + $0x98] sm:$0xff]
      %v272 = vld [vmem:[%s246 + $0xa0] sm:$0xff]
      %v273 = vld [vmem:[%s246 + $0xa8] sm:$0xff]
      %v274 = vld [vmem:[%s246 + $0xb0] sm:$0xff]
      %v275 = vld [vmem:[%s246 + $0xb8] sm:$0xff]
      %v276 = vld [vmem:[%s246 + $0xc0] sm:$0xff]
      %v277 = vld [vmem:[%s246 + $0xc8] sm:$0xff]
      %v278 = vld [vmem:[%s246 + $0xd0] sm:$0xff]
      %v279 = vld [vmem:[%s246 + $0xd8] sm:$0xff]
      %v280 = vld [vmem:[%s246 + $0xe0] sm:$0xff]
      %v281 = vld [vmem:[%s246 + $0xe8] sm:$0xff]
      %v282 = vld [vmem:[%s246 + $0xf0] sm:$0xff]
      %v283 = vld [vmem:[%s246 + $0xf8] sm:$0xff]
      %v284 = vld [vmem:[%s246 + $0x100] sm:$0xff]
      %v285 = vld [vmem:[%s246 + $0x108] sm:$0xff]
      %v286 = vld [vmem:[%s246 + $0x110] sm:$0xff]
      %v287 = vld [vmem:[%s246 + $0x118] sm:$0xff]
      %v288 = vld [vmem:[%s246 + $0x120] sm:$0xff]
      %v289 = vld [vmem:[%s246 + $0x128] sm:$0xff]
      %v290 = vld [vmem:[%s246 + $0x130] sm:$0xff]
      %v291 = vld [vmem:[%s246 + $0x138] sm:$0xff]
      %v292 = vld [vmem:[%s246 + $0x140] sm:$0xff]
      %v293 = vld [vmem:[%s246 + $0x148] sm:$0xff]
      %v294 = vld [vmem:[%s246 + $0x150] sm:$0xff]
      %v295 = vld [vmem:[%s246 + $0x158] sm:$0xff]
      %v296 = vld [vmem:[%s246 + $0x160] sm:$0xff]
      %v297 = vld [vmem:[%s246 + $0x168] sm:$0xff]
      %v298 = vld [vmem:[%s246 + $0x170] sm:$0xff]
      %v299 = vld [vmem:[%s246 + $0x178] sm:$0xff]
      %v300 = vld [vmem:[%s246 + $0x180] sm:$0xff]
      %v301 = vld [vmem:[%s246 + $0x188] sm:$0xff]
      %v302 = vld [vmem:[%s246 + $0x190] sm:$0xff]
      %v303 = vld [vmem:[%s246 + $0x198] sm:$0xff]
      %v304 = vld [vmem:[%s246 + $0x1a0] sm:$0xff]
      %v305 = vld [vmem:[%s246 + $0x1a8] sm:$0xff]
      %v306 = vld [vmem:[%s246 + $0x1b0] sm:$0xff]
      %v307 = vld [vmem:[%s246 + $0x1b8] sm:$0xff]
      %v308 = vld [vmem:[%s246 + $0x1c0] sm:$0xff]
      %v309 = vld [vmem:[%s246 + $0x1c8] sm:$0xff]
      %v310 = vld [vmem:[%s246 + $0x1d0] sm:$0xff]
      %v311 = vld [vmem:[%s246 + $0x1d8] sm:$0xff]
      %v312 = vld [vmem:[%s246 + $0x1e0] sm:$0xff]
      %v313 = vld [vmem:[%s246 + $0x1e8] sm:$0xff]
      %v314 = vld [vmem:[%s246 + $0x1f0] sm:$0xff]
      %v315 = vld [vmem:[%s246 + $0x1f8] sm:$0xff]
      %v316 = vld [vmem:[%s246 + $0x200] sm:$0xff]
      %v317 = vld [vmem:[%s246 + $0x208] sm:$0xff]
      %v318 = vld [vmem:[%s246 + $0x210] sm:$0xff]
      %v319 = vld [vmem:[%s246 + $0x218] sm:$0xff]
      %v320 = vld [vmem:[%s246 + $0x220] sm:$0xff]
      %v321 = vld [vmem:[%s246 + $0x228] sm:$0xff]
      %v322 = vld [vmem:[%s246 + $0x230] sm:$0xff]
      %v323 = vld [vmem:[%s246 + $0x238] sm:$0xff]
      %v324 = vld [vmem:[%s246 + $0x240] sm:$0xff]
      %v325 = vld [vmem:[%s246 + $0x248] sm:$0xff]
      %v326 = vld [vmem:[%s246 + $0x250] sm:$0xff]
      %v327 = vld [vmem:[%s246 + $0x258] sm:$0xff]
      %v328 = vld [vmem:[%s246 + $0x260] sm:$0xff]
      %v329 = vld [vmem:[%s246 + $0x268] sm:$0xff]
      %v330 = vld [vmem:[%s246 + $0x270] sm:$0xff]
      %v331 = vld [vmem:[%s246 + $0x278] sm:$0xff]
      %v332 = vld [vmem:[%s246 + $0x280] sm:$0xff]
      %v333 = vld [vmem:[%s246 + $0x288] sm:$0xff]
      %v334 = vld [vmem:[%s246 + $0x290] sm:$0xff]
      %v335 = vld [vmem:[%s246 + $0x298] sm:$0xff]
      %v336 = vld [vmem:[%s246 + $0x2a0] sm:$0xff]
      %v337 = vld [vmem:[%s246 + $0x2a8] sm:$0xff]
      %v338 = vld [vmem:[%s246 + $0x2b0] sm:$0xff]
      %v339 = vld [vmem:[%s246 + $0x2b8] sm:$0xff]
      %v340 = vld [vmem:[%s246 + $0x2c0] sm:$0xff]
      %v341 = vld [vmem:[%s246 + $0x2c8] sm:$0xff]
      %v342 = vld [vmem:[%s246 + $0x2d0] sm:$0xff]
      %v343 = vld [vmem:[%s246 + $0x2d8] sm:$0xff]
      %v344 = vld [vmem:[%s246 + $0x2e0] sm:$0xff]
      %v345 = vld [vmem:[%s246 + $0x2e8] sm:$0xff]
      %v346 = vld [vmem:[%s246 + $0x2f0] sm:$0xff]
      %v347 = vld [vmem:[%s246 + $0x2f8] sm:$0xff]
      %v348 = vld [vmem:[%s0] sm:$0xff]
      %v349 = vld [vmem:[%s0 + $0x8] sm:$0xff]
      %v350 = vld [vmem:[%s0 + $0x10] sm:$0xff]
      %v351 = vld [vmem:[%s0 + $0x18] sm:$0xff]
      %v352 = vld [vmem:[%s0 + $0x20] sm:$0xff]
      %v353 = vld [vmem:[%s0 + $0x28] sm:$0xff]
      %v354 = vld [vmem:[%s0 + $0x30] sm:$0xff]
      %v355 = vld [vmem:[%s0 + $0x38] sm:$0xff]
      %v356 = vld [vmem:[%s0 + $0x40] sm:$0xff]
      %v357 = vld [vmem:[%s0 + $0x48] sm:$0xff]
      %v358 = vld [vmem:[%s0 + $0x50] sm:$0xff]
      %v359 = vld [vmem:[%s0 + $0x58] sm:$0xff]
      %v360 = vld [vmem:[%s0 + $0x60] sm:$0xff]
      %v361 = vld [vmem:[%s0 + $0x68] sm:$0xff]
      %v362 = vld [vmem:[%s0 + $0x70] sm:$0xff]
      %v363 = vld [vmem:[%s0 + $0x78] sm:$0xff]
      %v364 = vld [vmem:[%s0 + $0x80] sm:$0xff]
      %v365 = vld [vmem:[%s0 + $0x88] sm:$0xff]
      %v366 = vld [vmem:[%s0 + $0x90] sm:$0xff]
      %v367 = vld [vmem:[%s0 + $0x98] sm:$0xff]
      %v368 = vld [vmem:[%s0 + $0xa0] sm:$0xff]
      %v369 = vld [vmem:[%s0 + $0xa8] sm:$0xff]
      %v370 = vld [vmem:[%s0 + $0xb0] sm:$0xff]
      %v371 = vld [vmem:[%s0 + $0xb8] sm:$0xff]
      %v372 = vld [vmem:[%s0 + $0xc0] sm:$0xff]
      %v373 = vld [vmem:[%s0 + $0xc8] sm:$0xff]
      %v374 = vld [vmem:[%s0 + $0xd0] sm:$0xff]
      %v375 = vld [vmem:[%s0 + $0xd8] sm:$0xff]
      %v376 = vld [vmem:[%s0 + $0xe0] sm:$0xff]
      %v377 = vld [vmem:[%s0 + $0xe8] sm:$0xff]
      %v378 = vld [vmem:[%s0 + $0xf0] sm:$0xff]
      %v379 = vld [vmem:[%s0 + $0xf8] sm:$0xff]
      %v380 = vld [vmem:[%s0 + $0x100] sm:$0xff]
      %v381 = vld [vmem:[%s0 + $0x108] sm:$0xff]
      %v382 = vld [vmem:[%s0 + $0x110] sm:$0xff]
      %v383 = vld [vmem:[%s0 + $0x118] sm:$0xff]
      %v384 = vld [vmem:[%s0 + $0x120] sm:$0xff]
      %v385 = vld [vmem:[%s0 + $0x128] sm:$0xff]
      %v386 = vld [vmem:[%s0 + $0x130] sm:$0xff]
      %v387 = vld [vmem:[%s0 + $0x138] sm:$0xff]
      %v388 = vld [vmem:[%s0 + $0x140] sm:$0xff]
      %v389 = vld [vmem:[%s0 + $0x148] sm:$0xff]
      %v390 = vld [vmem:[%s0 + $0x150] sm:$0xff]
      %v391 = vld [vmem:[%s0 + $0x158] sm:$0xff]
      %v392 = vld [vmem:[%s0 + $0x160] sm:$0xff]
      %v393 = vld [vmem:[%s0 + $0x168] sm:$0xff]
      %v394 = vld [vmem:[%s0 + $0x170] sm:$0xff]
      %v395 = vld [vmem:[%s0 + $0x178] sm:$0xff]
      %v396 = vld [vmem:[%s1] sm:$0xff]
      %v397 = vld [vmem:[%s1 + $0x8] sm:$0xff]
      %v398 = vld [vmem:[%s1 + $0x10] sm:$0xff]
      %v399 = vld [vmem:[%s1 + $0x18] sm:$0xff]
      %v400 = vld [vmem:[%s1 + $0x20] sm:$0xff]
      %v401 = vld [vmem:[%s1 + $0x28] sm:$0xff]
      %v402 = vld [vmem:[%s1 + $0x30] sm:$0xff]
      %v403 = vld [vmem:[%s1 + $0x38] sm:$0xff]
      %v404 = vld [vmem:[%s1 + $0x40] sm:$0xff]
      %v405 = vld [vmem:[%s1 + $0x48] sm:$0xff]
      %v406 = vld [vmem:[%s1 + $0x50] sm:$0xff]
      %v407 = vld [vmem:[%s1 + $0x58] sm:$0xff]
      %v408 = vld [vmem:[%s1 + $0x60] sm:$0xff]
      %v409 = vld [vmem:[%s1 + $0x68] sm:$0xff]
      %v410 = vld [vmem:[%s1 + $0x70] sm:$0xff]
      %v411 = vld [vmem:[%s1 + $0x78] sm:$0xff]
      %413 = vset.pattern.permute.xlu0 0
      %414 = vperm.xlu0 %413, %v396
      %v415 = vpop.permute.xlu0 %414
      %418 = vset.pattern.permute.xlu0 0
      %419 = vperm.xlu0 %418, %v397
      %v420 = vpop.permute.xlu0 %419
      %423 = vset.pattern.permute.xlu0 0
      %424 = vperm.xlu0 %423, %v398
      %v425 = vpop.permute.xlu0 %424
      %428 = vset.pattern.permute.xlu0 0
      %429 = vperm.xlu0 %428, %v399
      %v430 = vpop.permute.xlu0 %429
      %433 = vset.pattern.permute.xlu0 0
      %434 = vperm.xlu0 %433, %v400
      %v435 = vpop.permute.xlu0 %434
      %438 = vset.pattern.permute.xlu0 0
      %439 = vperm.xlu0 %438, %v401
      %v440 = vpop.permute.xlu0 %439
      %443 = vset.pattern.permute.xlu0 0
      %444 = vperm.xlu0 %443, %v402
      %v445 = vpop.permute.xlu0 %444
      %448 = vset.pattern.permute.xlu0 0
      %449 = vperm.xlu0 %448, %v403
      %v450 = vpop.permute.xlu0 %449
      %453 = vset.pattern.permute.xlu0 0
      %454 = vperm.xlu0 %453, %v404
      %v455 = vpop.permute.xlu0 %454
      %458 = vset.pattern.permute.xlu0 0
      %459 = vperm.xlu0 %458, %v405
      %v460 = vpop.permute.xlu0 %459
      %463 = vset.pattern.permute.xlu0 0
      %464 = vperm.xlu0 %463, %v406
      %v465 = vpop.permute.xlu0 %464
      %468 = vset.pattern.permute.xlu0 0
      %469 = vperm.xlu0 %468, %v407
      %v470 = vpop.permute.xlu0 %469
      %473 = vset.pattern.permute.xlu0 0
      %474 = vperm.xlu0 %473, %v408
      %v475 = vpop.permute.xlu0 %474
      %478 = vset.pattern.permute.xlu0 0
      %479 = vperm.xlu0 %478, %v409
      %v480 = vpop.permute.xlu0 %479
      %483 = vset.pattern.permute.xlu0 0
      %484 = vperm.xlu0 %483, %v410
      %v485 = vpop.permute.xlu0 %484
      %488 = vset.pattern.permute.xlu0 0
      %489 = vperm.xlu0 %488, %v411
      %v490 = vpop.permute.xlu0 %489
      %492 = vmatprep.subr.mxu0 %v253
      %493 = vmatpush1.msra.mxu0 %v252
      %494 = vmatprep.subr.mxu0 %v255
      %495 = vmatpush1.msra.mxu0 %v254
      %496 = vmatprep.subr.mxu0 %v257
      %497 = vmatpush1.msra.mxu0 %v256
      %498 = vmatprep.subr.mxu0 %v259
      %499 = vmatpush1.msra.mxu0 %v258
      %500 = vmatprep.subr.mxu0 %v261
      %501 = vmatpush1.msra.mxu0 %v260
      %502 = vmatprep.subr.mxu0 %v263
      %503 = vmatpush1.msra.mxu0 %v262
      %504 = vmatprep.subr.mxu0 %v265
      %505 = vmatpush1.msra.mxu0 %v264
      %506 = vmatprep.subr.mxu0 %v267
      %507 = vmatpush1.msra.mxu0 %v266
      %508 = vmatprep.subr.mxu0 %v269
      %509 = vmatpush1.msra.mxu0 %v268
      %510 = vmatprep.subr.mxu0 %v271
      %511 = vmatpush1.msra.mxu0 %v270
      %512 = vmatprep.subr.mxu0 %v273
      %513 = vmatpush1.msra.mxu0 %v272
      %514 = vmatprep.subr.mxu0 %v275
      %515 = vmatpush1.msra.mxu0 %v274
      %516 = vmatprep.subr.mxu0 %v277
      %517 = vmatpush1.msra.mxu0 %v276
      %518 = vmatprep.subr.mxu0 %v279
      %519 = vmatpush1.msra.mxu0 %v278
      %520 = vmatprep.subr.mxu0 %v281
      %521 = vmatpush1.msra.mxu0 %v280
      %522 = vmatprep.subr.mxu0 %v283
      %523 = vmatpush1.msra.mxu0 %v282
      %524 = vmatprep.subr.mxu0 %v285
      %525 = vmatpush1.msra.mxu0 %v284
      %526 = vmatprep.subr.mxu0 %v287
      %527 = vmatpush1.msra.mxu0 %v286
      %528 = vmatprep.subr.mxu0 %v289
      %529 = vmatpush1.msra.mxu0 %v288
      %530 = vmatprep.subr.mxu0 %v291
      %531 = vmatpush1.msra.mxu0 %v290
      %532 = vmatprep.subr.mxu0 %v293
      %533 = vmatpush1.msra.mxu0 %v292
      %534 = vmatprep.subr.mxu0 %v295
      %535 = vmatpush1.msra.mxu0 %v294
      %536 = vmatprep.subr.mxu0 %v297
      %537 = vmatpush1.msra.mxu0 %v296
      %538 = vmatprep.subr.mxu0 %v299
      %539 = vmatpush1.msra.mxu0 %v298
      %540 = vmatprep.subr.mxu0 %v301
      %541 = vmatpush1.msra.mxu0 %v300
      %542 = vmatprep.subr.mxu0 %v303
      %543 = vmatpush1.msra.mxu0 %v302
      %544 = vmatprep.subr.mxu0 %v305
      %545 = vmatpush1.msra.mxu0 %v304
      %546 = vmatprep.subr.mxu0 %v307
      %547 = vmatpush1.msra.mxu0 %v306
      %548 = vmatprep.subr.mxu0 %v309
      %549 = vmatpush1.msra.mxu0 %v308
      %550 = vmatprep.subr.mxu0 %v311
      %551 = vmatpush1.msra.mxu0 %v310
      %552 = vmatprep.subr.mxu0 %v313
      %553 = vmatpush1.msra.mxu0 %v312
      %554 = vmatprep.subr.mxu0 %v315
      %555 = vmatpush1.msra.mxu0 %v314
      %556 = vmatprep.mubr.f32.mxu0 %v349
      %557 = vmatmul.mubr.f32.gmra.mrb[0].mxu0 %v348
      %v558 = vpop.f32.mrb[0].mxu0
      %v559 = vadd.f32 %v415, %v558
      %v560 = vpop.f32.mrb[0].mxu0
      %v561 = vadd.f32 %v415, %v560
      %562 = vmatprep.mubr.f32.mxu0 %v352
      %563 = vmatmul.mubr.f32.gmra.mrb[0].mxu0 %v351
      %v564 = vpop.f32.mrb[0].mxu0
      %v565 = vadd.f32 %v420, %v564
      %v566 = vpop.f32.mrb[0].mxu0
      %v567 = vadd.f32 %v420, %v566
      %568 = vmatprep.mubr.f32.mxu0 %v355
      %569 = vmatmul.mubr.f32.gmra.mrb[0].mxu0 %v354
      %v570 = vpop.f32.mrb[0].mxu0
      %v571 = vadd.f32 %v425, %v570
      %v572 = vpop.f32.mrb[0].mxu0
      %v573 = vadd.f32 %v425, %v572
      %574 = vmatprep.mubr.f32.mxu0 %v358
      %575 = vmatmul.mubr.f32.gmra.mrb[0].mxu0 %v357
      %v576 = vpop.f32.mrb[0].mxu0
      %v577 = vadd.f32 %v430, %v576
      %v578 = vpop.f32.mrb[0].mxu0
      %v579 = vadd.f32 %v430, %v578
      %580 = vmatprep.mubr.f32.mxu0 %v361
      %581 = vmatmul.mubr.f32.gmra.mrb[0].mxu0 %v360
      %v582 = vpop.f32.mrb[0].mxu0
      %v583 = vadd.f32 %v435, %v582
      %v584 = vpop.f32.mrb[0].mxu0
      %v585 = vadd.f32 %v435, %v584
      %586 = vmatprep.mubr.f32.mxu0 %v364
      %587 = vmatmul.mubr.f32.gmra.mrb[0].mxu0 %v363
      %v588 = vpop.f32.mrb[0].mxu0
      %v589 = vadd.f32 %v440, %v588
      %v590 = vpop.f32.mrb[0].mxu0
      %v591 = vadd.f32 %v440, %v590
      %592 = vmatprep.mubr.f32.mxu0 %v367
      %593 = vmatmul.mubr.f32.gmra.mrb[0].mxu0 %v366
      %v594 = vpop.f32.mrb[0].mxu0
      %v595 = vadd.f32 %v445, %v594
      %v596 = vpop.f32.mrb[0].mxu0
      %v597 = vadd.f32 %v445, %v596
      %598 = vmatprep.mubr.f32.mxu0 %v370
      %599 = vmatmul.mubr.f32.gmra.mrb[0].mxu0 %v369
      %v600 = vpop.f32.mrb[0].mxu0
      %v601 = vadd.f32 %v450, %v600
      %v602 = vpop.f32.mrb[0].mxu0
      %v603 = vadd.f32 %v450, %v602
      %604 = vmatprep.mubr.f32.mxu0 %v373
      %605 = vmatmul.mubr.f32.gmra.mrb[0].mxu0 %v372
      %v606 = vpop.f32.mrb[0].mxu0
      %v607 = vadd.f32 %v455, %v606
      %v608 = vpop.f32.mrb[0].mxu0
      %v609 = vadd.f32 %v455, %v608
      %610 = vmatprep.mubr.f32.mxu0 %v376
      %611 = vmatmul.mubr.f32.gmra.mrb[0].mxu0 %v375
      %v612 = vpop.f32.mrb[0].mxu0
      %v613 = vadd.f32 %v460, %v612
      %v614 = vpop.f32.mrb[0].mxu0
      %v615 = vadd.f32 %v460, %v614
      %616 = vmatprep.mubr.f32.mxu0 %v379
      %617 = vmatmul.mubr.f32.gmra.mrb[0].mxu0 %v378
      %v618 = vpop.f32.mrb[0].mxu0
      %v619 = vadd.f32 %v465, %v618
      %v620 = vpop.f32.mrb[0].mxu0
      %v621 = vadd.f32 %v465, %v620
      %622 = vmatprep.mubr.f32.mxu0 %v382
      %623 = vmatmul.mubr.f32.gmra.mrb[0].mxu0 %v381
      %v624 = vpop.f32.mrb[0].mxu0
      %v625 = vadd.f32 %v470, %v624
      %v626 = vpop.f32.mrb[0].mxu0
      %v627 = vadd.f32 %v470, %v626
      %628 = vmatprep.mubr.f32.mxu0 %v385
      %629 = vmatmul.mubr.f32.gmra.mrb[0].mxu0 %v384
      %v630 = vpop.f32.mrb[0].mxu0
      %v631 = vadd.f32 %v475, %v630
      %v632 = vpop.f32.mrb[0].mxu0
      %v633 = vadd.f32 %v475, %v632
      %634 = vmatprep.mubr.f32.mxu0 %v388
      %635 = vmatmul.mubr.f32.gmra.mrb[0].mxu0 %v387
      %v636 = vpop.f32.mrb[0].mxu0
      %v637 = vadd.f32 %v480, %v636
      %v638 = vpop.f32.mrb[0].mxu0
      %v639 = vadd.f32 %v480, %v638
      %640 = vmatprep.mubr.f32.mxu0 %v391
      %641 = vmatmul.mubr.f32.gmra.mrb[0].mxu0 %v390
      %v642 = vpop.f32.mrb[0].mxu0
      %v643 = vadd.f32 %v485, %v642
      %v644 = vpop.f32.mrb[0].mxu0
      %v645 = vadd.f32 %v485, %v644
      %646 = vmatprep.mubr.f32.mxu0 %v394
      %647 = vmatmul.mubr.f32.gmra.mrb[0].mxu0 %v393
      %v648 = vpop.f32.mrb[0].mxu0
      %v649 = vadd.f32 %v490, %v648
      %v650 = vpop.f32.mrb[0].mxu0
      %v651 = vadd.f32 %v490, %v650
      %652 = vdwg.mxu0
      %653 = vmatprep.subr.mxu0 %v317
      %654 = vmatpush1.msra.mxu0 %v316
      %655 = vmatprep.subr.mxu0 %v319
      %656 = vmatpush1.msra.mxu0 %v318
      %657 = vmatprep.subr.mxu0 %v321
      %658 = vmatpush1.msra.mxu0 %v320
      %659 = vmatprep.subr.mxu0 %v323
      %660 = vmatpush1.msra.mxu0 %v322
      %661 = vmatprep.subr.mxu0 %v325
      %662 = vmatpush1.msra.mxu0 %v324
      %663 = vmatprep.subr.mxu0 %v327
      %664 = vmatpush1.msra.mxu0 %v326
      %665 = vmatprep.subr.mxu0 %v329
      %666 = vmatpush1.msra.mxu0 %v328
      %667 = vmatprep.subr.mxu0 %v331
      %668 = vmatpush1.msra.mxu0 %v330
      %669 = vmatprep.subr.mxu0 %v333
      %670 = vmatpush1.msra.mxu0 %v332
      %671 = vmatprep.subr.mxu0 %v335
      %672 = vmatpush1.msra.mxu0 %v334
      %673 = vmatprep.subr.mxu0 %v337
      %674 = vmatpush1.msra.mxu0 %v336
      %675 = vmatprep.subr.mxu0 %v339
      %676 = vmatpush1.msra.mxu0 %v338
      %677 = vmatprep.subr.mxu0 %v341
      %678 = vmatpush1.msra.mxu0 %v340
      %679 = vmatprep.subr.mxu0 %v343
      %680 = vmatpush1.msra.mxu0 %v342
      %681 = vmatprep.subr.mxu0 %v345
      %682 = vmatpush1.msra.mxu0 %v344
      %683 = vmatprep.subr.mxu0 %v347
      %684 = vmatpush1.msra.mxu0 %v346
      %685 = vmatprep.subr.mxu0 0.0
      %686 = vmatpush1.msra.mxu0 0.0
      %687 = vmatprep.subr.mxu0 0.0
      %688 = vmatpush1.msra.mxu0 0.0
      %689 = vmatprep.subr.mxu0 0.0
      %690 = vmatpush1.msra.mxu0 0.0
      %691 = vmatprep.subr.mxu0 0.0
      %692 = vmatpush1.msra.mxu0 0.0
      %693 = vmatprep.subr.mxu0 0.0
      %694 = vmatpush1.msra.mxu0 0.0
      %695 = vmatprep.subr.mxu0 0.0
      %696 = vmatpush1.msra.mxu0 0.0
      %697 = vmatprep.subr.mxu0 0.0
      %698 = vmatpush1.msra.mxu0 0.0
      %699 = vmatprep.subr.mxu0 0.0
      %700 = vmatpush1.msra.mxu0 0.0
      %701 = vmatprep.subr.mxu0 0.0
      %702 = vmatpush1.msra.mxu0 0.0
      %703 = vmatprep.subr.mxu0 0.0
      %704 = vmatpush1.msra.mxu0 0.0
      %705 = vmatprep.subr.mxu0 0.0
      %706 = vmatpush1.msra.mxu0 0.0
      %707 = vmatprep.subr.mxu0 0.0
      %708 = vmatpush1.msra.mxu0 0.0
      %709 = vmatprep.subr.mxu0 0.0
      %710 = vmatpush1.msra.mxu0 0.0
      %711 = vmatprep.subr.mxu0 0.0
      %712 = vmatpush1.msra.mxu0 0.0
      %713 = vmatprep.subr.mxu0 0.0
      %714 = vmatpush1.msra.mxu0 0.0
      %715 = vmatprep.subr.mxu0 0.0
      %716 = vmatpush1.msra.mxu0 0.0
      %717 = vmatprep.mubr.f32.mxu0 0.0
      %718 = vmatmul.mubr.f32.gmra.mrb[0].mxu0 %v350
      %v719 = vpop.f32.mrb[0].mxu0
      %v720 = vadd.f32 %v559, %v719
      %v721 = vpop.f32.mrb[0].mxu0
      %v722 = vadd.f32 %v561, %v721
      %723 = vmatprep.mubr.f32.mxu0 0.0
      %724 = vmatmul.mubr.f32.gmra.mrb[0].mxu0 %v353
      %v725 = vpop.f32.mrb[0].mxu0
      %v726 = vadd.f32 %v565, %v725
      %v727 = vpop.f32.mrb[0].mxu0
      %v728 = vadd.f32 %v567, %v727
      %729 = vmatprep.mubr.f32.mxu0 0.0
      %730 = vmatmul.mubr.f32.gmra.mrb[0].mxu0 %v356
      %v731 = vpop.f32.mrb[0].mxu0
      %v732 = vadd.f32 %v571, %v731
      %v733 = vpop.f32.mrb[0].mxu0
      %v734 = vadd.f32 %v573, %v733
      %735 = vmatprep.mubr.f32.mxu0 0.0
      %736 = vmatmul.mubr.f32.gmra.mrb[0].mxu0 %v359
      %v737 = vpop.f32.mrb[0].mxu0
      %v738 = vadd.f32 %v577, %v737
      %v739 = vpop.f32.mrb[0].mxu0
      %v740 = vadd.f32 %v579, %v739
      %741 = vmatprep.mubr.f32.mxu0 0.0
      %742 = vmatmul.mubr.f32.gmra.mrb[0].mxu0 %v362
      %v743 = vpop.f32.mrb[0].mxu0
      %v744 = vadd.f32 %v583, %v743
      %v745 = vpop.f32.mrb[0].mxu0
      %v746 = vadd.f32 %v585, %v745
      %747 = vmatprep.mubr.f32.mxu0 0.0
      %748 = vmatmul.mubr.f32.gmra.mrb[0].mxu0 %v365
      %v749 = vpop.f32.mrb[0].mxu0
      %v750 = vadd.f32 %v589, %v749
      %v751 = vpop.f32.mrb[0].mxu0
      %v752 = vadd.f32 %v591, %v751
      %753 = vmatprep.mubr.f32.mxu0 0.0
      %754 = vmatmul.mubr.f32.gmra.mrb[0].mxu0 %v368
      %v755 = vpop.f32.mrb[0].mxu0
      %v756 = vadd.f32 %v595, %v755
      %v757 = vpop.f32.mrb[0].mxu0
      %v758 = vadd.f32 %v597, %v757
      %759 = vmatprep.mubr.f32.mxu0 0.0
      %760 = vmatmul.mubr.f32.gmra.mrb[0].mxu0 %v371
      %v761 = vpop.f32.mrb[0].mxu0
      %v762 = vadd.f32 %v601, %v761
      %v763 = vpop.f32.mrb[0].mxu0
      %v764 = vadd.f32 %v603, %v763
      %765 = vmatprep.mubr.f32.mxu0 0.0
      %766 = vmatmul.mubr.f32.gmra.mrb[0].mxu0 %v374
      %v767 = vpop.f32.mrb[0].mxu0
      %v768 = vadd.f32 %v607, %v767
      %v769 = vpop.f32.mrb[0].mxu0
      %v770 = vadd.f32 %v609, %v769
      %771 = vmatprep.mubr.f32.mxu0 0.0
      %772 = vmatmul.mubr.f32.gmra.mrb[0].mxu0 %v377
      %v773 = vpop.f32.mrb[0].mxu0
      %v774 = vadd.f32 %v613, %v773
      %v775 = vpop.f32.mrb[0].mxu0
      %v776 = vadd.f32 %v615, %v775
      %777 = vmatprep.mubr.f32.mxu0 0.0
      %778 = vmatmul.mubr.f32.gmra.mrb[0].mxu0 %v380
      %v779 = vpop.f32.mrb[0].mxu0
      %v780 = vadd.f32 %v619, %v779
      %v781 = vpop.f32.mrb[0].mxu0
      %v782 = vadd.f32 %v621, %v781
      %783 = vmatprep.mubr.f32.mxu0 0.0
      %784 = vmatmul.mubr.f32.gmra.mrb[0].mxu0 %v383
      %v785 = vpop.f32.mrb[0].mxu0
      %v786 = vadd.f32 %v625, %v785
      %v787 = vpop.f32.mrb[0].mxu0
      %v788 = vadd.f32 %v627, %v787
      %789 = vmatprep.mubr.f32.mxu0 0.0
      %790 = vmatmul.mubr.f32.gmra.mrb[0].mxu0 %v386
      %v791 = vpop.f32.mrb[0].mxu0
      %v792 = vadd.f32 %v631, %v791
      %v793 = vpop.f32.mrb[0].mxu0
      %v794 = vadd.f32 %v633, %v793
      %795 = vmatprep.mubr.f32.mxu0 0.0
      %796 = vmatmul.mubr.f32.gmra.mrb[0].mxu0 %v389
      %v797 = vpop.f32.mrb[0].mxu0
      %v798 = vadd.f32 %v637, %v797
      %v799 = vpop.f32.mrb[0].mxu0
      %v800 = vadd.f32 %v639, %v799
      %801 = vmatprep.mubr.f32.mxu0 0.0
      %802 = vmatmul.mubr.f32.gmra.mrb[0].mxu0 %v392
      %v803 = vpop.f32.mrb[0].mxu0
      %v804 = vadd.f32 %v643, %v803
      %v805 = vpop.f32.mrb[0].mxu0
      %v806 = vadd.f32 %v645, %v805
      %807 = vmatprep.mubr.f32.mxu0 0.0
      %808 = vmatmul.mubr.f32.gmra.mrb[0].mxu0 %v395
      %v809 = vpop.f32.mrb[0].mxu0
      %v810 = vadd.f32 %v649, %v809
      %v811 = vpop.f32.mrb[0].mxu0
      %v812 = vadd.f32 %v651, %v811
      %813 = vdwg.mxu0
      %v814 = vsub.f32 0.0, %v768
      %v815 = vsub.f32 0.0, %v770
      %v816 = vsub.f32 0.0, %v774
      %v817 = vsub.f32 0.0, %v776
      %v818 = vsub.f32 0.0, %v780
      %v819 = vsub.f32 0.0, %v782
      %v820 = vsub.f32 0.0, %v786
      %v821 = vsub.f32 0.0, %v788
      %v822 = vsub.f32 0.0, %v792
      %v823 = vsub.f32 0.0, %v794
      %v824 = vsub.f32 0.0, %v798
      %v825 = vsub.f32 0.0, %v800
      %v826 = vsub.f32 0.0, %v804
      %v827 = vsub.f32 0.0, %v806
      %v828 = vsub.f32 0.0, %v810
      %v829 = vsub.f32 0.0, %v812
      %v830 = vmul.f32 %v814, 1.442695
      %v831 = vpow.pop %v830
      %v832 = vmul.f32 %v815, 1.442695
      %v833 = vpow.pop %v832
      %v834 = vmul.f32 %v816, 1.442695
      %v835 = vpow.pop %v834
      %v836 = vmul.f32 %v817, 1.442695
      %v837 = vpow.pop %v836
      %v838 = vmul.f32 %v818, 1.442695
      %v839 = vpow.pop %v838
      %v840 = vmul.f32 %v819, 1.442695
      %v841 = vpow.pop %v840
      %v842 = vmul.f32 %v820, 1.442695
      %v843 = vpow.pop %v842
      %v844 = vmul.f32 %v821, 1.442695
      %v845 = vpow.pop %v844
      %v846 = vmul.f32 %v822, 1.442695
      %v847 = vpow.pop %v846
      %v848 = vmul.f32 %v823, 1.442695
      %v849 = vpow.pop %v848
      %v850 = vmul.f32 %v824, 1.442695
      %v851 = vpow.pop %v850
      %v852 = vmul.f32 %v825, 1.442695
      %v853 = vpow.pop %v852
      %v854 = vmul.f32 %v826, 1.442695
      %v855 = vpow.pop %v854
      %v856 = vmul.f32 %v827, 1.442695
      %v857 = vpow.pop %v856
      %v858 = vmul.f32 %v828, 1.442695
      %v859 = vpow.pop %v858
      %v860 = vmul.f32 %v829, 1.442695
      %v861 = vpow.pop %v860
      %v862 = vadd.f32 %v831, 1.0
      %v863 = vadd.f32 %v833, 1.0
      %v864 = vadd.f32 %v835, 1.0
      %v865 = vadd.f32 %v837, 1.0
      %v866 = vadd.f32 %v839, 1.0
      %v867 = vadd.f32 %v841, 1.0
      %v868 = vadd.f32 %v843, 1.0
      %v869 = vadd.f32 %v845, 1.0
      %v870 = vadd.f32 %v847, 1.0
      %v871 = vadd.f32 %v849, 1.0
      %v872 = vadd.f32 %v851, 1.0
      %v873 = vadd.f32 %v853, 1.0
      %v874 = vadd.f32 %v855, 1.0
      %v875 = vadd.f32 %v857, 1.0
      %v876 = vadd.f32 %v859, 1.0
      %v877 = vadd.f32 %v861, 1.0
      %v878 = vrcp.pop %v862
      %v879 = vmul.f32 1.0, %v878
      %v880 = vrcp.pop %v863
      %v881 = vmul.f32 1.0, %v880
      %v882 = vrcp.pop %v864
      %v883 = vmul.f32 1.0, %v882
      %v884 = vrcp.pop %v865
      %v885 = vmul.f32 1.0, %v884
      %v886 = vrcp.pop %v866
      %v887 = vmul.f32 1.0, %v886
      %v888 = vrcp.pop %v867
      %v889 = vmul.f32 1.0, %v888
      %v890 = vrcp.pop %v868
      %v891 = vmul.f32 1.0, %v890
      %v892 = vrcp.pop %v869
      %v893 = vmul.f32 1.0, %v892
      %v894 = vrcp.pop %v870
      %v895 = vmul.f32 1.0, %v894
      %v896 = vrcp.pop %v871
      %v897 = vmul.f32 1.0, %v896
      %v898 = vrcp.pop %v872
      %v899 = vmul.f32 1.0, %v898
      %v900 = vrcp.pop %v873
      %v901 = vmul.f32 1.0, %v900
      %v902 = vrcp.pop %v874
      %v903 = vmul.f32 1.0, %v902
      %v904 = vrcp.pop %v875
      %v905 = vmul.f32 1.0, %v904
      %v906 = vrcp.pop %v876
      %v907 = vmul.f32 1.0, %v906
      %v908 = vrcp.pop %v877
      %v909 = vmul.f32 1.0, %v908
      %v910 = vmul.f32 %v720, %v879
      %v911 = vmul.f32 %v722, %v881
      %v912 = vmul.f32 %v726, %v883
      %v913 = vmul.f32 %v728, %v885
      %v914 = vmul.f32 %v732, %v887
      %v915 = vmul.f32 %v734, %v889
      %v916 = vmul.f32 %v738, %v891
      %v917 = vmul.f32 %v740, %v893
      %v918 = vmul.f32 %v744, %v895
      %v919 = vmul.f32 %v746, %v897
      %v920 = vmul.f32 %v750, %v899
      %v921 = vmul.f32 %v752, %v901
      %v922 = vmul.f32 %v756, %v903
      %v923 = vmul.f32 %v758, %v905
      %v924 = vmul.f32 %v762, %v907
      %v925 = vmul.f32 %v764, %v909
      %vm926 = vcmask 195584
      %v927 = vsel %vm926, %v911, 0.0
      %v928 = vadd.f32 %v910, %v927
      %929 = vadd.xlane.f32.xlu0 %v928
      %v930 = vpop.xlane.xlu0 %929
      %v931 = vsel %vm926, %v913, 0.0
      %v932 = vadd.f32 %v912, %v931
      %933 = vadd.xlane.f32.xlu0 %v932
      %v934 = vpop.xlane.xlu0 %933
      %v935 = vsel %vm926, %v915, 0.0
      %v936 = vadd.f32 %v914, %v935
      %937 = vadd.xlane.f32.xlu0 %v936
      %v938 = vpop.xlane.xlu0 %937
      %v939 = vsel %vm926, %v917, 0.0
      %v940 = vadd.f32 %v916, %v939
      %941 = vadd.xlane.f32.xlu0 %v940
      %v942 = vpop.xlane.xlu0 %941
      %v943 = vsel %vm926, %v919, 0.0
      %v944 = vadd.f32 %v918, %v943
      %945 = vadd.xlane.f32.xlu0 %v944
      %v946 = vpop.xlane.xlu0 %945
      %v947 = vsel %vm926, %v921, 0.0
      %v948 = vadd.f32 %v920, %v947
      %949 = vadd.xlane.f32.xlu0 %v948
      %v950 = vpop.xlane.xlu0 %949
      %v951 = vsel %vm926, %v923, 0.0
      %v952 = vadd.f32 %v922, %v951
      %953 = vadd.xlane.f32.xlu0 %v952
      %v954 = vpop.xlane.xlu0 %953
      %v955 = vsel %vm926, %v925, 0.0
      %v956 = vadd.f32 %v924, %v955
      %957 = vadd.xlane.f32.xlu0 %v956
      %v958 = vpop.xlane.xlu0 %957
      %v959 = vrcp.pop 152.0
      %v960 = vmul.f32 %v930, %v959
      %v961 = vmul.f32 %v934, %v959
      %v962 = vmul.f32 %v938, %v959
      %v963 = vmul.f32 %v942, %v959
      %v964 = vmul.f32 %v946, %v959
      %v965 = vmul.f32 %v950, %v959
      %v966 = vmul.f32 %v954, %v959
      %v967 = vmul.f32 %v958, %v959
      %v968 = vsub.f32 %v910, %v960
      %v969 = vsub.f32 %v911, %v960
      %v970 = vsub.f32 %v912, %v961
      %v971 = vsub.f32 %v913, %v961
      %v972 = vsub.f32 %v914, %v962
      %v973 = vsub.f32 %v915, %v962
      %v974 = vsub.f32 %v916, %v963
      %v975 = vsub.f32 %v917, %v963
      %v976 = vsub.f32 %v918, %v964
      %v977 = vsub.f32 %v919, %v964
      %v978 = vsub.f32 %v920, %v965
      %v979 = vsub.f32 %v921, %v965
      %v980 = vsub.f32 %v922, %v966
      %v981 = vsub.f32 %v923, %v966
      %v982 = vsub.f32 %v924, %v967
      %v983 = vsub.f32 %v925, %v967
      %v984 = vmul.f32 %v968, %v968
      %v985 = vmul.f32 %v969, %v969
      %v986 = vmul.f32 %v970, %v970
      %v987 = vmul.f32 %v971, %v971
      %v988 = vmul.f32 %v972, %v972
      %v989 = vmul.f32 %v973, %v973
      %v990 = vmul.f32 %v974, %v974
      %v991 = vmul.f32 %v975, %v975
      %v992 = vmul.f32 %v976, %v976
      %v993 = vmul.f32 %v977, %v977
      %v994 = vmul.f32 %v978, %v978
      %v995 = vmul.f32 %v979, %v979
      %v996 = vmul.f32 %v980, %v980
      %v997 = vmul.f32 %v981, %v981
      %v998 = vmul.f32 %v982, %v982
      %v999 = vmul.f32 %v983, %v983
      %v1000 = vsel %vm926, %v985, 0.0
      %v1001 = vadd.f32 %v984, %v1000
      %1002 = vadd.xlane.f32.xlu0 %v1001
      %v1003 = vpop.xlane.xlu0 %1002
      %v1004 = vsel %vm926, %v987, 0.0
      %v1005 = vadd.f32 %v986, %v1004
      %1006 = vadd.xlane.f32.xlu0 %v1005
      %v1007 = vpop.xlane.xlu0 %1006
      %v1008 = vsel %vm926, %v989, 0.0
      %v1009 = vadd.f32 %v988, %v1008
      %1010 = vadd.xlane.f32.xlu0 %v1009
      %v1011 = vpop.xlane.xlu0 %1010
      %v1012 = vsel %vm926, %v991, 0.0
      %v1013 = vadd.f32 %v990, %v1012
      %1014 = vadd.xlane.f32.xlu0 %v1013
      %v1015 = vpop.xlane.xlu0 %1014
      %v1016 = vsel %vm926, %v993, 0.0
      %v1017 = vadd.f32 %v992, %v1016
      %1018 = vadd.xlane.f32.xlu0 %v1017
      %v1019 = vpop.xlane.xlu0 %1018
      %v1020 = vsel %vm926, %v995, 0.0
      %v1021 = vadd.f32 %v994, %v1020
      %1022 = vadd.xlane.f32.xlu0 %v1021
      %v1023 = vpop.xlane.xlu0 %1022
      %v1024 = vsel %vm926, %v997, 0.0
      %v1025 = vadd.f32 %v996, %v1024
      %1026 = vadd.xlane.f32.xlu0 %v1025
      %v1027 = vpop.xlane.xlu0 %1026
      %v1028 = vsel %vm926, %v999, 0.0
      %v1029 = vadd.f32 %v998, %v1028
      %1030 = vadd.xlane.f32.xlu0 %v1029
      %v1031 = vpop.xlane.xlu0 %1030
      %v1032 = vmul.f32 %v1003, %v959
      %v1033 = vmul.f32 %v1007, %v959
      %v1034 = vmul.f32 %v1011, %v959
      %v1035 = vmul.f32 %v1015, %v959
      %v1036 = vmul.f32 %v1019, %v959
      %v1037 = vmul.f32 %v1023, %v959
      %v1038 = vmul.f32 %v1027, %v959
      %v1039 = vmul.f32 %v1031, %v959
      %v1040 = vadd.f32 %v1032, 1e-05
      %v1041 = vadd.f32 %v1033, 1e-05
      %v1042 = vadd.f32 %v1034, 1e-05
      %v1043 = vadd.f32 %v1035, 1e-05
      %v1044 = vadd.f32 %v1036, 1e-05
      %v1045 = vadd.f32 %v1037, 1e-05
      %v1046 = vadd.f32 %v1038, 1e-05
      %v1047 = vadd.f32 %v1039, 1e-05
      %v1048 = vrsqrt.pop %v1040
      %v1049 = vrsqrt.pop %v1041
      %v1050 = vrsqrt.pop %v1042
      %v1051 = vrsqrt.pop %v1043
      %v1052 = vrsqrt.pop %v1044
      %v1053 = vrsqrt.pop %v1045
      %v1054 = vrsqrt.pop %v1046
      %v1055 = vrsqrt.pop %v1047
      %v1056 = vmul.f32 %v968, %v1048
      %v1057 = vmul.f32 %v969, %v1048
      %v1058 = vmul.f32 %v970, %v1049
      %v1059 = vmul.f32 %v971, %v1049
      %v1060 = vmul.f32 %v972, %v1050
      %v1061 = vmul.f32 %v973, %v1050
      %v1062 = vmul.f32 %v974, %v1051
      %v1063 = vmul.f32 %v975, %v1051
      %v1064 = vmul.f32 %v976, %v1052
      %v1065 = vmul.f32 %v977, %v1052
      %v1066 = vmul.f32 %v978, %v1053
      %v1067 = vmul.f32 %v979, %v1053
      %v1068 = vmul.f32 %v980, %v1054
      %v1069 = vmul.f32 %v981, %v1054
      %v1070 = vmul.f32 %v982, %v1055
      %v1071 = vmul.f32 %v983, %v1055
      %v1072 = vld [vmem:[%s2] sm:$0xff]
      %v1073 = vld [vmem:[%s2 + $0x8] sm:$0xff]
      %v1074 = vld [vmem:[%s2 + $0x10] sm:$0xff]
      %v1075 = vld [vmem:[%s2 + $0x18] sm:$0xff]
      %v1076 = vld [vmem:[%s2 + $0x20] sm:$0xff]
      %v1077 = vld [vmem:[%s2 + $0x28] sm:$0xff]
      %v1078 = vld [vmem:[%s2 + $0x30] sm:$0xff]
      %v1079 = vld [vmem:[%s2 + $0x38] sm:$0xff]
      %1081 = vset.pattern.permute.xlu0 0
      %1082 = vperm.xlu0 %1081, %v1072
      %v1083 = vpop.permute.xlu0 %1082
      %1086 = vset.pattern.permute.xlu0 0
      %1087 = vperm.xlu0 %1086, %v1073
      %v1088 = vpop.permute.xlu0 %1087
      %1091 = vset.pattern.permute.xlu0 0
      %1092 = vperm.xlu0 %1091, %v1074
      %v1093 = vpop.permute.xlu0 %1092
      %1096 = vset.pattern.permute.xlu0 0
      %1097 = vperm.xlu0 %1096, %v1075
      %v1098 = vpop.permute.xlu0 %1097
      %1101 = vset.pattern.permute.xlu0 0
      %1102 = vperm.xlu0 %1101, %v1076
      %v1103 = vpop.permute.xlu0 %1102
      %1106 = vset.pattern.permute.xlu0 0
      %1107 = vperm.xlu0 %1106, %v1077
      %v1108 = vpop.permute.xlu0 %1107
      %1111 = vset.pattern.permute.xlu0 0
      %1112 = vperm.xlu0 %1111, %v1078
      %v1113 = vpop.permute.xlu0 %1112
      %1116 = vset.pattern.permute.xlu0 0
      %1117 = vperm.xlu0 %1116, %v1079
      %v1118 = vpop.permute.xlu0 %1117
      %v1120 = vmul.f32 %v1056, %v1083
      %v1121 = vmul.f32 %v1057, %v1083
      %v1122 = vmul.f32 %v1058, %v1088
      %v1123 = vmul.f32 %v1059, %v1088
      %v1124 = vmul.f32 %v1060, %v1093
      %v1125 = vmul.f32 %v1061, %v1093
      %v1126 = vmul.f32 %v1062, %v1098
      %v1127 = vmul.f32 %v1063, %v1098
      %v1128 = vmul.f32 %v1064, %v1103
      %v1129 = vmul.f32 %v1065, %v1103
      %v1130 = vmul.f32 %v1066, %v1108
      %v1131 = vmul.f32 %v1067, %v1108
      %v1132 = vmul.f32 %v1068, %v1113
      %v1133 = vmul.f32 %v1069, %v1113
      %v1134 = vmul.f32 %v1070, %v1118
      %v1135 = vmul.f32 %v1071, %v1118
      %v1136 = vld [vmem:[%s3] sm:$0xff]
      %v1137 = vld [vmem:[%s3 + $0x8] sm:$0xff]
      %v1138 = vld [vmem:[%s3 + $0x10] sm:$0xff]
      %v1139 = vld [vmem:[%s3 + $0x18] sm:$0xff]
      %v1140 = vld [vmem:[%s3 + $0x20] sm:$0xff]
      %v1141 = vld [vmem:[%s3 + $0x28] sm:$0xff]
      %v1142 = vld [vmem:[%s3 + $0x30] sm:$0xff]
      %v1143 = vld [vmem:[%s3 + $0x38] sm:$0xff]
      %1145 = vset.pattern.permute.xlu0 0
      %1146 = vperm.xlu0 %1145, %v1136
      %v1147 = vpop.permute.xlu0 %1146
      %1150 = vset.pattern.permute.xlu0 0
      %1151 = vperm.xlu0 %1150, %v1137
      %v1152 = vpop.permute.xlu0 %1151
      %1155 = vset.pattern.permute.xlu0 0
      %1156 = vperm.xlu0 %1155, %v1138
      %v1157 = vpop.permute.xlu0 %1156
      %1160 = vset.pattern.permute.xlu0 0
      %1161 = vperm.xlu0 %1160, %v1139
      %v1162 = vpop.permute.xlu0 %1161
      %1165 = vset.pattern.permute.xlu0 0
      %1166 = vperm.xlu0 %1165, %v1140
      %v1167 = vpop.permute.xlu0 %1166
      %1170 = vset.pattern.permute.xlu0 0
      %1171 = vperm.xlu0 %1170, %v1141
      %v1172 = vpop.permute.xlu0 %1171
      %1175 = vset.pattern.permute.xlu0 0
      %1176 = vperm.xlu0 %1175, %v1142
      %v1177 = vpop.permute.xlu0 %1176
      %1180 = vset.pattern.permute.xlu0 0
      %1181 = vperm.xlu0 %1180, %v1143
      %v1182 = vpop.permute.xlu0 %1181
      %v1184 = vadd.f32 %v1120, %v1147
      %v1185 = vadd.f32 %v1121, %v1147
      %v1186 = vadd.f32 %v1122, %v1152
      %v1187 = vadd.f32 %v1123, %v1152
      %v1188 = vadd.f32 %v1124, %v1157
      %v1189 = vadd.f32 %v1125, %v1157
      %v1190 = vadd.f32 %v1126, %v1162
      %v1191 = vadd.f32 %v1127, %v1162
      %v1192 = vadd.f32 %v1128, %v1167
      %v1193 = vadd.f32 %v1129, %v1167
      %v1194 = vadd.f32 %v1130, %v1172
      %v1195 = vadd.f32 %v1131, %v1172
      %v1196 = vadd.f32 %v1132, %v1177
      %v1197 = vadd.f32 %v1133, %v1177
      %v1198 = vadd.f32 %v1134, %v1182
      %v1199 = vadd.f32 %v1135, %v1182
      %vm1200 = vcmp.gt.f32.partialorder %v1184, 0.0
      %vm1201 = vcmp.gt.f32.partialorder %v1185, 0.0
      %vm1202 = vcmp.gt.f32.partialorder %v1186, 0.0
      %vm1203 = vcmp.gt.f32.partialorder %v1187, 0.0
      %vm1204 = vcmp.gt.f32.partialorder %v1188, 0.0
      %vm1205 = vcmp.gt.f32.partialorder %v1189, 0.0
      %vm1206 = vcmp.gt.f32.partialorder %v1190, 0.0
      %vm1207 = vcmp.gt.f32.partialorder %v1191, 0.0
      %vm1208 = vcmp.gt.f32.partialorder %v1192, 0.0
      %vm1209 = vcmp.gt.f32.partialorder %v1193, 0.0
      %vm1210 = vcmp.gt.f32.partialorder %v1194, 0.0
      %vm1211 = vcmp.gt.f32.partialorder %v1195, 0.0
      %vm1212 = vcmp.gt.f32.partialorder %v1196, 0.0
      %vm1213 = vcmp.gt.f32.partialorder %v1197, 0.0
      %vm1214 = vcmp.gt.f32.partialorder %v1198, 0.0
      %vm1215 = vcmp.gt.f32.partialorder %v1199, 0.0
      %v1216 = vld [vmem:[%s4] sm:$0xff]
      %v1217 = vld [vmem:[%s4 + $0x8] sm:$0xff]
      %v1218 = vld [vmem:[%s4 + $0x10] sm:$0xff]
      %v1219 = vld [vmem:[%s4 + $0x18] sm:$0xff]
      %v1220 = vld [vmem:[%s4 + $0x20] sm:$0xff]
      %v1221 = vld [vmem:[%s4 + $0x28] sm:$0xff]
      %v1222 = vld [vmem:[%s4 + $0x30] sm:$0xff]
      %v1223 = vld [vmem:[%s4 + $0x38] sm:$0xff]
      %1225 = vset.pattern.permute.xlu0 0
      %1226 = vperm.xlu0 %1225, %v1216
      %v1227 = vpop.permute.xlu0 %1226
      %1230 = vset.pattern.permute.xlu0 0
      %1231 = vperm.xlu0 %1230, %v1217
      %v1232 = vpop.permute.xlu0 %1231
      %1235 = vset.pattern.permute.xlu0 0
      %1236 = vperm.xlu0 %1235, %v1218
      %v1237 = vpop.permute.xlu0 %1236
      %1240 = vset.pattern.permute.xlu0 0
      %1241 = vperm.xlu0 %1240, %v1219
      %v1242 = vpop.permute.xlu0 %1241
      %1245 = vset.pattern.permute.xlu0 0
      %1246 = vperm.xlu0 %1245, %v1220
      %v1247 = vpop.permute.xlu0 %1246
      %1250 = vset.pattern.permute.xlu0 0
      %1251 = vperm.xlu0 %1250, %v1221
      %v1252 = vpop.permute.xlu0 %1251
      %1255 = vset.pattern.permute.xlu0 0
      %1256 = vperm.xlu0 %1255, %v1222
      %v1257 = vpop.permute.xlu0 %1256
      %1260 = vset.pattern.permute.xlu0 0
      %1261 = vperm.xlu0 %1260, %v1223
      %v1262 = vpop.permute.xlu0 %1261
      %v1264 = vmul.f32 %v1227, %v1184
      %v1265 = vmul.f32 %v1227, %v1185
      %v1266 = vmul.f32 %v1232, %v1186
      %v1267 = vmul.f32 %v1232, %v1187
      %v1268 = vmul.f32 %v1237, %v1188
      %v1269 = vmul.f32 %v1237, %v1189
      %v1270 = vmul.f32 %v1242, %v1190
      %v1271 = vmul.f32 %v1242, %v1191
      %v1272 = vmul.f32 %v1247, %v1192
      %v1273 = vmul.f32 %v1247, %v1193
      %v1274 = vmul.f32 %v1252, %v1194
      %v1275 = vmul.f32 %v1252, %v1195
      %v1276 = vmul.f32 %v1257, %v1196
      %v1277 = vmul.f32 %v1257, %v1197
      %v1278 = vmul.f32 %v1262, %v1198
      %v1279 = vmul.f32 %v1262, %v1199
      %v1280 = vsel %vm1200, %v1184, %v1264
      %v1281 = vsel %vm1201, %v1185, %v1265
      %v1282 = vsel %vm1202, %v1186, %v1266
      %v1283 = vsel %vm1203, %v1187, %v1267
      %v1284 = vsel %vm1204, %v1188, %v1268
      %v1285 = vsel %vm1205, %v1189, %v1269
      %v1286 = vsel %vm1206, %v1190, %v1270
      %v1287 = vsel %vm1207, %v1191, %v1271
      %v1288 = vsel %vm1208, %v1192, %v1272
      %v1289 = vsel %vm1209, %v1193, %v1273
      %v1290 = vsel %vm1210, %v1194, %v1274
      %v1291 = vsel %vm1211, %v1195, %v1275
      %v1292 = vsel %vm1212, %v1196, %v1276
      %v1293 = vsel %vm1213, %v1197, %v1277
      %v1294 = vsel %vm1214, %v1198, %v1278
      %v1295 = vsel %vm1215, %v1199, %v1279
      %1296 = vst [vmem:[%s251] sm:$0xff] %v1280
      %1297 = vst.msk [vmem:[%s251 + $0x8] sm:$0xff] %vm926, %v1281
      %1298 = vst [vmem:[%s251 + $0x10] sm:$0xff] %v1282
      %1299 = vst.msk [vmem:[%s251 + $0x18] sm:$0xff] %vm926, %v1283
      %1300 = vst [vmem:[%s251 + $0x20] sm:$0xff] %v1284
      %1301 = vst.msk [vmem:[%s251 + $0x28] sm:$0xff] %vm926, %v1285
      %1302 = vst [vmem:[%s251 + $0x30] sm:$0xff] %v1286
      %1303 = vst.msk [vmem:[%s251 + $0x38] sm:$0xff] %vm926, %v1287
      %1304 = vst [vmem:[%s251 + $0x40] sm:$0xff] %v1288
      %1305 = vst.msk [vmem:[%s251 + $0x48] sm:$0xff] %vm926, %v1289
      %1306 = vst [vmem:[%s251 + $0x50] sm:$0xff] %v1290
      %1307 = vst.msk [vmem:[%s251 + $0x58] sm:$0xff] %vm926, %v1291
      %1308 = vst [vmem:[%s251 + $0x60] sm:$0xff] %v1292
      %1309 = vst.msk [vmem:[%s251 + $0x68] sm:$0xff] %vm926, %v1293
      %1310 = vst [vmem:[%s251 + $0x70] sm:$0xff] %v1294
      %1311 = vst.msk [vmem:[%s251 + $0x78] sm:$0xff] %vm926, %v1295
      %p1312 = scmp.lt.s32.totalorder %s17, 1
      %s1313 = scalar_select %p1312, %s17, 1
      %s1314 = smul.addr %s1313, 16
      %s1315 = smul.addr %s1314, 8
      %s1316 = scalar_lea.vmem %s6, %s1315
      // Predicated region
      $region45: #{encoder_forward.7} parent=43 // pred_check
        %p1317 = pneg %p166
      $region46: #{encoder_forward.7} parent=43 // pred_check_branch
        %1319 = sbr.rel (%p1317) target = $region48
      $region47: #{encoder_forward.7} parent=43 // pred_region
        _
      $region48: #{encoder_forward.7} parent=43 // pred_fallthru
        _
    $region44: #{encoder_forward.7} parent=5 // pred_fallthru
      _
    %p1320 = scmp.le.s32.totalorder 2, %s12
    // Predicated region
    $region49: #{encoder_forward.7} parent=5 // pred_check
      %p1321 = pneg %p1320
    $region50: #{encoder_forward.7} parent=5 // pred_check_branch
      %1323 = sbr.rel (%p1321) target = $region52
    $region51: #{encoder_forward.7} parent=5 // pred_region
      %s1324 = ssub.s32 %s12, 2
      // Predicated region
      $region53: #{encoder_forward.7} parent=51 // pred_check
        %p1325 = pneg %p172
      $region54: #{encoder_forward.7} parent=51 // pred_check_branch
        %1327 = sbr.rel (%p1325) target = $region56
      $region55: #{encoder_forward.7} parent=51 // pred_region
        %p1328 = scmp.lt.s32.totalorder %s18, 1
        %s1329 = scalar_select %p1328, %s18, 1
        %s1330 = smul.addr %s1329, 16
        %s1331 = smul.addr %s1330, 8
        %s1332 = scalar_lea.vmem %s6, %s1331
      $region56: #{encoder_forward.7} parent=51 // pred_fallthru
        _
    $region52: #{encoder_forward.7} parent=5 // pred_fallthru
      _
  $region6: #{encoder_forward.7} parent=0 // loop_footer
    %s16 = sadd.s32 1, %s12
  $region7: #{encoder_forward.7} parent=0 // loop_footer_branch
    %11 = sbr.rel target = $region3
  $region8: #{encoder_forward.7} parent=0 // loop_exit
    _

// kernel: encoder_forward.8
$region0: #{encoder_forward.8}
  #allocation0 [shape = 'u32[]', space=smem, size = 0x4, offset = 0x4, fixed_abs, tag = 'smem constant byte address 0x4 - core index']
  #allocation1 [shape = 'u32[144,128]{1,0:T(1,128)}', space=vmem, size = 0x12000, scoped, tag = 'internal scratch']
  %s0 = inlined_call_operand.vmem [shape: f32[128,384], index: 0, kind: input, shape index: {}]
  %s1 = inlined_call_operand.vmem [shape: f32[128,1], index: 1, kind: input, shape index: {}]
  %s2 = inlined_call_operand.vmem [shape: f32[64,1], index: 2, kind: input, shape index: {}]
  %s3 = inlined_call_operand.vmem [shape: f32[64,1], index: 3, kind: input, shape index: {}]
  %s4 = inlined_call_operand.vmem [shape: f32[64,1], index: 4, kind: input, shape index: {}]
  %s5 = inlined_call_operand.vmem [shape: f32[2,384,72], index: 5, kind: input, shape index: {}]
  %s6 = inlined_call_operand.vmem [shape: f32[2,64,72], index: 6, kind: output, shape index: {}]
  %s7 = sld [smem:[#allocation0]]
  $region57: #{encoder_forward.8} parent=0
    _
  %s9 = ssub.s32 1, %s7
  %s10 = scalar_select 0, %s9, %s7
  loop: start=0, step=1, limit=4
  $region2: #{encoder_forward.8} parent=0 // loop_pre_header
    _
  $region3: #{encoder_forward.8} parent=0 // loop_header
    %s12 = sphi 0, %s16
    %p13 = scmp.ge.s32.totalorder %s12, 4
    %s20 = sphi 0, %s20
    %s22 = sphi 0, %s20
    %s23 = sphi 0, %s22
    %s37 = sphi 0, %s23
    %s41 = sphi 0, %s41
    %s43 = sphi 0, %s41
    %s44 = sphi 0, %s43
    %s58 = sphi 0, %s44
    %s62 = sphi 0, %s62
    %s64 = sphi 0, %s62
    %s65 = sphi 0, %s64
    %s79 = sphi 0, %s65
    %s83 = sphi 0, %s83
    %s85 = sphi 0, %s83
    %s86 = sphi 0, %s85
    %s100 = sphi 0, %s86
    %s104 = sphi 0, %s104
    %s106 = sphi 0, %s104
    %s107 = sphi 0, %s106
    %s121 = sphi 0, %s107
    %s127 = sphi 0, %s129
    %s130 = sphi 0, %s127
    %s131 = sphi 0, %s130
    %s147 = sphi 0, %s131
    %s153 = sphi 0, %s155
    %s156 = sphi 0, %s153
    %s157 = sphi 0, %s156
    %s173 = sphi 0, %s157
  $region4: #{encoder_forward.8} parent=0 // loop_header_branch
    %15 = sbr.rel (%p13) target = $region8
  $region5: #{encoder_forward.8} parent=0 // loop_body
    %s17 = ssub.s32 %s12, 1
    %s18 = ssub.s32 %s12, 2
    %s19 = sadd.s32 %s12, 1
    %s21 = sadd.s32 %s20, 1
    %p24 = scmp.eq.s32.totalorder %s12, 1
    %p25 = scmp.ne.s32.totalorder %s20, %s22
    %p26 = scmp.eq.s32.totalorder %s12, 0
    %p27 = por %p25, %p26
    %p28 = scmp.ne.s32.totalorder %s20, %s22
    %p29 = scmp.eq.s32.totalorder %s17, 1
    %p30 = por %p28, %p29
    %p31 = scmp.ne.s32.totalorder %s22, %s23
    %p32 = scmp.eq.s32.totalorder %s17, 0
    %p33 = por %p31, %p32
    %p34 = scmp.ne.s32.totalorder %s22, %s23
    %p35 = scmp.eq.s32.totalorder %s18, 1
    %p36 = por %p34, %p35
    %p38 = scmp.ne.s32.totalorder %s23, %s37
    %p39 = scmp.eq.s32.totalorder %s18, 0
    %p40 = por %p38, %p39
    %s42 = sadd.s32 %s41, 1
    %p45 = scmp.eq.s32.totalorder %s12, 1
    %p46 = scmp.ne.s32.totalorder %s41, %s43
    %p47 = scmp.eq.s32.totalorder %s12, 0
    %p48 = por %p46, %p47
    %p49 = scmp.ne.s32.totalorder %s41, %s43
    %p50 = scmp.eq.s32.totalorder %s17, 1
    %p51 = por %p49, %p50
    %p52 = scmp.ne.s32.totalorder %s43, %s44
    %p53 = scmp.eq.s32.totalorder %s17, 0
    %p54 = por %p52, %p53
    %p55 = scmp.ne.s32.totalorder %s43, %s44
    %p56 = scmp.eq.s32.totalorder %s18, 1
    %p57 = por %p55, %p56
    %p59 = scmp.ne.s32.totalorder %s44, %s58
    %p60 = scmp.eq.s32.totalorder %s18, 0
    %p61 = por %p59, %p60
    %s63 = sadd.s32 %s62, 1
    %p66 = scmp.eq.s32.totalorder %s12, 1
    %p67 = scmp.ne.s32.totalorder %s62, %s64
    %p68 = scmp.eq.s32.totalorder %s12, 0
    %p69 = por %p67, %p68
    %p70 = scmp.ne.s32.totalorder %s62, %s64
    %p71 = scmp.eq.s32.totalorder %s17, 1
    %p72 = por %p70, %p71
    %p73 = scmp.ne.s32.totalorder %s64, %s65
    %p74 = scmp.eq.s32.totalorder %s17, 0
    %p75 = por %p73, %p74
    %p76 = scmp.ne.s32.totalorder %s64, %s65
    %p77 = scmp.eq.s32.totalorder %s18, 1
    %p78 = por %p76, %p77
    %p80 = scmp.ne.s32.totalorder %s65, %s79
    %p81 = scmp.eq.s32.totalorder %s18, 0
    %p82 = por %p80, %p81
    %s84 = sadd.s32 %s83, 1
    %p87 = scmp.eq.s32.totalorder %s12, 1
    %p88 = scmp.ne.s32.totalorder %s83, %s85
    %p89 = scmp.eq.s32.totalorder %s12, 0
    %p90 = por %p88, %p89
    %p91 = scmp.ne.s32.totalorder %s83, %s85
    %p92 = scmp.eq.s32.totalorder %s17, 1
    %p93 = por %p91, %p92
    %p94 = scmp.ne.s32.totalorder %s85, %s86
    %p95 = scmp.eq.s32.totalorder %s17, 0
    %p96 = por %p94, %p95
    %p97 = scmp.ne.s32.totalorder %s85, %s86
    %p98 = scmp.eq.s32.totalorder %s18, 1
    %p99 = por %p97, %p98
    %p101 = scmp.ne.s32.totalorder %s86, %s100
    %p102 = scmp.eq.s32.totalorder %s18, 0
    %p103 = por %p101, %p102
    %s105 = sadd.s32 %s104, 1
    %p108 = scmp.eq.s32.totalorder %s12, 1
    %p109 = scmp.ne.s32.totalorder %s104, %s106
    %p110 = scmp.eq.s32.totalorder %s12, 0
    %p111 = por %p109, %p110
    %p112 = scmp.ne.s32.totalorder %s104, %s106
    %p113 = scmp.eq.s32.totalorder %s17, 1
    %p114 = por %p112, %p113
    %p115 = scmp.ne.s32.totalorder %s106, %s107
    %p116 = scmp.eq.s32.totalorder %s17, 0
    %p117 = por %p115, %p116
    %p118 = scmp.ne.s32.totalorder %s106, %s107
    %p119 = scmp.eq.s32.totalorder %s18, 1
    %p120 = por %p118, %p119
    %p122 = scmp.ne.s32.totalorder %s107, %s121
    %p123 = scmp.eq.s32.totalorder %s18, 0
    %p124 = por %p122, %p123
    %s125 = ssub.s32 %s12, %s19
    %p126 = scmp.eq.s32.totalorder %s125, 0
    %s128 = sadd.s32 %s127, 1
    %s129 = scalar_select %p126, %s127, %s128
    %p132 = pneg %p126
    %p133 = scmp.eq.s32.totalorder %s12, 1
    %p134 = por %p132, %p133
    %p135 = scmp.ne.s32.totalorder %s127, %s130
    %p136 = scmp.eq.s32.totalorder %s12, 0
    %p137 = por %p135, %p136
    %p138 = scmp.ne.s32.totalorder %s127, %s130
    %p139 = scmp.eq.s32.totalorder %s17, 1
    %p140 = por %p138, %p139
    %p141 = scmp.ne.s32.totalorder %s130, %s131
    %p142 = scmp.eq.s32.totalorder %s17, 0
    %p143 = por %p141, %p142
    %p144 = scmp.ne.s32.totalorder %s130, %s131
    %p145 = scmp.eq.s32.totalorder %s18, 1
    %p146 = por %p144, %p145
    %p148 = scmp.ne.s32.totalorder %s131, %s147
    %p149 = scmp.eq.s32.totalorder %s18, 0
    %p150 = por %p148, %p149
    %s151 = ssub.s32 %s12, %s19
    %p152 = scmp.eq.s32.totalorder %s151, 0
    %s154 = sadd.s32 %s153, 1
    %s155 = scalar_select %p152, %s153, %s154
    %p158 = pneg %p152
    %p159 = scmp.eq.s32.totalorder %s12, 1
    %p160 = por %p158, %p159
    %p161 = scmp.ne.s32.totalorder %s153, %s156
    %p162 = scmp.eq.s32.totalorder %s12, 0
    %p163 = por %p161, %p162
    %p164 = scmp.ne.s32.totalorder %s153, %s156
    %p165 = scmp.eq.s32.totalorder %s17, 1
    %p166 = por %p164, %p165
    %p167 = scmp.ne.s32.totalorder %s156, %s157
    %p168 = scmp.eq.s32.totalorder %s17, 0
    %p169 = por %p167, %p168
    %p170 = scmp.ne.s32.totalorder %s156, %s157
    %p171 = scmp.eq.s32.totalorder %s18, 1
    %p172 = por %p170, %p171
    %p174 = scmp.ne.s32.totalorder %s157, %s173
    %p175 = scmp.eq.s32.totalorder %s18, 0
    %p176 = por %p174, %p175
    %p177 = scmp.le.s32.totalorder 1, %s12
    %p178 = scmp.lt.s32.totalorder %s12, 3
    %p179 = pnand %p177, %p178
    %p180 = pneg %p179
    // Predicated region
    $region9: #{encoder_forward.8} parent=5 // pred_check
      _
    $region10: #{encoder_forward.8} parent=5 // pred_check_branch
      %182 = sbr.rel (%p179) target = $region12
    $region11: #{encoder_forward.8} parent=5 // pred_region
      %s183 = ssub.s32 %s12, 1
      // Predicated region
      $region13: #{encoder_forward.8} parent=11 // pred_check
        %p184 = pneg %p33
      $region14: #{encoder_forward.8} parent=11 // pred_check_branch
        %186 = sbr.rel (%p184) target = $region16
      $region15: #{encoder_forward.8} parent=11 // pred_region
        _
      $region16: #{encoder_forward.8} parent=11 // pred_fallthru
        _
      // Predicated region
      $region17: #{encoder_forward.8} parent=11 // pred_check
        %p187 = pneg %p54
      $region18: #{encoder_forward.8} parent=11 // pred_check_branch
        %189 = sbr.rel (%p187) target = $region20
      $region19: #{encoder_forward.8} parent=11 // pred_region
        _
      $region20: #{encoder_forward.8} parent=11 // pred_fallthru
        _
      // Predicated region
      $region21: #{encoder_forward.8} parent=11 // pred_check
        %p190 = pneg %p75
      $region22: #{encoder_forward.8} parent=11 // pred_check_branch
        %192 = sbr.rel (%p190) target = $region24
      $region23: #{encoder_forward.8} parent=11 // pred_region
        _
      $region24: #{encoder_forward.8} parent=11 // pred_fallthru
        _
      // Predicated region
      $region25: #{encoder_forward.8} parent=11 // pred_check
        %p193 = pneg %p96
      $region26: #{encoder_forward.8} parent=11 // pred_check_branch
        %195 = sbr.rel (%p193) target = $region28
      $region27: #{encoder_forward.8} parent=11 // pred_region
        _
      $region28: #{encoder_forward.8} parent=11 // pred_fallthru
        _
      // Predicated region
      $region29: #{encoder_forward.8} parent=11 // pred_check
        %p196 = pneg %p117
      $region30: #{encoder_forward.8} parent=11 // pred_check_branch
        %198 = sbr.rel (%p196) target = $region32
      $region31: #{encoder_forward.8} parent=11 // pred_region
        _
      $region32: #{encoder_forward.8} parent=11 // pred_fallthru
        _
    $region12: #{encoder_forward.8} parent=5 // pred_fallthru
      _
    %p199 = scmp.lt.s32.totalorder %s12, 2
    // Predicated region
    $region33: #{encoder_forward.8} parent=5 // pred_check
      %p200 = pneg %p199
    $region34: #{encoder_forward.8} parent=5 // pred_check_branch
      %202 = sbr.rel (%p200) target = $region36
    $region35: #{encoder_forward.8} parent=5 // pred_region
      // Predicated region
      $region37: #{encoder_forward.8} parent=35 // pred_check
        %p203 = pneg %p137
      $region38: #{encoder_forward.8} parent=35 // pred_check_branch
        %205 = sbr.rel (%p203) target = $region40
      $region39: #{encoder_forward.8} parent=35 // pred_region
        %p206 = scmp.lt.s32.totalorder %s12, 1
        %s207 = scalar_select %p206, %s12, 1
        %s208 = smul.addr %s207, 48
        %s209 = smul.addr %s208, 8
        %s210 = scalar_lea.vmem %s5, %s209
      $region40: #{encoder_forward.8} parent=35 // pred_fallthru
        _
    $region36: #{encoder_forward.8} parent=5 // pred_fallthru
      _
    %p211 = scmp.le.s32.totalorder 1, %s12
    %p212 = scmp.lt.s32.totalorder %s12, 3
    %p213 = pnand %p211, %p212
    %p214 = pneg %p213
    // Predicated region
    $region41: #{encoder_forward.8} parent=5 // pred_check
      _
    $region42: #{encoder_forward.8} parent=5 // pred_check_branch
      %216 = sbr.rel (%p213) target = $region44
    $region43: #{encoder_forward.8} parent=5 // pred_region
      %s217 = ssub.s32 %s12, 1
      %p218 = pneg %p33
      %p219 = pneg %p30
      %p220 = pneg %p54
      %p221 = pneg %p51
      %p222 = pneg %p75
      %p223 = pneg %p72
      %p224 = pneg %p96
      %p225 = pneg %p93
      %p226 = pneg %p117
      %p227 = pneg %p114
      %p228 = scmp.lt.s32.totalorder %s17, 1
      %s229 = scalar_select %p228, %s17, 1
      %s230 = smul.addr %s229, 48
      %s231 = smul.addr %s230, 8
      %s232 = scalar_lea.vmem %s5, %s231
      %p233 = pneg %p143
      %p234 = pneg %p140
      %p235 = pneg %p169
      %p236 = pneg %p166
      %p237 = scmp.lt.s32.totalorder %s17, 1
      %s238 = scalar_select %p237, %s17, 1
      %s239 = smul.addr %s238, 8
      %s240 = smul.addr %s239, 8
      %s241 = scalar_lea.vmem %s6, %s240
      %p242 = scmp.lt.s32.totalorder %s17, 1
      %s243 = scalar_select %p242, %s17, 1
      %s244 = smul.addr %s243, 48
      %s245 = smul.addr %s244, 8
      %s246 = scalar_lea.vmem %s5, %s245
      %p247 = scmp.lt.s32.totalorder %s17, 1
      %s248 = scalar_select %p247, %s17, 1
      %s249 = smul.addr %s248, 8
      %s250 = smul.addr %s249, 8
      %s251 = scalar_lea.vmem %s6, %s250
      %v252 = vld [vmem:[%s246] sm:$0xff]
      %v253 = vld [vmem:[%s246 + $0x8] sm:$0xff]
      %v254 = vld [vmem:[%s246 + $0x10] sm:$0xff]
      %v255 = vld [vmem:[%s246 + $0x18] sm:$0xff]
      %v256 = vld [vmem:[%s246 + $0x20] sm:$0xff]
      %v257 = vld [vmem:[%s246 + $0x28] sm:$0xff]
      %v258 = vld [vmem:[%s246 + $0x30] sm:$0xff]
      %v259 = vld [vmem:[%s246 + $0x38] sm:$0xff]
      %v260 = vld [vmem:[%s246 + $0x40] sm:$0xff]
      %v261 = vld [vmem:[%s246 + $0x48] sm:$0xff]
      %v262 = vld [vmem:[%s246 + $0x50] sm:$0xff]
      %v263 = vld [vmem:[%s246 + $0x58] sm:$0xff]
      %v264 = vld [vmem:[%s246 + $0x60] sm:$0xff]
      %v265 = vld [vmem:[%s246 + $0x68] sm:$0xff]
      %v266 = vld [vmem:[%s246 + $0x70] sm:$0xff]
      %v267 = vld [vmem:[%s246 + $0x78] sm:$0xff]
      %v268 = vld [vmem:[%s246 + $0x80] sm:$0xff]
      %v269 = vld [vmem:[%s246 + $0x88] sm:$0xff]
      %v270 = vld [vmem:[%s246 + $0x90] sm:$0xff]
      %v271 = vld [vmem:[%s246 + $0x98] sm:$0xff]
      %v272 = vld [vmem:[%s246 + $0xa0] sm:$0xff]
      %v273 = vld [vmem:[%s246 + $0xa8] sm:$0xff]
      %v274 = vld [vmem:[%s246 + $0xb0] sm:$0xff]
      %v275 = vld [vmem:[%s246 + $0xb8] sm:$0xff]
      %v276 = vld [vmem:[%s246 + $0xc0] sm:$0xff]
      %v277 = vld [vmem:[%s246 + $0xc8] sm:$0xff]
      %v278 = vld [vmem:[%s246 + $0xd0] sm:$0xff]
      %v279 = vld [vmem:[%s246 + $0xd8] sm:$0xff]
      %v280 = vld [vmem:[%s246 + $0xe0] sm:$0xff]
      %v281 = vld [vmem:[%s246 + $0xe8] sm:$0xff]
      %v282 = vld [vmem:[%s246 + $0xf0] sm:$0xff]
      %v283 = vld [vmem:[%s246 + $0xf8] sm:$0xff]
      %v284 = vld [vmem:[%s246 + $0x100] sm:$0xff]
      %v285 = vld [vmem:[%s246 + $0x108] sm:$0xff]
      %v286 = vld [vmem:[%s246 + $0x110] sm:$0xff]
      %v287 = vld [vmem:[%s246 + $0x118] sm:$0xff]
      %v288 = vld [vmem:[%s246 + $0x120] sm:$0xff]
      %v289 = vld [vmem:[%s246 + $0x128] sm:$0xff]
      %v290 = vld [vmem:[%s246 + $0x130] sm:$0xff]
      %v291 = vld [vmem:[%s246 + $0x138] sm:$0xff]
      %v292 = vld [vmem:[%s246 + $0x140] sm:$0xff]
      %v293 = vld [vmem:[%s246 + $0x148] sm:$0xff]
      %v294 = vld [vmem:[%s246 + $0x150] sm:$0xff]
      %v295 = vld [vmem:[%s246 + $0x158] sm:$0xff]
      %v296 = vld [vmem:[%s246 + $0x160] sm:$0xff]
      %v297 = vld [vmem:[%s246 + $0x168] sm:$0xff]
      %v298 = vld [vmem:[%s246 + $0x170] sm:$0xff]
      %v299 = vld [vmem:[%s246 + $0x178] sm:$0xff]
      %v300 = vld [vmem:[%s0] sm:$0xff]
      %v301 = vld [vmem:[%s0 + $0x8] sm:$0xff]
      %v302 = vld [vmem:[%s0 + $0x10] sm:$0xff]
      %v303 = vld [vmem:[%s0 + $0x18] sm:$0xff]
      %v304 = vld [vmem:[%s0 + $0x20] sm:$0xff]
      %v305 = vld [vmem:[%s0 + $0x28] sm:$0xff]
      %v306 = vld [vmem:[%s0 + $0x30] sm:$0xff]
      %v307 = vld [vmem:[%s0 + $0x38] sm:$0xff]
      %v308 = vld [vmem:[%s0 + $0x40] sm:$0xff]
      %v309 = vld [vmem:[%s0 + $0x48] sm:$0xff]
      %v310 = vld [vmem:[%s0 + $0x50] sm:$0xff]
      %v311 = vld [vmem:[%s0 + $0x58] sm:$0xff]
      %v312 = vld [vmem:[%s0 + $0x60] sm:$0xff]
      %v313 = vld [vmem:[%s0 + $0x68] sm:$0xff]
      %v314 = vld [vmem:[%s0 + $0x70] sm:$0xff]
      %v315 = vld [vmem:[%s0 + $0x78] sm:$0xff]
      %v316 = vld [vmem:[%s0 + $0x80] sm:$0xff]
      %v317 = vld [vmem:[%s0 + $0x88] sm:$0xff]
      %v318 = vld [vmem:[%s0 + $0x90] sm:$0xff]
      %v319 = vld [vmem:[%s0 + $0x98] sm:$0xff]
      %v320 = vld [vmem:[%s0 + $0xa0] sm:$0xff]
      %v321 = vld [vmem:[%s0 + $0xa8] sm:$0xff]
      %v322 = vld [vmem:[%s0 + $0xb0] sm:$0xff]
      %v323 = vld [vmem:[%s0 + $0xb8] sm:$0xff]
      %v324 = vld [vmem:[%s0 + $0xc0] sm:$0xff]
      %v325 = vld [vmem:[%s0 + $0xc8] sm:$0xff]
      %v326 = vld [vmem:[%s0 + $0xd0] sm:$0xff]
      %v327 = vld [vmem:[%s0 + $0xd8] sm:$0xff]
      %v328 = vld [vmem:[%s0 + $0xe0] sm:$0xff]
      %v329 = vld [vmem:[%s0 + $0xe8] sm:$0xff]
      %v330 = vld [vmem:[%s0 + $0xf0] sm:$0xff]
      %v331 = vld [vmem:[%s0 + $0xf8] sm:$0xff]
      %v332 = vld [vmem:[%s0 + $0x100] sm:$0xff]
      %v333 = vld [vmem:[%s0 + $0x108] sm:$0xff]
      %v334 = vld [vmem:[%s0 + $0x110] sm:$0xff]
      %v335 = vld [vmem:[%s0 + $0x118] sm:$0xff]
      %v336 = vld [vmem:[%s0 + $0x120] sm:$0xff]
      %v337 = vld [vmem:[%s0 + $0x128] sm:$0xff]
      %v338 = vld [vmem:[%s0 + $0x130] sm:$0xff]
      %v339 = vld [vmem:[%s0 + $0x138] sm:$0xff]
      %v340 = vld [vmem:[%s0 + $0x140] sm:$0xff]
      %v341 = vld [vmem:[%s0 + $0x148] sm:$0xff]
      %v342 = vld [vmem:[%s0 + $0x150] sm:$0xff]
      %v343 = vld [vmem:[%s0 + $0x158] sm:$0xff]
      %v344 = vld [vmem:[%s0 + $0x160] sm:$0xff]
      %v345 = vld [vmem:[%s0 + $0x168] sm:$0xff]
      %v346 = vld [vmem:[%s0 + $0x170] sm:$0xff]
      %v347 = vld [vmem:[%s0 + $0x178] sm:$0xff]
      %v348 = vld [vmem:[%s1] sm:$0xff]
      %v349 = vld [vmem:[%s1 + $0x8] sm:$0xff]
      %v350 = vld [vmem:[%s1 + $0x10] sm:$0xff]
      %v351 = vld [vmem:[%s1 + $0x18] sm:$0xff]
      %v352 = vld [vmem:[%s1 + $0x20] sm:$0xff]
      %v353 = vld [vmem:[%s1 + $0x28] sm:$0xff]
      %v354 = vld [vmem:[%s1 + $0x30] sm:$0xff]
      %v355 = vld [vmem:[%s1 + $0x38] sm:$0xff]
      %v356 = vld [vmem:[%s1 + $0x40] sm:$0xff]
      %v357 = vld [vmem:[%s1 + $0x48] sm:$0xff]
      %v358 = vld [vmem:[%s1 + $0x50] sm:$0xff]
      %v359 = vld [vmem:[%s1 + $0x58] sm:$0xff]
      %v360 = vld [vmem:[%s1 + $0x60] sm:$0xff]
      %v361 = vld [vmem:[%s1 + $0x68] sm:$0xff]
      %v362 = vld [vmem:[%s1 + $0x70] sm:$0xff]
      %v363 = vld [vmem:[%s1 + $0x78] sm:$0xff]
      %365 = vset.pattern.permute.xlu0 0
      %366 = vperm.xlu0 %365, %v348
      %v367 = vpop.permute.xlu0 %366
      %370 = vset.pattern.permute.xlu0 0
      %371 = vperm.xlu0 %370, %v349
      %v372 = vpop.permute.xlu0 %371
      %375 = vset.pattern.permute.xlu0 0
      %376 = vperm.xlu0 %375, %v350
      %v377 = vpop.permute.xlu0 %376
      %380 = vset.pattern.permute.xlu0 0
      %381 = vperm.xlu0 %380, %v351
      %v382 = vpop.permute.xlu0 %381
      %385 = vset.pattern.permute.xlu0 0
      %386 = vperm.xlu0 %385, %v352
      %v387 = vpop.permute.xlu0 %386
      %390 = vset.pattern.permute.xlu0 0
      %391 = vperm.xlu0 %390, %v353
      %v392 = vpop.permute.xlu0 %391
      %395 = vset.pattern.permute.xlu0 0
      %396 = vperm.xlu0 %395, %v354
      %v397 = vpop.permute.xlu0 %396
      %400 = vset.pattern.permute.xlu0 0
      %401 = vperm.xlu0 %400, %v355
      %v402 = vpop.permute.xlu0 %401
      %405 = vset.pattern.permute.xlu0 0
      %406 = vperm.xlu0 %405, %v356
      %v407 = vpop.permute.xlu0 %406
      %410 = vset.pattern.permute.xlu0 0
      %411 = vperm.xlu0 %410, %v357
      %v412 = vpop.permute.xlu0 %411
      %415 = vset.pattern.permute.xlu0 0
      %416 = vperm.xlu0 %415, %v358
      %v417 = vpop.permute.xlu0 %416
      %420 = vset.pattern.permute.xlu0 0
      %421 = vperm.xlu0 %420, %v359
      %v422 = vpop.permute.xlu0 %421
      %425 = vset.pattern.permute.xlu0 0
      %426 = vperm.xlu0 %425, %v360
      %v427 = vpop.permute.xlu0 %426
      %430 = vset.pattern.permute.xlu0 0
      %431 = vperm.xlu0 %430, %v361
      %v432 = vpop.permute.xlu0 %431
      %435 = vset.pattern.permute.xlu0 0
      %436 = vperm.xlu0 %435, %v362
      %v437 = vpop.permute.xlu0 %436
      %440 = vset.pattern.permute.xlu0 0
      %441 = vperm.xlu0 %440, %v363
      %v442 = vpop.permute.xlu0 %441
      %444 = vmatprep.subr.mxu0 0.0
      %445 = vmatpush1.msra.mxu0 %v252
      %446 = vmatprep.subr.mxu0 0.0
      %447 = vmatpush1.msra.mxu0 %v253
      %448 = vmatprep.subr.mxu0 0.0
      %449 = vmatpush1.msra.mxu0 %v254
      %450 = vmatprep.subr.mxu0 0.0
      %451 = vmatpush1.msra.mxu0 %v255
      %452 = vmatprep.subr.mxu0 0.0
      %453 = vmatpush1.msra.mxu0 %v256
      %454 = vmatprep.subr.mxu0 0.0
      %455 = vmatpush1.msra.mxu0 %v257
      %456 = vmatprep.subr.mxu0 0.0
      %457 = vmatpush1.msra.mxu0 %v258
      %458 = vmatprep.subr.mxu0 0.0
      %459 = vmatpush1.msra.mxu0 %v259
      %460 = vmatprep.subr.mxu0 0.0
      %461 = vmatpush1.msra.mxu0 %v260
      %462 = vmatprep.subr.mxu0 0.0
      %463 = vmatpush1.msra.mxu0 %v261
      %464 = vmatprep.subr.mxu0 0.0
      %465 = vmatpush1.msra.mxu0 %v262
      %466 = vmatprep.subr.mxu0 0.0
      %467 = vmatpush1.msra.mxu0 %v263
      %468 = vmatprep.subr.mxu0 0.0
      %469 = vmatpush1.msra.mxu0 %v264
      %470 = vmatprep.subr.mxu0 0.0
      %471 = vmatpush1.msra.mxu0 %v265
      %472 = vmatprep.subr.mxu0 0.0
      %473 = vmatpush1.msra.mxu0 %v266
      %474 = vmatprep.subr.mxu0 0.0
      %475 = vmatpush1.msra.mxu0 %v267
      %476 = vmatprep.subr.mxu0 0.0
      %477 = vmatpush1.msra.mxu0 %v268
      %478 = vmatprep.subr.mxu0 0.0
      %479 = vmatpush1.msra.mxu0 %v269
      %480 = vmatprep.subr.mxu0 0.0
      %481 = vmatpush1.msra.mxu0 %v270
      %482 = vmatprep.subr.mxu0 0.0
      %483 = vmatpush1.msra.mxu0 %v271
      %484 = vmatprep.subr.mxu0 0.0
      %485 = vmatpush1.msra.mxu0 %v272
      %486 = vmatprep.subr.mxu0 0.0
      %487 = vmatpush1.msra.mxu0 %v273
      %488 = vmatprep.subr.mxu0 0.0
      %489 = vmatpush1.msra.mxu0 %v274
      %490 = vmatprep.subr.mxu0 0.0
      %491 = vmatpush1.msra.mxu0 %v275
      %492 = vmatprep.subr.mxu0 0.0
      %493 = vmatpush1.msra.mxu0 %v276
      %494 = vmatprep.subr.mxu0 0.0
      %495 = vmatpush1.msra.mxu0 %v277
      %496 = vmatprep.subr.mxu0 0.0
      %497 = vmatpush1.msra.mxu0 %v278
      %498 = vmatprep.subr.mxu0 0.0
      %499 = vmatpush1.msra.mxu0 %v279
      %500 = vmatprep.subr.mxu0 0.0
      %501 = vmatpush1.msra.mxu0 %v280
      %502 = vmatprep.subr.mxu0 0.0
      %503 = vmatpush1.msra.mxu0 %v281
      %504 = vmatprep.subr.mxu0 0.0
      %505 = vmatpush1.msra.mxu0 %v282
      %506 = vmatprep.subr.mxu0 0.0
      %507 = vmatpush1.msra.mxu0 %v283
      %508 = vmatprep.mubr.f32.mxu0 %v301
      %509 = vmatmul.mubr.f32.gmra.mrb[0].mxu0 %v300
      %v510 = vpop.f32.mrb[0].mxu0
      %v511 = vadd.f32 %v367, %v510
      %v512 = vpop.f32.mrb[0].mxu0
      %513 = vmatprep.mubr.f32.mxu0 %v304
      %514 = vmatmul.mubr.f32.gmra.mrb[0].mxu0 %v303
      %v515 = vpop.f32.mrb[0].mxu0
      %v516 = vadd.f32 %v372, %v515
      %v517 = vpop.f32.mrb[0].mxu0
      %518 = vmatprep.mubr.f32.mxu0 %v307
      %519 = vmatmul.mubr.f32.gmra.mrb[0].mxu0 %v306
      %v520 = vpop.f32.mrb[0].mxu0
      %v521 = vadd.f32 %v377, %v520
      %v522 = vpop.f32.mrb[0].mxu0
      %523 = vmatprep.mubr.f32.mxu0 %v310
      %524 = vmatmul.mubr.f32.gmra.mrb[0].mxu0 %v309
      %v525 = vpop.f32.mrb[0].mxu0
      %v526 = vadd.f32 %v382, %v525
      %v527 = vpop.f32.mrb[0].mxu0
      %528 = vmatprep.mubr.f32.mxu0 %v313
      %529 = vmatmul.mubr.f32.gmra.mrb[0].mxu0 %v312
      %v530 = vpop.f32.mrb[0].mxu0
      %v531 = vadd.f32 %v387, %v530
      %v532 = vpop.f32.mrb[0].mxu0
      %533 = vmatprep.mubr.f32.mxu0 %v316
      %534 = vmatmul.mubr.f32.gmra.mrb[0].mxu0 %v315
      %v535 = vpop.f32.mrb[0].mxu0
      %v536 = vadd.f32 %v392, %v535
      %v537 = vpop.f32.mrb[0].mxu0
      %538 = vmatprep.mubr.f32.mxu0 %v319
      %539 = vmatmul.mubr.f32.gmra.mrb[0].mxu0 %v318
      %v540 = vpop.f32.mrb[0].mxu0
      %v541 = vadd.f32 %v397, %v540
      %v542 = vpop.f32.mrb[0].mxu0
      %543 = vmatprep.mubr.f32.mxu0 %v322
      %544 = vmatmul.mubr.f32.gmra.mrb[0].mxu0 %v321
      %v545 = vpop.f32.mrb[0].mxu0
      %v546 = vadd.f32 %v402, %v545
      %v547 = vpop.f32.mrb[0].mxu0
      %548 = vmatprep.mubr.f32.mxu0 %v325
      %549 = vmatmul.mubr.f32.gmra.mrb[0].mxu0 %v324
      %v550 = vpop.f32.mrb[0].mxu0
      %v551 = vadd.f32 %v407, %v550
      %v552 = vpop.f32.mrb[0].mxu0
      %553 = vmatprep.mubr.f32.mxu0 %v328
      %554 = vmatmul.mubr.f32.gmra.mrb[0].mxu0 %v327
      %v555 = vpop.f32.mrb[0].mxu0
      %v556 = vadd.f32 %v412, %v555
      %v557 = vpop.f32.mrb[0].mxu0
      %558 = vmatprep.mubr.f32.mxu0 %v331
      %559 = vmatmul.mubr.f32.gmra.mrb[0].mxu0 %v330
      %v560 = vpop.f32.mrb[0].mxu0
      %v561 = vadd.f32 %v417, %v560
      %v562 = vpop.f32.mrb[0].mxu0
      %563 = vmatprep.mubr.f32.mxu0 %v334
      %564 = vmatmul.mubr.f32.gmra.mrb[0].mxu0 %v333
      %v565 = vpop.f32.mrb[0].mxu0
      %v566 = vadd.f32 %v422, %v565
      %v567 = vpop.f32.mrb[0].mxu0
      %568 = vmatprep.mubr.f32.mxu0 %v337
      %569 = vmatmul.mubr.f32.gmra.mrb[0].mxu0 %v336
      %v570 = vpop.f32.mrb[0].mxu0
      %v571 = vadd.f32 %v427, %v570
      %v572 = vpop.f32.mrb[0].mxu0
      %573 = vmatprep.mubr.f32.mxu0 %v340
      %574 = vmatmul.mubr.f32.gmra.mrb[0].mxu0 %v339
      %v575 = vpop.f32.mrb[0].mxu0
      %v576 = vadd.f32 %v432, %v575
      %v577 = vpop.f32.mrb[0].mxu0
      %578 = vmatprep.mubr.f32.mxu0 %v343
      %579 = vmatmul.mubr.f32.gmra.mrb[0].mxu0 %v342
      %v580 = vpop.f32.mrb[0].mxu0
      %v581 = vadd.f32 %v437, %v580
      %v582 = vpop.f32.mrb[0].mxu0
      %583 = vmatprep.mubr.f32.mxu0 %v346
      %584 = vmatmul.mubr.f32.gmra.mrb[0].mxu0 %v345
      %v585 = vpop.f32.mrb[0].mxu0
      %v586 = vadd.f32 %v442, %v585
      %v587 = vpop.f32.mrb[0].mxu0
      %588 = vdwg.mxu0
      %589 = vmatprep.subr.mxu0 0.0
      %590 = vmatpush1.msra.mxu0 %v284
      %591 = vmatprep.subr.mxu0 0.0
      %592 = vmatpush1.msra.mxu0 %v285
      %593 = vmatprep.subr.mxu0 0.0
      %594 = vmatpush1.msra.mxu0 %v286
      %595 = vmatprep.subr.mxu0 0.0
      %596 = vmatpush1.msra.mxu0 %v287
      %597 = vmatprep.subr.mxu0 0.0
      %598 = vmatpush1.msra.mxu0 %v288
      %599 = vmatprep.subr.mxu0 0.0
      %600 = vmatpush1.msra.mxu0 %v289
      %601 = vmatprep.subr.mxu0 0.0
      %602 = vmatpush1.msra.mxu0 %v290
      %603 = vmatprep.subr.mxu0 0.0
      %604 = vmatpush1.msra.mxu0 %v291
      %605 = vmatprep.subr.mxu0 0.0
      %606 = vmatpush1.msra.mxu0 %v292
      %607 = vmatprep.subr.mxu0 0.0
      %608 = vmatpush1.msra.mxu0 %v293
      %609 = vmatprep.subr.mxu0 0.0
      %610 = vmatpush1.msra.mxu0 %v294
      %611 = vmatprep.subr.mxu0 0.0
      %612 = vmatpush1.msra.mxu0 %v295
      %613 = vmatprep.subr.mxu0 0.0
      %614 = vmatpush1.msra.mxu0 %v296
      %615 = vmatprep.subr.mxu0 0.0
      %616 = vmatpush1.msra.mxu0 %v297
      %617 = vmatprep.subr.mxu0 0.0
      %618 = vmatpush1.msra.mxu0 %v298
      %619 = vmatprep.subr.mxu0 0.0
      %620 = vmatpush1.msra.mxu0 %v299
      %621 = vmatprep.subr.mxu0 0.0
      %622 = vmatpush1.msra.mxu0 0.0
      %623 = vmatprep.subr.mxu0 0.0
      %624 = vmatpush1.msra.mxu0 0.0
      %625 = vmatprep.subr.mxu0 0.0
      %626 = vmatpush1.msra.mxu0 0.0
      %627 = vmatprep.subr.mxu0 0.0
      %628 = vmatpush1.msra.mxu0 0.0
      %629 = vmatprep.subr.mxu0 0.0
      %630 = vmatpush1.msra.mxu0 0.0
      %631 = vmatprep.subr.mxu0 0.0
      %632 = vmatpush1.msra.mxu0 0.0
      %633 = vmatprep.subr.mxu0 0.0
      %634 = vmatpush1.msra.mxu0 0.0
      %635 = vmatprep.subr.mxu0 0.0
      %636 = vmatpush1.msra.mxu0 0.0
      %637 = vmatprep.subr.mxu0 0.0
      %638 = vmatpush1.msra.mxu0 0.0
      %639 = vmatprep.subr.mxu0 0.0
      %640 = vmatpush1.msra.mxu0 0.0
      %641 = vmatprep.subr.mxu0 0.0
      %642 = vmatpush1.msra.mxu0 0.0
      %643 = vmatprep.subr.mxu0 0.0
      %644 = vmatpush1.msra.mxu0 0.0
      %645 = vmatprep.subr.mxu0 0.0
      %646 = vmatpush1.msra.mxu0 0.0
      %647 = vmatprep.subr.mxu0 0.0
      %648 = vmatpush1.msra.mxu0 0.0
      %649 = vmatprep.subr.mxu0 0.0
      %650 = vmatpush1.msra.mxu0 0.0
      %651 = vmatprep.subr.mxu0 0.0
      %652 = vmatpush1.msra.mxu0 0.0
      %653 = vmatprep.mubr.f32.mxu0 0.0
      %654 = vmatmul.mubr.f32.gmra.mrb[0].mxu0 %v302
      %v655 = vpop.f32.mrb[0].mxu0
      %v656 = vadd.f32 %v511, %v655
      %v657 = vpop.f32.mrb[0].mxu0
      %658 = vmatprep.mubr.f32.mxu0 0.0
      %659 = vmatmul.mubr.f32.gmra.mrb[0].mxu0 %v305
      %v660 = vpop.f32.mrb[0].mxu0
      %v661 = vadd.f32 %v516, %v660
      %v662 = vpop.f32.mrb[0].mxu0
      %663 = vmatprep.mubr.f32.mxu0 0.0
      %664 = vmatmul.mubr.f32.gmra.mrb[0].mxu0 %v308
      %v665 = vpop.f32.mrb[0].mxu0
      %v666 = vadd.f32 %v521, %v665
      %v667 = vpop.f32.mrb[0].mxu0
      %668 = vmatprep.mubr.f32.mxu0 0.0
      %669 = vmatmul.mubr.f32.gmra.mrb[0].mxu0 %v311
      %v670 = vpop.f32.mrb[0].mxu0
      %v671 = vadd.f32 %v526, %v670
      %v672 = vpop.f32.mrb[0].mxu0
      %673 = vmatprep.mubr.f32.mxu0 0.0
      %674 = vmatmul.mubr.f32.gmra.mrb[0].mxu0 %v314
      %v675 = vpop.f32.mrb[0].mxu0
      %v676 = vadd.f32 %v531, %v675
      %v677 = vpop.f32.mrb[0].mxu0
      %678 = vmatprep.mubr.f32.mxu0 0.0
      %679 = vmatmul.mubr.f32.gmra.mrb[0].mxu0 %v317
      %v680 = vpop.f32.mrb[0].mxu0
      %v681 = vadd.f32 %v536, %v680
      %v682 = vpop.f32.mrb[0].mxu0
      %683 = vmatprep.mubr.f32.mxu0 0.0
      %684 = vmatmul.mubr.f32.gmra.mrb[0].mxu0 %v320
      %v685 = vpop.f32.mrb[0].mxu0
      %v686 = vadd.f32 %v541, %v685
      %v687 = vpop.f32.mrb[0].mxu0
      %688 = vmatprep.mubr.f32.mxu0 0.0
      %689 = vmatmul.mubr.f32.gmra.mrb[0].mxu0 %v323
      %v690 = vpop.f32.mrb[0].mxu0
      %v691 = vadd.f32 %v546, %v690
      %v692 = vpop.f32.mrb[0].mxu0
      %693 = vmatprep.mubr.f32.mxu0 0.0
      %694 = vmatmul.mubr.f32.gmra.mrb[0].mxu0 %v326
      %v695 = vpop.f32.mrb[0].mxu0
      %v696 = vadd.f32 %v551, %v695
      %v697 = vpop.f32.mrb[0].mxu0
      %698 = vmatprep.mubr.f32.mxu0 0.0
      %699 = vmatmul.mubr.f32.gmra.mrb[0].mxu0 %v329
      %v700 = vpop.f32.mrb[0].mxu0
      %v701 = vadd.f32 %v556, %v700
      %v702 = vpop.f32.mrb[0].mxu0
      %703 = vmatprep.mubr.f32.mxu0 0.0
      %704 = vmatmul.mubr.f32.gmra.mrb[0].mxu0 %v332
      %v705 = vpop.f32.mrb[0].mxu0
      %v706 = vadd.f32 %v561, %v705
      %v707 = vpop.f32.mrb[0].mxu0
      %708 = vmatprep.mubr.f32.mxu0 0.0
      %709 = vmatmul.mubr.f32.gmra.mrb[0].mxu0 %v335
      %v710 = vpop.f32.mrb[0].mxu0
      %v711 = vadd.f32 %v566, %v710
      %v712 = vpop.f32.mrb[0].mxu0
      %713 = vmatprep.mubr.f32.mxu0 0.0
      %714 = vmatmul.mubr.f32.gmra.mrb[0].mxu0 %v338
      %v715 = vpop.f32.mrb[0].mxu0
      %v716 = vadd.f32 %v571, %v715
      %v717 = vpop.f32.mrb[0].mxu0
      %718 = vmatprep.mubr.f32.mxu0 0.0
      %719 = vmatmul.mubr.f32.gmra.mrb[0].mxu0 %v341
      %v720 = vpop.f32.mrb[0].mxu0
      %v721 = vadd.f32 %v576, %v720
      %v722 = vpop.f32.mrb[0].mxu0
      %723 = vmatprep.mubr.f32.mxu0 0.0
      %724 = vmatmul.mubr.f32.gmra.mrb[0].mxu0 %v344
      %v725 = vpop.f32.mrb[0].mxu0
      %v726 = vadd.f32 %v581, %v725
      %v727 = vpop.f32.mrb[0].mxu0
      %728 = vmatprep.mubr.f32.mxu0 0.0
      %729 = vmatmul.mubr.f32.gmra.mrb[0].mxu0 %v347
      %v730 = vpop.f32.mrb[0].mxu0
      %v731 = vadd.f32 %v586, %v730
      %v732 = vpop.f32.mrb[0].mxu0
      %733 = vdwg.mxu0
      %v734 = vsub.f32 0.0, %v696
      %v735 = vsub.f32 0.0, %v701
      %v736 = vsub.f32 0.0, %v706
      %v737 = vsub.f32 0.0, %v711
      %v738 = vsub.f32 0.0, %v716
      %v739 = vsub.f32 0.0, %v721
      %v740 = vsub.f32 0.0, %v726
      %v741 = vsub.f32 0.0, %v731
      %v742 = vmul.f32 %v734, 1.442695
      %v743 = vpow.pop %v742
      %v744 = vmul.f32 %v735, 1.442695
      %v745 = vpow.pop %v744
      %v746 = vmul.f32 %v736, 1.442695
      %v747 = vpow.pop %v746
      %v748 = vmul.f32 %v737, 1.442695
      %v749 = vpow.pop %v748
      %v750 = vmul.f32 %v738, 1.442695
      %v751 = vpow.pop %v750
      %v752 = vmul.f32 %v739, 1.442695
      %v753 = vpow.pop %v752
      %v754 = vmul.f32 %v740, 1.442695
      %v755 = vpow.pop %v754
      %v756 = vmul.f32 %v741, 1.442695
      %v757 = vpow.pop %v756
      %v758 = vadd.f32 %v743, 1.0
      %v759 = vadd.f32 %v745, 1.0
      %v760 = vadd.f32 %v747, 1.0
      %v761 = vadd.f32 %v749, 1.0
      %v762 = vadd.f32 %v751, 1.0
      %v763 = vadd.f32 %v753, 1.0
      %v764 = vadd.f32 %v755, 1.0
      %v765 = vadd.f32 %v757, 1.0
      %v766 = vrcp.pop %v758
      %v767 = vmul.f32 1.0, %v766
      %v768 = vrcp.pop %v759
      %v769 = vmul.f32 1.0, %v768
      %v770 = vrcp.pop %v760
      %v771 = vmul.f32 1.0, %v770
      %v772 = vrcp.pop %v761
      %v773 = vmul.f32 1.0, %v772
      %v774 = vrcp.pop %v762
      %v775 = vmul.f32 1.0, %v774
      %v776 = vrcp.pop %v763
      %v777 = vmul.f32 1.0, %v776
      %v778 = vrcp.pop %v764
      %v779 = vmul.f32 1.0, %v778
      %v780 = vrcp.pop %v765
      %v781 = vmul.f32 1.0, %v780
      %v782 = vmul.f32 %v656, %v767
      %v783 = vmul.f32 %v661, %v769
      %v784 = vmul.f32 %v666, %v771
      %v785 = vmul.f32 %v671, %v773
      %v786 = vmul.f32 %v676, %v775
      %v787 = vmul.f32 %v681, %v777
      %v788 = vmul.f32 %v686, %v779
      %v789 = vmul.f32 %v691, %v781
      %vm790 = vcmask 588800
      %v791 = vsel %vm790, %v782, 0.0
      %792 = vadd.xlane.f32.xlu0 %v791
      %v793 = vpop.xlane.xlu0 %792
      %v794 = vsel %vm790, %v783, 0.0
      %795 = vadd.xlane.f32.xlu0 %v794
      %v796 = vpop.xlane.xlu0 %795
      %v797 = vsel %vm790, %v784, 0.0
      %798 = vadd.xlane.f32.xlu0 %v797
      %v799 = vpop.xlane.xlu0 %798
      %v800 = vsel %vm790, %v785, 0.0
      %801 = vadd.xlane.f32.xlu0 %v800
      %v802 = vpop.xlane.xlu0 %801
      %v803 = vsel %vm790, %v786, 0.0
      %804 = vadd.xlane.f32.xlu0 %v803
      %v805 = vpop.xlane.xlu0 %804
      %v806 = vsel %vm790, %v787, 0.0
      %807 = vadd.xlane.f32.xlu0 %v806
      %v808 = vpop.xlane.xlu0 %807
      %v809 = vsel %vm790, %v788, 0.0
      %810 = vadd.xlane.f32.xlu0 %v809
      %v811 = vpop.xlane.xlu0 %810
      %v812 = vsel %vm790, %v789, 0.0
      %813 = vadd.xlane.f32.xlu0 %v812
      %v814 = vpop.xlane.xlu0 %813
      %v815 = vrcp.pop 72.0
      %v816 = vmul.f32 %v793, %v815
      %v817 = vmul.f32 %v796, %v815
      %v818 = vmul.f32 %v799, %v815
      %v819 = vmul.f32 %v802, %v815
      %v820 = vmul.f32 %v805, %v815
      %v821 = vmul.f32 %v808, %v815
      %v822 = vmul.f32 %v811, %v815
      %v823 = vmul.f32 %v814, %v815
      %v824 = vsub.f32 %v782, %v816
      %v825 = vsub.f32 %v783, %v817
      %v826 = vsub.f32 %v784, %v818
      %v827 = vsub.f32 %v785, %v819
      %v828 = vsub.f32 %v786, %v820
      %v829 = vsub.f32 %v787, %v821
      %v830 = vsub.f32 %v788, %v822
      %v831 = vsub.f32 %v789, %v823
      %v832 = vmul.f32 %v824, %v824
      %v833 = vmul.f32 %v825, %v825
      %v834 = vmul.f32 %v826, %v826
      %v835 = vmul.f32 %v827, %v827
      %v836 = vmul.f32 %v828, %v828
      %v837 = vmul.f32 %v829, %v829
      %v838 = vmul.f32 %v830, %v830
      %v839 = vmul.f32 %v831, %v831
      %v840 = vsel %vm790, %v832, 0.0
      %841 = vadd.xlane.f32.xlu0 %v840
      %v842 = vpop.xlane.xlu0 %841
      %v843 = vsel %vm790, %v833, 0.0
      %844 = vadd.xlane.f32.xlu0 %v843
      %v845 = vpop.xlane.xlu0 %844
      %v846 = vsel %vm790, %v834, 0.0
      %847 = vadd.xlane.f32.xlu0 %v846
      %v848 = vpop.xlane.xlu0 %847
      %v849 = vsel %vm790, %v835, 0.0
      %850 = vadd.xlane.f32.xlu0 %v849
      %v851 = vpop.xlane.xlu0 %850
      %v852 = vsel %vm790, %v836, 0.0
      %853 = vadd.xlane.f32.xlu0 %v852
      %v854 = vpop.xlane.xlu0 %853
      %v855 = vsel %vm790, %v837, 0.0
      %856 = vadd.xlane.f32.xlu0 %v855
      %v857 = vpop.xlane.xlu0 %856
      %v858 = vsel %vm790, %v838, 0.0
      %859 = vadd.xlane.f32.xlu0 %v858
      %v860 = vpop.xlane.xlu0 %859
      %v861 = vsel %vm790, %v839, 0.0
      %862 = vadd.xlane.f32.xlu0 %v861
      %v863 = vpop.xlane.xlu0 %862
      %v864 = vmul.f32 %v842, %v815
      %v865 = vmul.f32 %v845, %v815
      %v866 = vmul.f32 %v848, %v815
      %v867 = vmul.f32 %v851, %v815
      %v868 = vmul.f32 %v854, %v815
      %v869 = vmul.f32 %v857, %v815
      %v870 = vmul.f32 %v860, %v815
      %v871 = vmul.f32 %v863, %v815
      %v872 = vadd.f32 %v864, 1e-05
      %v873 = vadd.f32 %v865, 1e-05
      %v874 = vadd.f32 %v866, 1e-05
      %v875 = vadd.f32 %v867, 1e-05
      %v876 = vadd.f32 %v868, 1e-05
      %v877 = vadd.f32 %v869, 1e-05
      %v878 = vadd.f32 %v870, 1e-05
      %v879 = vadd.f32 %v871, 1e-05
      %v880 = vrsqrt.pop %v872
      %v881 = vrsqrt.pop %v873
      %v882 = vrsqrt.pop %v874
      %v883 = vrsqrt.pop %v875
      %v884 = vrsqrt.pop %v876
      %v885 = vrsqrt.pop %v877
      %v886 = vrsqrt.pop %v878
      %v887 = vrsqrt.pop %v879
      %v888 = vmul.f32 %v824, %v880
      %v889 = vmul.f32 %v825, %v881
      %v890 = vmul.f32 %v826, %v882
      %v891 = vmul.f32 %v827, %v883
      %v892 = vmul.f32 %v828, %v884
      %v893 = vmul.f32 %v829, %v885
      %v894 = vmul.f32 %v830, %v886
      %v895 = vmul.f32 %v831, %v887
      %v896 = vld [vmem:[%s2] sm:$0xff]
      %v897 = vld [vmem:[%s2 + $0x8] sm:$0xff]
      %v898 = vld [vmem:[%s2 + $0x10] sm:$0xff]
      %v899 = vld [vmem:[%s2 + $0x18] sm:$0xff]
      %v900 = vld [vmem:[%s2 + $0x20] sm:$0xff]
      %v901 = vld [vmem:[%s2 + $0x28] sm:$0xff]
      %v902 = vld [vmem:[%s2 + $0x30] sm:$0xff]
      %v903 = vld [vmem:[%s2 + $0x38] sm:$0xff]
      %905 = vset.pattern.permute.xlu0 0
      %906 = vperm.xlu0 %905, %v896
      %v907 = vpop.permute.xlu0 %906
      %910 = vset.pattern.permute.xlu0 0
      %911 = vperm.xlu0 %910, %v897
      %v912 = vpop.permute.xlu0 %911
      %915 = vset.pattern.permute.xlu0 0
      %916 = vperm.xlu0 %915, %v898
      %v917 = vpop.permute.xlu0 %916
      %920 = vset.pattern.permute.xlu0 0
      %921 = vperm.xlu0 %920, %v899
      %v922 = vpop.permute.xlu0 %921
      %925 = vset.pattern.permute.xlu0 0
      %926 = vperm.xlu0 %925, %v900
      %v927 = vpop.permute.xlu0 %926
      %930 = vset.pattern.permute.xlu0 0
      %931 = vperm.xlu0 %930, %v901
      %v932 = vpop.permute.xlu0 %931
      %935 = vset.pattern.permute.xlu0 0
      %936 = vperm.xlu0 %935, %v902
      %v937 = vpop.permute.xlu0 %936
      %940 = vset.pattern.permute.xlu0 0
      %941 = vperm.xlu0 %940, %v903
      %v942 = vpop.permute.xlu0 %941
      %v944 = vmul.f32 %v888, %v907
      %v945 = vmul.f32 %v889, %v912
      %v946 = vmul.f32 %v890, %v917
      %v947 = vmul.f32 %v891, %v922
      %v948 = vmul.f32 %v892, %v927
      %v949 = vmul.f32 %v893, %v932
      %v950 = vmul.f32 %v894, %v937
      %v951 = vmul.f32 %v895, %v942
      %v952 = vld [vmem:[%s3] sm:$0xff]
      %v953 = vld [vmem:[%s3 + $0x8] sm:$0xff]
      %v954 = vld [vmem:[%s3 + $0x10] sm:$0xff]
      %v955 = vld [vmem:[%s3 + $0x18] sm:$0xff]
      %v956 = vld [vmem:[%s3 + $0x20] sm:$0xff]
      %v957 = vld [vmem:[%s3 + $0x28] sm:$0xff]
      %v958 = vld [vmem:[%s3 + $0x30] sm:$0xff]
      %v959 = vld [vmem:[%s3 + $0x38] sm:$0xff]
      %961 = vset.pattern.permute.xlu0 0
      %962 = vperm.xlu0 %961, %v952
      %v963 = vpop.permute.xlu0 %962
      %966 = vset.pattern.permute.xlu0 0
      %967 = vperm.xlu0 %966, %v953
      %v968 = vpop.permute.xlu0 %967
      %971 = vset.pattern.permute.xlu0 0
      %972 = vperm.xlu0 %971, %v954
      %v973 = vpop.permute.xlu0 %972
      %976 = vset.pattern.permute.xlu0 0
      %977 = vperm.xlu0 %976, %v955
      %v978 = vpop.permute.xlu0 %977
      %981 = vset.pattern.permute.xlu0 0
      %982 = vperm.xlu0 %981, %v956
      %v983 = vpop.permute.xlu0 %982
      %986 = vset.pattern.permute.xlu0 0
      %987 = vperm.xlu0 %986, %v957
      %v988 = vpop.permute.xlu0 %987
      %991 = vset.pattern.permute.xlu0 0
      %992 = vperm.xlu0 %991, %v958
      %v993 = vpop.permute.xlu0 %992
      %996 = vset.pattern.permute.xlu0 0
      %997 = vperm.xlu0 %996, %v959
      %v998 = vpop.permute.xlu0 %997
      %v1000 = vadd.f32 %v944, %v963
      %v1001 = vadd.f32 %v945, %v968
      %v1002 = vadd.f32 %v946, %v973
      %v1003 = vadd.f32 %v947, %v978
      %v1004 = vadd.f32 %v948, %v983
      %v1005 = vadd.f32 %v949, %v988
      %v1006 = vadd.f32 %v950, %v993
      %v1007 = vadd.f32 %v951, %v998
      %vm1008 = vcmp.gt.f32.partialorder %v1000, 0.0
      %vm1009 = vcmp.gt.f32.partialorder %v1001, 0.0
      %vm1010 = vcmp.gt.f32.partialorder %v1002, 0.0
      %vm1011 = vcmp.gt.f32.partialorder %v1003, 0.0
      %vm1012 = vcmp.gt.f32.partialorder %v1004, 0.0
      %vm1013 = vcmp.gt.f32.partialorder %v1005, 0.0
      %vm1014 = vcmp.gt.f32.partialorder %v1006, 0.0
      %vm1015 = vcmp.gt.f32.partialorder %v1007, 0.0
      %v1016 = vld [vmem:[%s4] sm:$0xff]
      %v1017 = vld [vmem:[%s4 + $0x8] sm:$0xff]
      %v1018 = vld [vmem:[%s4 + $0x10] sm:$0xff]
      %v1019 = vld [vmem:[%s4 + $0x18] sm:$0xff]
      %v1020 = vld [vmem:[%s4 + $0x20] sm:$0xff]
      %v1021 = vld [vmem:[%s4 + $0x28] sm:$0xff]
      %v1022 = vld [vmem:[%s4 + $0x30] sm:$0xff]
      %v1023 = vld [vmem:[%s4 + $0x38] sm:$0xff]
      %1025 = vset.pattern.permute.xlu0 0
      %1026 = vperm.xlu0 %1025, %v1016
      %v1027 = vpop.permute.xlu0 %1026
      %1030 = vset.pattern.permute.xlu0 0
      %1031 = vperm.xlu0 %1030, %v1017
      %v1032 = vpop.permute.xlu0 %1031
      %1035 = vset.pattern.permute.xlu0 0
      %1036 = vperm.xlu0 %1035, %v1018
      %v1037 = vpop.permute.xlu0 %1036
      %1040 = vset.pattern.permute.xlu0 0
      %1041 = vperm.xlu0 %1040, %v1019
      %v1042 = vpop.permute.xlu0 %1041
      %1045 = vset.pattern.permute.xlu0 0
      %1046 = vperm.xlu0 %1045, %v1020
      %v1047 = vpop.permute.xlu0 %1046
      %1050 = vset.pattern.permute.xlu0 0
      %1051 = vperm.xlu0 %1050, %v1021
      %v1052 = vpop.permute.xlu0 %1051
      %1055 = vset.pattern.permute.xlu0 0
      %1056 = vperm.xlu0 %1055, %v1022
      %v1057 = vpop.permute.xlu0 %1056
      %1060 = vset.pattern.permute.xlu0 0
      %1061 = vperm.xlu0 %1060, %v1023
      %v1062 = vpop.permute.xlu0 %1061
      %v1064 = vmul.f32 %v1027, %v1000
      %v1065 = vmul.f32 %v1032, %v1001
      %v1066 = vmul.f32 %v1037, %v1002
      %v1067 = vmul.f32 %v1042, %v1003
      %v1068 = vmul.f32 %v1047, %v1004
      %v1069 = vmul.f32 %v1052, %v1005
      %v1070 = vmul.f32 %v1057, %v1006
      %v1071 = vmul.f32 %v1062, %v1007
      %v1072 = vsel %vm1008, %v1000, %v1064
      %v1073 = vsel %vm1009, %v1001, %v1065
      %v1074 = vsel %vm1010, %v1002, %v1066
      %v1075 = vsel %vm1011, %v1003, %v1067
      %v1076 = vsel %vm1012, %v1004, %v1068
      %v1077 = vsel %vm1013, %v1005, %v1069
      %v1078 = vsel %vm1014, %v1006, %v1070
      %v1079 = vsel %vm1015, %v1007, %v1071
      %1080 = vst.msk [vmem:[%s251] sm:$0xff] %vm790, %v1072
      %1081 = vst.msk [vmem:[%s251 + $0x8] sm:$0xff] %vm790, %v1073
      %1082 = vst.msk [vmem:[%s251 + $0x10] sm:$0xff] %vm790, %v1074
      %1083 = vst.msk [vmem:[%s251 + $0x18] sm:$0xff] %vm790, %v1075
      %1084 = vst.msk [vmem:[%s251 + $0x20] sm:$0xff] %vm790, %v1076
      %1085 = vst.msk [vmem:[%s251 + $0x28] sm:$0xff] %vm790, %v1077
      %1086 = vst.msk [vmem:[%s251 + $0x30] sm:$0xff] %vm790, %v1078
      %1087 = vst.msk [vmem:[%s251 + $0x38] sm:$0xff] %vm790, %v1079
      %p1088 = scmp.lt.s32.totalorder %s17, 1
      %s1089 = scalar_select %p1088, %s17, 1
      %s1090 = smul.addr %s1089, 8
      %s1091 = smul.addr %s1090, 8
      %s1092 = scalar_lea.vmem %s6, %s1091
      // Predicated region
      $region45: #{encoder_forward.8} parent=43 // pred_check
        %p1093 = pneg %p166
      $region46: #{encoder_forward.8} parent=43 // pred_check_branch
        %1095 = sbr.rel (%p1093) target = $region48
      $region47: #{encoder_forward.8} parent=43 // pred_region
        _
      $region48: #{encoder_forward.8} parent=43 // pred_fallthru
        _
    $region44: #{encoder_forward.8} parent=5 // pred_fallthru
      _
    %p1096 = scmp.le.s32.totalorder 2, %s12
    // Predicated region
    $region49: #{encoder_forward.8} parent=5 // pred_check
      %p1097 = pneg %p1096
    $region50: #{encoder_forward.8} parent=5 // pred_check_branch
      %1099 = sbr.rel (%p1097) target = $region52
    $region51: #{encoder_forward.8} parent=5 // pred_region
      %s1100 = ssub.s32 %s12, 2
      // Predicated region
      $region53: #{encoder_forward.8} parent=51 // pred_check
        %p1101 = pneg %p172
      $region54: #{encoder_forward.8} parent=51 // pred_check_branch
        %1103 = sbr.rel (%p1101) target = $region56
      $region55: #{encoder_forward.8} parent=51 // pred_region
        %p1104 = scmp.lt.s32.totalorder %s18, 1
        %s1105 = scalar_select %p1104, %s18, 1
        %s1106 = smul.addr %s1105, 8
        %s1107 = smul.addr %s1106, 8
        %s1108 = scalar_lea.vmem %s6, %s1107
      $region56: #{encoder_forward.8} parent=51 // pred_fallthru
        _
    $region52: #{encoder_forward.8} parent=5 // pred_fallthru
      _
  $region6: #{encoder_forward.8} parent=0 // loop_footer
    %s16 = sadd.s32 1, %s12
  $region7: #{encoder_forward.8} parent=0 // loop_footer_branch
    %11 = sbr.rel target = $region3
  $region8: #{encoder_forward.8} parent=0 // loop_exit
    _

// kernel: encoder_forward.9
$region0: #{encoder_forward.9}
  #allocation0 [shape = 'u32[]', space=smem, size = 0x4, offset = 0x4, fixed_abs, tag = 'smem constant byte address 0x4 - core index']
  #allocation1 [shape = 'u32[144,128]{1,0:T(1,128)}', space=vmem, size = 0x12000, scoped, tag = 'internal scratch']
  %s0 = inlined_call_operand.vmem [shape: f32[128,384], index: 0, kind: input, shape index: {}]
  %s1 = inlined_call_operand.vmem [shape: f32[128,1], index: 1, kind: input, shape index: {}]
  %s2 = inlined_call_operand.vmem [shape: f32[64,1], index: 2, kind: input, shape index: {}]
  %s3 = inlined_call_operand.vmem [shape: f32[64,1], index: 3, kind: input, shape index: {}]
  %s4 = inlined_call_operand.vmem [shape: f32[64,1], index: 4, kind: input, shape index: {}]
  %s5 = inlined_call_operand.vmem [shape: f32[2,384,32], index: 5, kind: input, shape index: {}]
  %s6 = inlined_call_operand.vmem [shape: f32[2,64,32], index: 6, kind: output, shape index: {}]
  %s7 = sld [smem:[#allocation0]]
  $region57: #{encoder_forward.9} parent=0
    _
  %s9 = ssub.s32 1, %s7
  %s10 = scalar_select 0, %s9, %s7
  loop: start=0, step=1, limit=4
  $region2: #{encoder_forward.9} parent=0 // loop_pre_header
    _
  $region3: #{encoder_forward.9} parent=0 // loop_header
    %s12 = sphi 0, %s16
    %p13 = scmp.ge.s32.totalorder %s12, 4
    %s20 = sphi 0, %s20
    %s22 = sphi 0, %s20
    %s23 = sphi 0, %s22
    %s37 = sphi 0, %s23
    %s41 = sphi 0, %s41
    %s43 = sphi 0, %s41
    %s44 = sphi 0, %s43
    %s58 = sphi 0, %s44
    %s62 = sphi 0, %s62
    %s64 = sphi 0, %s62
    %s65 = sphi 0, %s64
    %s79 = sphi 0, %s65
    %s83 = sphi 0, %s83
    %s85 = sphi 0, %s83
    %s86 = sphi 0, %s85
    %s100 = sphi 0, %s86
    %s104 = sphi 0, %s104
    %s106 = sphi 0, %s104
    %s107 = sphi 0, %s106
    %s121 = sphi 0, %s107
    %s127 = sphi 0, %s129
    %s130 = sphi 0, %s127
    %s131 = sphi 0, %s130
    %s147 = sphi 0, %s131
    %s153 = sphi 0, %s155
    %s156 = sphi 0, %s153
    %s157 = sphi 0, %s156
    %s173 = sphi 0, %s157
  $region4: #{encoder_forward.9} parent=0 // loop_header_branch
    %15 = sbr.rel (%p13) target = $region8
  $region5: #{encoder_forward.9} parent=0 // loop_body
    %s17 = ssub.s32 %s12, 1
    %s18 = ssub.s32 %s12, 2
    %s19 = sadd.s32 %s12, 1
    %s21 = sadd.s32 %s20, 1
    %p24 = scmp.eq.s32.totalorder %s12, 1
    %p25 = scmp.ne.s32.totalorder %s20, %s22
    %p26 = scmp.eq.s32.totalorder %s12, 0
    %p27 = por %p25, %p26
    %p28 = scmp.ne.s32.totalorder %s20, %s22
    %p29 = scmp.eq.s32.totalorder %s17, 1
    %p30 = por %p28, %p29
    %p31 = scmp.ne.s32.totalorder %s22, %s23
    %p32 = scmp.eq.s32.totalorder %s17, 0
    %p33 = por %p31, %p32
    %p34 = scmp.ne.s32.totalorder %s22, %s23
    %p35 = scmp.eq.s32.totalorder %s18, 1
    %p36 = por %p34, %p35
    %p38 = scmp.ne.s32.totalorder %s23, %s37
    %p39 = scmp.eq.s32.totalorder %s18, 0
    %p40 = por %p38, %p39
    %s42 = sadd.s32 %s41, 1
    %p45 = scmp.eq.s32.totalorder %s12, 1
    %p46 = scmp.ne.s32.totalorder %s41, %s43
    %p47 = scmp.eq.s32.totalorder %s12, 0
    %p48 = por %p46, %p47
    %p49 = scmp.ne.s32.totalorder %s41, %s43
    %p50 = scmp.eq.s32.totalorder %s17, 1
    %p51 = por %p49, %p50
    %p52 = scmp.ne.s32.totalorder %s43, %s44
    %p53 = scmp.eq.s32.totalorder %s17, 0
    %p54 = por %p52, %p53
    %p55 = scmp.ne.s32.totalorder %s43, %s44
    %p56 = scmp.eq.s32.totalorder %s18, 1
    %p57 = por %p55, %p56
    %p59 = scmp.ne.s32.totalorder %s44, %s58
    %p60 = scmp.eq.s32.totalorder %s18, 0
    %p61 = por %p59, %p60
    %s63 = sadd.s32 %s62, 1
    %p66 = scmp.eq.s32.totalorder %s12, 1
    %p67 = scmp.ne.s32.totalorder %s62, %s64
    %p68 = scmp.eq.s32.totalorder %s12, 0
    %p69 = por %p67, %p68
    %p70 = scmp.ne.s32.totalorder %s62, %s64
    %p71 = scmp.eq.s32.totalorder %s17, 1
    %p72 = por %p70, %p71
    %p73 = scmp.ne.s32.totalorder %s64, %s65
    %p74 = scmp.eq.s32.totalorder %s17, 0
    %p75 = por %p73, %p74
    %p76 = scmp.ne.s32.totalorder %s64, %s65
    %p77 = scmp.eq.s32.totalorder %s18, 1
    %p78 = por %p76, %p77
    %p80 = scmp.ne.s32.totalorder %s65, %s79
    %p81 = scmp.eq.s32.totalorder %s18, 0
    %p82 = por %p80, %p81
    %s84 = sadd.s32 %s83, 1
    %p87 = scmp.eq.s32.totalorder %s12, 1
    %p88 = scmp.ne.s32.totalorder %s83, %s85
    %p89 = scmp.eq.s32.totalorder %s12, 0
    %p90 = por %p88, %p89
    %p91 = scmp.ne.s32.totalorder %s83, %s85
    %p92 = scmp.eq.s32.totalorder %s17, 1
    %p93 = por %p91, %p92
    %p94 = scmp.ne.s32.totalorder %s85, %s86
    %p95 = scmp.eq.s32.totalorder %s17, 0
    %p96 = por %p94, %p95
    %p97 = scmp.ne.s32.totalorder %s85, %s86
    %p98 = scmp.eq.s32.totalorder %s18, 1
    %p99 = por %p97, %p98
    %p101 = scmp.ne.s32.totalorder %s86, %s100
    %p102 = scmp.eq.s32.totalorder %s18, 0
    %p103 = por %p101, %p102
    %s105 = sadd.s32 %s104, 1
    %p108 = scmp.eq.s32.totalorder %s12, 1
    %p109 = scmp.ne.s32.totalorder %s104, %s106
    %p110 = scmp.eq.s32.totalorder %s12, 0
    %p111 = por %p109, %p110
    %p112 = scmp.ne.s32.totalorder %s104, %s106
    %p113 = scmp.eq.s32.totalorder %s17, 1
    %p114 = por %p112, %p113
    %p115 = scmp.ne.s32.totalorder %s106, %s107
    %p116 = scmp.eq.s32.totalorder %s17, 0
    %p117 = por %p115, %p116
    %p118 = scmp.ne.s32.totalorder %s106, %s107
    %p119 = scmp.eq.s32.totalorder %s18, 1
    %p120 = por %p118, %p119
    %p122 = scmp.ne.s32.totalorder %s107, %s121
    %p123 = scmp.eq.s32.totalorder %s18, 0
    %p124 = por %p122, %p123
    %s125 = ssub.s32 %s12, %s19
    %p126 = scmp.eq.s32.totalorder %s125, 0
    %s128 = sadd.s32 %s127, 1
    %s129 = scalar_select %p126, %s127, %s128
    %p132 = pneg %p126
    %p133 = scmp.eq.s32.totalorder %s12, 1
    %p134 = por %p132, %p133
    %p135 = scmp.ne.s32.totalorder %s127, %s130
    %p136 = scmp.eq.s32.totalorder %s12, 0
    %p137 = por %p135, %p136
    %p138 = scmp.ne.s32.totalorder %s127, %s130
    %p139 = scmp.eq.s32.totalorder %s17, 1
    %p140 = por %p138, %p139
    %p141 = scmp.ne.s32.totalorder %s130, %s131
    %p142 = scmp.eq.s32.totalorder %s17, 0
    %p143 = por %p141, %p142
    %p144 = scmp.ne.s32.totalorder %s130, %s131
    %p145 = scmp.eq.s32.totalorder %s18, 1
    %p146 = por %p144, %p145
    %p148 = scmp.ne.s32.totalorder %s131, %s147
    %p149 = scmp.eq.s32.totalorder %s18, 0
    %p150 = por %p148, %p149
    %s151 = ssub.s32 %s12, %s19
    %p152 = scmp.eq.s32.totalorder %s151, 0
    %s154 = sadd.s32 %s153, 1
    %s155 = scalar_select %p152, %s153, %s154
    %p158 = pneg %p152
    %p159 = scmp.eq.s32.totalorder %s12, 1
    %p160 = por %p158, %p159
    %p161 = scmp.ne.s32.totalorder %s153, %s156
    %p162 = scmp.eq.s32.totalorder %s12, 0
    %p163 = por %p161, %p162
    %p164 = scmp.ne.s32.totalorder %s153, %s156
    %p165 = scmp.eq.s32.totalorder %s17, 1
    %p166 = por %p164, %p165
    %p167 = scmp.ne.s32.totalorder %s156, %s157
    %p168 = scmp.eq.s32.totalorder %s17, 0
    %p169 = por %p167, %p168
    %p170 = scmp.ne.s32.totalorder %s156, %s157
    %p171 = scmp.eq.s32.totalorder %s18, 1
    %p172 = por %p170, %p171
    %p174 = scmp.ne.s32.totalorder %s157, %s173
    %p175 = scmp.eq.s32.totalorder %s18, 0
    %p176 = por %p174, %p175
    %p177 = scmp.le.s32.totalorder 1, %s12
    %p178 = scmp.lt.s32.totalorder %s12, 3
    %p179 = pnand %p177, %p178
    %p180 = pneg %p179
    // Predicated region
    $region9: #{encoder_forward.9} parent=5 // pred_check
      _
    $region10: #{encoder_forward.9} parent=5 // pred_check_branch
      %182 = sbr.rel (%p179) target = $region12
    $region11: #{encoder_forward.9} parent=5 // pred_region
      %s183 = ssub.s32 %s12, 1
      // Predicated region
      $region13: #{encoder_forward.9} parent=11 // pred_check
        %p184 = pneg %p33
      $region14: #{encoder_forward.9} parent=11 // pred_check_branch
        %186 = sbr.rel (%p184) target = $region16
      $region15: #{encoder_forward.9} parent=11 // pred_region
        _
      $region16: #{encoder_forward.9} parent=11 // pred_fallthru
        _
      // Predicated region
      $region17: #{encoder_forward.9} parent=11 // pred_check
        %p187 = pneg %p54
      $region18: #{encoder_forward.9} parent=11 // pred_check_branch
        %189 = sbr.rel (%p187) target = $region20
      $region19: #{encoder_forward.9} parent=11 // pred_region
        _
      $region20: #{encoder_forward.9} parent=11 // pred_fallthru
        _
      // Predicated region
      $region21: #{encoder_forward.9} parent=11 // pred_check
        %p190 = pneg %p75
      $region22: #{encoder_forward.9} parent=11 // pred_check_branch
        %192 = sbr.rel (%p190) target = $region24
      $region23: #{encoder_forward.9} parent=11 // pred_region
        _
      $region24: #{encoder_forward.9} parent=11 // pred_fallthru
        _
      // Predicated region
      $region25: #{encoder_forward.9} parent=11 // pred_check
        %p193 = pneg %p96
      $region26: #{encoder_forward.9} parent=11 // pred_check_branch
        %195 = sbr.rel (%p193) target = $region28
      $region27: #{encoder_forward.9} parent=11 // pred_region
        _
      $region28: #{encoder_forward.9} parent=11 // pred_fallthru
        _
      // Predicated region
      $region29: #{encoder_forward.9} parent=11 // pred_check
        %p196 = pneg %p117
      $region30: #{encoder_forward.9} parent=11 // pred_check_branch
        %198 = sbr.rel (%p196) target = $region32
      $region31: #{encoder_forward.9} parent=11 // pred_region
        _
      $region32: #{encoder_forward.9} parent=11 // pred_fallthru
        _
    $region12: #{encoder_forward.9} parent=5 // pred_fallthru
      _
    %p199 = scmp.lt.s32.totalorder %s12, 2
    // Predicated region
    $region33: #{encoder_forward.9} parent=5 // pred_check
      %p200 = pneg %p199
    $region34: #{encoder_forward.9} parent=5 // pred_check_branch
      %202 = sbr.rel (%p200) target = $region36
    $region35: #{encoder_forward.9} parent=5 // pred_region
      // Predicated region
      $region37: #{encoder_forward.9} parent=35 // pred_check
        %p203 = pneg %p137
      $region38: #{encoder_forward.9} parent=35 // pred_check_branch
        %205 = sbr.rel (%p203) target = $region40
      $region39: #{encoder_forward.9} parent=35 // pred_region
        %p206 = scmp.lt.s32.totalorder %s12, 1
        %s207 = scalar_select %p206, %s12, 1
        %s208 = smul.addr %s207, 48
        %s209 = smul.addr %s208, 8
        %s210 = scalar_lea.vmem %s5, %s209
      $region40: #{encoder_forward.9} parent=35 // pred_fallthru
        _
    $region36: #{encoder_forward.9} parent=5 // pred_fallthru
      _
    %p211 = scmp.le.s32.totalorder 1, %s12
    %p212 = scmp.lt.s32.totalorder %s12, 3
    %p213 = pnand %p211, %p212
    %p214 = pneg %p213
    // Predicated region
    $region41: #{encoder_forward.9} parent=5 // pred_check
      _
    $region42: #{encoder_forward.9} parent=5 // pred_check_branch
      %216 = sbr.rel (%p213) target = $region44
    $region43: #{encoder_forward.9} parent=5 // pred_region
      %s217 = ssub.s32 %s12, 1
      %p218 = pneg %p33
      %p219 = pneg %p30
      %p220 = pneg %p54
      %p221 = pneg %p51
      %p222 = pneg %p75
      %p223 = pneg %p72
      %p224 = pneg %p96
      %p225 = pneg %p93
      %p226 = pneg %p117
      %p227 = pneg %p114
      %p228 = scmp.lt.s32.totalorder %s17, 1
      %s229 = scalar_select %p228, %s17, 1
      %s230 = smul.addr %s229, 48
      %s231 = smul.addr %s230, 8
      %s232 = scalar_lea.vmem %s5, %s231
      %p233 = pneg %p143
      %p234 = pneg %p140
      %p235 = pneg %p169
      %p236 = pneg %p166
      %p237 = scmp.lt.s32.totalorder %s17, 1
      %s238 = scalar_select %p237, %s17, 1
      %s239 = smul.addr %s238, 8
      %s240 = smul.addr %s239, 8
      %s241 = scalar_lea.vmem %s6, %s240
      %p242 = scmp.lt.s32.totalorder %s17, 1
      %s243 = scalar_select %p242, %s17, 1
      %s244 = smul.addr %s243, 48
      %s245 = smul.addr %s244, 8
      %s246 = scalar_lea.vmem %s5, %s245
      %p247 = scmp.lt.s32.totalorder %s17, 1
      %s248 = scalar_select %p247, %s17, 1
      %s249 = smul.addr %s248, 8
      %s250 = smul.addr %s249, 8
      %s251 = scalar_lea.vmem %s6, %s250
      %v252 = vld [vmem:[%s246] sm:$0xff]
      %v253 = vld [vmem:[%s246 + $0x8] sm:$0xff]
      %v254 = vld [vmem:[%s246 + $0x10] sm:$0xff]
      %v255 = vld [vmem:[%s246 + $0x18] sm:$0xff]
      %v256 = vld [vmem:[%s246 + $0x20] sm:$0xff]
      %v257 = vld [vmem:[%s246 + $0x28] sm:$0xff]
      %v258 = vld [vmem:[%s246 + $0x30] sm:$0xff]
      %v259 = vld [vmem:[%s246 + $0x38] sm:$0xff]
      %v260 = vld [vmem:[%s246 + $0x40] sm:$0xff]
      %v261 = vld [vmem:[%s246 + $0x48] sm:$0xff]
      %v262 = vld [vmem:[%s246 + $0x50] sm:$0xff]
      %v263 = vld [vmem:[%s246 + $0x58] sm:$0xff]
      %v264 = vld [vmem:[%s246 + $0x60] sm:$0xff]
      %v265 = vld [vmem:[%s246 + $0x68] sm:$0xff]
      %v266 = vld [vmem:[%s246 + $0x70] sm:$0xff]
      %v267 = vld [vmem:[%s246 + $0x78] sm:$0xff]
      %v268 = vld [vmem:[%s246 + $0x80] sm:$0xff]
      %v269 = vld [vmem:[%s246 + $0x88] sm:$0xff]
      %v270 = vld [vmem:[%s246 + $0x90] sm:$0xff]
      %v271 = vld [vmem:[%s246 + $0x98] sm:$0xff]
      %v272 = vld [vmem:[%s246 + $0xa0] sm:$0xff]
      %v273 = vld [vmem:[%s246 + $0xa8] sm:$0xff]
      %v274 = vld [vmem:[%s246 + $0xb0] sm:$0xff]
      %v275 = vld [vmem:[%s246 + $0xb8] sm:$0xff]
      %v276 = vld [vmem:[%s246 + $0xc0] sm:$0xff]
      %v277 = vld [vmem:[%s246 + $0xc8] sm:$0xff]
      %v278 = vld [vmem:[%s246 + $0xd0] sm:$0xff]
      %v279 = vld [vmem:[%s246 + $0xd8] sm:$0xff]
      %v280 = vld [vmem:[%s246 + $0xe0] sm:$0xff]
      %v281 = vld [vmem:[%s246 + $0xe8] sm:$0xff]
      %v282 = vld [vmem:[%s246 + $0xf0] sm:$0xff]
      %v283 = vld [vmem:[%s246 + $0xf8] sm:$0xff]
      %v284 = vld [vmem:[%s246 + $0x100] sm:$0xff]
      %v285 = vld [vmem:[%s246 + $0x108] sm:$0xff]
      %v286 = vld [vmem:[%s246 + $0x110] sm:$0xff]
      %v287 = vld [vmem:[%s246 + $0x118] sm:$0xff]
      %v288 = vld [vmem:[%s246 + $0x120] sm:$0xff]
      %v289 = vld [vmem:[%s246 + $0x128] sm:$0xff]
      %v290 = vld [vmem:[%s246 + $0x130] sm:$0xff]
      %v291 = vld [vmem:[%s246 + $0x138] sm:$0xff]
      %v292 = vld [vmem:[%s246 + $0x140] sm:$0xff]
      %v293 = vld [vmem:[%s246 + $0x148] sm:$0xff]
      %v294 = vld [vmem:[%s246 + $0x150] sm:$0xff]
      %v295 = vld [vmem:[%s246 + $0x158] sm:$0xff]
      %v296 = vld [vmem:[%s246 + $0x160] sm:$0xff]
      %v297 = vld [vmem:[%s246 + $0x168] sm:$0xff]
      %v298 = vld [vmem:[%s246 + $0x170] sm:$0xff]
      %v299 = vld [vmem:[%s246 + $0x178] sm:$0xff]
      %v300 = vld [vmem:[%s0] sm:$0xff]
      %v301 = vld [vmem:[%s0 + $0x8] sm:$0xff]
      %v302 = vld [vmem:[%s0 + $0x10] sm:$0xff]
      %v303 = vld [vmem:[%s0 + $0x18] sm:$0xff]
      %v304 = vld [vmem:[%s0 + $0x20] sm:$0xff]
      %v305 = vld [vmem:[%s0 + $0x28] sm:$0xff]
      %v306 = vld [vmem:[%s0 + $0x30] sm:$0xff]
      %v307 = vld [vmem:[%s0 + $0x38] sm:$0xff]
      %v308 = vld [vmem:[%s0 + $0x40] sm:$0xff]
      %v309 = vld [vmem:[%s0 + $0x48] sm:$0xff]
      %v310 = vld [vmem:[%s0 + $0x50] sm:$0xff]
      %v311 = vld [vmem:[%s0 + $0x58] sm:$0xff]
      %v312 = vld [vmem:[%s0 + $0x60] sm:$0xff]
      %v313 = vld [vmem:[%s0 + $0x68] sm:$0xff]
      %v314 = vld [vmem:[%s0 + $0x70] sm:$0xff]
      %v315 = vld [vmem:[%s0 + $0x78] sm:$0xff]
      %v316 = vld [vmem:[%s0 + $0x80] sm:$0xff]
      %v317 = vld [vmem:[%s0 + $0x88] sm:$0xff]
      %v318 = vld [vmem:[%s0 + $0x90] sm:$0xff]
      %v319 = vld [vmem:[%s0 + $0x98] sm:$0xff]
      %v320 = vld [vmem:[%s0 + $0xa0] sm:$0xff]
      %v321 = vld [vmem:[%s0 + $0xa8] sm:$0xff]
      %v322 = vld [vmem:[%s0 + $0xb0] sm:$0xff]
      %v323 = vld [vmem:[%s0 + $0xb8] sm:$0xff]
      %v324 = vld [vmem:[%s0 + $0xc0] sm:$0xff]
      %v325 = vld [vmem:[%s0 + $0xc8] sm:$0xff]
      %v326 = vld [vmem:[%s0 + $0xd0] sm:$0xff]
      %v327 = vld [vmem:[%s0 + $0xd8] sm:$0xff]
      %v328 = vld [vmem:[%s0 + $0xe0] sm:$0xff]
      %v329 = vld [vmem:[%s0 + $0xe8] sm:$0xff]
      %v330 = vld [vmem:[%s0 + $0xf0] sm:$0xff]
      %v331 = vld [vmem:[%s0 + $0xf8] sm:$0xff]
      %v332 = vld [vmem:[%s0 + $0x100] sm:$0xff]
      %v333 = vld [vmem:[%s0 + $0x108] sm:$0xff]
      %v334 = vld [vmem:[%s0 + $0x110] sm:$0xff]
      %v335 = vld [vmem:[%s0 + $0x118] sm:$0xff]
      %v336 = vld [vmem:[%s0 + $0x120] sm:$0xff]
      %v337 = vld [vmem:[%s0 + $0x128] sm:$0xff]
      %v338 = vld [vmem:[%s0 + $0x130] sm:$0xff]
      %v339 = vld [vmem:[%s0 + $0x138] sm:$0xff]
      %v340 = vld [vmem:[%s0 + $0x140] sm:$0xff]
      %v341 = vld [vmem:[%s0 + $0x148] sm:$0xff]
      %v342 = vld [vmem:[%s0 + $0x150] sm:$0xff]
      %v343 = vld [vmem:[%s0 + $0x158] sm:$0xff]
      %v344 = vld [vmem:[%s0 + $0x160] sm:$0xff]
      %v345 = vld [vmem:[%s0 + $0x168] sm:$0xff]
      %v346 = vld [vmem:[%s0 + $0x170] sm:$0xff]
      %v347 = vld [vmem:[%s0 + $0x178] sm:$0xff]
      %v348 = vld [vmem:[%s1] sm:$0xff]
      %v349 = vld [vmem:[%s1 + $0x8] sm:$0xff]
      %v350 = vld [vmem:[%s1 + $0x10] sm:$0xff]
      %v351 = vld [vmem:[%s1 + $0x18] sm:$0xff]
      %v352 = vld [vmem:[%s1 + $0x20] sm:$0xff]
      %v353 = vld [vmem:[%s1 + $0x28] sm:$0xff]
      %v354 = vld [vmem:[%s1 + $0x30] sm:$0xff]
      %v355 = vld [vmem:[%s1 + $0x38] sm:$0xff]
      %v356 = vld [vmem:[%s1 + $0x40] sm:$0xff]
      %v357 = vld [vmem:[%s1 + $0x48] sm:$0xff]
      %v358 = vld [vmem:[%s1 + $0x50] sm:$0xff]
      %v359 = vld [vmem:[%s1 + $0x58] sm:$0xff]
      %v360 = vld [vmem:[%s1 + $0x60] sm:$0xff]
      %v361 = vld [vmem:[%s1 + $0x68] sm:$0xff]
      %v362 = vld [vmem:[%s1 + $0x70] sm:$0xff]
      %v363 = vld [vmem:[%s1 + $0x78] sm:$0xff]
      %365 = vset.pattern.permute.xlu0 0
      %366 = vperm.xlu0 %365, %v348
      %v367 = vpop.permute.xlu0 %366
      %370 = vset.pattern.permute.xlu0 0
      %371 = vperm.xlu0 %370, %v349
      %v372 = vpop.permute.xlu0 %371
      %375 = vset.pattern.permute.xlu0 0
      %376 = vperm.xlu0 %375, %v350
      %v377 = vpop.permute.xlu0 %376
      %380 = vset.pattern.permute.xlu0 0
      %381 = vperm.xlu0 %380, %v351
      %v382 = vpop.permute.xlu0 %381
      %385 = vset.pattern.permute.xlu0 0
      %386 = vperm.xlu0 %385, %v352
      %v387 = vpop.permute.xlu0 %386
      %390 = vset.pattern.permute.xlu0 0
      %391 = vperm.xlu0 %390, %v353
      %v392 = vpop.permute.xlu0 %391
      %395 = vset.pattern.permute.xlu0 0
      %396 = vperm.xlu0 %395, %v354
      %v397 = vpop.permute.xlu0 %396
      %400 = vset.pattern.permute.xlu0 0
      %401 = vperm.xlu0 %400, %v355
      %v402 = vpop.permute.xlu0 %401
      %405 = vset.pattern.permute.xlu0 0
      %406 = vperm.xlu0 %405, %v356
      %v407 = vpop.permute.xlu0 %406
      %410 = vset.pattern.permute.xlu0 0
      %411 = vperm.xlu0 %410, %v357
      %v412 = vpop.permute.xlu0 %411
      %415 = vset.pattern.permute.xlu0 0
      %416 = vperm.xlu0 %415, %v358
      %v417 = vpop.permute.xlu0 %416
      %420 = vset.pattern.permute.xlu0 0
      %421 = vperm.xlu0 %420, %v359
      %v422 = vpop.permute.xlu0 %421
      %425 = vset.pattern.permute.xlu0 0
      %426 = vperm.xlu0 %425, %v360
      %v427 = vpop.permute.xlu0 %426
      %430 = vset.pattern.permute.xlu0 0
      %431 = vperm.xlu0 %430, %v361
      %v432 = vpop.permute.xlu0 %431
      %435 = vset.pattern.permute.xlu0 0
      %436 = vperm.xlu0 %435, %v362
      %v437 = vpop.permute.xlu0 %436
      %440 = vset.pattern.permute.xlu0 0
      %441 = vperm.xlu0 %440, %v363
      %v442 = vpop.permute.xlu0 %441
      %444 = vmatprep.subr.mxu0 0.0
      %445 = vmatpush1.msra.mxu0 %v252
      %446 = vmatprep.subr.mxu0 0.0
      %447 = vmatpush1.msra.mxu0 %v253
      %448 = vmatprep.subr.mxu0 0.0
      %449 = vmatpush1.msra.mxu0 %v254
      %450 = vmatprep.subr.mxu0 0.0
      %451 = vmatpush1.msra.mxu0 %v255
      %452 = vmatprep.subr.mxu0 0.0
      %453 = vmatpush1.msra.mxu0 %v256
      %454 = vmatprep.subr.mxu0 0.0
      %455 = vmatpush1.msra.mxu0 %v257
      %456 = vmatprep.subr.mxu0 0.0
      %457 = vmatpush1.msra.mxu0 %v258
      %458 = vmatprep.subr.mxu0 0.0
      %459 = vmatpush1.msra.mxu0 %v259
      %460 = vmatprep.subr.mxu0 0.0
      %461 = vmatpush1.msra.mxu0 %v260
      %462 = vmatprep.subr.mxu0 0.0
      %463 = vmatpush1.msra.mxu0 %v261
      %464 = vmatprep.subr.mxu0 0.0
      %465 = vmatpush1.msra.mxu0 %v262
      %466 = vmatprep.subr.mxu0 0.0
      %467 = vmatpush1.msra.mxu0 %v263
      %468 = vmatprep.subr.mxu0 0.0
      %469 = vmatpush1.msra.mxu0 %v264
      %470 = vmatprep.subr.mxu0 0.0
      %471 = vmatpush1.msra.mxu0 %v265
      %472 = vmatprep.subr.mxu0 0.0
      %473 = vmatpush1.msra.mxu0 %v266
      %474 = vmatprep.subr.mxu0 0.0
      %475 = vmatpush1.msra.mxu0 %v267
      %476 = vmatprep.subr.mxu0 0.0
      %477 = vmatpush1.msra.mxu0 %v268
      %478 = vmatprep.subr.mxu0 0.0
      %479 = vmatpush1.msra.mxu0 %v269
      %480 = vmatprep.subr.mxu0 0.0
      %481 = vmatpush1.msra.mxu0 %v270
      %482 = vmatprep.subr.mxu0 0.0
      %483 = vmatpush1.msra.mxu0 %v271
      %484 = vmatprep.subr.mxu0 0.0
      %485 = vmatpush1.msra.mxu0 %v272
      %486 = vmatprep.subr.mxu0 0.0
      %487 = vmatpush1.msra.mxu0 %v273
      %488 = vmatprep.subr.mxu0 0.0
      %489 = vmatpush1.msra.mxu0 %v274
      %490 = vmatprep.subr.mxu0 0.0
      %491 = vmatpush1.msra.mxu0 %v275
      %492 = vmatprep.subr.mxu0 0.0
      %493 = vmatpush1.msra.mxu0 %v276
      %494 = vmatprep.subr.mxu0 0.0
      %495 = vmatpush1.msra.mxu0 %v277
      %496 = vmatprep.subr.mxu0 0.0
      %497 = vmatpush1.msra.mxu0 %v278
      %498 = vmatprep.subr.mxu0 0.0
      %499 = vmatpush1.msra.mxu0 %v279
      %500 = vmatprep.subr.mxu0 0.0
      %501 = vmatpush1.msra.mxu0 %v280
      %502 = vmatprep.subr.mxu0 0.0
      %503 = vmatpush1.msra.mxu0 %v281
      %504 = vmatprep.subr.mxu0 0.0
      %505 = vmatpush1.msra.mxu0 %v282
      %506 = vmatprep.subr.mxu0 0.0
      %507 = vmatpush1.msra.mxu0 %v283
      %508 = vmatprep.mubr.f32.mxu0 %v301
      %509 = vmatmul.mubr.f32.gmra.mrb[0].mxu0 %v300
      %v510 = vpop.f32.mrb[0].mxu0
      %v511 = vadd.f32 %v367, %v510
      %v512 = vpop.f32.mrb[0].mxu0
      %513 = vmatprep.mubr.f32.mxu0 %v304
      %514 = vmatmul.mubr.f32.gmra.mrb[0].mxu0 %v303
      %v515 = vpop.f32.mrb[0].mxu0
      %v516 = vadd.f32 %v372, %v515
      %v517 = vpop.f32.mrb[0].mxu0
      %518 = vmatprep.mubr.f32.mxu0 %v307
      %519 = vmatmul.mubr.f32.gmra.mrb[0].mxu0 %v306
      %v520 = vpop.f32.mrb[0].mxu0
      %v521 = vadd.f32 %v377, %v520
      %v522 = vpop.f32.mrb[0].mxu0
      %523 = vmatprep.mubr.f32.mxu0 %v310
      %524 = vmatmul.mubr.f32.gmra.mrb[0].mxu0 %v309
      %v525 = vpop.f32.mrb[0].mxu0
      %v526 = vadd.f32 %v382, %v525
      %v527 = vpop.f32.mrb[0].mxu0
      %528 = vmatprep.mubr.f32.mxu0 %v313
      %529 = vmatmul.mubr.f32.gmra.mrb[0].mxu0 %v312
      %v530 = vpop.f32.mrb[0].mxu0
      %v531 = vadd.f32 %v387, %v530
      %v532 = vpop.f32.mrb[0].mxu0
      %533 = vmatprep.mubr.f32.mxu0 %v316
      %534 = vmatmul.mubr.f32.gmra.mrb[0].mxu0 %v315
      %v535 = vpop.f32.mrb[0].mxu0
      %v536 = vadd.f32 %v392, %v535
      %v537 = vpop.f32.mrb[0].mxu0
      %538 = vmatprep.mubr.f32.mxu0 %v319
      %539 = vmatmul.mubr.f32.gmra.mrb[0].mxu0 %v318
      %v540 = vpop.f32.mrb[0].mxu0
      %v541 = vadd.f32 %v397, %v540
      %v542 = vpop.f32.mrb[0].mxu0
      %543 = vmatprep.mubr.f32.mxu0 %v322
      %544 = vmatmul.mubr.f32.gmra.mrb[0].mxu0 %v321
      %v545 = vpop.f32.mrb[0].mxu0
      %v546 = vadd.f32 %v402, %v545
      %v547 = vpop.f32.mrb[0].mxu0
      %548 = vmatprep.mubr.f32.mxu0 %v325
      %549 = vmatmul.mubr.f32.gmra.mrb[0].mxu0 %v324
      %v550 = vpop.f32.mrb[0].mxu0
      %v551 = vadd.f32 %v407, %v550
      %v552 = vpop.f32.mrb[0].mxu0
      %553 = vmatprep.mubr.f32.mxu0 %v328
      %554 = vmatmul.mubr.f32.gmra.mrb[0].mxu0 %v327
      %v555 = vpop.f32.mrb[0].mxu0
      %v556 = vadd.f32 %v412, %v555
      %v557 = vpop.f32.mrb[0].mxu0
      %558 = vmatprep.mubr.f32.mxu0 %v331
      %559 = vmatmul.mubr.f32.gmra.mrb[0].mxu0 %v330
      %v560 = vpop.f32.mrb[0].mxu0
      %v561 = vadd.f32 %v417, %v560
      %v562 = vpop.f32.mrb[0].mxu0
      %563 = vmatprep.mubr.f32.mxu0 %v334
      %564 = vmatmul.mubr.f32.gmra.mrb[0].mxu0 %v333
      %v565 = vpop.f32.mrb[0].mxu0
      %v566 = vadd.f32 %v422, %v565
      %v567 = vpop.f32.mrb[0].mxu0
      %568 = vmatprep.mubr.f32.mxu0 %v337
      %569 = vmatmul.mubr.f32.gmra.mrb[0].mxu0 %v336
      %v570 = vpop.f32.mrb[0].mxu0
      %v571 = vadd.f32 %v427, %v570
      %v572 = vpop.f32.mrb[0].mxu0
      %573 = vmatprep.mubr.f32.mxu0 %v340
      %574 = vmatmul.mubr.f32.gmra.mrb[0].mxu0 %v339
      %v575 = vpop.f32.mrb[0].mxu0
      %v576 = vadd.f32 %v432, %v575
      %v577 = vpop.f32.mrb[0].mxu0
      %578 = vmatprep.mubr.f32.mxu0 %v343
      %579 = vmatmul.mubr.f32.gmra.mrb[0].mxu0 %v342
      %v580 = vpop.f32.mrb[0].mxu0
      %v581 = vadd.f32 %v437, %v580
      %v582 = vpop.f32.mrb[0].mxu0
      %583 = vmatprep.mubr.f32.mxu0 %v346
      %584 = vmatmul.mubr.f32.gmra.mrb[0].mxu0 %v345
      %v585 = vpop.f32.mrb[0].mxu0
      %v586 = vadd.f32 %v442, %v585
      %v587 = vpop.f32.mrb[0].mxu0
      %588 = vdwg.mxu0
      %589 = vmatprep.subr.mxu0 0.0
      %590 = vmatpush1.msra.mxu0 %v284
      %591 = vmatprep.subr.mxu0 0.0
      %592 = vmatpush1.msra.mxu0 %v285
      %593 = vmatprep.subr.mxu0 0.0
      %594 = vmatpush1.msra.mxu0 %v286
      %595 = vmatprep.subr.mxu0 0.0
      %596 = vmatpush1.msra.mxu0 %v287
      %597 = vmatprep.subr.mxu0 0.0
      %598 = vmatpush1.msra.mxu0 %v288
      %599 = vmatprep.subr.mxu0 0.0
      %600 = vmatpush1.msra.mxu0 %v289
      %601 = vmatprep.subr.mxu0 0.0
      %602 = vmatpush1.msra.mxu0 %v290
      %603 = vmatprep.subr.mxu0 0.0
      %604 = vmatpush1.msra.mxu0 %v291
      %605 = vmatprep.subr.mxu0 0.0
      %606 = vmatpush1.msra.mxu0 %v292
      %607 = vmatprep.subr.mxu0 0.0
      %608 = vmatpush1.msra.mxu0 %v293
      %609 = vmatprep.subr.mxu0 0.0
      %610 = vmatpush1.msra.mxu0 %v294
      %611 = vmatprep.subr.mxu0 0.0
      %612 = vmatpush1.msra.mxu0 %v295
      %613 = vmatprep.subr.mxu0 0.0
      %614 = vmatpush1.msra.mxu0 %v296
      %615 = vmatprep.subr.mxu0 0.0
      %616 = vmatpush1.msra.mxu0 %v297
      %617 = vmatprep.subr.mxu0 0.0
      %618 = vmatpush1.msra.mxu0 %v298
      %619 = vmatprep.subr.mxu0 0.0
      %620 = vmatpush1.msra.mxu0 %v299
      %621 = vmatprep.subr.mxu0 0.0
      %622 = vmatpush1.msra.mxu0 0.0
      %623 = vmatprep.subr.mxu0 0.0
      %624 = vmatpush1.msra.mxu0 0.0
      %625 = vmatprep.subr.mxu0 0.0
      %626 = vmatpush1.msra.mxu0 0.0
      %627 = vmatprep.subr.mxu0 0.0
      %628 = vmatpush1.msra.mxu0 0.0
      %629 = vmatprep.subr.mxu0 0.0
      %630 = vmatpush1.msra.mxu0 0.0
      %631 = vmatprep.subr.mxu0 0.0
      %632 = vmatpush1.msra.mxu0 0.0
      %633 = vmatprep.subr.mxu0 0.0
      %634 = vmatpush1.msra.mxu0 0.0
      %635 = vmatprep.subr.mxu0 0.0
      %636 = vmatpush1.msra.mxu0 0.0
      %637 = vmatprep.subr.mxu0 0.0
      %638 = vmatpush1.msra.mxu0 0.0
      %639 = vmatprep.subr.mxu0 0.0
      %640 = vmatpush1.msra.mxu0 0.0
      %641 = vmatprep.subr.mxu0 0.0
      %642 = vmatpush1.msra.mxu0 0.0
      %643 = vmatprep.subr.mxu0 0.0
      %644 = vmatpush1.msra.mxu0 0.0
      %645 = vmatprep.subr.mxu0 0.0
      %646 = vmatpush1.msra.mxu0 0.0
      %647 = vmatprep.subr.mxu0 0.0
      %648 = vmatpush1.msra.mxu0 0.0
      %649 = vmatprep.subr.mxu0 0.0
      %650 = vmatpush1.msra.mxu0 0.0
      %651 = vmatprep.subr.mxu0 0.0
      %652 = vmatpush1.msra.mxu0 0.0
      %653 = vmatprep.mubr.f32.mxu0 0.0
      %654 = vmatmul.mubr.f32.gmra.mrb[0].mxu0 %v302
      %v655 = vpop.f32.mrb[0].mxu0
      %v656 = vadd.f32 %v511, %v655
      %v657 = vpop.f32.mrb[0].mxu0
      %658 = vmatprep.mubr.f32.mxu0 0.0
      %659 = vmatmul.mubr.f32.gmra.mrb[0].mxu0 %v305
      %v660 = vpop.f32.mrb[0].mxu0
      %v661 = vadd.f32 %v516, %v660
      %v662 = vpop.f32.mrb[0].mxu0
      %663 = vmatprep.mubr.f32.mxu0 0.0
      %664 = vmatmul.mubr.f32.gmra.mrb[0].mxu0 %v308
      %v665 = vpop.f32.mrb[0].mxu0
      %v666 = vadd.f32 %v521, %v665
      %v667 = vpop.f32.mrb[0].mxu0
      %668 = vmatprep.mubr.f32.mxu0 0.0
      %669 = vmatmul.mubr.f32.gmra.mrb[0].mxu0 %v311
      %v670 = vpop.f32.mrb[0].mxu0
      %v671 = vadd.f32 %v526, %v670
      %v672 = vpop.f32.mrb[0].mxu0
      %673 = vmatprep.mubr.f32.mxu0 0.0
      %674 = vmatmul.mubr.f32.gmra.mrb[0].mxu0 %v314
      %v675 = vpop.f32.mrb[0].mxu0
      %v676 = vadd.f32 %v531, %v675
      %v677 = vpop.f32.mrb[0].mxu0
      %678 = vmatprep.mubr.f32.mxu0 0.0
      %679 = vmatmul.mubr.f32.gmra.mrb[0].mxu0 %v317
      %v680 = vpop.f32.mrb[0].mxu0
      %v681 = vadd.f32 %v536, %v680
      %v682 = vpop.f32.mrb[0].mxu0
      %683 = vmatprep.mubr.f32.mxu0 0.0
      %684 = vmatmul.mubr.f32.gmra.mrb[0].mxu0 %v320
      %v685 = vpop.f32.mrb[0].mxu0
      %v686 = vadd.f32 %v541, %v685
      %v687 = vpop.f32.mrb[0].mxu0
      %688 = vmatprep.mubr.f32.mxu0 0.0
      %689 = vmatmul.mubr.f32.gmra.mrb[0].mxu0 %v323
      %v690 = vpop.f32.mrb[0].mxu0
      %v691 = vadd.f32 %v546, %v690
      %v692 = vpop.f32.mrb[0].mxu0
      %693 = vmatprep.mubr.f32.mxu0 0.0
      %694 = vmatmul.mubr.f32.gmra.mrb[0].mxu0 %v326
      %v695 = vpop.f32.mrb[0].mxu0
      %v696 = vadd.f32 %v551, %v695
      %v697 = vpop.f32.mrb[0].mxu0
      %698 = vmatprep.mubr.f32.mxu0 0.0
      %699 = vmatmul.mubr.f32.gmra.mrb[0].mxu0 %v329
      %v700 = vpop.f32.mrb[0].mxu0
      %v701 = vadd.f32 %v556, %v700
      %v702 = vpop.f32.mrb[0].mxu0
      %703 = vmatprep.mubr.f32.mxu0 0.0
      %704 = vmatmul.mubr.f32.gmra.mrb[0].mxu0 %v332
      %v705 = vpop.f32.mrb[0].mxu0
      %v706 = vadd.f32 %v561, %v705
      %v707 = vpop.f32.mrb[0].mxu0
      %708 = vmatprep.mubr.f32.mxu0 0.0
      %709 = vmatmul.mubr.f32.gmra.mrb[0].mxu0 %v335
      %v710 = vpop.f32.mrb[0].mxu0
      %v711 = vadd.f32 %v566, %v710
      %v712 = vpop.f32.mrb[0].mxu0
      %713 = vmatprep.mubr.f32.mxu0 0.0
      %714 = vmatmul.mubr.f32.gmra.mrb[0].mxu0 %v338
      %v715 = vpop.f32.mrb[0].mxu0
      %v716 = vadd.f32 %v571, %v715
      %v717 = vpop.f32.mrb[0].mxu0
      %718 = vmatprep.mubr.f32.mxu0 0.0
      %719 = vmatmul.mubr.f32.gmra.mrb[0].mxu0 %v341
      %v720 = vpop.f32.mrb[0].mxu0
      %v721 = vadd.f32 %v576, %v720
      %v722 = vpop.f32.mrb[0].mxu0
      %723 = vmatprep.mubr.f32.mxu0 0.0
      %724 = vmatmul.mubr.f32.gmra.mrb[0].mxu0 %v344
      %v725 = vpop.f32.mrb[0].mxu0
      %v726 = vadd.f32 %v581, %v725
      %v727 = vpop.f32.mrb[0].mxu0
      %728 = vmatprep.mubr.f32.mxu0 0.0
      %729 = vmatmul.mubr.f32.gmra.mrb[0].mxu0 %v347
      %v730 = vpop.f32.mrb[0].mxu0
      %v731 = vadd.f32 %v586, %v730
      %v732 = vpop.f32.mrb[0].mxu0
      %733 = vdwg.mxu0
      %v734 = vsub.f32 0.0, %v696
      %v735 = vsub.f32 0.0, %v701
      %v736 = vsub.f32 0.0, %v706
      %v737 = vsub.f32 0.0, %v711
      %v738 = vsub.f32 0.0, %v716
      %v739 = vsub.f32 0.0, %v721
      %v740 = vsub.f32 0.0, %v726
      %v741 = vsub.f32 0.0, %v731
      %v742 = vmul.f32 %v734, 1.442695
      %v743 = vpow.pop %v742
      %v744 = vmul.f32 %v735, 1.442695
      %v745 = vpow.pop %v744
      %v746 = vmul.f32 %v736, 1.442695
      %v747 = vpow.pop %v746
      %v748 = vmul.f32 %v737, 1.442695
      %v749 = vpow.pop %v748
      %v750 = vmul.f32 %v738, 1.442695
      %v751 = vpow.pop %v750
      %v752 = vmul.f32 %v739, 1.442695
      %v753 = vpow.pop %v752
      %v754 = vmul.f32 %v740, 1.442695
      %v755 = vpow.pop %v754
      %v756 = vmul.f32 %v741, 1.442695
      %v757 = vpow.pop %v756
      %v758 = vadd.f32 %v743, 1.0
      %v759 = vadd.f32 %v745, 1.0
      %v760 = vadd.f32 %v747, 1.0
      %v761 = vadd.f32 %v749, 1.0
      %v762 = vadd.f32 %v751, 1.0
      %v763 = vadd.f32 %v753, 1.0
      %v764 = vadd.f32 %v755, 1.0
      %v765 = vadd.f32 %v757, 1.0
      %v766 = vrcp.pop %v758
      %v767 = vmul.f32 1.0, %v766
      %v768 = vrcp.pop %v759
      %v769 = vmul.f32 1.0, %v768
      %v770 = vrcp.pop %v760
      %v771 = vmul.f32 1.0, %v770
      %v772 = vrcp.pop %v761
      %v773 = vmul.f32 1.0, %v772
      %v774 = vrcp.pop %v762
      %v775 = vmul.f32 1.0, %v774
      %v776 = vrcp.pop %v763
      %v777 = vmul.f32 1.0, %v776
      %v778 = vrcp.pop %v764
      %v779 = vmul.f32 1.0, %v778
      %v780 = vrcp.pop %v765
      %v781 = vmul.f32 1.0, %v780
      %v782 = vmul.f32 %v656, %v767
      %v783 = vmul.f32 %v661, %v769
      %v784 = vmul.f32 %v666, %v771
      %v785 = vmul.f32 %v671, %v773
      %v786 = vmul.f32 %v676, %v775
      %v787 = vmul.f32 %v681, %v777
      %v788 = vmul.f32 %v686, %v779
      %v789 = vmul.f32 %v691, %v781
      %vm790 = vcmask 261120
      %v791 = vsel %vm790, %v782, 0.0
      %792 = vadd.xlane.f32.xlu0 %v791
      %v793 = vpop.xlane.xlu0 %792
      %v794 = vsel %vm790, %v783, 0.0
      %795 = vadd.xlane.f32.xlu0 %v794
      %v796 = vpop.xlane.xlu0 %795
      %v797 = vsel %vm790, %v784, 0.0
      %798 = vadd.xlane.f32.xlu0 %v797
      %v799 = vpop.xlane.xlu0 %798
      %v800 = vsel %vm790, %v785, 0.0
      %801 = vadd.xlane.f32.xlu0 %v800
      %v802 = vpop.xlane.xlu0 %801
      %v803 = vsel %vm790, %v786, 0.0
      %804 = vadd.xlane.f32.xlu0 %v803
      %v805 = vpop.xlane.xlu0 %804
      %v806 = vsel %vm790, %v787, 0.0
      %807 = vadd.xlane.f32.xlu0 %v806
      %v808 = vpop.xlane.xlu0 %807
      %v809 = vsel %vm790, %v788, 0.0
      %810 = vadd.xlane.f32.xlu0 %v809
      %v811 = vpop.xlane.xlu0 %810
      %v812 = vsel %vm790, %v789, 0.0
      %813 = vadd.xlane.f32.xlu0 %v812
      %v814 = vpop.xlane.xlu0 %813
      %v815 = vrcp.pop 32.0
      %v816 = vmul.f32 %v793, %v815
      %v817 = vmul.f32 %v796, %v815
      %v818 = vmul.f32 %v799, %v815
      %v819 = vmul.f32 %v802, %v815
      %v820 = vmul.f32 %v805, %v815
      %v821 = vmul.f32 %v808, %v815
      %v822 = vmul.f32 %v811, %v815
      %v823 = vmul.f32 %v814, %v815
      %v824 = vsub.f32 %v782, %v816
      %v825 = vsub.f32 %v783, %v817
      %v826 = vsub.f32 %v784, %v818
      %v827 = vsub.f32 %v785, %v819
      %v828 = vsub.f32 %v786, %v820
      %v829 = vsub.f32 %v787, %v821
      %v830 = vsub.f32 %v788, %v822
      %v831 = vsub.f32 %v789, %v823
      %v832 = vmul.f32 %v824, %v824
      %v833 = vmul.f32 %v825, %v825
      %v834 = vmul.f32 %v826, %v826
      %v835 = vmul.f32 %v827, %v827
      %v836 = vmul.f32 %v828, %v828
      %v837 = vmul.f32 %v829, %v829
      %v838 = vmul.f32 %v830, %v830
      %v839 = vmul.f32 %v831, %v831
      %v840 = vsel %vm790, %v832, 0.0
      %841 = vadd.xlane.f32.xlu0 %v840
      %v842 = vpop.xlane.xlu0 %841
      %v843 = vsel %vm790, %v833, 0.0
      %844 = vadd.xlane.f32.xlu0 %v843
      %v845 = vpop.xlane.xlu0 %844
      %v846 = vsel %vm790, %v834, 0.0
      %847 = vadd.xlane.f32.xlu0 %v846
      %v848 = vpop.xlane.xlu0 %847
      %v849 = vsel %vm790, %v835, 0.0
      %850 = vadd.xlane.f32.xlu0 %v849
      %v851 = vpop.xlane.xlu0 %850
      %v852 = vsel %vm790, %v836, 0.0
      %853 = vadd.xlane.f32.xlu0 %v852
      %v854 = vpop.xlane.xlu0 %853
      %v855 = vsel %vm790, %v837, 0.0
      %856 = vadd.xlane.f32.xlu0 %v855
      %v857 = vpop.xlane.xlu0 %856
      %v858 = vsel %vm790, %v838, 0.0
      %859 = vadd.xlane.f32.xlu0 %v858
      %v860 = vpop.xlane.xlu0 %859
      %v861 = vsel %vm790, %v839, 0.0
      %862 = vadd.xlane.f32.xlu0 %v861
      %v863 = vpop.xlane.xlu0 %862
      %v864 = vmul.f32 %v842, %v815
      %v865 = vmul.f32 %v845, %v815
      %v866 = vmul.f32 %v848, %v815
      %v867 = vmul.f32 %v851, %v815
      %v868 = vmul.f32 %v854, %v815
      %v869 = vmul.f32 %v857, %v815
      %v870 = vmul.f32 %v860, %v815
      %v871 = vmul.f32 %v863, %v815
      %v872 = vadd.f32 %v864, 1e-05
      %v873 = vadd.f32 %v865, 1e-05
      %v874 = vadd.f32 %v866, 1e-05
      %v875 = vadd.f32 %v867, 1e-05
      %v876 = vadd.f32 %v868, 1e-05
      %v877 = vadd.f32 %v869, 1e-05
      %v878 = vadd.f32 %v870, 1e-05
      %v879 = vadd.f32 %v871, 1e-05
      %v880 = vrsqrt.pop %v872
      %v881 = vrsqrt.pop %v873
      %v882 = vrsqrt.pop %v874
      %v883 = vrsqrt.pop %v875
      %v884 = vrsqrt.pop %v876
      %v885 = vrsqrt.pop %v877
      %v886 = vrsqrt.pop %v878
      %v887 = vrsqrt.pop %v879
      %v888 = vmul.f32 %v824, %v880
      %v889 = vmul.f32 %v825, %v881
      %v890 = vmul.f32 %v826, %v882
      %v891 = vmul.f32 %v827, %v883
      %v892 = vmul.f32 %v828, %v884
      %v893 = vmul.f32 %v829, %v885
      %v894 = vmul.f32 %v830, %v886
      %v895 = vmul.f32 %v831, %v887
      %v896 = vld [vmem:[%s2] sm:$0xff]
      %v897 = vld [vmem:[%s2 + $0x8] sm:$0xff]
      %v898 = vld [vmem:[%s2 + $0x10] sm:$0xff]
      %v899 = vld [vmem:[%s2 + $0x18] sm:$0xff]
      %v900 = vld [vmem:[%s2 + $0x20] sm:$0xff]
      %v901 = vld [vmem:[%s2 + $0x28] sm:$0xff]
      %v902 = vld [vmem:[%s2 + $0x30] sm:$0xff]
      %v903 = vld [vmem:[%s2 + $0x38] sm:$0xff]
      %905 = vset.pattern.permute.xlu0 0
      %906 = vperm.xlu0 %905, %v896
      %v907 = vpop.permute.xlu0 %906
      %910 = vset.pattern.permute.xlu0 0
      %911 = vperm.xlu0 %910, %v897
      %v912 = vpop.permute.xlu0 %911
      %915 = vset.pattern.permute.xlu0 0
      %916 = vperm.xlu0 %915, %v898
      %v917 = vpop.permute.xlu0 %916
      %920 = vset.pattern.permute.xlu0 0
      %921 = vperm.xlu0 %920, %v899
      %v922 = vpop.permute.xlu0 %921
      %925 = vset.pattern.permute.xlu0 0
      %926 = vperm.xlu0 %925, %v900
      %v927 = vpop.permute.xlu0 %926
      %930 = vset.pattern.permute.xlu0 0
      %931 = vperm.xlu0 %930, %v901
      %v932 = vpop.permute.xlu0 %931
      %935 = vset.pattern.permute.xlu0 0
      %936 = vperm.xlu0 %935, %v902
      %v937 = vpop.permute.xlu0 %936
      %940 = vset.pattern.permute.xlu0 0
      %941 = vperm.xlu0 %940, %v903
      %v942 = vpop.permute.xlu0 %941
      %v944 = vmul.f32 %v888, %v907
      %v945 = vmul.f32 %v889, %v912
      %v946 = vmul.f32 %v890, %v917
      %v947 = vmul.f32 %v891, %v922
      %v948 = vmul.f32 %v892, %v927
      %v949 = vmul.f32 %v893, %v932
      %v950 = vmul.f32 %v894, %v937
      %v951 = vmul.f32 %v895, %v942
      %v952 = vld [vmem:[%s3] sm:$0xff]
      %v953 = vld [vmem:[%s3 + $0x8] sm:$0xff]
      %v954 = vld [vmem:[%s3 + $0x10] sm:$0xff]
      %v955 = vld [vmem:[%s3 + $0x18] sm:$0xff]
      %v956 = vld [vmem:[%s3 + $0x20] sm:$0xff]
      %v957 = vld [vmem:[%s3 + $0x28] sm:$0xff]
      %v958 = vld [vmem:[%s3 + $0x30] sm:$0xff]
      %v959 = vld [vmem:[%s3 + $0x38] sm:$0xff]
      %961 = vset.pattern.permute.xlu0 0
      %962 = vperm.xlu0 %961, %v952
      %v963 = vpop.permute.xlu0 %962
      %966 = vset.pattern.permute.xlu0 0
      %967 = vperm.xlu0 %966, %v953
      %v968 = vpop.permute.xlu0 %967
      %971 = vset.pattern.permute.xlu0 0
      %972 = vperm.xlu0 %971, %v954
      %v973 = vpop.permute.xlu0 %972
      %976 = vset.pattern.permute.xlu0 0
      %977 = vperm.xlu0 %976, %v955
      %v978 = vpop.permute.xlu0 %977
      %981 = vset.pattern.permute.xlu0 0
      %982 = vperm.xlu0 %981, %v956
      %v983 = vpop.permute.xlu0 %982
      %986 = vset.pattern.permute.xlu0 0
      %987 = vperm.xlu0 %986, %v957
      %v988 = vpop.permute.xlu0 %987
      %991 = vset.pattern.permute.xlu0 0
      %992 = vperm.xlu0 %991, %v958
      %v993 = vpop.permute.xlu0 %992
      %996 = vset.pattern.permute.xlu0 0
      %997 = vperm.xlu0 %996, %v959
      %v998 = vpop.permute.xlu0 %997
      %v1000 = vadd.f32 %v944, %v963
      %v1001 = vadd.f32 %v945, %v968
      %v1002 = vadd.f32 %v946, %v973
      %v1003 = vadd.f32 %v947, %v978
      %v1004 = vadd.f32 %v948, %v983
      %v1005 = vadd.f32 %v949, %v988
      %v1006 = vadd.f32 %v950, %v993
      %v1007 = vadd.f32 %v951, %v998
      %vm1008 = vcmp.gt.f32.partialorder %v1000, 0.0
      %vm1009 = vcmp.gt.f32.partialorder %v1001, 0.0
      %vm1010 = vcmp.gt.f32.partialorder %v1002, 0.0
      %vm1011 = vcmp.gt.f32.partialorder %v1003, 0.0
      %vm1012 = vcmp.gt.f32.partialorder %v1004, 0.0
      %vm1013 = vcmp.gt.f32.partialorder %v1005, 0.0
      %vm1014 = vcmp.gt.f32.partialorder %v1006, 0.0
      %vm1015 = vcmp.gt.f32.partialorder %v1007, 0.0
      %v1016 = vld [vmem:[%s4] sm:$0xff]
      %v1017 = vld [vmem:[%s4 + $0x8] sm:$0xff]
      %v1018 = vld [vmem:[%s4 + $0x10] sm:$0xff]
      %v1019 = vld [vmem:[%s4 + $0x18] sm:$0xff]
      %v1020 = vld [vmem:[%s4 + $0x20] sm:$0xff]
      %v1021 = vld [vmem:[%s4 + $0x28] sm:$0xff]
      %v1022 = vld [vmem:[%s4 + $0x30] sm:$0xff]
      %v1023 = vld [vmem:[%s4 + $0x38] sm:$0xff]
      %1025 = vset.pattern.permute.xlu0 0
      %1026 = vperm.xlu0 %1025, %v1016
      %v1027 = vpop.permute.xlu0 %1026
      %1030 = vset.pattern.permute.xlu0 0
      %1031 = vperm.xlu0 %1030, %v1017
      %v1032 = vpop.permute.xlu0 %1031
      %1035 = vset.pattern.permute.xlu0 0
      %1036 = vperm.xlu0 %1035, %v1018
      %v1037 = vpop.permute.xlu0 %1036
      %1040 = vset.pattern.permute.xlu0 0
      %1041 = vperm.xlu0 %1040, %v1019
      %v1042 = vpop.permute.xlu0 %1041
      %1045 = vset.pattern.permute.xlu0 0
      %1046 = vperm.xlu0 %1045, %v1020
      %v1047 = vpop.permute.xlu0 %1046
      %1050 = vset.pattern.permute.xlu0 0
      %1051 = vperm.xlu0 %1050, %v1021
      %v1052 = vpop.permute.xlu0 %1051
      %1055 = vset.pattern.permute.xlu0 0
      %1056 = vperm.xlu0 %1055, %v1022
      %v1057 = vpop.permute.xlu0 %1056
      %1060 = vset.pattern.permute.xlu0 0
      %1061 = vperm.xlu0 %1060, %v1023
      %v1062 = vpop.permute.xlu0 %1061
      %v1064 = vmul.f32 %v1027, %v1000
      %v1065 = vmul.f32 %v1032, %v1001
      %v1066 = vmul.f32 %v1037, %v1002
      %v1067 = vmul.f32 %v1042, %v1003
      %v1068 = vmul.f32 %v1047, %v1004
      %v1069 = vmul.f32 %v1052, %v1005
      %v1070 = vmul.f32 %v1057, %v1006
      %v1071 = vmul.f32 %v1062, %v1007
      %v1072 = vsel %vm1008, %v1000, %v1064
      %v1073 = vsel %vm1009, %v1001, %v1065
      %v1074 = vsel %vm1010, %v1002, %v1066
      %v1075 = vsel %vm1011, %v1003, %v1067
      %v1076 = vsel %vm1012, %v1004, %v1068
      %v1077 = vsel %vm1013, %v1005, %v1069
      %v1078 = vsel %vm1014, %v1006, %v1070
      %v1079 = vsel %vm1015, %v1007, %v1071
      %1080 = vst.msk [vmem:[%s251] sm:$0xff] %vm790, %v1072
      %1081 = vst.msk [vmem:[%s251 + $0x8] sm:$0xff] %vm790, %v1073
      %1082 = vst.msk [vmem:[%s251 + $0x10] sm:$0xff] %vm790, %v1074
      %1083 = vst.msk [vmem:[%s251 + $0x18] sm:$0xff] %vm790, %v1075
      %1084 = vst.msk [vmem:[%s251 + $0x20] sm:$0xff] %vm790, %v1076
      %1085 = vst.msk [vmem:[%s251 + $0x28] sm:$0xff] %vm790, %v1077
      %1086 = vst.msk [vmem:[%s251 + $0x30] sm:$0xff] %vm790, %v1078
      %1087 = vst.msk [vmem:[%s251 + $0x38] sm:$0xff] %vm790, %v1079
      %p1088 = scmp.lt.s32.totalorder %s17, 1
      %s1089 = scalar_select %p1088, %s17, 1
      %s1090 = smul.addr %s1089, 8
      %s1091 = smul.addr %s1090, 8
      %s1092 = scalar_lea.vmem %s6, %s1091
      // Predicated region
      $region45: #{encoder_forward.9} parent=43 // pred_check
        %p1093 = pneg %p166
      $region46: #{encoder_forward.9} parent=43 // pred_check_branch
        %1095 = sbr.rel (%p1093) target = $region48
      $region47: #{encoder_forward.9} parent=43 // pred_region
        _
      $region48: #{encoder_forward.9} parent=43 // pred_fallthru
        _
    $region44: #{encoder_forward.9} parent=5 // pred_fallthru
      _
    %p1096 = scmp.le.s32.totalorder 2, %s12
    // Predicated region
    $region49: #{encoder_forward.9} parent=5 // pred_check
      %p1097 = pneg %p1096
    $region50: #{encoder_forward.9} parent=5 // pred_check_branch
      %1099 = sbr.rel (%p1097) target = $region52
    $region51: #{encoder_forward.9} parent=5 // pred_region
      %s1100 = ssub.s32 %s12, 2
      // Predicated region
      $region53: #{encoder_forward.9} parent=51 // pred_check
        %p1101 = pneg %p172
      $region54: #{encoder_forward.9} parent=51 // pred_check_branch
        %1103 = sbr.rel (%p1101) target = $region56
      $region55: #{encoder_forward.9} parent=51 // pred_region
        %p1104 = scmp.lt.s32.totalorder %s18, 1
        %s1105 = scalar_select %p1104, %s18, 1
        %s1106 = smul.addr %s1105, 8
        %s1107 = smul.addr %s1106, 8
        %s1108 = scalar_lea.vmem %s6, %s1107
      $region56: #{encoder_forward.9} parent=51 // pred_fallthru
        _
    $region52: #{encoder_forward.9} parent=5 // pred_fallthru
      _
  $region6: #{encoder_forward.9} parent=0 // loop_footer
    %s16 = sadd.s32 1, %s12
  $region7: #{encoder_forward.9} parent=0 // loop_footer_branch
    %11 = sbr.rel target = $region3
  $region8: #{encoder_forward.9} parent=0 // loop_exit
    _

</llo_original>
